<compile_context>
chip_gen: v7x
topology: tpu7x:2x2x1
jax: 0.10.0
libtpu: 0.0.40
codegen_flags: <defaults>
</compile_context>

<pallas_src>
import functools

import jax
import jax.numpy as jnp
import numpy as np
from jax import lax
from jax.experimental import pallas as pl
from jax.experimental.pallas import tpu as pltpu


def _layer_norm(x, g, b, eps=1e-5):
    mu = jnp.mean(x, axis=-1, keepdims=True)
    var = jnp.mean((x - mu) ** 2, axis=-1, keepdims=True)
    return (x - mu) * lax.rsqrt(var + eps) * g + b


def _classifier_kernel(
    tok_ref, bias_ref, mask_ref, convw_ref, convb_ref,
    a_ln_g_ref, a_ln_b_ref, wqkv_ref, wout_ref, bout_ref,
    f_ln_g_ref, f_ln_b_ref, fW1_ref, fb1_ref, fW2_ref, fb2_ref,
    h_ln_g_ref, h_ln_b_ref, hW1_ref, hb1_ref, hW2_ref, hb2_ref, hW3_ref, hb3_ref,
    out_ref,
    *, depth, heads, dim_head, b_tile, n_pad,
):
    inner = heads * dim_head
    scale = dim_head ** -0.5
    M = b_tile * n_pad

    x = tok_ref[...]            # (M, dim) f32 residual stream (padded rows are exactly zero)
    bias = bias_ref[...]        # (M, M)  additive mask: 0 same-image real key, -1e30 otherwise
    mask = mask_ref[...]        # (M, 1)  1.0 for real token rows, 0.0 for padded rows

    for l in range(depth):
        # ---------- PreNorm(Attention) + residual ----------
        xn = _layer_norm(x, a_ln_g_ref[l], a_ln_b_ref[l])
        qkv = jnp.dot(xn.astype(jnp.bfloat16), wqkv_ref[l],
                      preferred_element_type=jnp.float32)          # (M, 3*inner) f32
        heads_out = []
        for h in range(heads):
            qh = qkv[:, h * dim_head:(h + 1) * dim_head]
            kh = qkv[:, inner + h * dim_head:inner + (h + 1) * dim_head]
            vh = qkv[:, 2 * inner + h * dim_head:2 * inner + (h + 1) * dim_head]
            dots = lax.dot_general(
                qh, kh, (((1,), (1,)), ((), ())),
                preferred_element_type=jnp.float32) * scale + bias  # (M, M)
            dots = dots - jnp.max(dots, axis=-1, keepdims=True)
            e = jnp.exp(dots)
            p_attn = e * pl.reciprocal(jnp.sum(e, axis=-1, keepdims=True), approx=True)
            heads_out.append(jnp.dot(p_attn, vh, preferred_element_type=jnp.float32))
        ho = jnp.concatenate(heads_out, axis=-1)                    # (M, inner)
        ao = jnp.dot(ho.astype(jnp.bfloat16), wout_ref[l],
                     preferred_element_type=jnp.float32) + bout_ref[l]
        x = x + ao * mask

        # ---------- ConBlock: token-axis (3,1) conv via XLU rolls + residual ----------
        # Padded rows stay zero, so rolled-in rows at image boundaries act as zero padding.
        cw = convw_ref[l]                                           # (3, 1, 1)
        x_prev = pltpu.roll(x, shift=1, axis=0)                     # x[i-1]
        x_next = pltpu.roll(x, shift=M - 1, axis=0)                 # x[i+1]
        conv = cw[0] * x_prev + cw[1] * x + cw[2] * x_next + convb_ref[l]
        x = x + conv * mask

        # ---------- PreNorm(FeedForward) + residual ----------
        xn = _layer_norm(x, f_ln_g_ref[l], f_ln_b_ref[l])
        hmid = jnp.dot(xn.astype(jnp.bfloat16), fW1_ref[l],
                       preferred_element_type=jnp.float32) + fb1_ref[l]
        hmid = jax.nn.gelu(hmid, approximate=True)
        ff = jnp.dot(hmid.astype(jnp.bfloat16), fW2_ref[l],
                     preferred_element_type=jnp.float32) + fb2_ref[l]
        x = x + ff * mask

    # ---------- pool = 'cls' + mlp_head (kept in f32; logits padded to 128 lanes) ----------
    cls_rows = [x[bt * n_pad:bt * n_pad + 1, :] for bt in range(b_tile)]
    cls_t = cls_rows[0] if b_tile == 1 else jnp.concatenate(cls_rows, axis=0)   # (b_tile, dim)
    cn = _layer_norm(cls_t, h_ln_g_ref[...], h_ln_b_ref[...])
    h1 = jnp.maximum(
        jnp.dot(cn, hW1_ref[...], preferred_element_type=jnp.float32) + hb1_ref[...], 0.0)
    h2 = jnp.maximum(
        jnp.dot(h1, hW2_ref[...], preferred_element_type=jnp.float32) + hb2_ref[...], 0.0)
    logits = jnp.dot(h2, hW3_ref[...], preferred_element_type=jnp.float32) + hb3_ref[...]
    out_ref[0] = logits  # (b_tile, 128)


def classifier_block_pallas(x_feat, P, *, depth, heads, dim_head, b_tile=None):
    b, c, p, _ = x_feat.shape
    dim = P['cls'].shape[-1]
    num_classes = P['hW3'].shape[-1]
    n_real = c + 1
    n_pad = ((n_real + 7) // 8) * 8          # sublane-aligned token count
    if b_tile is None:
        b_tile = min(b, 4)
    num_tiles = -(-b // b_tile)
    b_pad = num_tiles * b_tile
    M = b_tile * n_pad
    NC_PAD = 128                             # lane-dense logits

    # ---- XLA-side glue: patch embedding (K = p*p GEMM), cls prepend, token padding ----
    x3 = x_feat.reshape(b, c, p * p).astype(jnp.float32)
    emb = x3 @ P['peW'] + P['peB']                                   # (b, c, dim)
    cls = jnp.broadcast_to(P['cls'][None, :, :], (b, 1, dim))
    tokens = jnp.concatenate(
        [cls, emb, jnp.zeros((b, n_pad - n_real, dim), jnp.float32)], axis=1)
    if b_pad > b:
        tokens = jnp.concatenate(
            [tokens, jnp.zeros((b_pad - b, n_pad, dim), jnp.float32)], axis=0)
    tokens = tokens.reshape(b_pad * n_pad, dim)                      # (b_pad*n_pad, dim)

    # ---- static masks (identical for every grid step) ----
    rows = np.arange(M)
    rb = rows // n_pad                     # image index within the tile
    ct = rows % n_pad                      # token index within the image
    allowed = (rb[:, None] == rb[None, :]) & (ct[None, :] < n_real)
    attn_bias = jnp.asarray(np.where(allowed, 0.0, -1e30), dtype=jnp.float32)     # (M, M)
    row_mask = jnp.asarray((ct < n_real).astype(np.float32)).reshape(M, 1)        # (M, 1)

    bf = jnp.bfloat16
    conv_w = P['conv_w'].reshape(depth, 3, 1, 1).astype(jnp.float32)
    conv_b = P['conv_b'].reshape(depth, 1, 1).astype(jnp.float32)
    hW3p = jnp.zeros((dim, NC_PAD), jnp.float32).at[:, :num_classes].set(P['hW3'])
    hb3p = jnp.zeros((1, NC_PAD), jnp.float32).at[:, :num_classes].set(P['hb3'])

    args = [
        attn_bias, row_mask, conv_w, conv_b,
        P['a_ln_g'], P['a_ln_b'], P['wqkv'].astype(bf), P['wout'].astype(bf), P['bout'],
        P['f_ln_g'], P['f_ln_b'], P['fW1'].astype(bf), P['fb1'], P['fW2'].astype(bf), P['fb2'],
        P['h_ln_g'], P['h_ln_b'], P['hW1'], P['hb1'], P['hW2'], P['hb2'], hW3p, hb3p,
    ]

    def full_spec(a):
        zeros = (0,) * a.ndim
        return pl.BlockSpec(a.shape, lambda i: zeros)

    in_specs = [pl.BlockSpec((M, dim), lambda i: (i, 0))] + [full_spec(a) for a in args]

    kernel = functools.partial(_classifier_kernel, depth=depth, heads=heads,
                               dim_head=dim_head, b_tile=b_tile, n_pad=n_pad)
    out = pl.pallas_call(
        kernel,
        out_shape=jax.ShapeDtypeStruct((num_tiles, b_tile, NC_PAD), jnp.float32),
        grid_spec=pltpu.PrefetchScalarGridSpec(
            num_scalar_prefetch=0,
            grid=(num_tiles,),
            in_specs=in_specs,
            out_specs=pl.BlockSpec((1, b_tile, NC_PAD), lambda i: (i, 0, 0)),
        ),
        compiler_params=pltpu.CompilerParams(dimension_semantics=("parallel",)),
    )(tokens, *args)
    return out.reshape(b_pad, NC_PAD)[:b, :num_classes]


def classifier_block_ref(x_feat, P, *, depth, heads, dim_head):
    """Pure-JAX f32 reference mirroring the PyTorch forward (eval mode, dropout=0)."""
    b, c, p, _ = x_feat.shape
    dim = P['cls'].shape[-1]
    n = c + 1
    inner = heads * dim_head
    scale = dim_head ** -0.5

    x = x_feat.reshape(b, c, p * p).astype(jnp.float32) @ P['peW'] + P['peB']
    cls = jnp.broadcast_to(P['cls'][None, :, :], (b, 1, dim))
    x = jnp.concatenate([cls, x], axis=1)

    for l in range(depth):
        xn = _layer_norm(x, P['a_ln_g'][l], P['a_ln_b'][l])
        qkv = xn @ P['wqkv'][l]
        q, k, v = jnp.split(qkv, 3, axis=-1)

        def split_heads(t):
            return t.reshape(b, n, heads, dim_head).transpose(0, 2, 1, 3)

        qh, kh, vh = split_heads(q), split_heads(k), split_heads(v)
        dots = jnp.einsum('bhid,bhjd->bhij', qh, kh) * scale
        attn = jax.nn.softmax(dots, axis=-1)
        o = jnp.einsum('bhij,bhjd->bhid', attn, vh).transpose(0, 2, 1, 3).reshape(b, n, inner)
        x = o @ P['wout'][l] + P['bout'][l] + x

        # ConBlock: Conv2d(1,1,(3,1),padding=(1,0)) over the token axis
        xp = jnp.pad(x, ((0, 0), (1, 0), (0, 0)))[:, :-1]
        xnx = jnp.pad(x, ((0, 0), (0, 1), (0, 0)))[:, 1:]
        conv = (P['conv_w'][l, 0] * xp + P['conv_w'][l, 1] * x +
                P['conv_w'][l, 2] * xnx + P['conv_b'][l])
        x = conv + x

        xn2 = _layer_norm(x, P['f_ln_g'][l], P['f_ln_b'][l])
        hmid = jax.nn.gelu(xn2 @ P['fW1'][l] + P['fb1'][l], approximate=True)
        x = hmid @ P['fW2'][l] + P['fb2'][l] + x

    cls_t = x[:, 0]
    cn = _layer_norm(cls_t, P['h_ln_g'], P['h_ln_b'])
    h1 = jnp.maximum(cn @ P['hW1'] + P['hb1'], 0.0)
    h2 = jnp.maximum(h1 @ P['hW2'] + P['hb2'], 0.0)
    return h2 @ P['hW3'] + P['hb3']


def init_params(key, *, channels, patch_size, dim, depth, heads, dim_head, mlp_dim, num_classes):
    psq = patch_size * patch_size
    inner = heads * dim_head
    ki = iter(jax.random.split(key, 32))

    def nrm(shape, s):
        return jax.random.normal(next(ki), shape, dtype=jnp.float32) * s

    P = {}
    P['cls'] = nrm((1, dim), 1.0)                          # nn.Parameter(torch.randn(1,1,dim))
    P['peW'] = nrm((psq, dim), psq ** -0.5)
    P['peB'] = nrm((1, dim), 0.1)

    P['a_ln_g'] = jnp.ones((depth, 1, dim), jnp.float32)
    P['a_ln_b'] = jnp.zeros((depth, 1, dim), jnp.float32)
    P['wqkv'] = nrm((depth, dim, 3 * inner), dim ** -0.5)  # to_qkv (bias=False)
    P['wout'] = nrm((depth, inner, dim), inner ** -0.5)
    P['bout'] = nrm((depth, 1, dim), 0.1)

    # ConBlock: Conv2d(1,1,(3,1),padding=(1,0)) weights [w(i-1), w(i), w(i+1)] + scalar bias
    P['conv_w'] = nrm((depth, 3), 0.5)
    P['conv_b'] = nrm((depth,), 0.1)

    P['f_ln_g'] = jnp.ones((depth, 1, dim), jnp.float32)
    P['f_ln_b'] = jnp.zeros((depth, 1, dim), jnp.float32)
    P['fW1'] = nrm((depth, dim, mlp_dim), dim ** -0.5)
    P['fb1'] = nrm((depth, 1, mlp_dim), 0.1)
    P['fW2'] = nrm((depth, mlp_dim, dim), mlp_dim ** -0.5)
    P['fb2'] = nrm((depth, 1, dim), 0.1)

    P['h_ln_g'] = jnp.ones((1, dim), jnp.float32)
    P['h_ln_b'] = jnp.zeros((1, dim), jnp.float32)
    P['hW1'] = nrm((dim, 224), dim ** -0.5)
    P['hb1'] = nrm((1, 224), 0.1)
    P['hW2'] = nrm((224, dim), 224 ** -0.5)
    P['hb2'] = nrm((1, dim), 0.1)
    P['hW3'] = nrm((dim, num_classes), dim ** -0.5)
    P['hb3'] = nrm((1, num_classes), 0.1)
    return P


if __name__ == "__main__":
    # myCCViT config: scale=0.5 -> backbone output channels = chnl_sets[0.5][-1] = 64;
    # image_size=32 -> classifierBlock patch_size = image_size // 16 = 2.
    image_size = 32
    in_ch = 64
    patch_size = image_size // 16
    num_classes = 10
    dim = 32
    depth_tr = 2
    heads = 4
    mlp_dim = 16          # classifierBlock passes mlp_dim as Attention's dim_head too
    batch = 2

    key = jax.random.PRNGKey(0)
    kx, kp = jax.random.split(key)
    # backbone feature map (input to the classifierBlock / Pallas kernel)
    x_feat = jax.random.normal(kx, (batch, in_ch, patch_size, patch_size), dtype=jnp.float32)

    params = init_params(kp, channels=in_ch, patch_size=patch_size, dim=dim,
                         depth=depth_tr, heads=heads, dim_head=mlp_dim,
                         mlp_dim=mlp_dim, num_classes=num_classes)

    out = classifier_block_pallas(x_feat, params, depth=depth_tr, heads=heads, dim_head=mlp_dim)
    out = jax.block_until_ready(out)

    ref = classifier_block_ref(x_feat, params, depth=depth_tr, heads=heads, dim_head=mlp_dim)
    ref = jax.block_until_ready(ref)

    assert out.shape == (batch, num_classes)
    np.testing.assert_allclose(np.asarray(out), np.asarray(ref), rtol=5e-2, atol=5e-2)
    print("KERNEL_OK")
</pallas_src>

<mosaic_0001>
module attributes {stable_mosaic.version = 11 : i64} {
  func.func @_classifier_kernel(%arg0: i32, %arg1: memref<144x32xf32, #tpu.memory_space<vmem>>, %arg2: memref<144x144xf32, #tpu.memory_space<vmem>>, %arg3: memref<144x1xf32, #tpu.memory_space<vmem>>, %arg4: memref<2x3x1x1xf32, #tpu.memory_space<vmem>>, %arg5: memref<2x1x1xf32, #tpu.memory_space<vmem>>, %arg6: memref<2x1x32xf32, #tpu.memory_space<vmem>>, %arg7: memref<2x1x32xf32, #tpu.memory_space<vmem>>, %arg8: memref<2x32x192xbf16, #tpu.memory_space<vmem>>, %arg9: memref<2x64x32xbf16, #tpu.memory_space<vmem>>, %arg10: memref<2x1x32xf32, #tpu.memory_space<vmem>>, %arg11: memref<2x1x32xf32, #tpu.memory_space<vmem>>, %arg12: memref<2x1x32xf32, #tpu.memory_space<vmem>>, %arg13: memref<2x32x16xbf16, #tpu.memory_space<vmem>>, %arg14: memref<2x1x16xf32, #tpu.memory_space<vmem>>, %arg15: memref<2x16x32xbf16, #tpu.memory_space<vmem>>, %arg16: memref<2x1x32xf32, #tpu.memory_space<vmem>>, %arg17: memref<1x32xf32, #tpu.memory_space<vmem>>, %arg18: memref<1x32xf32, #tpu.memory_space<vmem>>, %arg19: memref<32x224xf32, #tpu.memory_space<vmem>>, %arg20: memref<1x224xf32, #tpu.memory_space<vmem>>, %arg21: memref<224x32xf32, #tpu.memory_space<vmem>>, %arg22: memref<1x32xf32, #tpu.memory_space<vmem>>, %arg23: memref<32x128xf32, #tpu.memory_space<vmem>>, %arg24: memref<1x128xf32, #tpu.memory_space<vmem>>, %arg25: memref<1x2x128xf32, #tpu.memory_space<vmem>>) attributes {dimension_semantics = [#tpu.dimension_semantics<parallel>], iteration_bounds = array<i64: 1>, scalar_prefetch = 0 : i64, scratch_operands = 0 : i64, tpu.core_type = #tpu.core_type<tc>, window_params = [{transform_indices = @transform_0, window_bounds = array<i64: 144, 32>}, {pipeline_mode = #tpu.pipeline_mode<synchronous>, transform_indices = @transform_1, window_bounds = array<i64: 144, 144>}, {pipeline_mode = #tpu.pipeline_mode<synchronous>, transform_indices = @transform_2, window_bounds = array<i64: 144, 1>}, {pipeline_mode = #tpu.pipeline_mode<synchronous>, transform_indices = @transform_3, window_bounds = array<i64: 2, 3, 1, 1>}, {pipeline_mode = #tpu.pipeline_mode<synchronous>, transform_indices = @transform_4, window_bounds = array<i64: 2, 1, 1>}, {pipeline_mode = #tpu.pipeline_mode<synchronous>, transform_indices = @transform_5, window_bounds = array<i64: 2, 1, 32>}, {pipeline_mode = #tpu.pipeline_mode<synchronous>, transform_indices = @transform_6, window_bounds = array<i64: 2, 1, 32>}, {pipeline_mode = #tpu.pipeline_mode<synchronous>, transform_indices = @transform_7, window_bounds = array<i64: 2, 32, 192>}, {pipeline_mode = #tpu.pipeline_mode<synchronous>, transform_indices = @transform_8, window_bounds = array<i64: 2, 64, 32>}, {pipeline_mode = #tpu.pipeline_mode<synchronous>, transform_indices = @transform_9, window_bounds = array<i64: 2, 1, 32>}, {pipeline_mode = #tpu.pipeline_mode<synchronous>, transform_indices = @transform_10, window_bounds = array<i64: 2, 1, 32>}, {pipeline_mode = #tpu.pipeline_mode<synchronous>, transform_indices = @transform_11, window_bounds = array<i64: 2, 1, 32>}, {pipeline_mode = #tpu.pipeline_mode<synchronous>, transform_indices = @transform_12, window_bounds = array<i64: 2, 32, 16>}, {pipeline_mode = #tpu.pipeline_mode<synchronous>, transform_indices = @transform_13, window_bounds = array<i64: 2, 1, 16>}, {pipeline_mode = #tpu.pipeline_mode<synchronous>, transform_indices = @transform_14, window_bounds = array<i64: 2, 16, 32>}, {pipeline_mode = #tpu.pipeline_mode<synchronous>, transform_indices = @transform_15, window_bounds = array<i64: 2, 1, 32>}, {pipeline_mode = #tpu.pipeline_mode<synchronous>, transform_indices = @transform_16, window_bounds = array<i64: 1, 32>}, {pipeline_mode = #tpu.pipeline_mode<synchronous>, transform_indices = @transform_17, window_bounds = array<i64: 1, 32>}, {pipeline_mode = #tpu.pipeline_mode<synchronous>, transform_indices = @transform_18, window_bounds = array<i64: 32, 224>}, {pipeline_mode = #tpu.pipeline_mode<synchronous>, transform_indices = @transform_19, window_bounds = array<i64: 1, 224>}, {pipeline_mode = #tpu.pipeline_mode<synchronous>, transform_indices = @transform_20, window_bounds = array<i64: 224, 32>}, {pipeline_mode = #tpu.pipeline_mode<synchronous>, transform_indices = @transform_21, window_bounds = array<i64: 1, 32>}, {pipeline_mode = #tpu.pipeline_mode<synchronous>, transform_indices = @transform_22, window_bounds = array<i64: 32, 128>}, {pipeline_mode = #tpu.pipeline_mode<synchronous>, transform_indices = @transform_23, window_bounds = array<i64: 1, 128>}, {transform_indices = @transform_24, window_bounds = array<i64: 1, 2, 128>}]} {
    %c0 = arith.constant 0 : index
    %c0_0 = arith.constant 0 : index
    %0 = vector.load %arg1[%c0, %c0_0] : memref<144x32xf32, #tpu.memory_space<vmem>>, vector<144x32xf32>
    %c0_1 = arith.constant 0 : index
    %c0_2 = arith.constant 0 : index
    %1 = vector.load %arg2[%c0_1, %c0_2] : memref<144x144xf32, #tpu.memory_space<vmem>>, vector<144x144xf32>
    %c0_3 = arith.constant 0 : index
    %c0_4 = arith.constant 0 : index
    %2 = vector.load %arg3[%c0_3, %c0_4] : memref<144x1xf32, #tpu.memory_space<vmem>>, vector<144x1xf32>
    %c0_5 = arith.constant 0 : index
    %c0_6 = arith.constant 0 : index
    %c0_7 = arith.constant 0 : index
    %3 = vector.load %arg6[%c0_5, %c0_6, %c0_7] : memref<2x1x32xf32, #tpu.memory_space<vmem>>, vector<1x1x32xf32>
    %4 = vector.shape_cast %3 : vector<1x1x32xf32> to vector<1x32xf32>
    %c0_8 = arith.constant 0 : index
    %c0_9 = arith.constant 0 : index
    %c0_10 = arith.constant 0 : index
    %5 = vector.load %arg7[%c0_8, %c0_9, %c0_10] : memref<2x1x32xf32, #tpu.memory_space<vmem>>, vector<1x1x32xf32>
    %6 = vector.shape_cast %5 : vector<1x1x32xf32> to vector<1x32xf32>
    %cst = arith.constant dense<0.000000e+00> : vector<144xf32>
    %7 = vector.multi_reduction <add>, %0, %cst [1] : vector<144x32xf32> to vector<144xf32>
    %8 = vector.shape_cast %7 : vector<144xf32> to vector<144x1xf32>
    %cst_11 = arith.constant 3.200000e+01 : f32
    %9 = vector.broadcast %cst_11 : f32 to vector<144x1xf32>
    %10 = arith.divf %8, %9 : vector<144x1xf32>
    %11 = vector.broadcast %10 : vector<144x1xf32> to vector<144x32xf32>
    %12 = arith.subf %0, %11 : vector<144x32xf32>
    %13 = arith.mulf %12, %12 : vector<144x32xf32>
    %cst_12 = arith.constant dense<0.000000e+00> : vector<144xf32>
    %14 = vector.multi_reduction <add>, %13, %cst_12 [1] : vector<144x32xf32> to vector<144xf32>
    %15 = vector.shape_cast %14 : vector<144xf32> to vector<144x1xf32>
    %cst_13 = arith.constant 3.200000e+01 : f32
    %16 = vector.broadcast %cst_13 : f32 to vector<144x1xf32>
    %17 = arith.divf %15, %16 : vector<144x1xf32>
    %18 = vector.broadcast %10 : vector<144x1xf32> to vector<144x32xf32>
    %19 = arith.subf %0, %18 : vector<144x32xf32>
    %cst_14 = arith.constant 9.99999974E-6 : f32
    %20 = vector.broadcast %cst_14 : f32 to vector<144x1xf32>
    %21 = arith.addf %17, %20 : vector<144x1xf32>
    %22 = math.rsqrt %21 : vector<144x1xf32>
    %23 = vector.broadcast %22 : vector<144x1xf32> to vector<144x32xf32>
    %24 = arith.mulf %19, %23 : vector<144x32xf32>
    %25 = vector.broadcast %4 : vector<1x32xf32> to vector<144x32xf32>
    %26 = arith.mulf %24, %25 : vector<144x32xf32>
    %27 = vector.broadcast %6 : vector<1x32xf32> to vector<144x32xf32>
    %28 = arith.addf %26, %27 : vector<144x32xf32>
    %29 = arith.truncf %28 : vector<144x32xf32> to vector<144x32xbf16>
    %c0_15 = arith.constant 0 : index
    %c0_16 = arith.constant 0 : index
    %c0_17 = arith.constant 0 : index
    %30 = vector.load %arg8[%c0_15, %c0_16, %c0_17] : memref<2x32x192xbf16, #tpu.memory_space<vmem>>, vector<1x32x192xbf16>
    %31 = vector.shape_cast %30 : vector<1x32x192xbf16> to vector<32x192xbf16>
    %cst_18 = arith.constant dense<0.000000e+00> : vector<144x192xf32>
    %32 = tpu.matmul %29, %31, %cst_18 {dimension_numbers = #tpu.dot_dimension_numbers<[1], [0], [0], [1], [0, 0, 1, 1], [], []>} : vector<144x32xbf16>, vector<32x192xbf16>, vector<144x192xf32> -> vector<144x192xf32>
    %33 = vector.extract_strided_slice %32 {offsets = [0, 0], sizes = [144, 16], strides = [1, 1]} : vector<144x192xf32> to vector<144x16xf32>
    %34 = vector.extract_strided_slice %32 {offsets = [0, 64], sizes = [144, 16], strides = [1, 1]} : vector<144x192xf32> to vector<144x16xf32>
    %35 = vector.extract_strided_slice %32 {offsets = [0, 128], sizes = [144, 16], strides = [1, 1]} : vector<144x192xf32> to vector<144x16xf32>
    %cst_19 = arith.constant dense<0.000000e+00> : vector<144x144xf32>
    %36 = tpu.matmul %33, %34, %cst_19 {dimension_numbers = #tpu.dot_dimension_numbers<[1], [1], [0], [0], [0, 0, 1, 0], [], []>} : vector<144x16xf32>, vector<144x16xf32>, vector<144x144xf32> -> vector<144x144xf32>
    %cst_20 = arith.constant 2.500000e-01 : f32
    %37 = vector.broadcast %cst_20 : f32 to vector<144x144xf32>
    %38 = arith.mulf %36, %37 : vector<144x144xf32>
    %39 = arith.addf %38, %1 : vector<144x144xf32>
    %cst_21 = arith.constant dense<0xFF800000> : vector<144xf32>
    %40 = vector.multi_reduction <maximumf>, %39, %cst_21 [1] : vector<144x144xf32> to vector<144xf32>
    %41 = vector.shape_cast %40 : vector<144xf32> to vector<144x1xf32>
    %42 = vector.broadcast %41 : vector<144x1xf32> to vector<144x144xf32>
    %43 = arith.subf %39, %42 : vector<144x144xf32>
    %44 = math.exp %43 : vector<144x144xf32>
    %cst_22 = arith.constant dense<0.000000e+00> : vector<144xf32>
    %45 = vector.multi_reduction <add>, %44, %cst_22 [1] : vector<144x144xf32> to vector<144xf32>
    %46 = vector.shape_cast %45 : vector<144xf32> to vector<144x1xf32>
    %47 = tpu.reciprocal %46 {approx = true} : vector<144x1xf32> -> vector<144x1xf32>
    %48 = vector.broadcast %47 : vector<144x1xf32> to vector<144x144xf32>
    %49 = arith.mulf %44, %48 : vector<144x144xf32>
    %cst_23 = arith.constant dense<0.000000e+00> : vector<144x16xf32>
    %50 = tpu.matmul %49, %35, %cst_23 {dimension_numbers = #tpu.dot_dimension_numbers<[1], [0], [0], [1], [0, 0, 1, 1], [], []>} : vector<144x144xf32>, vector<144x16xf32>, vector<144x16xf32> -> vector<144x16xf32>
    %51 = vector.extract_strided_slice %32 {offsets = [0, 16], sizes = [144, 16], strides = [1, 1]} : vector<144x192xf32> to vector<144x16xf32>
    %52 = vector.extract_strided_slice %32 {offsets = [0, 80], sizes = [144, 16], strides = [1, 1]} : vector<144x192xf32> to vector<144x16xf32>
    %53 = vector.extract_strided_slice %32 {offsets = [0, 144], sizes = [144, 16], strides = [1, 1]} : vector<144x192xf32> to vector<144x16xf32>
    %cst_24 = arith.constant dense<0.000000e+00> : vector<144x144xf32>
    %54 = tpu.matmul %51, %52, %cst_24 {dimension_numbers = #tpu.dot_dimension_numbers<[1], [1], [0], [0], [0, 0, 1, 0], [], []>} : vector<144x16xf32>, vector<144x16xf32>, vector<144x144xf32> -> vector<144x144xf32>
    %cst_25 = arith.constant 2.500000e-01 : f32
    %55 = vector.broadcast %cst_25 : f32 to vector<144x144xf32>
    %56 = arith.mulf %54, %55 : vector<144x144xf32>
    %57 = arith.addf %56, %1 : vector<144x144xf32>
    %cst_26 = arith.constant dense<0xFF800000> : vector<144xf32>
    %58 = vector.multi_reduction <maximumf>, %57, %cst_26 [1] : vector<144x144xf32> to vector<144xf32>
    %59 = vector.shape_cast %58 : vector<144xf32> to vector<144x1xf32>
    %60 = vector.broadcast %59 : vector<144x1xf32> to vector<144x144xf32>
    %61 = arith.subf %57, %60 : vector<144x144xf32>
    %62 = math.exp %61 : vector<144x144xf32>
    %cst_27 = arith.constant dense<0.000000e+00> : vector<144xf32>
    %63 = vector.multi_reduction <add>, %62, %cst_27 [1] : vector<144x144xf32> to vector<144xf32>
    %64 = vector.shape_cast %63 : vector<144xf32> to vector<144x1xf32>
    %65 = tpu.reciprocal %64 {approx = true} : vector<144x1xf32> -> vector<144x1xf32>
    %66 = vector.broadcast %65 : vector<144x1xf32> to vector<144x144xf32>
    %67 = arith.mulf %62, %66 : vector<144x144xf32>
    %cst_28 = arith.constant dense<0.000000e+00> : vector<144x16xf32>
    %68 = tpu.matmul %67, %53, %cst_28 {dimension_numbers = #tpu.dot_dimension_numbers<[1], [0], [0], [1], [0, 0, 1, 1], [], []>} : vector<144x144xf32>, vector<144x16xf32>, vector<144x16xf32> -> vector<144x16xf32>
    %69 = vector.extract_strided_slice %32 {offsets = [0, 32], sizes = [144, 16], strides = [1, 1]} : vector<144x192xf32> to vector<144x16xf32>
    %70 = vector.extract_strided_slice %32 {offsets = [0, 96], sizes = [144, 16], strides = [1, 1]} : vector<144x192xf32> to vector<144x16xf32>
    %71 = vector.extract_strided_slice %32 {offsets = [0, 160], sizes = [144, 16], strides = [1, 1]} : vector<144x192xf32> to vector<144x16xf32>
    %cst_29 = arith.constant dense<0.000000e+00> : vector<144x144xf32>
    %72 = tpu.matmul %69, %70, %cst_29 {dimension_numbers = #tpu.dot_dimension_numbers<[1], [1], [0], [0], [0, 0, 1, 0], [], []>} : vector<144x16xf32>, vector<144x16xf32>, vector<144x144xf32> -> vector<144x144xf32>
    %cst_30 = arith.constant 2.500000e-01 : f32
    %73 = vector.broadcast %cst_30 : f32 to vector<144x144xf32>
    %74 = arith.mulf %72, %73 : vector<144x144xf32>
    %75 = arith.addf %74, %1 : vector<144x144xf32>
    %cst_31 = arith.constant dense<0xFF800000> : vector<144xf32>
    %76 = vector.multi_reduction <maximumf>, %75, %cst_31 [1] : vector<144x144xf32> to vector<144xf32>
    %77 = vector.shape_cast %76 : vector<144xf32> to vector<144x1xf32>
    %78 = vector.broadcast %77 : vector<144x1xf32> to vector<144x144xf32>
    %79 = arith.subf %75, %78 : vector<144x144xf32>
    %80 = math.exp %79 : vector<144x144xf32>
    %cst_32 = arith.constant dense<0.000000e+00> : vector<144xf32>
    %81 = vector.multi_reduction <add>, %80, %cst_32 [1] : vector<144x144xf32> to vector<144xf32>
    %82 = vector.shape_cast %81 : vector<144xf32> to vector<144x1xf32>
    %83 = tpu.reciprocal %82 {approx = true} : vector<144x1xf32> -> vector<144x1xf32>
    %84 = vector.broadcast %83 : vector<144x1xf32> to vector<144x144xf32>
    %85 = arith.mulf %80, %84 : vector<144x144xf32>
    %cst_33 = arith.constant dense<0.000000e+00> : vector<144x16xf32>
    %86 = tpu.matmul %85, %71, %cst_33 {dimension_numbers = #tpu.dot_dimension_numbers<[1], [0], [0], [1], [0, 0, 1, 1], [], []>} : vector<144x144xf32>, vector<144x16xf32>, vector<144x16xf32> -> vector<144x16xf32>
    %87 = vector.extract_strided_slice %32 {offsets = [0, 48], sizes = [144, 16], strides = [1, 1]} : vector<144x192xf32> to vector<144x16xf32>
    %88 = vector.extract_strided_slice %32 {offsets = [0, 112], sizes = [144, 16], strides = [1, 1]} : vector<144x192xf32> to vector<144x16xf32>
    %89 = vector.extract_strided_slice %32 {offsets = [0, 176], sizes = [144, 16], strides = [1, 1]} : vector<144x192xf32> to vector<144x16xf32>
    %cst_34 = arith.constant dense<0.000000e+00> : vector<144x144xf32>
    %90 = tpu.matmul %87, %88, %cst_34 {dimension_numbers = #tpu.dot_dimension_numbers<[1], [1], [0], [0], [0, 0, 1, 0], [], []>} : vector<144x16xf32>, vector<144x16xf32>, vector<144x144xf32> -> vector<144x144xf32>
    %cst_35 = arith.constant 2.500000e-01 : f32
    %91 = vector.broadcast %cst_35 : f32 to vector<144x144xf32>
    %92 = arith.mulf %90, %91 : vector<144x144xf32>
    %93 = arith.addf %92, %1 : vector<144x144xf32>
    %cst_36 = arith.constant dense<0xFF800000> : vector<144xf32>
    %94 = vector.multi_reduction <maximumf>, %93, %cst_36 [1] : vector<144x144xf32> to vector<144xf32>
    %95 = vector.shape_cast %94 : vector<144xf32> to vector<144x1xf32>
    %96 = vector.broadcast %95 : vector<144x1xf32> to vector<144x144xf32>
    %97 = arith.subf %93, %96 : vector<144x144xf32>
    %98 = math.exp %97 : vector<144x144xf32>
    %cst_37 = arith.constant dense<0.000000e+00> : vector<144xf32>
    %99 = vector.multi_reduction <add>, %98, %cst_37 [1] : vector<144x144xf32> to vector<144xf32>
    %100 = vector.shape_cast %99 : vector<144xf32> to vector<144x1xf32>
    %101 = tpu.reciprocal %100 {approx = true} : vector<144x1xf32> -> vector<144x1xf32>
    %102 = vector.broadcast %101 : vector<144x1xf32> to vector<144x144xf32>
    %103 = arith.mulf %98, %102 : vector<144x144xf32>
    %cst_38 = arith.constant dense<0.000000e+00> : vector<144x16xf32>
    %104 = tpu.matmul %103, %89, %cst_38 {dimension_numbers = #tpu.dot_dimension_numbers<[1], [0], [0], [1], [0, 0, 1, 1], [], []>} : vector<144x144xf32>, vector<144x16xf32>, vector<144x16xf32> -> vector<144x16xf32>
    %105 = tpu.concatenate %50, %68, %86, %104 in 1 : vector<144x16xf32>, vector<144x16xf32>, vector<144x16xf32>, vector<144x16xf32> -> vector<144x64xf32>
    %106 = arith.truncf %105 : vector<144x64xf32> to vector<144x64xbf16>
    %c0_39 = arith.constant 0 : index
    %c0_40 = arith.constant 0 : index
    %c0_41 = arith.constant 0 : index
    %107 = vector.load %arg9[%c0_39, %c0_40, %c0_41] : memref<2x64x32xbf16, #tpu.memory_space<vmem>>, vector<1x64x32xbf16>
    %108 = vector.shape_cast %107 : vector<1x64x32xbf16> to vector<64x32xbf16>
    %cst_42 = arith.constant dense<0.000000e+00> : vector<144x32xf32>
    %109 = tpu.matmul %106, %108, %cst_42 {dimension_numbers = #tpu.dot_dimension_numbers<[1], [0], [0], [1], [0, 0, 1, 1], [], []>} : vector<144x64xbf16>, vector<64x32xbf16>, vector<144x32xf32> -> vector<144x32xf32>
    %c0_43 = arith.constant 0 : index
    %c0_44 = arith.constant 0 : index
    %c0_45 = arith.constant 0 : index
    %110 = vector.load %arg10[%c0_43, %c0_44, %c0_45] : memref<2x1x32xf32, #tpu.memory_space<vmem>>, vector<1x1x32xf32>
    %111 = vector.shape_cast %110 : vector<1x1x32xf32> to vector<1x32xf32>
    %112 = vector.broadcast %111 : vector<1x32xf32> to vector<144x32xf32>
    %113 = arith.addf %109, %112 : vector<144x32xf32>
    %114 = vector.broadcast %2 : vector<144x1xf32> to vector<144x32xf32>
    %115 = arith.mulf %113, %114 : vector<144x32xf32>
    %116 = arith.addf %0, %115 : vector<144x32xf32>
    %c0_46 = arith.constant 0 : index
    %c0_47 = arith.constant 0 : index
    %c0_48 = arith.constant 0 : index
    %c0_49 = arith.constant 0 : index
    %117 = vector.load %arg4[%c0_46, %c0_47, %c0_48, %c0_49] : memref<2x3x1x1xf32, #tpu.memory_space<vmem>>, vector<1x3x1x1xf32>
    %118 = vector.shape_cast %117 : vector<1x3x1x1xf32> to vector<3x1x1xf32>
    %c1_i32 = arith.constant 1 : i32
    %119 = tpu.dynamic_rotate %116 by %c1_i32 dim 0 : vector<144x32xf32>, i32 -> vector<144x32xf32>
    %c143_i32 = arith.constant 143 : i32
    %120 = tpu.dynamic_rotate %116 by %c143_i32 dim 0 : vector<144x32xf32>, i32 -> vector<144x32xf32>
    %121 = vector.extract_strided_slice %118 {offsets = [0, 0, 0], sizes = [1, 1, 1], strides = [1, 1, 1]} : vector<3x1x1xf32> to vector<1x1x1xf32>
    %122 = vector.shape_cast %121 : vector<1x1x1xf32> to vector<1x1xf32>
    %123 = vector.broadcast %122 : vector<1x1xf32> to vector<144x32xf32>
    %124 = arith.mulf %123, %119 : vector<144x32xf32>
    %125 = vector.extract_strided_slice %118 {offsets = [1, 0, 0], sizes = [1, 1, 1], strides = [1, 1, 1]} : vector<3x1x1xf32> to vector<1x1x1xf32>
    %126 = vector.shape_cast %125 : vector<1x1x1xf32> to vector<1x1xf32>
    %127 = vector.broadcast %126 : vector<1x1xf32> to vector<144x32xf32>
    %128 = arith.mulf %127, %116 : vector<144x32xf32>
    %129 = arith.addf %124, %128 : vector<144x32xf32>
    %130 = vector.extract_strided_slice %118 {offsets = [2, 0, 0], sizes = [1, 1, 1], strides = [1, 1, 1]} : vector<3x1x1xf32> to vector<1x1x1xf32>
    %131 = vector.shape_cast %130 : vector<1x1x1xf32> to vector<1x1xf32>
    %132 = vector.broadcast %131 : vector<1x1xf32> to vector<144x32xf32>
    %133 = arith.mulf %132, %120 : vector<144x32xf32>
    %134 = arith.addf %129, %133 : vector<144x32xf32>
    %c0_50 = arith.constant 0 : index
    %c0_51 = arith.constant 0 : index
    %c0_52 = arith.constant 0 : index
    %135 = vector.load %arg5[%c0_50, %c0_51, %c0_52] : memref<2x1x1xf32, #tpu.memory_space<vmem>>, vector<1x1x1xf32>
    %136 = vector.shape_cast %135 : vector<1x1x1xf32> to vector<1x1xf32>
    %137 = vector.broadcast %136 : vector<1x1xf32> to vector<144x32xf32>
    %138 = arith.addf %134, %137 : vector<144x32xf32>
    %139 = vector.broadcast %2 : vector<144x1xf32> to vector<144x32xf32>
    %140 = arith.mulf %138, %139 : vector<144x32xf32>
    %141 = arith.addf %116, %140 : vector<144x32xf32>
    %c0_53 = arith.constant 0 : index
    %c0_54 = arith.constant 0 : index
    %c0_55 = arith.constant 0 : index
    %142 = vector.load %arg11[%c0_53, %c0_54, %c0_55] : memref<2x1x32xf32, #tpu.memory_space<vmem>>, vector<1x1x32xf32>
    %143 = vector.shape_cast %142 : vector<1x1x32xf32> to vector<1x32xf32>
    %c0_56 = arith.constant 0 : index
    %c0_57 = arith.constant 0 : index
    %c0_58 = arith.constant 0 : index
    %144 = vector.load %arg12[%c0_56, %c0_57, %c0_58] : memref<2x1x32xf32, #tpu.memory_space<vmem>>, vector<1x1x32xf32>
    %145 = vector.shape_cast %144 : vector<1x1x32xf32> to vector<1x32xf32>
    %cst_59 = arith.constant dense<0.000000e+00> : vector<144xf32>
    %146 = vector.multi_reduction <add>, %141, %cst_59 [1] : vector<144x32xf32> to vector<144xf32>
    %147 = vector.shape_cast %146 : vector<144xf32> to vector<144x1xf32>
    %cst_60 = arith.constant 3.200000e+01 : f32
    %148 = vector.broadcast %cst_60 : f32 to vector<144x1xf32>
    %149 = arith.divf %147, %148 : vector<144x1xf32>
    %150 = vector.broadcast %149 : vector<144x1xf32> to vector<144x32xf32>
    %151 = arith.subf %141, %150 : vector<144x32xf32>
    %152 = arith.mulf %151, %151 : vector<144x32xf32>
    %cst_61 = arith.constant dense<0.000000e+00> : vector<144xf32>
    %153 = vector.multi_reduction <add>, %152, %cst_61 [1] : vector<144x32xf32> to vector<144xf32>
    %154 = vector.shape_cast %153 : vector<144xf32> to vector<144x1xf32>
    %cst_62 = arith.constant 3.200000e+01 : f32
    %155 = vector.broadcast %cst_62 : f32 to vector<144x1xf32>
    %156 = arith.divf %154, %155 : vector<144x1xf32>
    %157 = vector.broadcast %149 : vector<144x1xf32> to vector<144x32xf32>
    %158 = arith.subf %141, %157 : vector<144x32xf32>
    %cst_63 = arith.constant 9.99999974E-6 : f32
    %159 = vector.broadcast %cst_63 : f32 to vector<144x1xf32>
    %160 = arith.addf %156, %159 : vector<144x1xf32>
    %161 = math.rsqrt %160 : vector<144x1xf32>
    %162 = vector.broadcast %161 : vector<144x1xf32> to vector<144x32xf32>
    %163 = arith.mulf %158, %162 : vector<144x32xf32>
    %164 = vector.broadcast %143 : vector<1x32xf32> to vector<144x32xf32>
    %165 = arith.mulf %163, %164 : vector<144x32xf32>
    %166 = vector.broadcast %145 : vector<1x32xf32> to vector<144x32xf32>
    %167 = arith.addf %165, %166 : vector<144x32xf32>
    %168 = arith.truncf %167 : vector<144x32xf32> to vector<144x32xbf16>
    %c0_64 = arith.constant 0 : index
    %c0_65 = arith.constant 0 : index
    %c0_66 = arith.constant 0 : index
    %169 = vector.load %arg13[%c0_64, %c0_65, %c0_66] : memref<2x32x16xbf16, #tpu.memory_space<vmem>>, vector<1x32x16xbf16>
    %170 = vector.shape_cast %169 : vector<1x32x16xbf16> to vector<32x16xbf16>
    %cst_67 = arith.constant dense<0.000000e+00> : vector<144x16xf32>
    %171 = tpu.matmul %168, %170, %cst_67 {dimension_numbers = #tpu.dot_dimension_numbers<[1], [0], [0], [1], [0, 0, 1, 1], [], []>} : vector<144x32xbf16>, vector<32x16xbf16>, vector<144x16xf32> -> vector<144x16xf32>
    %c0_68 = arith.constant 0 : index
    %c0_69 = arith.constant 0 : index
    %c0_70 = arith.constant 0 : index
    %172 = vector.load %arg14[%c0_68, %c0_69, %c0_70] : memref<2x1x16xf32, #tpu.memory_space<vmem>>, vector<1x1x16xf32>
    %173 = vector.shape_cast %172 : vector<1x1x16xf32> to vector<1x16xf32>
    %174 = vector.broadcast %173 : vector<1x16xf32> to vector<144x16xf32>
    %175 = arith.addf %171, %174 : vector<144x16xf32>
    %176 = arith.mulf %175, %175 : vector<144x16xf32>
    %177 = arith.mulf %175, %176 : vector<144x16xf32>
    %cst_71 = arith.constant 4.471500e-02 : f32
    %178 = vector.broadcast %cst_71 : f32 to vector<144x16xf32>
    %179 = arith.mulf %178, %177 : vector<144x16xf32>
    %180 = arith.addf %175, %179 : vector<144x16xf32>
    %cst_72 = arith.constant 0.797884583 : f32
    %181 = vector.broadcast %cst_72 : f32 to vector<144x16xf32>
    %182 = arith.mulf %181, %180 : vector<144x16xf32>
    %183 = math.tanh %182 : vector<144x16xf32>
    %cst_73 = arith.constant 1.000000e+00 : f32
    %184 = vector.broadcast %cst_73 : f32 to vector<144x16xf32>
    %185 = arith.addf %184, %183 : vector<144x16xf32>
    %cst_74 = arith.constant 5.000000e-01 : f32
    %186 = vector.broadcast %cst_74 : f32 to vector<144x16xf32>
    %187 = arith.mulf %186, %185 : vector<144x16xf32>
    %188 = arith.mulf %175, %187 : vector<144x16xf32>
    %189 = arith.truncf %188 : vector<144x16xf32> to vector<144x16xbf16>
    %c0_75 = arith.constant 0 : index
    %c0_76 = arith.constant 0 : index
    %c0_77 = arith.constant 0 : index
    %190 = vector.load %arg15[%c0_75, %c0_76, %c0_77] : memref<2x16x32xbf16, #tpu.memory_space<vmem>>, vector<1x16x32xbf16>
    %191 = vector.shape_cast %190 : vector<1x16x32xbf16> to vector<16x32xbf16>
    %cst_78 = arith.constant dense<0.000000e+00> : vector<144x32xf32>
    %192 = tpu.matmul %189, %191, %cst_78 {dimension_numbers = #tpu.dot_dimension_numbers<[1], [0], [0], [1], [0, 0, 1, 1], [], []>} : vector<144x16xbf16>, vector<16x32xbf16>, vector<144x32xf32> -> vector<144x32xf32>
    %c0_79 = arith.constant 0 : index
    %c0_80 = arith.constant 0 : index
    %c0_81 = arith.constant 0 : index
    %193 = vector.load %arg16[%c0_79, %c0_80, %c0_81] : memref<2x1x32xf32, #tpu.memory_space<vmem>>, vector<1x1x32xf32>
    %194 = vector.shape_cast %193 : vector<1x1x32xf32> to vector<1x32xf32>
    %195 = vector.broadcast %194 : vector<1x32xf32> to vector<144x32xf32>
    %196 = arith.addf %192, %195 : vector<144x32xf32>
    %197 = vector.broadcast %2 : vector<144x1xf32> to vector<144x32xf32>
    %198 = arith.mulf %196, %197 : vector<144x32xf32>
    %199 = arith.addf %141, %198 : vector<144x32xf32>
    %c1 = arith.constant 1 : index
    %c0_82 = arith.constant 0 : index
    %c0_83 = arith.constant 0 : index
    %200 = vector.load %arg6[%c1, %c0_82, %c0_83] : memref<2x1x32xf32, #tpu.memory_space<vmem>>, vector<1x1x32xf32>
    %201 = vector.shape_cast %200 : vector<1x1x32xf32> to vector<1x32xf32>
    %c1_84 = arith.constant 1 : index
    %c0_85 = arith.constant 0 : index
    %c0_86 = arith.constant 0 : index
    %202 = vector.load %arg7[%c1_84, %c0_85, %c0_86] : memref<2x1x32xf32, #tpu.memory_space<vmem>>, vector<1x1x32xf32>
    %203 = vector.shape_cast %202 : vector<1x1x32xf32> to vector<1x32xf32>
    %cst_87 = arith.constant dense<0.000000e+00> : vector<144xf32>
    %204 = vector.multi_reduction <add>, %199, %cst_87 [1] : vector<144x32xf32> to vector<144xf32>
    %205 = vector.shape_cast %204 : vector<144xf32> to vector<144x1xf32>
    %cst_88 = arith.constant 3.200000e+01 : f32
    %206 = vector.broadcast %cst_88 : f32 to vector<144x1xf32>
    %207 = arith.divf %205, %206 : vector<144x1xf32>
    %208 = vector.broadcast %207 : vector<144x1xf32> to vector<144x32xf32>
    %209 = arith.subf %199, %208 : vector<144x32xf32>
    %210 = arith.mulf %209, %209 : vector<144x32xf32>
    %cst_89 = arith.constant dense<0.000000e+00> : vector<144xf32>
    %211 = vector.multi_reduction <add>, %210, %cst_89 [1] : vector<144x32xf32> to vector<144xf32>
    %212 = vector.shape_cast %211 : vector<144xf32> to vector<144x1xf32>
    %cst_90 = arith.constant 3.200000e+01 : f32
    %213 = vector.broadcast %cst_90 : f32 to vector<144x1xf32>
    %214 = arith.divf %212, %213 : vector<144x1xf32>
    %215 = vector.broadcast %207 : vector<144x1xf32> to vector<144x32xf32>
    %216 = arith.subf %199, %215 : vector<144x32xf32>
    %cst_91 = arith.constant 9.99999974E-6 : f32
    %217 = vector.broadcast %cst_91 : f32 to vector<144x1xf32>
    %218 = arith.addf %214, %217 : vector<144x1xf32>
    %219 = math.rsqrt %218 : vector<144x1xf32>
    %220 = vector.broadcast %219 : vector<144x1xf32> to vector<144x32xf32>
    %221 = arith.mulf %216, %220 : vector<144x32xf32>
    %222 = vector.broadcast %201 : vector<1x32xf32> to vector<144x32xf32>
    %223 = arith.mulf %221, %222 : vector<144x32xf32>
    %224 = vector.broadcast %203 : vector<1x32xf32> to vector<144x32xf32>
    %225 = arith.addf %223, %224 : vector<144x32xf32>
    %226 = arith.truncf %225 : vector<144x32xf32> to vector<144x32xbf16>
    %c1_92 = arith.constant 1 : index
    %c0_93 = arith.constant 0 : index
    %c0_94 = arith.constant 0 : index
    %227 = vector.load %arg8[%c1_92, %c0_93, %c0_94] : memref<2x32x192xbf16, #tpu.memory_space<vmem>>, vector<1x32x192xbf16>
    %228 = vector.shape_cast %227 : vector<1x32x192xbf16> to vector<32x192xbf16>
    %cst_95 = arith.constant dense<0.000000e+00> : vector<144x192xf32>
    %229 = tpu.matmul %226, %228, %cst_95 {dimension_numbers = #tpu.dot_dimension_numbers<[1], [0], [0], [1], [0, 0, 1, 1], [], []>} : vector<144x32xbf16>, vector<32x192xbf16>, vector<144x192xf32> -> vector<144x192xf32>
    %230 = vector.extract_strided_slice %229 {offsets = [0, 0], sizes = [144, 16], strides = [1, 1]} : vector<144x192xf32> to vector<144x16xf32>
    %231 = vector.extract_strided_slice %229 {offsets = [0, 64], sizes = [144, 16], strides = [1, 1]} : vector<144x192xf32> to vector<144x16xf32>
    %232 = vector.extract_strided_slice %229 {offsets = [0, 128], sizes = [144, 16], strides = [1, 1]} : vector<144x192xf32> to vector<144x16xf32>
    %cst_96 = arith.constant dense<0.000000e+00> : vector<144x144xf32>
    %233 = tpu.matmul %230, %231, %cst_96 {dimension_numbers = #tpu.dot_dimension_numbers<[1], [1], [0], [0], [0, 0, 1, 0], [], []>} : vector<144x16xf32>, vector<144x16xf32>, vector<144x144xf32> -> vector<144x144xf32>
    %cst_97 = arith.constant 2.500000e-01 : f32
    %234 = vector.broadcast %cst_97 : f32 to vector<144x144xf32>
    %235 = arith.mulf %233, %234 : vector<144x144xf32>
    %236 = arith.addf %235, %1 : vector<144x144xf32>
    %cst_98 = arith.constant dense<0xFF800000> : vector<144xf32>
    %237 = vector.multi_reduction <maximumf>, %236, %cst_98 [1] : vector<144x144xf32> to vector<144xf32>
    %238 = vector.shape_cast %237 : vector<144xf32> to vector<144x1xf32>
    %239 = vector.broadcast %238 : vector<144x1xf32> to vector<144x144xf32>
    %240 = arith.subf %236, %239 : vector<144x144xf32>
    %241 = math.exp %240 : vector<144x144xf32>
    %cst_99 = arith.constant dense<0.000000e+00> : vector<144xf32>
    %242 = vector.multi_reduction <add>, %241, %cst_99 [1] : vector<144x144xf32> to vector<144xf32>
    %243 = vector.shape_cast %242 : vector<144xf32> to vector<144x1xf32>
    %244 = tpu.reciprocal %243 {approx = true} : vector<144x1xf32> -> vector<144x1xf32>
    %245 = vector.broadcast %244 : vector<144x1xf32> to vector<144x144xf32>
    %246 = arith.mulf %241, %245 : vector<144x144xf32>
    %cst_100 = arith.constant dense<0.000000e+00> : vector<144x16xf32>
    %247 = tpu.matmul %246, %232, %cst_100 {dimension_numbers = #tpu.dot_dimension_numbers<[1], [0], [0], [1], [0, 0, 1, 1], [], []>} : vector<144x144xf32>, vector<144x16xf32>, vector<144x16xf32> -> vector<144x16xf32>
    %248 = vector.extract_strided_slice %229 {offsets = [0, 16], sizes = [144, 16], strides = [1, 1]} : vector<144x192xf32> to vector<144x16xf32>
    %249 = vector.extract_strided_slice %229 {offsets = [0, 80], sizes = [144, 16], strides = [1, 1]} : vector<144x192xf32> to vector<144x16xf32>
    %250 = vector.extract_strided_slice %229 {offsets = [0, 144], sizes = [144, 16], strides = [1, 1]} : vector<144x192xf32> to vector<144x16xf32>
    %cst_101 = arith.constant dense<0.000000e+00> : vector<144x144xf32>
    %251 = tpu.matmul %248, %249, %cst_101 {dimension_numbers = #tpu.dot_dimension_numbers<[1], [1], [0], [0], [0, 0, 1, 0], [], []>} : vector<144x16xf32>, vector<144x16xf32>, vector<144x144xf32> -> vector<144x144xf32>
    %cst_102 = arith.constant 2.500000e-01 : f32
    %252 = vector.broadcast %cst_102 : f32 to vector<144x144xf32>
    %253 = arith.mulf %251, %252 : vector<144x144xf32>
    %254 = arith.addf %253, %1 : vector<144x144xf32>
    %cst_103 = arith.constant dense<0xFF800000> : vector<144xf32>
    %255 = vector.multi_reduction <maximumf>, %254, %cst_103 [1] : vector<144x144xf32> to vector<144xf32>
    %256 = vector.shape_cast %255 : vector<144xf32> to vector<144x1xf32>
    %257 = vector.broadcast %256 : vector<144x1xf32> to vector<144x144xf32>
    %258 = arith.subf %254, %257 : vector<144x144xf32>
    %259 = math.exp %258 : vector<144x144xf32>
    %cst_104 = arith.constant dense<0.000000e+00> : vector<144xf32>
    %260 = vector.multi_reduction <add>, %259, %cst_104 [1] : vector<144x144xf32> to vector<144xf32>
    %261 = vector.shape_cast %260 : vector<144xf32> to vector<144x1xf32>
    %262 = tpu.reciprocal %261 {approx = true} : vector<144x1xf32> -> vector<144x1xf32>
    %263 = vector.broadcast %262 : vector<144x1xf32> to vector<144x144xf32>
    %264 = arith.mulf %259, %263 : vector<144x144xf32>
    %cst_105 = arith.constant dense<0.000000e+00> : vector<144x16xf32>
    %265 = tpu.matmul %264, %250, %cst_105 {dimension_numbers = #tpu.dot_dimension_numbers<[1], [0], [0], [1], [0, 0, 1, 1], [], []>} : vector<144x144xf32>, vector<144x16xf32>, vector<144x16xf32> -> vector<144x16xf32>
    %266 = vector.extract_strided_slice %229 {offsets = [0, 32], sizes = [144, 16], strides = [1, 1]} : vector<144x192xf32> to vector<144x16xf32>
    %267 = vector.extract_strided_slice %229 {offsets = [0, 96], sizes = [144, 16], strides = [1, 1]} : vector<144x192xf32> to vector<144x16xf32>
    %268 = vector.extract_strided_slice %229 {offsets = [0, 160], sizes = [144, 16], strides = [1, 1]} : vector<144x192xf32> to vector<144x16xf32>
    %cst_106 = arith.constant dense<0.000000e+00> : vector<144x144xf32>
    %269 = tpu.matmul %266, %267, %cst_106 {dimension_numbers = #tpu.dot_dimension_numbers<[1], [1], [0], [0], [0, 0, 1, 0], [], []>} : vector<144x16xf32>, vector<144x16xf32>, vector<144x144xf32> -> vector<144x144xf32>
    %cst_107 = arith.constant 2.500000e-01 : f32
    %270 = vector.broadcast %cst_107 : f32 to vector<144x144xf32>
    %271 = arith.mulf %269, %270 : vector<144x144xf32>
    %272 = arith.addf %271, %1 : vector<144x144xf32>
    %cst_108 = arith.constant dense<0xFF800000> : vector<144xf32>
    %273 = vector.multi_reduction <maximumf>, %272, %cst_108 [1] : vector<144x144xf32> to vector<144xf32>
    %274 = vector.shape_cast %273 : vector<144xf32> to vector<144x1xf32>
    %275 = vector.broadcast %274 : vector<144x1xf32> to vector<144x144xf32>
    %276 = arith.subf %272, %275 : vector<144x144xf32>
    %277 = math.exp %276 : vector<144x144xf32>
    %cst_109 = arith.constant dense<0.000000e+00> : vector<144xf32>
    %278 = vector.multi_reduction <add>, %277, %cst_109 [1] : vector<144x144xf32> to vector<144xf32>
    %279 = vector.shape_cast %278 : vector<144xf32> to vector<144x1xf32>
    %280 = tpu.reciprocal %279 {approx = true} : vector<144x1xf32> -> vector<144x1xf32>
    %281 = vector.broadcast %280 : vector<144x1xf32> to vector<144x144xf32>
    %282 = arith.mulf %277, %281 : vector<144x144xf32>
    %cst_110 = arith.constant dense<0.000000e+00> : vector<144x16xf32>
    %283 = tpu.matmul %282, %268, %cst_110 {dimension_numbers = #tpu.dot_dimension_numbers<[1], [0], [0], [1], [0, 0, 1, 1], [], []>} : vector<144x144xf32>, vector<144x16xf32>, vector<144x16xf32> -> vector<144x16xf32>
    %284 = vector.extract_strided_slice %229 {offsets = [0, 48], sizes = [144, 16], strides = [1, 1]} : vector<144x192xf32> to vector<144x16xf32>
    %285 = vector.extract_strided_slice %229 {offsets = [0, 112], sizes = [144, 16], strides = [1, 1]} : vector<144x192xf32> to vector<144x16xf32>
    %286 = vector.extract_strided_slice %229 {offsets = [0, 176], sizes = [144, 16], strides = [1, 1]} : vector<144x192xf32> to vector<144x16xf32>
    %cst_111 = arith.constant dense<0.000000e+00> : vector<144x144xf32>
    %287 = tpu.matmul %284, %285, %cst_111 {dimension_numbers = #tpu.dot_dimension_numbers<[1], [1], [0], [0], [0, 0, 1, 0], [], []>} : vector<144x16xf32>, vector<144x16xf32>, vector<144x144xf32> -> vector<144x144xf32>
    %cst_112 = arith.constant 2.500000e-01 : f32
    %288 = vector.broadcast %cst_112 : f32 to vector<144x144xf32>
    %289 = arith.mulf %287, %288 : vector<144x144xf32>
    %290 = arith.addf %289, %1 : vector<144x144xf32>
    %cst_113 = arith.constant dense<0xFF800000> : vector<144xf32>
    %291 = vector.multi_reduction <maximumf>, %290, %cst_113 [1] : vector<144x144xf32> to vector<144xf32>
    %292 = vector.shape_cast %291 : vector<144xf32> to vector<144x1xf32>
    %293 = vector.broadcast %292 : vector<144x1xf32> to vector<144x144xf32>
    %294 = arith.subf %290, %293 : vector<144x144xf32>
    %295 = math.exp %294 : vector<144x144xf32>
    %cst_114 = arith.constant dense<0.000000e+00> : vector<144xf32>
    %296 = vector.multi_reduction <add>, %295, %cst_114 [1] : vector<144x144xf32> to vector<144xf32>
    %297 = vector.shape_cast %296 : vector<144xf32> to vector<144x1xf32>
    %298 = tpu.reciprocal %297 {approx = true} : vector<144x1xf32> -> vector<144x1xf32>
    %299 = vector.broadcast %298 : vector<144x1xf32> to vector<144x144xf32>
    %300 = arith.mulf %295, %299 : vector<144x144xf32>
    %cst_115 = arith.constant dense<0.000000e+00> : vector<144x16xf32>
    %301 = tpu.matmul %300, %286, %cst_115 {dimension_numbers = #tpu.dot_dimension_numbers<[1], [0], [0], [1], [0, 0, 1, 1], [], []>} : vector<144x144xf32>, vector<144x16xf32>, vector<144x16xf32> -> vector<144x16xf32>
    %302 = tpu.concatenate %247, %265, %283, %301 in 1 : vector<144x16xf32>, vector<144x16xf32>, vector<144x16xf32>, vector<144x16xf32> -> vector<144x64xf32>
    %303 = arith.truncf %302 : vector<144x64xf32> to vector<144x64xbf16>
    %c1_116 = arith.constant 1 : index
    %c0_117 = arith.constant 0 : index
    %c0_118 = arith.constant 0 : index
    %304 = vector.load %arg9[%c1_116, %c0_117, %c0_118] : memref<2x64x32xbf16, #tpu.memory_space<vmem>>, vector<1x64x32xbf16>
    %305 = vector.shape_cast %304 : vector<1x64x32xbf16> to vector<64x32xbf16>
    %cst_119 = arith.constant dense<0.000000e+00> : vector<144x32xf32>
    %306 = tpu.matmul %303, %305, %cst_119 {dimension_numbers = #tpu.dot_dimension_numbers<[1], [0], [0], [1], [0, 0, 1, 1], [], []>} : vector<144x64xbf16>, vector<64x32xbf16>, vector<144x32xf32> -> vector<144x32xf32>
    %c1_120 = arith.constant 1 : index
    %c0_121 = arith.constant 0 : index
    %c0_122 = arith.constant 0 : index
    %307 = vector.load %arg10[%c1_120, %c0_121, %c0_122] : memref<2x1x32xf32, #tpu.memory_space<vmem>>, vector<1x1x32xf32>
    %308 = vector.shape_cast %307 : vector<1x1x32xf32> to vector<1x32xf32>
    %309 = vector.broadcast %308 : vector<1x32xf32> to vector<144x32xf32>
    %310 = arith.addf %306, %309 : vector<144x32xf32>
    %311 = vector.broadcast %2 : vector<144x1xf32> to vector<144x32xf32>
    %312 = arith.mulf %310, %311 : vector<144x32xf32>
    %313 = arith.addf %199, %312 : vector<144x32xf32>
    %c1_123 = arith.constant 1 : index
    %c0_124 = arith.constant 0 : index
    %c0_125 = arith.constant 0 : index
    %c0_126 = arith.constant 0 : index
    %314 = vector.load %arg4[%c1_123, %c0_124, %c0_125, %c0_126] : memref<2x3x1x1xf32, #tpu.memory_space<vmem>>, vector<1x3x1x1xf32>
    %315 = vector.shape_cast %314 : vector<1x3x1x1xf32> to vector<3x1x1xf32>
    %c1_i32_127 = arith.constant 1 : i32
    %316 = tpu.dynamic_rotate %313 by %c1_i32_127 dim 0 : vector<144x32xf32>, i32 -> vector<144x32xf32>
    %c143_i32_128 = arith.constant 143 : i32
    %317 = tpu.dynamic_rotate %313 by %c143_i32_128 dim 0 : vector<144x32xf32>, i32 -> vector<144x32xf32>
    %318 = vector.extract_strided_slice %315 {offsets = [0, 0, 0], sizes = [1, 1, 1], strides = [1, 1, 1]} : vector<3x1x1xf32> to vector<1x1x1xf32>
    %319 = vector.shape_cast %318 : vector<1x1x1xf32> to vector<1x1xf32>
    %320 = vector.broadcast %319 : vector<1x1xf32> to vector<144x32xf32>
    %321 = arith.mulf %320, %316 : vector<144x32xf32>
    %322 = vector.extract_strided_slice %315 {offsets = [1, 0, 0], sizes = [1, 1, 1], strides = [1, 1, 1]} : vector<3x1x1xf32> to vector<1x1x1xf32>
    %323 = vector.shape_cast %322 : vector<1x1x1xf32> to vector<1x1xf32>
    %324 = vector.broadcast %323 : vector<1x1xf32> to vector<144x32xf32>
    %325 = arith.mulf %324, %313 : vector<144x32xf32>
    %326 = arith.addf %321, %325 : vector<144x32xf32>
    %327 = vector.extract_strided_slice %315 {offsets = [2, 0, 0], sizes = [1, 1, 1], strides = [1, 1, 1]} : vector<3x1x1xf32> to vector<1x1x1xf32>
    %328 = vector.shape_cast %327 : vector<1x1x1xf32> to vector<1x1xf32>
    %329 = vector.broadcast %328 : vector<1x1xf32> to vector<144x32xf32>
    %330 = arith.mulf %329, %317 : vector<144x32xf32>
    %331 = arith.addf %326, %330 : vector<144x32xf32>
    %c1_129 = arith.constant 1 : index
    %c0_130 = arith.constant 0 : index
    %c0_131 = arith.constant 0 : index
    %332 = vector.load %arg5[%c1_129, %c0_130, %c0_131] : memref<2x1x1xf32, #tpu.memory_space<vmem>>, vector<1x1x1xf32>
    %333 = vector.shape_cast %332 : vector<1x1x1xf32> to vector<1x1xf32>
    %334 = vector.broadcast %333 : vector<1x1xf32> to vector<144x32xf32>
    %335 = arith.addf %331, %334 : vector<144x32xf32>
    %336 = vector.broadcast %2 : vector<144x1xf32> to vector<144x32xf32>
    %337 = arith.mulf %335, %336 : vector<144x32xf32>
    %338 = arith.addf %313, %337 : vector<144x32xf32>
    %c1_132 = arith.constant 1 : index
    %c0_133 = arith.constant 0 : index
    %c0_134 = arith.constant 0 : index
    %339 = vector.load %arg11[%c1_132, %c0_133, %c0_134] : memref<2x1x32xf32, #tpu.memory_space<vmem>>, vector<1x1x32xf32>
    %340 = vector.shape_cast %339 : vector<1x1x32xf32> to vector<1x32xf32>
    %c1_135 = arith.constant 1 : index
    %c0_136 = arith.constant 0 : index
    %c0_137 = arith.constant 0 : index
    %341 = vector.load %arg12[%c1_135, %c0_136, %c0_137] : memref<2x1x32xf32, #tpu.memory_space<vmem>>, vector<1x1x32xf32>
    %342 = vector.shape_cast %341 : vector<1x1x32xf32> to vector<1x32xf32>
    %cst_138 = arith.constant dense<0.000000e+00> : vector<144xf32>
    %343 = vector.multi_reduction <add>, %338, %cst_138 [1] : vector<144x32xf32> to vector<144xf32>
    %344 = vector.shape_cast %343 : vector<144xf32> to vector<144x1xf32>
    %cst_139 = arith.constant 3.200000e+01 : f32
    %345 = vector.broadcast %cst_139 : f32 to vector<144x1xf32>
    %346 = arith.divf %344, %345 : vector<144x1xf32>
    %347 = vector.broadcast %346 : vector<144x1xf32> to vector<144x32xf32>
    %348 = arith.subf %338, %347 : vector<144x32xf32>
    %349 = arith.mulf %348, %348 : vector<144x32xf32>
    %cst_140 = arith.constant dense<0.000000e+00> : vector<144xf32>
    %350 = vector.multi_reduction <add>, %349, %cst_140 [1] : vector<144x32xf32> to vector<144xf32>
    %351 = vector.shape_cast %350 : vector<144xf32> to vector<144x1xf32>
    %cst_141 = arith.constant 3.200000e+01 : f32
    %352 = vector.broadcast %cst_141 : f32 to vector<144x1xf32>
    %353 = arith.divf %351, %352 : vector<144x1xf32>
    %354 = vector.broadcast %346 : vector<144x1xf32> to vector<144x32xf32>
    %355 = arith.subf %338, %354 : vector<144x32xf32>
    %cst_142 = arith.constant 9.99999974E-6 : f32
    %356 = vector.broadcast %cst_142 : f32 to vector<144x1xf32>
    %357 = arith.addf %353, %356 : vector<144x1xf32>
    %358 = math.rsqrt %357 : vector<144x1xf32>
    %359 = vector.broadcast %358 : vector<144x1xf32> to vector<144x32xf32>
    %360 = arith.mulf %355, %359 : vector<144x32xf32>
    %361 = vector.broadcast %340 : vector<1x32xf32> to vector<144x32xf32>
    %362 = arith.mulf %360, %361 : vector<144x32xf32>
    %363 = vector.broadcast %342 : vector<1x32xf32> to vector<144x32xf32>
    %364 = arith.addf %362, %363 : vector<144x32xf32>
    %365 = arith.truncf %364 : vector<144x32xf32> to vector<144x32xbf16>
    %c1_143 = arith.constant 1 : index
    %c0_144 = arith.constant 0 : index
    %c0_145 = arith.constant 0 : index
    %366 = vector.load %arg13[%c1_143, %c0_144, %c0_145] : memref<2x32x16xbf16, #tpu.memory_space<vmem>>, vector<1x32x16xbf16>
    %367 = vector.shape_cast %366 : vector<1x32x16xbf16> to vector<32x16xbf16>
    %cst_146 = arith.constant dense<0.000000e+00> : vector<144x16xf32>
    %368 = tpu.matmul %365, %367, %cst_146 {dimension_numbers = #tpu.dot_dimension_numbers<[1], [0], [0], [1], [0, 0, 1, 1], [], []>} : vector<144x32xbf16>, vector<32x16xbf16>, vector<144x16xf32> -> vector<144x16xf32>
    %c1_147 = arith.constant 1 : index
    %c0_148 = arith.constant 0 : index
    %c0_149 = arith.constant 0 : index
    %369 = vector.load %arg14[%c1_147, %c0_148, %c0_149] : memref<2x1x16xf32, #tpu.memory_space<vmem>>, vector<1x1x16xf32>
    %370 = vector.shape_cast %369 : vector<1x1x16xf32> to vector<1x16xf32>
    %371 = vector.broadcast %370 : vector<1x16xf32> to vector<144x16xf32>
    %372 = arith.addf %368, %371 : vector<144x16xf32>
    %373 = arith.mulf %372, %372 : vector<144x16xf32>
    %374 = arith.mulf %372, %373 : vector<144x16xf32>
    %cst_150 = arith.constant 4.471500e-02 : f32
    %375 = vector.broadcast %cst_150 : f32 to vector<144x16xf32>
    %376 = arith.mulf %375, %374 : vector<144x16xf32>
    %377 = arith.addf %372, %376 : vector<144x16xf32>
    %cst_151 = arith.constant 0.797884583 : f32
    %378 = vector.broadcast %cst_151 : f32 to vector<144x16xf32>
    %379 = arith.mulf %378, %377 : vector<144x16xf32>
    %380 = math.tanh %379 : vector<144x16xf32>
    %cst_152 = arith.constant 1.000000e+00 : f32
    %381 = vector.broadcast %cst_152 : f32 to vector<144x16xf32>
    %382 = arith.addf %381, %380 : vector<144x16xf32>
    %cst_153 = arith.constant 5.000000e-01 : f32
    %383 = vector.broadcast %cst_153 : f32 to vector<144x16xf32>
    %384 = arith.mulf %383, %382 : vector<144x16xf32>
    %385 = arith.mulf %372, %384 : vector<144x16xf32>
    %386 = arith.truncf %385 : vector<144x16xf32> to vector<144x16xbf16>
    %c1_154 = arith.constant 1 : index
    %c0_155 = arith.constant 0 : index
    %c0_156 = arith.constant 0 : index
    %387 = vector.load %arg15[%c1_154, %c0_155, %c0_156] : memref<2x16x32xbf16, #tpu.memory_space<vmem>>, vector<1x16x32xbf16>
    %388 = vector.shape_cast %387 : vector<1x16x32xbf16> to vector<16x32xbf16>
    %cst_157 = arith.constant dense<0.000000e+00> : vector<144x32xf32>
    %389 = tpu.matmul %386, %388, %cst_157 {dimension_numbers = #tpu.dot_dimension_numbers<[1], [0], [0], [1], [0, 0, 1, 1], [], []>} : vector<144x16xbf16>, vector<16x32xbf16>, vector<144x32xf32> -> vector<144x32xf32>
    %c1_158 = arith.constant 1 : index
    %c0_159 = arith.constant 0 : index
    %c0_160 = arith.constant 0 : index
    %390 = vector.load %arg16[%c1_158, %c0_159, %c0_160] : memref<2x1x32xf32, #tpu.memory_space<vmem>>, vector<1x1x32xf32>
    %391 = vector.shape_cast %390 : vector<1x1x32xf32> to vector<1x32xf32>
    %392 = vector.broadcast %391 : vector<1x32xf32> to vector<144x32xf32>
    %393 = arith.addf %389, %392 : vector<144x32xf32>
    %394 = vector.broadcast %2 : vector<144x1xf32> to vector<144x32xf32>
    %395 = arith.mulf %393, %394 : vector<144x32xf32>
    %396 = arith.addf %338, %395 : vector<144x32xf32>
    %397 = vector.extract_strided_slice %396 {offsets = [0, 0], sizes = [1, 32], strides = [1, 1]} : vector<144x32xf32> to vector<1x32xf32>
    %398 = vector.extract_strided_slice %396 {offsets = [72, 0], sizes = [1, 32], strides = [1, 1]} : vector<144x32xf32> to vector<1x32xf32>
    %399 = tpu.concatenate %397, %398 in 0 : vector<1x32xf32>, vector<1x32xf32> -> vector<2x32xf32>
    %c0_161 = arith.constant 0 : index
    %c0_162 = arith.constant 0 : index
    %400 = vector.load %arg17[%c0_161, %c0_162] : memref<1x32xf32, #tpu.memory_space<vmem>>, vector<1x32xf32>
    %c0_163 = arith.constant 0 : index
    %c0_164 = arith.constant 0 : index
    %401 = vector.load %arg18[%c0_163, %c0_164] : memref<1x32xf32, #tpu.memory_space<vmem>>, vector<1x32xf32>
    %cst_165 = arith.constant dense<0.000000e+00> : vector<2xf32>
    %402 = vector.multi_reduction <add>, %399, %cst_165 [1] : vector<2x32xf32> to vector<2xf32>
    %403 = vector.shape_cast %402 : vector<2xf32> to vector<2x1xf32>
    %cst_166 = arith.constant 3.200000e+01 : f32
    %404 = vector.broadcast %cst_166 : f32 to vector<2x1xf32>
    %405 = arith.divf %403, %404 : vector<2x1xf32>
    %406 = vector.broadcast %405 : vector<2x1xf32> to vector<2x32xf32>
    %407 = arith.subf %399, %406 : vector<2x32xf32>
    %408 = arith.mulf %407, %407 : vector<2x32xf32>
    %cst_167 = arith.constant dense<0.000000e+00> : vector<2xf32>
    %409 = vector.multi_reduction <add>, %408, %cst_167 [1] : vector<2x32xf32> to vector<2xf32>
    %410 = vector.shape_cast %409 : vector<2xf32> to vector<2x1xf32>
    %cst_168 = arith.constant 3.200000e+01 : f32
    %411 = vector.broadcast %cst_168 : f32 to vector<2x1xf32>
    %412 = arith.divf %410, %411 : vector<2x1xf32>
    %413 = vector.broadcast %405 : vector<2x1xf32> to vector<2x32xf32>
    %414 = arith.subf %399, %413 : vector<2x32xf32>
    %cst_169 = arith.constant 9.99999974E-6 : f32
    %415 = vector.broadcast %cst_169 : f32 to vector<2x1xf32>
    %416 = arith.addf %412, %415 : vector<2x1xf32>
    %417 = math.rsqrt %416 : vector<2x1xf32>
    %418 = vector.broadcast %417 : vector<2x1xf32> to vector<2x32xf32>
    %419 = arith.mulf %414, %418 : vector<2x32xf32>
    %420 = vector.broadcast %400 : vector<1x32xf32> to vector<2x32xf32>
    %421 = arith.mulf %419, %420 : vector<2x32xf32>
    %422 = vector.broadcast %401 : vector<1x32xf32> to vector<2x32xf32>
    %423 = arith.addf %421, %422 : vector<2x32xf32>
    %c0_170 = arith.constant 0 : index
    %c0_171 = arith.constant 0 : index
    %424 = vector.load %arg19[%c0_170, %c0_171] : memref<32x224xf32, #tpu.memory_space<vmem>>, vector<32x224xf32>
    %cst_172 = arith.constant dense<0.000000e+00> : vector<2x224xf32>
    %425 = tpu.matmul %423, %424, %cst_172 {dimension_numbers = #tpu.dot_dimension_numbers<[1], [0], [0], [1], [0, 0, 1, 1], [], []>} : vector<2x32xf32>, vector<32x224xf32>, vector<2x224xf32> -> vector<2x224xf32>
    %c0_173 = arith.constant 0 : index
    %c0_174 = arith.constant 0 : index
    %426 = vector.load %arg20[%c0_173, %c0_174] : memref<1x224xf32, #tpu.memory_space<vmem>>, vector<1x224xf32>
    %427 = vector.broadcast %426 : vector<1x224xf32> to vector<2x224xf32>
    %428 = arith.addf %425, %427 : vector<2x224xf32>
    %cst_175 = arith.constant 0.000000e+00 : f32
    %429 = vector.broadcast %cst_175 : f32 to vector<2x224xf32>
    %430 = arith.maximumf %428, %429 : vector<2x224xf32>
    %c0_176 = arith.constant 0 : index
    %c0_177 = arith.constant 0 : index
    %431 = vector.load %arg21[%c0_176, %c0_177] : memref<224x32xf32, #tpu.memory_space<vmem>>, vector<224x32xf32>
    %cst_178 = arith.constant dense<0.000000e+00> : vector<2x32xf32>
    %432 = tpu.matmul %430, %431, %cst_178 {dimension_numbers = #tpu.dot_dimension_numbers<[1], [0], [0], [1], [0, 0, 1, 1], [], []>} : vector<2x224xf32>, vector<224x32xf32>, vector<2x32xf32> -> vector<2x32xf32>
    %c0_179 = arith.constant 0 : index
    %c0_180 = arith.constant 0 : index
    %433 = vector.load %arg22[%c0_179, %c0_180] : memref<1x32xf32, #tpu.memory_space<vmem>>, vector<1x32xf32>
    %434 = vector.broadcast %433 : vector<1x32xf32> to vector<2x32xf32>
    %435 = arith.addf %432, %434 : vector<2x32xf32>
    %cst_181 = arith.constant 0.000000e+00 : f32
    %436 = vector.broadcast %cst_181 : f32 to vector<2x32xf32>
    %437 = arith.maximumf %435, %436 : vector<2x32xf32>
    %c0_182 = arith.constant 0 : index
    %c0_183 = arith.constant 0 : index
    %438 = vector.load %arg23[%c0_182, %c0_183] : memref<32x128xf32, #tpu.memory_space<vmem>>, vector<32x128xf32>
    %cst_184 = arith.constant dense<0.000000e+00> : vector<2x128xf32>
    %439 = tpu.matmul %437, %438, %cst_184 {dimension_numbers = #tpu.dot_dimension_numbers<[1], [0], [0], [1], [0, 0, 1, 1], [], []>} : vector<2x32xf32>, vector<32x128xf32>, vector<2x128xf32> -> vector<2x128xf32>
    %c0_185 = arith.constant 0 : index
    %c0_186 = arith.constant 0 : index
    %440 = vector.load %arg24[%c0_185, %c0_186] : memref<1x128xf32, #tpu.memory_space<vmem>>, vector<1x128xf32>
    %441 = vector.broadcast %440 : vector<1x128xf32> to vector<2x128xf32>
    %442 = arith.addf %439, %441 : vector<2x128xf32>
    %c0_187 = arith.constant 0 : index
    %c0_188 = arith.constant 0 : index
    %c0_189 = arith.constant 0 : index
    %443 = vector.load %arg25[%c0_187, %c0_188, %c0_189] : memref<1x2x128xf32, #tpu.memory_space<vmem>>, vector<1x2x128xf32>
    %444 = vector.shape_cast %443 : vector<1x2x128xf32> to vector<2x128xf32>
    %445 = vector.shape_cast %442 : vector<2x128xf32> to vector<1x2x128xf32>
    tpu.vector_store %arg25[%c0_187, %c0_188, %c0_189], %445 {strides = array<i32>} : memref<1x2x128xf32, #tpu.memory_space<vmem>>, vector<1x2x128xf32>,
    return
  }
  func.func @transform_0(%arg0: i32) -> (i32, i32) {
    %c0_i32 = arith.constant 0 : i32
    %c0_i32_0 = arith.constant 0 : i32
    return %arg0, %c0_i32 : i32, i32
  }
  func.func @transform_1(%arg0: i32) -> (i32, i32) {
    %c0_i32 = arith.constant 0 : i32
    %c0_i32_0 = arith.constant 0 : i32
    %c0_i32_1 = arith.constant 0 : i32
    return %c0_i32, %c0_i32_0 : i32, i32
  }
  func.func @transform_2(%arg0: i32) -> (i32, i32) {
    %c0_i32 = arith.constant 0 : i32
    %c0_i32_0 = arith.constant 0 : i32
    %c0_i32_1 = arith.constant 0 : i32
    return %c0_i32, %c0_i32_0 : i32, i32
  }
  func.func @transform_3(%arg0: i32) -> (i32, i32, i32, i32) {
    %c0_i32 = arith.constant 0 : i32
    %c0_i32_0 = arith.constant 0 : i32
    %c0_i32_1 = arith.constant 0 : i32
    %c0_i32_2 = arith.constant 0 : i32
    %c0_i32_3 = arith.constant 0 : i32
    return %c0_i32, %c0_i32_0, %c0_i32_1, %c0_i32_2 : i32, i32, i32, i32
  }
  func.func @transform_4(%arg0: i32) -> (i32, i32, i32) {
    %c0_i32 = arith.constant 0 : i32
    %c0_i32_0 = arith.constant 0 : i32
    %c0_i32_1 = arith.constant 0 : i32
    %c0_i32_2 = arith.constant 0 : i32
    return %c0_i32, %c0_i32_0, %c0_i32_1 : i32, i32, i32
  }
  func.func @transform_5(%arg0: i32) -> (i32, i32, i32) {
    %c0_i32 = arith.constant 0 : i32
    %c0_i32_0 = arith.constant 0 : i32
    %c0_i32_1 = arith.constant 0 : i32
    %c0_i32_2 = arith.constant 0 : i32
    return %c0_i32, %c0_i32_0, %c0_i32_1 : i32, i32, i32
  }
  func.func @transform_6(%arg0: i32) -> (i32, i32, i32) {
    %c0_i32 = arith.constant 0 : i32
    %c0_i32_0 = arith.constant 0 : i32
    %c0_i32_1 = arith.constant 0 : i32
    %c0_i32_2 = arith.constant 0 : i32
    return %c0_i32, %c0_i32_0, %c0_i32_1 : i32, i32, i32
  }
  func.func @transform_7(%arg0: i32) -> (i32, i32, i32) {
    %c0_i32 = arith.constant 0 : i32
    %c0_i32_0 = arith.constant 0 : i32
    %c0_i32_1 = arith.constant 0 : i32
    %c0_i32_2 = arith.constant 0 : i32
    return %c0_i32, %c0_i32_0, %c0_i32_1 : i32, i32, i32
  }
  func.func @transform_8(%arg0: i32) -> (i32, i32, i32) {
    %c0_i32 = arith.constant 0 : i32
    %c0_i32_0 = arith.constant 0 : i32
    %c0_i32_1 = arith.constant 0 : i32
    %c0_i32_2 = arith.constant 0 : i32
    return %c0_i32, %c0_i32_0, %c0_i32_1 : i32, i32, i32
  }
  func.func @transform_9(%arg0: i32) -> (i32, i32, i32) {
    %c0_i32 = arith.constant 0 : i32
    %c0_i32_0 = arith.constant 0 : i32
    %c0_i32_1 = arith.constant 0 : i32
    %c0_i32_2 = arith.constant 0 : i32
    return %c0_i32, %c0_i32_0, %c0_i32_1 : i32, i32, i32
  }
  func.func @transform_10(%arg0: i32) -> (i32, i32, i32) {
    %c0_i32 = arith.constant 0 : i32
    %c0_i32_0 = arith.constant 0 : i32
    %c0_i32_1 = arith.constant 0 : i32
    %c0_i32_2 = arith.constant 0 : i32
    return %c0_i32, %c0_i32_0, %c0_i32_1 : i32, i32, i32
  }
  func.func @transform_11(%arg0: i32) -> (i32, i32, i32) {
    %c0_i32 = arith.constant 0 : i32
    %c0_i32_0 = arith.constant 0 : i32
    %c0_i32_1 = arith.constant 0 : i32
    %c0_i32_2 = arith.constant 0 : i32
    return %c0_i32, %c0_i32_0, %c0_i32_1 : i32, i32, i32
  }
  func.func @transform_12(%arg0: i32) -> (i32, i32, i32) {
    %c0_i32 = arith.constant 0 : i32
    %c0_i32_0 = arith.constant 0 : i32
    %c0_i32_1 = arith.constant 0 : i32
    %c0_i32_2 = arith.constant 0 : i32
    return %c0_i32, %c0_i32_0, %c0_i32_1 : i32, i32, i32
  }
  func.func @transform_13(%arg0: i32) -> (i32, i32, i32) {
    %c0_i32 = arith.constant 0 : i32
    %c0_i32_0 = arith.constant 0 : i32
    %c0_i32_1 = arith.constant 0 : i32
    %c0_i32_2 = arith.constant 0 : i32
    return %c0_i32, %c0_i32_0, %c0_i32_1 : i32, i32, i32
  }
  func.func @transform_14(%arg0: i32) -> (i32, i32, i32) {
    %c0_i32 = arith.constant 0 : i32
    %c0_i32_0 = arith.constant 0 : i32
    %c0_i32_1 = arith.constant 0 : i32
    %c0_i32_2 = arith.constant 0 : i32
    return %c0_i32, %c0_i32_0, %c0_i32_1 : i32, i32, i32
  }
  func.func @transform_15(%arg0: i32) -> (i32, i32, i32) {
    %c0_i32 = arith.constant 0 : i32
    %c0_i32_0 = arith.constant 0 : i32
    %c0_i32_1 = arith.constant 0 : i32
    %c0_i32_2 = arith.constant 0 : i32
    return %c0_i32, %c0_i32_0, %c0_i32_1 : i32, i32, i32
  }
  func.func @transform_16(%arg0: i32) -> (i32, i32) {
    %c0_i32 = arith.constant 0 : i32
    %c0_i32_0 = arith.constant 0 : i32
    %c0_i32_1 = arith.constant 0 : i32
    return %c0_i32, %c0_i32_0 : i32, i32
  }
  func.func @transform_17(%arg0: i32) -> (i32, i32) {
    %c0_i32 = arith.constant 0 : i32
    %c0_i32_0 = arith.constant 0 : i32
    %c0_i32_1 = arith.constant 0 : i32
    return %c0_i32, %c0_i32_0 : i32, i32
  }
  func.func @transform_18(%arg0: i32) -> (i32, i32) {
    %c0_i32 = arith.constant 0 : i32
    %c0_i32_0 = arith.constant 0 : i32
    %c0_i32_1 = arith.constant 0 : i32
    return %c0_i32, %c0_i32_0 : i32, i32
  }
  func.func @transform_19(%arg0: i32) -> (i32, i32) {
    %c0_i32 = arith.constant 0 : i32
    %c0_i32_0 = arith.constant 0 : i32
    %c0_i32_1 = arith.constant 0 : i32
    return %c0_i32, %c0_i32_0 : i32, i32
  }
  func.func @transform_20(%arg0: i32) -> (i32, i32) {
    %c0_i32 = arith.constant 0 : i32
    %c0_i32_0 = arith.constant 0 : i32
    %c0_i32_1 = arith.constant 0 : i32
    return %c0_i32, %c0_i32_0 : i32, i32
  }
  func.func @transform_21(%arg0: i32) -> (i32, i32) {
    %c0_i32 = arith.constant 0 : i32
    %c0_i32_0 = arith.constant 0 : i32
    %c0_i32_1 = arith.constant 0 : i32
    return %c0_i32, %c0_i32_0 : i32, i32
  }
  func.func @transform_22(%arg0: i32) -> (i32, i32) {
    %c0_i32 = arith.constant 0 : i32
    %c0_i32_0 = arith.constant 0 : i32
    %c0_i32_1 = arith.constant 0 : i32
    return %c0_i32, %c0_i32_0 : i32, i32
  }
  func.func @transform_23(%arg0: i32) -> (i32, i32) {
    %c0_i32 = arith.constant 0 : i32
    %c0_i32_0 = arith.constant 0 : i32
    %c0_i32_1 = arith.constant 0 : i32
    return %c0_i32, %c0_i32_0 : i32, i32
  }
  func.func @transform_24(%arg0: i32) -> (i32, i32, i32) {
    %c0_i32 = arith.constant 0 : i32
    %c0_i32_0 = arith.constant 0 : i32
    %c0_i32_1 = arith.constant 0 : i32
    return %arg0, %c0_i32, %c0_i32_0 : i32, i32, i32
  }
}

</mosaic_0001>

<llo_original>
// kernel: tpu_custom_call.1
$region0: #{tpu_custom_call.1}
  #allocation0 [shape = 'u32[]', space=smem, size = 0x4, offset = 0x4, fixed_abs, tag = 'smem constant byte address 0x4 - core index']
  #allocation1 [shape = 'u32[144,128]{1,0:T(1,128)}', space=vmem, size = 0x12000, scoped, tag = 'internal scratch']
  %s0 = inlined_call_operand.vmem [shape: f32[144,32], index: 0, kind: input, shape index: {}]
  %s1 = inlined_call_operand.vmem [shape: f32[144,144], index: 1, kind: input, shape index: {}]
  %s2 = inlined_call_operand.vmem [shape: f32[144,1], index: 2, kind: input, shape index: {}]
  %s3 = inlined_call_operand.vmem [shape: f32[2,3,1,1], index: 3, kind: input, shape index: {}]
  %s4 = inlined_call_operand.vmem [shape: f32[2,1,1], index: 4, kind: input, shape index: {}]
  %s5 = inlined_call_operand.vmem [shape: f32[2,1,32], index: 5, kind: input, shape index: {}]
  %s6 = inlined_call_operand.vmem [shape: f32[2,1,32], index: 6, kind: input, shape index: {}]
  %s7 = inlined_call_operand.vmem [shape: bf16[2,32,192], index: 7, kind: input, shape index: {}]
  %s8 = inlined_call_operand.vmem [shape: bf16[2,64,32], index: 8, kind: input, shape index: {}]
  %s9 = inlined_call_operand.vmem [shape: f32[2,1,32], index: 9, kind: input, shape index: {}]
  %s10 = inlined_call_operand.vmem [shape: f32[2,1,32], index: 10, kind: input, shape index: {}]
  %s11 = inlined_call_operand.vmem [shape: f32[2,1,32], index: 11, kind: input, shape index: {}]
  %s12 = inlined_call_operand.vmem [shape: bf16[2,32,16], index: 12, kind: input, shape index: {}]
  %s13 = inlined_call_operand.vmem [shape: f32[2,1,16], index: 13, kind: input, shape index: {}]
  %s14 = inlined_call_operand.vmem [shape: bf16[2,16,32], index: 14, kind: input, shape index: {}]
  %s15 = inlined_call_operand.vmem [shape: f32[2,1,32], index: 15, kind: input, shape index: {}]
  %s16 = inlined_call_operand.vmem [shape: f32[1,32], index: 16, kind: input, shape index: {}]
  %s17 = inlined_call_operand.vmem [shape: f32[1,32], index: 17, kind: input, shape index: {}]
  %s18 = inlined_call_operand.vmem [shape: f32[32,224], index: 18, kind: input, shape index: {}]
  %s19 = inlined_call_operand.vmem [shape: f32[1,224], index: 19, kind: input, shape index: {}]
  %s20 = inlined_call_operand.vmem [shape: f32[224,32], index: 20, kind: input, shape index: {}]
  %s21 = inlined_call_operand.vmem [shape: f32[1,32], index: 21, kind: input, shape index: {}]
  %s22 = inlined_call_operand.vmem [shape: f32[32,128], index: 22, kind: input, shape index: {}]
  %s23 = inlined_call_operand.vmem [shape: f32[1,128], index: 23, kind: input, shape index: {}]
  %s24 = inlined_call_operand.hbm [shape: f32[1,2,128], index: 24, kind: output, shape index: {}]
  %s25 = sld [smem:[#allocation0]]
  $region106: #{tpu_custom_call.1} parent=0
    _
  %s27 = ssub.s32 1, %s25
  %s28 = scalar_select 0, %s27, %s25
  $region1: #{tpu_custom_call.1} parent=0
    #allocation2 [shape = 'u8[1024]{0}', space=vmem, size = 0x400, scoped, tag = 'output window, operand 0, single buffered']
    #allocation3 [shape = 's32[1]{0}', space=sflag, size = 0x4, scoped, tag = 'scoped memory for tpu_custom_call.1']
    %29 = vsyncpa [#allocation3], 0
    // Predicated region
    $region2: #{tpu_custom_call.1} parent=1 // pred_check
      _
    $region3: #{tpu_custom_call.1} parent=1 // pred_check_branch
      %31 = sbr.rel (0) target = $region5
    $region4: #{tpu_custom_call.1} parent=1 // pred_region
      _
    $region5: #{tpu_custom_call.1} parent=1 // pred_fallthru
      _
    // Predicated region
    $region6: #{tpu_custom_call.1} parent=1 // pred_check
      _
    $region7: #{tpu_custom_call.1} parent=1 // pred_check_branch
      %33 = sbr.rel (0) target = $region9
    $region8: #{tpu_custom_call.1} parent=1 // pred_region
      _
    $region9: #{tpu_custom_call.1} parent=1 // pred_fallthru
      _
    // Predicated region
    $region10: #{tpu_custom_call.1} parent=1 // pred_check
      _
    $region11: #{tpu_custom_call.1} parent=1 // pred_check_branch
      %35 = sbr.rel (0) target = $region13
    $region12: #{tpu_custom_call.1} parent=1 // pred_region
      _
    $region13: #{tpu_custom_call.1} parent=1 // pred_fallthru
      _
    // Predicated region
    $region14: #{tpu_custom_call.1} parent=1 // pred_check
      _
    $region15: #{tpu_custom_call.1} parent=1 // pred_check_branch
      %37 = sbr.rel (0) target = $region17
    $region16: #{tpu_custom_call.1} parent=1 // pred_region
      _
    $region17: #{tpu_custom_call.1} parent=1 // pred_fallthru
      _
    // Predicated region
    $region18: #{tpu_custom_call.1} parent=1 // pred_check
      _
    $region19: #{tpu_custom_call.1} parent=1 // pred_check_branch
      %39 = sbr.rel (0) target = $region21
    $region20: #{tpu_custom_call.1} parent=1 // pred_region
      _
    $region21: #{tpu_custom_call.1} parent=1 // pred_fallthru
      _
    // Predicated region
    $region22: #{tpu_custom_call.1} parent=1 // pred_check
      _
    $region23: #{tpu_custom_call.1} parent=1 // pred_check_branch
      %41 = sbr.rel (0) target = $region25
    $region24: #{tpu_custom_call.1} parent=1 // pred_region
      _
    $region25: #{tpu_custom_call.1} parent=1 // pred_fallthru
      _
    // Predicated region
    $region26: #{tpu_custom_call.1} parent=1 // pred_check
      _
    $region27: #{tpu_custom_call.1} parent=1 // pred_check_branch
      %43 = sbr.rel (0) target = $region29
    $region28: #{tpu_custom_call.1} parent=1 // pred_region
      _
    $region29: #{tpu_custom_call.1} parent=1 // pred_fallthru
      _
    // Predicated region
    $region30: #{tpu_custom_call.1} parent=1 // pred_check
      _
    $region31: #{tpu_custom_call.1} parent=1 // pred_check_branch
      %45 = sbr.rel (0) target = $region33
    $region32: #{tpu_custom_call.1} parent=1 // pred_region
      _
    $region33: #{tpu_custom_call.1} parent=1 // pred_fallthru
      _
    // Predicated region
    $region34: #{tpu_custom_call.1} parent=1 // pred_check
      _
    $region35: #{tpu_custom_call.1} parent=1 // pred_check_branch
      %47 = sbr.rel (0) target = $region37
    $region36: #{tpu_custom_call.1} parent=1 // pred_region
      _
    $region37: #{tpu_custom_call.1} parent=1 // pred_fallthru
      _
    // Predicated region
    $region38: #{tpu_custom_call.1} parent=1 // pred_check
      _
    $region39: #{tpu_custom_call.1} parent=1 // pred_check_branch
      %49 = sbr.rel (0) target = $region41
    $region40: #{tpu_custom_call.1} parent=1 // pred_region
      _
    $region41: #{tpu_custom_call.1} parent=1 // pred_fallthru
      _
    // Predicated region
    $region42: #{tpu_custom_call.1} parent=1 // pred_check
      _
    $region43: #{tpu_custom_call.1} parent=1 // pred_check_branch
      %51 = sbr.rel (0) target = $region45
    $region44: #{tpu_custom_call.1} parent=1 // pred_region
      _
    $region45: #{tpu_custom_call.1} parent=1 // pred_fallthru
      _
    // Predicated region
    $region46: #{tpu_custom_call.1} parent=1 // pred_check
      _
    $region47: #{tpu_custom_call.1} parent=1 // pred_check_branch
      %53 = sbr.rel (0) target = $region49
    $region48: #{tpu_custom_call.1} parent=1 // pred_region
      _
    $region49: #{tpu_custom_call.1} parent=1 // pred_fallthru
      _
    // Predicated region
    $region50: #{tpu_custom_call.1} parent=1 // pred_check
      _
    $region51: #{tpu_custom_call.1} parent=1 // pred_check_branch
      %55 = sbr.rel (0) target = $region53
    $region52: #{tpu_custom_call.1} parent=1 // pred_region
      _
    $region53: #{tpu_custom_call.1} parent=1 // pred_fallthru
      _
    // Predicated region
    $region54: #{tpu_custom_call.1} parent=1 // pred_check
      _
    $region55: #{tpu_custom_call.1} parent=1 // pred_check_branch
      %57 = sbr.rel (0) target = $region57
    $region56: #{tpu_custom_call.1} parent=1 // pred_region
      _
    $region57: #{tpu_custom_call.1} parent=1 // pred_fallthru
      _
    // Predicated region
    $region58: #{tpu_custom_call.1} parent=1 // pred_check
      _
    $region59: #{tpu_custom_call.1} parent=1 // pred_check_branch
      %59 = sbr.rel (0) target = $region61
    $region60: #{tpu_custom_call.1} parent=1 // pred_region
      _
    $region61: #{tpu_custom_call.1} parent=1 // pred_fallthru
      _
    // Predicated region
    $region62: #{tpu_custom_call.1} parent=1 // pred_check
      _
    $region63: #{tpu_custom_call.1} parent=1 // pred_check_branch
      %61 = sbr.rel (0) target = $region65
    $region64: #{tpu_custom_call.1} parent=1 // pred_region
      _
    $region65: #{tpu_custom_call.1} parent=1 // pred_fallthru
      _
    // Predicated region
    $region66: #{tpu_custom_call.1} parent=1 // pred_check
      _
    $region67: #{tpu_custom_call.1} parent=1 // pred_check_branch
      %63 = sbr.rel (0) target = $region69
    $region68: #{tpu_custom_call.1} parent=1 // pred_region
      _
    $region69: #{tpu_custom_call.1} parent=1 // pred_fallthru
      _
    // Predicated region
    $region70: #{tpu_custom_call.1} parent=1 // pred_check
      _
    $region71: #{tpu_custom_call.1} parent=1 // pred_check_branch
      %65 = sbr.rel (0) target = $region73
    $region72: #{tpu_custom_call.1} parent=1 // pred_region
      _
    $region73: #{tpu_custom_call.1} parent=1 // pred_fallthru
      _
    // Predicated region
    $region74: #{tpu_custom_call.1} parent=1 // pred_check
      _
    $region75: #{tpu_custom_call.1} parent=1 // pred_check_branch
      %67 = sbr.rel (0) target = $region77
    $region76: #{tpu_custom_call.1} parent=1 // pred_region
      _
    $region77: #{tpu_custom_call.1} parent=1 // pred_fallthru
      _
    // Predicated region
    $region78: #{tpu_custom_call.1} parent=1 // pred_check
      _
    $region79: #{tpu_custom_call.1} parent=1 // pred_check_branch
      %69 = sbr.rel (0) target = $region81
    $region80: #{tpu_custom_call.1} parent=1 // pred_region
      _
    $region81: #{tpu_custom_call.1} parent=1 // pred_fallthru
      _
    // Predicated region
    $region82: #{tpu_custom_call.1} parent=1 // pred_check
      _
    $region83: #{tpu_custom_call.1} parent=1 // pred_check_branch
      %71 = sbr.rel (0) target = $region85
    $region84: #{tpu_custom_call.1} parent=1 // pred_region
      _
    $region85: #{tpu_custom_call.1} parent=1 // pred_fallthru
      _
    // Predicated region
    $region86: #{tpu_custom_call.1} parent=1 // pred_check
      _
    $region87: #{tpu_custom_call.1} parent=1 // pred_check_branch
      %73 = sbr.rel (0) target = $region89
    $region88: #{tpu_custom_call.1} parent=1 // pred_region
      _
    $region89: #{tpu_custom_call.1} parent=1 // pred_fallthru
      _
    // Predicated region
    $region90: #{tpu_custom_call.1} parent=1 // pred_check
      _
    $region91: #{tpu_custom_call.1} parent=1 // pred_check_branch
      %75 = sbr.rel (0) target = $region93
    $region92: #{tpu_custom_call.1} parent=1 // pred_region
      _
    $region93: #{tpu_custom_call.1} parent=1 // pred_fallthru
      _
    // Predicated region
    $region94: #{tpu_custom_call.1} parent=1 // pred_check
      _
    $region95: #{tpu_custom_call.1} parent=1 // pred_check_branch
      %77 = sbr.rel (0) target = $region97
    $region96: #{tpu_custom_call.1} parent=1 // pred_region
      _
    $region97: #{tpu_custom_call.1} parent=1 // pred_fallthru
      _
    %v79 = vld [vmem:[%s0] sm:$0xff]
    %v80 = vld [vmem:[%s0 + $0x8] sm:$0xff]
    %v81 = vld [vmem:[%s0 + $0x10] sm:$0xff]
    %v82 = vld [vmem:[%s0 + $0x18] sm:$0xff]
    %v83 = vld [vmem:[%s0 + $0x20] sm:$0xff]
    %v84 = vld [vmem:[%s0 + $0x28] sm:$0xff]
    %v85 = vld [vmem:[%s0 + $0x30] sm:$0xff]
    %v86 = vld [vmem:[%s0 + $0x38] sm:$0xff]
    %v87 = vld [vmem:[%s0 + $0x40] sm:$0xff]
    %v88 = vld [vmem:[%s0 + $0x48] sm:$0xff]
    %v89 = vld [vmem:[%s0 + $0x50] sm:$0xff]
    %v90 = vld [vmem:[%s0 + $0x58] sm:$0xff]
    %v91 = vld [vmem:[%s0 + $0x60] sm:$0xff]
    %v92 = vld [vmem:[%s0 + $0x68] sm:$0xff]
    %v93 = vld [vmem:[%s0 + $0x70] sm:$0xff]
    %v94 = vld [vmem:[%s0 + $0x78] sm:$0xff]
    %v95 = vld [vmem:[%s0 + $0x80] sm:$0xff]
    %v96 = vld [vmem:[%s0 + $0x88] sm:$0xff]
    %v97 = vld [vmem:[%s1] sm:$0xff]
    %v98 = vld [vmem:[%s1 + $0x8] sm:$0xff]
    %v99 = vld [vmem:[%s1 + $0x10] sm:$0xff]
    %v100 = vld [vmem:[%s1 + $0x18] sm:$0xff]
    %v101 = vld [vmem:[%s1 + $0x20] sm:$0xff]
    %v102 = vld [vmem:[%s1 + $0x28] sm:$0xff]
    %v103 = vld [vmem:[%s1 + $0x30] sm:$0xff]
    %v104 = vld [vmem:[%s1 + $0x38] sm:$0xff]
    %v105 = vld [vmem:[%s1 + $0x40] sm:$0xff]
    %v106 = vld [vmem:[%s1 + $0x48] sm:$0xff]
    %v107 = vld [vmem:[%s1 + $0x50] sm:$0xff]
    %v108 = vld [vmem:[%s1 + $0x58] sm:$0xff]
    %v109 = vld [vmem:[%s1 + $0x60] sm:$0xff]
    %v110 = vld [vmem:[%s1 + $0x68] sm:$0xff]
    %v111 = vld [vmem:[%s1 + $0x70] sm:$0xff]
    %v112 = vld [vmem:[%s1 + $0x78] sm:$0xff]
    %v113 = vld [vmem:[%s1 + $0x80] sm:$0xff]
    %v114 = vld [vmem:[%s1 + $0x88] sm:$0xff]
    %v115 = vld [vmem:[%s1 + $0x90] sm:$0xff]
    %v116 = vld [vmem:[%s1 + $0x98] sm:$0xff]
    %v117 = vld [vmem:[%s1 + $0xa0] sm:$0xff]
    %v118 = vld [vmem:[%s1 + $0xa8] sm:$0xff]
    %v119 = vld [vmem:[%s1 + $0xb0] sm:$0xff]
    %v120 = vld [vmem:[%s1 + $0xb8] sm:$0xff]
    %v121 = vld [vmem:[%s1 + $0xc0] sm:$0xff]
    %v122 = vld [vmem:[%s1 + $0xc8] sm:$0xff]
    %v123 = vld [vmem:[%s1 + $0xd0] sm:$0xff]
    %v124 = vld [vmem:[%s1 + $0xd8] sm:$0xff]
    %v125 = vld [vmem:[%s1 + $0xe0] sm:$0xff]
    %v126 = vld [vmem:[%s1 + $0xe8] sm:$0xff]
    %v127 = vld [vmem:[%s1 + $0xf0] sm:$0xff]
    %v128 = vld [vmem:[%s1 + $0xf8] sm:$0xff]
    %v129 = vld [vmem:[%s1 + $0x100] sm:$0xff]
    %v130 = vld [vmem:[%s1 + $0x108] sm:$0xff]
    %v131 = vld [vmem:[%s1 + $0x110] sm:$0xff]
    %v132 = vld [vmem:[%s1 + $0x118] sm:$0xff]
    %v133 = vld [vmem:[%s2] sm:$0xff]
    %v134 = vld [vmem:[%s2 + $0x8] sm:$0xff]
    %v135 = vld [vmem:[%s2 + $0x10] sm:$0xff]
    %v136 = vld [vmem:[%s2 + $0x18] sm:$0xff]
    %v137 = vld [vmem:[%s2 + $0x20] sm:$0xff]
    %v138 = vld [vmem:[%s2 + $0x28] sm:$0xff]
    %v139 = vld [vmem:[%s2 + $0x30] sm:$0xff]
    %v140 = vld [vmem:[%s2 + $0x38] sm:$0xff]
    %v141 = vld [vmem:[%s2 + $0x40] sm:$0xff]
    %v142 = vld [vmem:[%s2 + $0x48] sm:$0xff]
    %v143 = vld [vmem:[%s2 + $0x50] sm:$0xff]
    %v144 = vld [vmem:[%s2 + $0x58] sm:$0xff]
    %v145 = vld [vmem:[%s2 + $0x60] sm:$0xff]
    %v146 = vld [vmem:[%s2 + $0x68] sm:$0xff]
    %v147 = vld [vmem:[%s2 + $0x70] sm:$0xff]
    %v148 = vld [vmem:[%s2 + $0x78] sm:$0xff]
    %v149 = vld [vmem:[%s2 + $0x80] sm:$0xff]
    %v150 = vld [vmem:[%s2 + $0x88] sm:$0xff]
    %v151 = vld [vmem:[%s5] sm:$0x1]
    %v152 = vld [vmem:[%s6] sm:$0x1]
    %vm153 = vcmask 261120
    %v154 = vsel %vm153, %v79, 0.0
    %155 = vadd.xlane.f32.xlu0 %v154
    %v156 = vpop.xlane.xlu0 %155
    %v157 = vsel %vm153, %v80, 0.0
    %158 = vadd.xlane.f32.xlu0 %v157
    %v159 = vpop.xlane.xlu0 %158
    %v160 = vsel %vm153, %v81, 0.0
    %161 = vadd.xlane.f32.xlu0 %v160
    %v162 = vpop.xlane.xlu0 %161
    %v163 = vsel %vm153, %v82, 0.0
    %164 = vadd.xlane.f32.xlu0 %v163
    %v165 = vpop.xlane.xlu0 %164
    %v166 = vsel %vm153, %v83, 0.0
    %167 = vadd.xlane.f32.xlu0 %v166
    %v168 = vpop.xlane.xlu0 %167
    %v169 = vsel %vm153, %v84, 0.0
    %170 = vadd.xlane.f32.xlu0 %v169
    %v171 = vpop.xlane.xlu0 %170
    %v172 = vsel %vm153, %v85, 0.0
    %173 = vadd.xlane.f32.xlu0 %v172
    %v174 = vpop.xlane.xlu0 %173
    %v175 = vsel %vm153, %v86, 0.0
    %176 = vadd.xlane.f32.xlu0 %v175
    %v177 = vpop.xlane.xlu0 %176
    %v178 = vsel %vm153, %v87, 0.0
    %179 = vadd.xlane.f32.xlu0 %v178
    %v180 = vpop.xlane.xlu0 %179
    %v181 = vsel %vm153, %v88, 0.0
    %182 = vadd.xlane.f32.xlu0 %v181
    %v183 = vpop.xlane.xlu0 %182
    %v184 = vsel %vm153, %v89, 0.0
    %185 = vadd.xlane.f32.xlu0 %v184
    %v186 = vpop.xlane.xlu0 %185
    %v187 = vsel %vm153, %v90, 0.0
    %188 = vadd.xlane.f32.xlu0 %v187
    %v189 = vpop.xlane.xlu0 %188
    %v190 = vsel %vm153, %v91, 0.0
    %191 = vadd.xlane.f32.xlu0 %v190
    %v192 = vpop.xlane.xlu0 %191
    %v193 = vsel %vm153, %v92, 0.0
    %194 = vadd.xlane.f32.xlu0 %v193
    %v195 = vpop.xlane.xlu0 %194
    %v196 = vsel %vm153, %v93, 0.0
    %197 = vadd.xlane.f32.xlu0 %v196
    %v198 = vpop.xlane.xlu0 %197
    %v199 = vsel %vm153, %v94, 0.0
    %200 = vadd.xlane.f32.xlu0 %v199
    %v201 = vpop.xlane.xlu0 %200
    %v202 = vsel %vm153, %v95, 0.0
    %203 = vadd.xlane.f32.xlu0 %v202
    %v204 = vpop.xlane.xlu0 %203
    %v205 = vsel %vm153, %v96, 0.0
    %206 = vadd.xlane.f32.xlu0 %v205
    %v207 = vpop.xlane.xlu0 %206
    %v208 = vrcp.pop 32.0
    %v209 = vmul.f32 %v156, %v208
    %v210 = vmul.f32 %v159, %v208
    %v211 = vmul.f32 %v162, %v208
    %v212 = vmul.f32 %v165, %v208
    %v213 = vmul.f32 %v168, %v208
    %v214 = vmul.f32 %v171, %v208
    %v215 = vmul.f32 %v174, %v208
    %v216 = vmul.f32 %v177, %v208
    %v217 = vmul.f32 %v180, %v208
    %v218 = vmul.f32 %v183, %v208
    %v219 = vmul.f32 %v186, %v208
    %v220 = vmul.f32 %v189, %v208
    %v221 = vmul.f32 %v192, %v208
    %v222 = vmul.f32 %v195, %v208
    %v223 = vmul.f32 %v198, %v208
    %v224 = vmul.f32 %v201, %v208
    %v225 = vmul.f32 %v204, %v208
    %v226 = vmul.f32 %v207, %v208
    %v227 = vsub.f32 %v79, %v209
    %v228 = vsub.f32 %v80, %v210
    %v229 = vsub.f32 %v81, %v211
    %v230 = vsub.f32 %v82, %v212
    %v231 = vsub.f32 %v83, %v213
    %v232 = vsub.f32 %v84, %v214
    %v233 = vsub.f32 %v85, %v215
    %v234 = vsub.f32 %v86, %v216
    %v235 = vsub.f32 %v87, %v217
    %v236 = vsub.f32 %v88, %v218
    %v237 = vsub.f32 %v89, %v219
    %v238 = vsub.f32 %v90, %v220
    %v239 = vsub.f32 %v91, %v221
    %v240 = vsub.f32 %v92, %v222
    %v241 = vsub.f32 %v93, %v223
    %v242 = vsub.f32 %v94, %v224
    %v243 = vsub.f32 %v95, %v225
    %v244 = vsub.f32 %v96, %v226
    %v245 = vmul.f32 %v227, %v227
    %v246 = vmul.f32 %v228, %v228
    %v247 = vmul.f32 %v229, %v229
    %v248 = vmul.f32 %v230, %v230
    %v249 = vmul.f32 %v231, %v231
    %v250 = vmul.f32 %v232, %v232
    %v251 = vmul.f32 %v233, %v233
    %v252 = vmul.f32 %v234, %v234
    %v253 = vmul.f32 %v235, %v235
    %v254 = vmul.f32 %v236, %v236
    %v255 = vmul.f32 %v237, %v237
    %v256 = vmul.f32 %v238, %v238
    %v257 = vmul.f32 %v239, %v239
    %v258 = vmul.f32 %v240, %v240
    %v259 = vmul.f32 %v241, %v241
    %v260 = vmul.f32 %v242, %v242
    %v261 = vmul.f32 %v243, %v243
    %v262 = vmul.f32 %v244, %v244
    %v263 = vsel %vm153, %v245, 0.0
    %264 = vadd.xlane.f32.xlu0 %v263
    %v265 = vpop.xlane.xlu0 %264
    %v266 = vsel %vm153, %v246, 0.0
    %267 = vadd.xlane.f32.xlu0 %v266
    %v268 = vpop.xlane.xlu0 %267
    %v269 = vsel %vm153, %v247, 0.0
    %270 = vadd.xlane.f32.xlu0 %v269
    %v271 = vpop.xlane.xlu0 %270
    %v272 = vsel %vm153, %v248, 0.0
    %273 = vadd.xlane.f32.xlu0 %v272
    %v274 = vpop.xlane.xlu0 %273
    %v275 = vsel %vm153, %v249, 0.0
    %276 = vadd.xlane.f32.xlu0 %v275
    %v277 = vpop.xlane.xlu0 %276
    %v278 = vsel %vm153, %v250, 0.0
    %279 = vadd.xlane.f32.xlu0 %v278
    %v280 = vpop.xlane.xlu0 %279
    %v281 = vsel %vm153, %v251, 0.0
    %282 = vadd.xlane.f32.xlu0 %v281
    %v283 = vpop.xlane.xlu0 %282
    %v284 = vsel %vm153, %v252, 0.0
    %285 = vadd.xlane.f32.xlu0 %v284
    %v286 = vpop.xlane.xlu0 %285
    %v287 = vsel %vm153, %v253, 0.0
    %288 = vadd.xlane.f32.xlu0 %v287
    %v289 = vpop.xlane.xlu0 %288
    %v290 = vsel %vm153, %v254, 0.0
    %291 = vadd.xlane.f32.xlu0 %v290
    %v292 = vpop.xlane.xlu0 %291
    %v293 = vsel %vm153, %v255, 0.0
    %294 = vadd.xlane.f32.xlu0 %v293
    %v295 = vpop.xlane.xlu0 %294
    %v296 = vsel %vm153, %v256, 0.0
    %297 = vadd.xlane.f32.xlu0 %v296
    %v298 = vpop.xlane.xlu0 %297
    %v299 = vsel %vm153, %v257, 0.0
    %300 = vadd.xlane.f32.xlu0 %v299
    %v301 = vpop.xlane.xlu0 %300
    %v302 = vsel %vm153, %v258, 0.0
    %303 = vadd.xlane.f32.xlu0 %v302
    %v304 = vpop.xlane.xlu0 %303
    %v305 = vsel %vm153, %v259, 0.0
    %306 = vadd.xlane.f32.xlu0 %v305
    %v307 = vpop.xlane.xlu0 %306
    %v308 = vsel %vm153, %v260, 0.0
    %309 = vadd.xlane.f32.xlu0 %v308
    %v310 = vpop.xlane.xlu0 %309
    %v311 = vsel %vm153, %v261, 0.0
    %312 = vadd.xlane.f32.xlu0 %v311
    %v313 = vpop.xlane.xlu0 %312
    %v314 = vsel %vm153, %v262, 0.0
    %315 = vadd.xlane.f32.xlu0 %v314
    %v316 = vpop.xlane.xlu0 %315
    %v317 = vmul.f32 %v265, %v208
    %v318 = vmul.f32 %v268, %v208
    %v319 = vmul.f32 %v271, %v208
    %v320 = vmul.f32 %v274, %v208
    %v321 = vmul.f32 %v277, %v208
    %v322 = vmul.f32 %v280, %v208
    %v323 = vmul.f32 %v283, %v208
    %v324 = vmul.f32 %v286, %v208
    %v325 = vmul.f32 %v289, %v208
    %v326 = vmul.f32 %v292, %v208
    %v327 = vmul.f32 %v295, %v208
    %v328 = vmul.f32 %v298, %v208
    %v329 = vmul.f32 %v301, %v208
    %v330 = vmul.f32 %v304, %v208
    %v331 = vmul.f32 %v307, %v208
    %v332 = vmul.f32 %v310, %v208
    %v333 = vmul.f32 %v313, %v208
    %v334 = vmul.f32 %v316, %v208
    %v335 = vadd.f32 %v317, 1e-05
    %v336 = vadd.f32 %v318, 1e-05
    %v337 = vadd.f32 %v319, 1e-05
    %v338 = vadd.f32 %v320, 1e-05
    %v339 = vadd.f32 %v321, 1e-05
    %v340 = vadd.f32 %v322, 1e-05
    %v341 = vadd.f32 %v323, 1e-05
    %v342 = vadd.f32 %v324, 1e-05
    %v343 = vadd.f32 %v325, 1e-05
    %v344 = vadd.f32 %v326, 1e-05
    %v345 = vadd.f32 %v327, 1e-05
    %v346 = vadd.f32 %v328, 1e-05
    %v347 = vadd.f32 %v329, 1e-05
    %v348 = vadd.f32 %v330, 1e-05
    %v349 = vadd.f32 %v331, 1e-05
    %v350 = vadd.f32 %v332, 1e-05
    %v351 = vadd.f32 %v333, 1e-05
    %v352 = vadd.f32 %v334, 1e-05
    %v353 = vrsqrt.pop %v335
    %v354 = vrsqrt.pop %v336
    %v355 = vrsqrt.pop %v337
    %v356 = vrsqrt.pop %v338
    %v357 = vrsqrt.pop %v339
    %v358 = vrsqrt.pop %v340
    %v359 = vrsqrt.pop %v341
    %v360 = vrsqrt.pop %v342
    %v361 = vrsqrt.pop %v343
    %v362 = vrsqrt.pop %v344
    %v363 = vrsqrt.pop %v345
    %v364 = vrsqrt.pop %v346
    %v365 = vrsqrt.pop %v347
    %v366 = vrsqrt.pop %v348
    %v367 = vrsqrt.pop %v349
    %v368 = vrsqrt.pop %v350
    %v369 = vrsqrt.pop %v351
    %v370 = vrsqrt.pop %v352
    %v371 = vmul.f32 %v227, %v353
    %v372 = vmul.f32 %v228, %v354
    %v373 = vmul.f32 %v229, %v355
    %v374 = vmul.f32 %v230, %v356
    %v375 = vmul.f32 %v231, %v357
    %v376 = vmul.f32 %v232, %v358
    %v377 = vmul.f32 %v233, %v359
    %v378 = vmul.f32 %v234, %v360
    %v379 = vmul.f32 %v235, %v361
    %v380 = vmul.f32 %v236, %v362
    %v381 = vmul.f32 %v237, %v363
    %v382 = vmul.f32 %v238, %v364
    %v383 = vmul.f32 %v239, %v365
    %v384 = vmul.f32 %v240, %v366
    %v385 = vmul.f32 %v241, %v367
    %v386 = vmul.f32 %v242, %v368
    %v387 = vmul.f32 %v243, %v369
    %v388 = vmul.f32 %v244, %v370
    %v390 = vlaneseq
    %v391 = vshrl.u32 %v390, 7
    %v392 = vsub.s32 0, %v391
    %v393 = vrot.slane %v151, %v392
    %v395 = vmul.f32 %v371, %v393
    %v396 = vmul.f32 %v372, %v393
    %v397 = vmul.f32 %v373, %v393
    %v398 = vmul.f32 %v374, %v393
    %v399 = vmul.f32 %v375, %v393
    %v400 = vmul.f32 %v376, %v393
    %v401 = vmul.f32 %v377, %v393
    %v402 = vmul.f32 %v378, %v393
    %v403 = vmul.f32 %v379, %v393
    %v404 = vmul.f32 %v380, %v393
    %v405 = vmul.f32 %v381, %v393
    %v406 = vmul.f32 %v382, %v393
    %v407 = vmul.f32 %v383, %v393
    %v408 = vmul.f32 %v384, %v393
    %v409 = vmul.f32 %v385, %v393
    %v410 = vmul.f32 %v386, %v393
    %v411 = vmul.f32 %v387, %v393
    %v412 = vmul.f32 %v388, %v393
    %v414 = vlaneseq
    %v415 = vshrl.u32 %v414, 7
    %v416 = vsub.s32 0, %v415
    %v417 = vrot.slane %v152, %v416
    %v419 = vadd.f32 %v395, %v417
    %v420 = vadd.f32 %v396, %v417
    %v421 = vadd.f32 %v397, %v417
    %v422 = vadd.f32 %v398, %v417
    %v423 = vadd.f32 %v399, %v417
    %v424 = vadd.f32 %v400, %v417
    %v425 = vadd.f32 %v401, %v417
    %v426 = vadd.f32 %v402, %v417
    %v427 = vadd.f32 %v403, %v417
    %v428 = vadd.f32 %v404, %v417
    %v429 = vadd.f32 %v405, %v417
    %v430 = vadd.f32 %v406, %v417
    %v431 = vadd.f32 %v407, %v417
    %v432 = vadd.f32 %v408, %v417
    %v433 = vadd.f32 %v409, %v417
    %v434 = vadd.f32 %v410, %v417
    %v435 = vadd.f32 %v411, %v417
    %v436 = vadd.f32 %v412, %v417
    %v437 = vpack.c.bf16 %v420, %v419
    %v438 = vpack.c.bf16 %v422, %v421
    %v439 = vpack.c.bf16 %v424, %v423
    %v440 = vpack.c.bf16 %v426, %v425
    %v441 = vpack.c.bf16 %v428, %v427
    %v442 = vpack.c.bf16 %v430, %v429
    %v443 = vpack.c.bf16 %v432, %v431
    %v444 = vpack.c.bf16 %v434, %v433
    %v445 = vpack.c.bf16 %v436, %v435
    %v446 = vld [vmem:[%s7] sm:$0xff]
    %v447 = vld [vmem:[%s7 + $0x8] sm:$0xff]
    %v448 = vld [vmem:[%s7 + $0x10] sm:$0xff]
    %v449 = vld [vmem:[%s7 + $0x18] sm:$0xff]
    %v454 = vunpack.c.l.b16 %v446
    %v455 = vunpack.c.h.b16 %v446
    %v456 = vunpack.c.l.b16 %v447
    %v457 = vunpack.c.h.b16 %v447
    %v458 = vunpack.c.l.b16 %v448
    %v459 = vunpack.c.h.b16 %v448
    %v460 = vunpack.c.l.b16 %v449
    %v461 = vunpack.c.h.b16 %v449
    %v462 = vpack.c.b16 %v456, %v454
    %v463 = vpack.c.b16 %v457, %v455
    %v464 = vpack.c.b16 %v460, %v458
    %v465 = vpack.c.b16 %v461, %v459
    %v471 = vsel %vm153, %v437, 0
    %v474 = vsel %vm153, %v438, 0
    %v477 = vsel %vm153, %v439, 0
    %v480 = vsel %vm153, %v440, 0
    %v483 = vsel %vm153, %v441, 0
    %v486 = vsel %vm153, %v442, 0
    %v489 = vsel %vm153, %v443, 0
    %v492 = vsel %vm153, %v444, 0
    %v495 = vsel %vm153, %v445, 0
    %497 = vmatprep.subr.bf16.mxu0 %v463
    %498 = vmatpush1.bf16.msra.mxu0 %v462
    %499 = vmatprep.subr.bf16.mxu0 %v465
    %500 = vmatpush1.bf16.msra.mxu0 %v464
    %501 = vmatprep.subr.bf16.mxu0 0
    %502 = vmatpush1.bf16.msra.mxu0 0
    %503 = vmatprep.subr.bf16.mxu0 0
    %504 = vmatpush1.bf16.msra.mxu0 0
    %505 = vmatprep.subr.bf16.mxu0 0
    %506 = vmatpush1.bf16.msra.mxu0 0
    %507 = vmatprep.subr.bf16.mxu0 0
    %508 = vmatpush1.bf16.msra.mxu0 0
    %509 = vmatprep.subr.bf16.mxu0 0
    %510 = vmatpush1.bf16.msra.mxu0 0
    %511 = vmatprep.subr.bf16.mxu0 0
    %512 = vmatpush1.bf16.msra.mxu0 0
    %513 = vmatprep.subr.bf16.mxu0 0
    %514 = vmatpush1.bf16.msra.mxu0 0
    %515 = vmatprep.subr.bf16.mxu0 0
    %516 = vmatpush1.bf16.msra.mxu0 0
    %517 = vmatprep.subr.bf16.mxu0 0
    %518 = vmatpush1.bf16.msra.mxu0 0
    %519 = vmatprep.subr.bf16.mxu0 0
    %520 = vmatpush1.bf16.msra.mxu0 0
    %521 = vmatprep.subr.bf16.mxu0 0
    %522 = vmatpush1.bf16.msra.mxu0 0
    %523 = vmatprep.subr.bf16.mxu0 0
    %524 = vmatpush1.bf16.msra.mxu0 0
    %525 = vmatprep.subr.bf16.mxu0 0
    %526 = vmatpush1.bf16.msra.mxu0 0
    %527 = vmatprep.subr.bf16.mxu0 0
    %528 = vmatpush1.bf16.msra.mxu0 0
    %529 = vmatprep.mubr.bf16.mxu0 0
    %530 = vmatmul.mubr.bf16.gmra.mrb[0].mxu0 %v471
    %v531 = vpop.f32.mrb[0].mxu0
    %v532 = vadd.f32 0.0, %v531
    %v533 = vpop.f32.mrb[0].mxu0
    %v534 = vadd.f32 0.0, %v533
    %v535 = vpop.f32.mrb[0].mxu0
    %v536 = vadd.f32 0.0, %v535
    %v537 = vpop.f32.mrb[0].mxu0
    %v538 = vadd.f32 0.0, %v537
    %539 = vmatprep.mubr.bf16.mxu0 0
    %540 = vmatmul.mubr.bf16.gmra.mrb[0].mxu0 %v474
    %v541 = vpop.f32.mrb[0].mxu0
    %v542 = vadd.f32 0.0, %v541
    %v543 = vpop.f32.mrb[0].mxu0
    %v544 = vadd.f32 0.0, %v543
    %v545 = vpop.f32.mrb[0].mxu0
    %v546 = vadd.f32 0.0, %v545
    %v547 = vpop.f32.mrb[0].mxu0
    %v548 = vadd.f32 0.0, %v547
    %549 = vmatprep.mubr.bf16.mxu0 0
    %550 = vmatmul.mubr.bf16.gmra.mrb[0].mxu0 %v477
    %v551 = vpop.f32.mrb[0].mxu0
    %v552 = vadd.f32 0.0, %v551
    %v553 = vpop.f32.mrb[0].mxu0
    %v554 = vadd.f32 0.0, %v553
    %v555 = vpop.f32.mrb[0].mxu0
    %v556 = vadd.f32 0.0, %v555
    %v557 = vpop.f32.mrb[0].mxu0
    %v558 = vadd.f32 0.0, %v557
    %559 = vmatprep.mubr.bf16.mxu0 0
    %560 = vmatmul.mubr.bf16.gmra.mrb[0].mxu0 %v480
    %v561 = vpop.f32.mrb[0].mxu0
    %v562 = vadd.f32 0.0, %v561
    %v563 = vpop.f32.mrb[0].mxu0
    %v564 = vadd.f32 0.0, %v563
    %v565 = vpop.f32.mrb[0].mxu0
    %v566 = vadd.f32 0.0, %v565
    %v567 = vpop.f32.mrb[0].mxu0
    %v568 = vadd.f32 0.0, %v567
    %569 = vmatprep.mubr.bf16.mxu0 0
    %570 = vmatmul.mubr.bf16.gmra.mrb[0].mxu0 %v483
    %v571 = vpop.f32.mrb[0].mxu0
    %v572 = vadd.f32 0.0, %v571
    %v573 = vpop.f32.mrb[0].mxu0
    %v574 = vadd.f32 0.0, %v573
    %v575 = vpop.f32.mrb[0].mxu0
    %v576 = vadd.f32 0.0, %v575
    %v577 = vpop.f32.mrb[0].mxu0
    %v578 = vadd.f32 0.0, %v577
    %579 = vmatprep.mubr.bf16.mxu0 0
    %580 = vmatmul.mubr.bf16.gmra.mrb[0].mxu0 %v486
    %v581 = vpop.f32.mrb[0].mxu0
    %v582 = vadd.f32 0.0, %v581
    %v583 = vpop.f32.mrb[0].mxu0
    %v584 = vadd.f32 0.0, %v583
    %v585 = vpop.f32.mrb[0].mxu0
    %v586 = vadd.f32 0.0, %v585
    %v587 = vpop.f32.mrb[0].mxu0
    %v588 = vadd.f32 0.0, %v587
    %589 = vmatprep.mubr.bf16.mxu0 0
    %590 = vmatmul.mubr.bf16.gmra.mrb[0].mxu0 %v489
    %v591 = vpop.f32.mrb[0].mxu0
    %v592 = vadd.f32 0.0, %v591
    %v593 = vpop.f32.mrb[0].mxu0
    %v594 = vadd.f32 0.0, %v593
    %v595 = vpop.f32.mrb[0].mxu0
    %v596 = vadd.f32 0.0, %v595
    %v597 = vpop.f32.mrb[0].mxu0
    %v598 = vadd.f32 0.0, %v597
    %599 = vmatprep.mubr.bf16.mxu0 0
    %600 = vmatmul.mubr.bf16.gmra.mrb[0].mxu0 %v492
    %v601 = vpop.f32.mrb[0].mxu0
    %v602 = vadd.f32 0.0, %v601
    %v603 = vpop.f32.mrb[0].mxu0
    %v604 = vadd.f32 0.0, %v603
    %v605 = vpop.f32.mrb[0].mxu0
    %v606 = vadd.f32 0.0, %v605
    %v607 = vpop.f32.mrb[0].mxu0
    %v608 = vadd.f32 0.0, %v607
    %609 = vmatprep.mubr.bf16.mxu0 0
    %610 = vmatmul.mubr.bf16.gmra.mrb[0].mxu0 %v495
    %v611 = vpop.f32.mrb[0].mxu0
    %v612 = vadd.f32 0.0, %v611
    %v613 = vpop.f32.mrb[0].mxu0
    %v614 = vadd.f32 0.0, %v613
    %v615 = vpop.f32.mrb[0].mxu0
    %v616 = vadd.f32 0.0, %v615
    %v617 = vpop.f32.mrb[0].mxu0
    %v618 = vadd.f32 0.0, %v617
    %619 = vdwg.mxu0
    %638 = vrot.lane.b32.xlu0 %v532, 64
    %v639 = vpop.permute.xlu0 %638
    %640 = vrot.lane.b32.xlu0 %v536, 64
    %v641 = vpop.permute.xlu0 %640
    %642 = vrot.lane.b32.xlu0 %v542, 64
    %v643 = vpop.permute.xlu0 %642
    %644 = vrot.lane.b32.xlu0 %v546, 64
    %v645 = vpop.permute.xlu0 %644
    %646 = vrot.lane.b32.xlu0 %v552, 64
    %v647 = vpop.permute.xlu0 %646
    %648 = vrot.lane.b32.xlu0 %v556, 64
    %v649 = vpop.permute.xlu0 %648
    %650 = vrot.lane.b32.xlu0 %v562, 64
    %v651 = vpop.permute.xlu0 %650
    %652 = vrot.lane.b32.xlu0 %v566, 64
    %v653 = vpop.permute.xlu0 %652
    %654 = vrot.lane.b32.xlu0 %v572, 64
    %v655 = vpop.permute.xlu0 %654
    %656 = vrot.lane.b32.xlu0 %v576, 64
    %v657 = vpop.permute.xlu0 %656
    %658 = vrot.lane.b32.xlu0 %v582, 64
    %v659 = vpop.permute.xlu0 %658
    %660 = vrot.lane.b32.xlu0 %v586, 64
    %v661 = vpop.permute.xlu0 %660
    %662 = vrot.lane.b32.xlu0 %v592, 64
    %v663 = vpop.permute.xlu0 %662
    %664 = vrot.lane.b32.xlu0 %v596, 64
    %v665 = vpop.permute.xlu0 %664
    %666 = vrot.lane.b32.xlu0 %v602, 64
    %v667 = vpop.permute.xlu0 %666
    %668 = vrot.lane.b32.xlu0 %v606, 64
    %v669 = vpop.permute.xlu0 %668
    %670 = vrot.lane.b32.xlu0 %v612, 64
    %v671 = vpop.permute.xlu0 %670
    %672 = vrot.lane.b32.xlu0 %v616, 64
    %v673 = vpop.permute.xlu0 %672
    %vm674 = vcmask 130048
    %v675 = vsel %vm674, %v532, 0
    %v677 = vsel %vm674, %v536, 0
    %v679 = vsel %vm674, %v542, 0
    %v681 = vsel %vm674, %v546, 0
    %v683 = vsel %vm674, %v552, 0
    %v685 = vsel %vm674, %v556, 0
    %v687 = vsel %vm674, %v562, 0
    %v689 = vsel %vm674, %v566, 0
    %v691 = vsel %vm674, %v572, 0
    %v693 = vsel %vm674, %v576, 0
    %v695 = vsel %vm674, %v582, 0
    %v697 = vsel %vm674, %v586, 0
    %v699 = vsel %vm674, %v592, 0
    %v701 = vsel %vm674, %v596, 0
    %v703 = vsel %vm674, %v602, 0
    %v705 = vsel %vm674, %v606, 0
    %v707 = vsel %vm674, %v612, 0
    %v709 = vsel %vm674, %v616, 0
    %v711 = vsel %vm674, %v639, 0
    %v713 = vsel %vm674, %v641, 0
    %v715 = vsel %vm674, %v643, 0
    %v717 = vsel %vm674, %v645, 0
    %v719 = vsel %vm674, %v647, 0
    %v721 = vsel %vm674, %v649, 0
    %v723 = vsel %vm674, %v651, 0
    %v725 = vsel %vm674, %v653, 0
    %v727 = vsel %vm674, %v655, 0
    %v729 = vsel %vm674, %v657, 0
    %v731 = vsel %vm674, %v659, 0
    %v733 = vsel %vm674, %v661, 0
    %v735 = vsel %vm674, %v663, 0
    %v737 = vsel %vm674, %v665, 0
    %v739 = vsel %vm674, %v667, 0
    %v741 = vsel %vm674, %v669, 0
    %v743 = vsel %vm674, %v671, 0
    %v745 = vsel %vm674, %v673, 0
    %747 = vmatprep.subr.mxu0 0.0
    %748 = vmatpush1.xpose.msra.mxu0 %v711
    %749 = vmatprep.subr.mxu0 0.0
    %750 = vmatpush1.xpose.msra.mxu0 %v713
    %751 = vmatprep.subr.mxu0 0.0
    %752 = vmatpush1.xpose.msra.mxu0 %v715
    %753 = vmatprep.subr.mxu0 0.0
    %754 = vmatpush1.xpose.msra.mxu0 %v717
    %755 = vmatprep.subr.mxu0 0.0
    %756 = vmatpush1.xpose.msra.mxu0 %v719
    %757 = vmatprep.subr.mxu0 0.0
    %758 = vmatpush1.xpose.msra.mxu0 %v721
    %759 = vmatprep.subr.mxu0 0.0
    %760 = vmatpush1.xpose.msra.mxu0 %v723
    %761 = vmatprep.subr.mxu0 0.0
    %762 = vmatpush1.xpose.msra.mxu0 %v725
    %763 = vmatprep.subr.mxu0 0.0
    %764 = vmatpush1.xpose.msra.mxu0 %v727
    %765 = vmatprep.subr.mxu0 0.0
    %766 = vmatpush1.xpose.msra.mxu0 %v729
    %767 = vmatprep.subr.mxu0 0.0
    %768 = vmatpush1.xpose.msra.mxu0 %v731
    %769 = vmatprep.subr.mxu0 0.0
    %770 = vmatpush1.xpose.msra.mxu0 %v733
    %771 = vmatprep.subr.mxu0 0.0
    %772 = vmatpush1.xpose.msra.mxu0 %v735
    %773 = vmatprep.subr.mxu0 0.0
    %774 = vmatpush1.xpose.msra.mxu0 %v737
    %775 = vmatprep.subr.mxu0 0.0
    %776 = vmatpush1.xpose.msra.mxu0 %v739
    %777 = vmatprep.subr.mxu0 0.0
    %778 = vmatpush1.xpose.msra.mxu0 %v741
    %779 = vmatprep.subr.mxu0 0.0
    %780 = vmatpush1.xpose.msra.mxu0 %v743
    %781 = vmatprep.subr.mxu0 0.0
    %782 = vmatpush1.xpose.msra.mxu0 %v745
    %783 = vmatprep.subr.mxu0 0.0
    %784 = vmatpush1.xpose.msra.mxu0 0.0
    %785 = vmatprep.subr.mxu0 0.0
    %786 = vmatpush1.xpose.msra.mxu0 0.0
    %787 = vmatprep.subr.mxu0 0.0
    %788 = vmatpush1.xpose.msra.mxu0 0.0
    %789 = vmatprep.subr.mxu0 0.0
    %790 = vmatpush1.xpose.msra.mxu0 0.0
    %791 = vmatprep.subr.mxu0 0.0
    %792 = vmatpush1.xpose.msra.mxu0 0.0
    %793 = vmatprep.subr.mxu0 0.0
    %794 = vmatpush1.xpose.msra.mxu0 0.0
    %795 = vmatprep.subr.mxu0 0.0
    %796 = vmatpush1.xpose.msra.mxu0 0.0
    %797 = vmatprep.subr.mxu0 0.0
    %798 = vmatpush1.xpose.msra.mxu0 0.0
    %799 = vmatprep.subr.mxu0 0.0
    %800 = vmatpush1.xpose.msra.mxu0 0.0
    %801 = vmatprep.subr.mxu0 0.0
    %802 = vmatpush1.xpose.msra.mxu0 0.0
    %803 = vmatprep.subr.mxu0 0.0
    %804 = vmatpush1.xpose.msra.mxu0 0.0
    %805 = vmatprep.subr.mxu0 0.0
    %806 = vmatpush1.xpose.msra.mxu0 0.0
    %807 = vmatprep.subr.mxu0 0.0
    %808 = vmatpush1.xpose.msra.mxu0 0.0
    %809 = vmatprep.subr.mxu0 0.0
    %810 = vmatpush1.xpose.msra.mxu0 0.0
    %811 = vmatprep.mubr.f32.mxu0 0.0
    %812 = vmatmul.mubr.f32.gmra.mrb[0].mxu0 %v675
    %v813 = vpop.f32.mrb[0].mxu0
    %v814 = vadd.f32 0.0, %v813
    %v815 = vpop.f32.mrb[0].mxu0
    %v816 = vadd.f32 0.0, %v815
    %817 = vmatprep.mubr.f32.mxu0 0.0
    %818 = vmatmul.mubr.f32.gmra.mrb[0].mxu0 %v677
    %v819 = vpop.f32.mrb[0].mxu0
    %v820 = vadd.f32 0.0, %v819
    %v821 = vpop.f32.mrb[0].mxu0
    %v822 = vadd.f32 0.0, %v821
    %823 = vmatprep.mubr.f32.mxu0 0.0
    %824 = vmatmul.mubr.f32.gmra.mrb[0].mxu0 %v679
    %v825 = vpop.f32.mrb[0].mxu0
    %v826 = vadd.f32 0.0, %v825
    %v827 = vpop.f32.mrb[0].mxu0
    %v828 = vadd.f32 0.0, %v827
    %829 = vmatprep.mubr.f32.mxu0 0.0
    %830 = vmatmul.mubr.f32.gmra.mrb[0].mxu0 %v681
    %v831 = vpop.f32.mrb[0].mxu0
    %v832 = vadd.f32 0.0, %v831
    %v833 = vpop.f32.mrb[0].mxu0
    %v834 = vadd.f32 0.0, %v833
    %835 = vmatprep.mubr.f32.mxu0 0.0
    %836 = vmatmul.mubr.f32.gmra.mrb[0].mxu0 %v683
    %v837 = vpop.f32.mrb[0].mxu0
    %v838 = vadd.f32 0.0, %v837
    %v839 = vpop.f32.mrb[0].mxu0
    %v840 = vadd.f32 0.0, %v839
    %841 = vmatprep.mubr.f32.mxu0 0.0
    %842 = vmatmul.mubr.f32.gmra.mrb[0].mxu0 %v685
    %v843 = vpop.f32.mrb[0].mxu0
    %v844 = vadd.f32 0.0, %v843
    %v845 = vpop.f32.mrb[0].mxu0
    %v846 = vadd.f32 0.0, %v845
    %847 = vmatprep.mubr.f32.mxu0 0.0
    %848 = vmatmul.mubr.f32.gmra.mrb[0].mxu0 %v687
    %v849 = vpop.f32.mrb[0].mxu0
    %v850 = vadd.f32 0.0, %v849
    %v851 = vpop.f32.mrb[0].mxu0
    %v852 = vadd.f32 0.0, %v851
    %853 = vmatprep.mubr.f32.mxu0 0.0
    %854 = vmatmul.mubr.f32.gmra.mrb[0].mxu0 %v689
    %v855 = vpop.f32.mrb[0].mxu0
    %v856 = vadd.f32 0.0, %v855
    %v857 = vpop.f32.mrb[0].mxu0
    %v858 = vadd.f32 0.0, %v857
    %859 = vmatprep.mubr.f32.mxu0 0.0
    %860 = vmatmul.mubr.f32.gmra.mrb[0].mxu0 %v691
    %v861 = vpop.f32.mrb[0].mxu0
    %v862 = vadd.f32 0.0, %v861
    %v863 = vpop.f32.mrb[0].mxu0
    %v864 = vadd.f32 0.0, %v863
    %865 = vmatprep.mubr.f32.mxu0 0.0
    %866 = vmatmul.mubr.f32.gmra.mrb[0].mxu0 %v693
    %v867 = vpop.f32.mrb[0].mxu0
    %v868 = vadd.f32 0.0, %v867
    %v869 = vpop.f32.mrb[0].mxu0
    %v870 = vadd.f32 0.0, %v869
    %871 = vmatprep.mubr.f32.mxu0 0.0
    %872 = vmatmul.mubr.f32.gmra.mrb[0].mxu0 %v695
    %v873 = vpop.f32.mrb[0].mxu0
    %v874 = vadd.f32 0.0, %v873
    %v875 = vpop.f32.mrb[0].mxu0
    %v876 = vadd.f32 0.0, %v875
    %877 = vmatprep.mubr.f32.mxu0 0.0
    %878 = vmatmul.mubr.f32.gmra.mrb[0].mxu0 %v697
    %v879 = vpop.f32.mrb[0].mxu0
    %v880 = vadd.f32 0.0, %v879
    %v881 = vpop.f32.mrb[0].mxu0
    %v882 = vadd.f32 0.0, %v881
    %883 = vmatprep.mubr.f32.mxu0 0.0
    %884 = vmatmul.mubr.f32.gmra.mrb[0].mxu0 %v699
    %v885 = vpop.f32.mrb[0].mxu0
    %v886 = vadd.f32 0.0, %v885
    %v887 = vpop.f32.mrb[0].mxu0
    %v888 = vadd.f32 0.0, %v887
    %889 = vmatprep.mubr.f32.mxu0 0.0
    %890 = vmatmul.mubr.f32.gmra.mrb[0].mxu0 %v701
    %v891 = vpop.f32.mrb[0].mxu0
    %v892 = vadd.f32 0.0, %v891
    %v893 = vpop.f32.mrb[0].mxu0
    %v894 = vadd.f32 0.0, %v893
    %895 = vmatprep.mubr.f32.mxu0 0.0
    %896 = vmatmul.mubr.f32.gmra.mrb[0].mxu0 %v703
    %v897 = vpop.f32.mrb[0].mxu0
    %v898 = vadd.f32 0.0, %v897
    %v899 = vpop.f32.mrb[0].mxu0
    %v900 = vadd.f32 0.0, %v899
    %901 = vmatprep.mubr.f32.mxu0 0.0
    %902 = vmatmul.mubr.f32.gmra.mrb[0].mxu0 %v705
    %v903 = vpop.f32.mrb[0].mxu0
    %v904 = vadd.f32 0.0, %v903
    %v905 = vpop.f32.mrb[0].mxu0
    %v906 = vadd.f32 0.0, %v905
    %907 = vmatprep.mubr.f32.mxu0 0.0
    %908 = vmatmul.mubr.f32.gmra.mrb[0].mxu0 %v707
    %v909 = vpop.f32.mrb[0].mxu0
    %v910 = vadd.f32 0.0, %v909
    %v911 = vpop.f32.mrb[0].mxu0
    %v912 = vadd.f32 0.0, %v911
    %913 = vmatprep.mubr.f32.mxu0 0.0
    %914 = vmatmul.mubr.f32.gmra.mrb[0].mxu0 %v709
    %v915 = vpop.f32.mrb[0].mxu0
    %v916 = vadd.f32 0.0, %v915
    %v917 = vpop.f32.mrb[0].mxu0
    %v918 = vadd.f32 0.0, %v917
    %919 = vdwg.mxu0
    %v920 = vmul.f32 %v814, 0.25
    %v921 = vmul.f32 %v816, 0.25
    %v922 = vmul.f32 %v820, 0.25
    %v923 = vmul.f32 %v822, 0.25
    %v924 = vmul.f32 %v826, 0.25
    %v925 = vmul.f32 %v828, 0.25
    %v926 = vmul.f32 %v832, 0.25
    %v927 = vmul.f32 %v834, 0.25
    %v928 = vmul.f32 %v838, 0.25
    %v929 = vmul.f32 %v840, 0.25
    %v930 = vmul.f32 %v844, 0.25
    %v931 = vmul.f32 %v846, 0.25
    %v932 = vmul.f32 %v850, 0.25
    %v933 = vmul.f32 %v852, 0.25
    %v934 = vmul.f32 %v856, 0.25
    %v935 = vmul.f32 %v858, 0.25
    %v936 = vmul.f32 %v862, 0.25
    %v937 = vmul.f32 %v864, 0.25
    %v938 = vmul.f32 %v868, 0.25
    %v939 = vmul.f32 %v870, 0.25
    %v940 = vmul.f32 %v874, 0.25
    %v941 = vmul.f32 %v876, 0.25
    %v942 = vmul.f32 %v880, 0.25
    %v943 = vmul.f32 %v882, 0.25
    %v944 = vmul.f32 %v886, 0.25
    %v945 = vmul.f32 %v888, 0.25
    %v946 = vmul.f32 %v892, 0.25
    %v947 = vmul.f32 %v894, 0.25
    %v948 = vmul.f32 %v898, 0.25
    %v949 = vmul.f32 %v900, 0.25
    %v950 = vmul.f32 %v904, 0.25
    %v951 = vmul.f32 %v906, 0.25
    %v952 = vmul.f32 %v910, 0.25
    %v953 = vmul.f32 %v912, 0.25
    %v954 = vmul.f32 %v916, 0.25
    %v955 = vmul.f32 %v918, 0.25
    %v956 = vadd.f32 %v920, %v97
    %v957 = vadd.f32 %v921, %v98
    %v958 = vadd.f32 %v922, %v99
    %v959 = vadd.f32 %v923, %v100
    %v960 = vadd.f32 %v924, %v101
    %v961 = vadd.f32 %v925, %v102
    %v962 = vadd.f32 %v926, %v103
    %v963 = vadd.f32 %v927, %v104
    %v964 = vadd.f32 %v928, %v105
    %v965 = vadd.f32 %v929, %v106
    %v966 = vadd.f32 %v930, %v107
    %v967 = vadd.f32 %v931, %v108
    %v968 = vadd.f32 %v932, %v109
    %v969 = vadd.f32 %v933, %v110
    %v970 = vadd.f32 %v934, %v111
    %v971 = vadd.f32 %v935, %v112
    %v972 = vadd.f32 %v936, %v113
    %v973 = vadd.f32 %v937, %v114
    %v974 = vadd.f32 %v938, %v115
    %v975 = vadd.f32 %v939, %v116
    %v976 = vadd.f32 %v940, %v117
    %v977 = vadd.f32 %v941, %v118
    %v978 = vadd.f32 %v942, %v119
    %v979 = vadd.f32 %v943, %v120
    %v980 = vadd.f32 %v944, %v121
    %v981 = vadd.f32 %v945, %v122
    %v982 = vadd.f32 %v946, %v123
    %v983 = vadd.f32 %v947, %v124
    %v984 = vadd.f32 %v948, %v125
    %v985 = vadd.f32 %v949, %v126
    %v986 = vadd.f32 %v950, %v127
    %v987 = vadd.f32 %v951, %v128
    %v988 = vadd.f32 %v952, %v129
    %v989 = vadd.f32 %v953, %v130
    %v990 = vadd.f32 %v954, %v131
    %v991 = vadd.f32 %v955, %v132
    %v992 = vsel %vm674, %v957, -inf
    %v993 = vmax.f32 %v956, %v992
    %994 = vmax.xlane.f32.xlu0 %v993
    %v995 = vpop.xlane.xlu0 %994
    %v996 = vsel %vm674, %v959, -inf
    %v997 = vmax.f32 %v958, %v996
    %998 = vmax.xlane.f32.xlu0 %v997
    %v999 = vpop.xlane.xlu0 %998
    %v1000 = vsel %vm674, %v961, -inf
    %v1001 = vmax.f32 %v960, %v1000
    %1002 = vmax.xlane.f32.xlu0 %v1001
    %v1003 = vpop.xlane.xlu0 %1002
    %v1004 = vsel %vm674, %v963, -inf
    %v1005 = vmax.f32 %v962, %v1004
    %1006 = vmax.xlane.f32.xlu0 %v1005
    %v1007 = vpop.xlane.xlu0 %1006
    %v1008 = vsel %vm674, %v965, -inf
    %v1009 = vmax.f32 %v964, %v1008
    %1010 = vmax.xlane.f32.xlu0 %v1009
    %v1011 = vpop.xlane.xlu0 %1010
    %v1012 = vsel %vm674, %v967, -inf
    %v1013 = vmax.f32 %v966, %v1012
    %1014 = vmax.xlane.f32.xlu0 %v1013
    %v1015 = vpop.xlane.xlu0 %1014
    %v1016 = vsel %vm674, %v969, -inf
    %v1017 = vmax.f32 %v968, %v1016
    %1018 = vmax.xlane.f32.xlu0 %v1017
    %v1019 = vpop.xlane.xlu0 %1018
    %v1020 = vsel %vm674, %v971, -inf
    %v1021 = vmax.f32 %v970, %v1020
    %1022 = vmax.xlane.f32.xlu0 %v1021
    %v1023 = vpop.xlane.xlu0 %1022
    %v1024 = vsel %vm674, %v973, -inf
    %v1025 = vmax.f32 %v972, %v1024
    %1026 = vmax.xlane.f32.xlu0 %v1025
    %v1027 = vpop.xlane.xlu0 %1026
    %v1028 = vsel %vm674, %v975, -inf
    %v1029 = vmax.f32 %v974, %v1028
    %1030 = vmax.xlane.f32.xlu0 %v1029
    %v1031 = vpop.xlane.xlu0 %1030
    %v1032 = vsel %vm674, %v977, -inf
    %v1033 = vmax.f32 %v976, %v1032
    %1034 = vmax.xlane.f32.xlu0 %v1033
    %v1035 = vpop.xlane.xlu0 %1034
    %v1036 = vsel %vm674, %v979, -inf
    %v1037 = vmax.f32 %v978, %v1036
    %1038 = vmax.xlane.f32.xlu0 %v1037
    %v1039 = vpop.xlane.xlu0 %1038
    %v1040 = vsel %vm674, %v981, -inf
    %v1041 = vmax.f32 %v980, %v1040
    %1042 = vmax.xlane.f32.xlu0 %v1041
    %v1043 = vpop.xlane.xlu0 %1042
    %v1044 = vsel %vm674, %v983, -inf
    %v1045 = vmax.f32 %v982, %v1044
    %1046 = vmax.xlane.f32.xlu0 %v1045
    %v1047 = vpop.xlane.xlu0 %1046
    %v1048 = vsel %vm674, %v985, -inf
    %v1049 = vmax.f32 %v984, %v1048
    %1050 = vmax.xlane.f32.xlu0 %v1049
    %v1051 = vpop.xlane.xlu0 %1050
    %v1052 = vsel %vm674, %v987, -inf
    %v1053 = vmax.f32 %v986, %v1052
    %1054 = vmax.xlane.f32.xlu0 %v1053
    %v1055 = vpop.xlane.xlu0 %1054
    %v1056 = vsel %vm674, %v989, -inf
    %v1057 = vmax.f32 %v988, %v1056
    %1058 = vmax.xlane.f32.xlu0 %v1057
    %v1059 = vpop.xlane.xlu0 %1058
    %v1060 = vsel %vm674, %v991, -inf
    %v1061 = vmax.f32 %v990, %v1060
    %1062 = vmax.xlane.f32.xlu0 %v1061
    %v1063 = vpop.xlane.xlu0 %1062
    %v1064 = vsub.f32 %v956, %v995
    %v1065 = vsub.f32 %v957, %v995
    %v1066 = vsub.f32 %v958, %v999
    %v1067 = vsub.f32 %v959, %v999
    %v1068 = vsub.f32 %v960, %v1003
    %v1069 = vsub.f32 %v961, %v1003
    %v1070 = vsub.f32 %v962, %v1007
    %v1071 = vsub.f32 %v963, %v1007
    %v1072 = vsub.f32 %v964, %v1011
    %v1073 = vsub.f32 %v965, %v1011
    %v1074 = vsub.f32 %v966, %v1015
    %v1075 = vsub.f32 %v967, %v1015
    %v1076 = vsub.f32 %v968, %v1019
    %v1077 = vsub.f32 %v969, %v1019
    %v1078 = vsub.f32 %v970, %v1023
    %v1079 = vsub.f32 %v971, %v1023
    %v1080 = vsub.f32 %v972, %v1027
    %v1081 = vsub.f32 %v973, %v1027
    %v1082 = vsub.f32 %v974, %v1031
    %v1083 = vsub.f32 %v975, %v1031
    %v1084 = vsub.f32 %v976, %v1035
    %v1085 = vsub.f32 %v977, %v1035
    %v1086 = vsub.f32 %v978, %v1039
    %v1087 = vsub.f32 %v979, %v1039
    %v1088 = vsub.f32 %v980, %v1043
    %v1089 = vsub.f32 %v981, %v1043
    %v1090 = vsub.f32 %v982, %v1047
    %v1091 = vsub.f32 %v983, %v1047
    %v1092 = vsub.f32 %v984, %v1051
    %v1093 = vsub.f32 %v985, %v1051
    %v1094 = vsub.f32 %v986, %v1055
    %v1095 = vsub.f32 %v987, %v1055
    %v1096 = vsub.f32 %v988, %v1059
    %v1097 = vsub.f32 %v989, %v1059
    %v1098 = vsub.f32 %v990, %v1063
    %v1099 = vsub.f32 %v991, %v1063
    %v1100 = vmul.f32 %v1064, 1.442695
    %v1101 = vpow.pop %v1100
    %v1102 = vmul.f32 %v1065, 1.442695
    %v1103 = vpow.pop %v1102
    %v1104 = vmul.f32 %v1066, 1.442695
    %v1105 = vpow.pop %v1104
    %v1106 = vmul.f32 %v1067, 1.442695
    %v1107 = vpow.pop %v1106
    %v1108 = vmul.f32 %v1068, 1.442695
    %v1109 = vpow.pop %v1108
    %v1110 = vmul.f32 %v1069, 1.442695
    %v1111 = vpow.pop %v1110
    %v1112 = vmul.f32 %v1070, 1.442695
    %v1113 = vpow.pop %v1112
    %v1114 = vmul.f32 %v1071, 1.442695
    %v1115 = vpow.pop %v1114
    %v1116 = vmul.f32 %v1072, 1.442695
    %v1117 = vpow.pop %v1116
    %v1118 = vmul.f32 %v1073, 1.442695
    %v1119 = vpow.pop %v1118
    %v1120 = vmul.f32 %v1074, 1.442695
    %v1121 = vpow.pop %v1120
    %v1122 = vmul.f32 %v1075, 1.442695
    %v1123 = vpow.pop %v1122
    %v1124 = vmul.f32 %v1076, 1.442695
    %v1125 = vpow.pop %v1124
    %v1126 = vmul.f32 %v1077, 1.442695
    %v1127 = vpow.pop %v1126
    %v1128 = vmul.f32 %v1078, 1.442695
    %v1129 = vpow.pop %v1128
    %v1130 = vmul.f32 %v1079, 1.442695
    %v1131 = vpow.pop %v1130
    %v1132 = vmul.f32 %v1080, 1.442695
    %v1133 = vpow.pop %v1132
    %v1134 = vmul.f32 %v1081, 1.442695
    %v1135 = vpow.pop %v1134
    %v1136 = vmul.f32 %v1082, 1.442695
    %v1137 = vpow.pop %v1136
    %v1138 = vmul.f32 %v1083, 1.442695
    %v1139 = vpow.pop %v1138
    %v1140 = vmul.f32 %v1084, 1.442695
    %v1141 = vpow.pop %v1140
    %v1142 = vmul.f32 %v1085, 1.442695
    %v1143 = vpow.pop %v1142
    %v1144 = vmul.f32 %v1086, 1.442695
    %v1145 = vpow.pop %v1144
    %v1146 = vmul.f32 %v1087, 1.442695
    %v1147 = vpow.pop %v1146
    %v1148 = vmul.f32 %v1088, 1.442695
    %v1149 = vpow.pop %v1148
    %v1150 = vmul.f32 %v1089, 1.442695
    %v1151 = vpow.pop %v1150
    %v1152 = vmul.f32 %v1090, 1.442695
    %v1153 = vpow.pop %v1152
    %v1154 = vmul.f32 %v1091, 1.442695
    %v1155 = vpow.pop %v1154
    %v1156 = vmul.f32 %v1092, 1.442695
    %v1157 = vpow.pop %v1156
    %v1158 = vmul.f32 %v1093, 1.442695
    %v1159 = vpow.pop %v1158
    %v1160 = vmul.f32 %v1094, 1.442695
    %v1161 = vpow.pop %v1160
    %v1162 = vmul.f32 %v1095, 1.442695
    %v1163 = vpow.pop %v1162
    %v1164 = vmul.f32 %v1096, 1.442695
    %v1165 = vpow.pop %v1164
    %v1166 = vmul.f32 %v1097, 1.442695
    %v1167 = vpow.pop %v1166
    %v1168 = vmul.f32 %v1098, 1.442695
    %v1169 = vpow.pop %v1168
    %v1170 = vmul.f32 %v1099, 1.442695
    %v1171 = vpow.pop %v1170
    %v1172 = vsel %vm674, %v1103, 0.0
    %v1173 = vadd.f32 %v1101, %v1172
    %1174 = vadd.xlane.f32.xlu0 %v1173
    %v1175 = vpop.xlane.xlu0 %1174
    %v1176 = vsel %vm674, %v1107, 0.0
    %v1177 = vadd.f32 %v1105, %v1176
    %1178 = vadd.xlane.f32.xlu0 %v1177
    %v1179 = vpop.xlane.xlu0 %1178
    %v1180 = vsel %vm674, %v1111, 0.0
    %v1181 = vadd.f32 %v1109, %v1180
    %1182 = vadd.xlane.f32.xlu0 %v1181
    %v1183 = vpop.xlane.xlu0 %1182
    %v1184 = vsel %vm674, %v1115, 0.0
    %v1185 = vadd.f32 %v1113, %v1184
    %1186 = vadd.xlane.f32.xlu0 %v1185
    %v1187 = vpop.xlane.xlu0 %1186
    %v1188 = vsel %vm674, %v1119, 0.0
    %v1189 = vadd.f32 %v1117, %v1188
    %1190 = vadd.xlane.f32.xlu0 %v1189
    %v1191 = vpop.xlane.xlu0 %1190
    %v1192 = vsel %vm674, %v1123, 0.0
    %v1193 = vadd.f32 %v1121, %v1192
    %1194 = vadd.xlane.f32.xlu0 %v1193
    %v1195 = vpop.xlane.xlu0 %1194
    %v1196 = vsel %vm674, %v1127, 0.0
    %v1197 = vadd.f32 %v1125, %v1196
    %1198 = vadd.xlane.f32.xlu0 %v1197
    %v1199 = vpop.xlane.xlu0 %1198
    %v1200 = vsel %vm674, %v1131, 0.0
    %v1201 = vadd.f32 %v1129, %v1200
    %1202 = vadd.xlane.f32.xlu0 %v1201
    %v1203 = vpop.xlane.xlu0 %1202
    %v1204 = vsel %vm674, %v1135, 0.0
    %v1205 = vadd.f32 %v1133, %v1204
    %1206 = vadd.xlane.f32.xlu0 %v1205
    %v1207 = vpop.xlane.xlu0 %1206
    %v1208 = vsel %vm674, %v1139, 0.0
    %v1209 = vadd.f32 %v1137, %v1208
    %1210 = vadd.xlane.f32.xlu0 %v1209
    %v1211 = vpop.xlane.xlu0 %1210
    %v1212 = vsel %vm674, %v1143, 0.0
    %v1213 = vadd.f32 %v1141, %v1212
    %1214 = vadd.xlane.f32.xlu0 %v1213
    %v1215 = vpop.xlane.xlu0 %1214
    %v1216 = vsel %vm674, %v1147, 0.0
    %v1217 = vadd.f32 %v1145, %v1216
    %1218 = vadd.xlane.f32.xlu0 %v1217
    %v1219 = vpop.xlane.xlu0 %1218
    %v1220 = vsel %vm674, %v1151, 0.0
    %v1221 = vadd.f32 %v1149, %v1220
    %1222 = vadd.xlane.f32.xlu0 %v1221
    %v1223 = vpop.xlane.xlu0 %1222
    %v1224 = vsel %vm674, %v1155, 0.0
    %v1225 = vadd.f32 %v1153, %v1224
    %1226 = vadd.xlane.f32.xlu0 %v1225
    %v1227 = vpop.xlane.xlu0 %1226
    %v1228 = vsel %vm674, %v1159, 0.0
    %v1229 = vadd.f32 %v1157, %v1228
    %1230 = vadd.xlane.f32.xlu0 %v1229
    %v1231 = vpop.xlane.xlu0 %1230
    %v1232 = vsel %vm674, %v1163, 0.0
    %v1233 = vadd.f32 %v1161, %v1232
    %1234 = vadd.xlane.f32.xlu0 %v1233
    %v1235 = vpop.xlane.xlu0 %1234
    %v1236 = vsel %vm674, %v1167, 0.0
    %v1237 = vadd.f32 %v1165, %v1236
    %1238 = vadd.xlane.f32.xlu0 %v1237
    %v1239 = vpop.xlane.xlu0 %1238
    %v1240 = vsel %vm674, %v1171, 0.0
    %v1241 = vadd.f32 %v1169, %v1240
    %1242 = vadd.xlane.f32.xlu0 %v1241
    %v1243 = vpop.xlane.xlu0 %1242
    %v1244 = vrcp.pop %v1175
    %v1245 = vrcp.pop %v1179
    %v1246 = vrcp.pop %v1183
    %v1247 = vrcp.pop %v1187
    %v1248 = vrcp.pop %v1191
    %v1249 = vrcp.pop %v1195
    %v1250 = vrcp.pop %v1199
    %v1251 = vrcp.pop %v1203
    %v1252 = vrcp.pop %v1207
    %v1253 = vrcp.pop %v1211
    %v1254 = vrcp.pop %v1215
    %v1255 = vrcp.pop %v1219
    %v1256 = vrcp.pop %v1223
    %v1257 = vrcp.pop %v1227
    %v1258 = vrcp.pop %v1231
    %v1259 = vrcp.pop %v1235
    %v1260 = vrcp.pop %v1239
    %v1261 = vrcp.pop %v1243
    %v1262 = vmul.f32 %v1101, %v1244
    %v1263 = vmul.f32 %v1103, %v1244
    %v1264 = vmul.f32 %v1105, %v1245
    %v1265 = vmul.f32 %v1107, %v1245
    %v1266 = vmul.f32 %v1109, %v1246
    %v1267 = vmul.f32 %v1111, %v1246
    %v1268 = vmul.f32 %v1113, %v1247
    %v1269 = vmul.f32 %v1115, %v1247
    %v1270 = vmul.f32 %v1117, %v1248
    %v1271 = vmul.f32 %v1119, %v1248
    %v1272 = vmul.f32 %v1121, %v1249
    %v1273 = vmul.f32 %v1123, %v1249
    %v1274 = vmul.f32 %v1125, %v1250
    %v1275 = vmul.f32 %v1127, %v1250
    %v1276 = vmul.f32 %v1129, %v1251
    %v1277 = vmul.f32 %v1131, %v1251
    %v1278 = vmul.f32 %v1133, %v1252
    %v1279 = vmul.f32 %v1135, %v1252
    %v1280 = vmul.f32 %v1137, %v1253
    %v1281 = vmul.f32 %v1139, %v1253
    %v1282 = vmul.f32 %v1141, %v1254
    %v1283 = vmul.f32 %v1143, %v1254
    %v1284 = vmul.f32 %v1145, %v1255
    %v1285 = vmul.f32 %v1147, %v1255
    %v1286 = vmul.f32 %v1149, %v1256
    %v1287 = vmul.f32 %v1151, %v1256
    %v1288 = vmul.f32 %v1153, %v1257
    %v1289 = vmul.f32 %v1155, %v1257
    %v1290 = vmul.f32 %v1157, %v1258
    %v1291 = vmul.f32 %v1159, %v1258
    %v1292 = vmul.f32 %v1161, %v1259
    %v1293 = vmul.f32 %v1163, %v1259
    %v1294 = vmul.f32 %v1165, %v1260
    %v1295 = vmul.f32 %v1167, %v1260
    %v1296 = vmul.f32 %v1169, %v1261
    %v1297 = vmul.f32 %v1171, %v1261
    %v1299 = vsel %vm674, %v1263, 0
    %v1302 = vsel %vm674, %v1265, 0
    %v1305 = vsel %vm674, %v1267, 0
    %v1308 = vsel %vm674, %v1269, 0
    %v1311 = vsel %vm674, %v1271, 0
    %v1314 = vsel %vm674, %v1273, 0
    %v1317 = vsel %vm674, %v1275, 0
    %v1320 = vsel %vm674, %v1277, 0
    %v1323 = vsel %vm674, %v1279, 0
    %v1326 = vsel %vm674, %v1281, 0
    %v1329 = vsel %vm674, %v1283, 0
    %v1332 = vsel %vm674, %v1285, 0
    %v1335 = vsel %vm674, %v1287, 0
    %v1338 = vsel %vm674, %v1289, 0
    %v1341 = vsel %vm674, %v1291, 0
    %v1344 = vsel %vm674, %v1293, 0
    %v1347 = vsel %vm674, %v1295, 0
    %v1350 = vsel %vm674, %v1297, 0
    %1352 = vmatprep.subr.mxu0 0.0
    %1353 = vmatpush1.msra.mxu0 %v534
    %1354 = vmatprep.subr.mxu0 0.0
    %1355 = vmatpush1.msra.mxu0 %v538
    %1356 = vmatprep.subr.mxu0 0.0
    %1357 = vmatpush1.msra.mxu0 %v544
    %1358 = vmatprep.subr.mxu0 0.0
    %1359 = vmatpush1.msra.mxu0 %v548
    %1360 = vmatprep.subr.mxu0 0.0
    %1361 = vmatpush1.msra.mxu0 %v554
    %1362 = vmatprep.subr.mxu0 0.0
    %1363 = vmatpush1.msra.mxu0 %v558
    %1364 = vmatprep.subr.mxu0 0.0
    %1365 = vmatpush1.msra.mxu0 %v564
    %1366 = vmatprep.subr.mxu0 0.0
    %1367 = vmatpush1.msra.mxu0 %v568
    %1368 = vmatprep.subr.mxu0 0.0
    %1369 = vmatpush1.msra.mxu0 %v574
    %1370 = vmatprep.subr.mxu0 0.0
    %1371 = vmatpush1.msra.mxu0 %v578
    %1372 = vmatprep.subr.mxu0 0.0
    %1373 = vmatpush1.msra.mxu0 %v584
    %1374 = vmatprep.subr.mxu0 0.0
    %1375 = vmatpush1.msra.mxu0 %v588
    %1376 = vmatprep.subr.mxu0 0.0
    %1377 = vmatpush1.msra.mxu0 %v594
    %1378 = vmatprep.subr.mxu0 0.0
    %1379 = vmatpush1.msra.mxu0 %v598
    %1380 = vmatprep.subr.mxu0 0.0
    %1381 = vmatpush1.msra.mxu0 %v604
    %1382 = vmatprep.subr.mxu0 0.0
    %1383 = vmatpush1.msra.mxu0 %v608
    %1384 = vmatprep.subr.mxu0 0.0
    %1385 = vmatpush1.msra.mxu0 %v614
    %1386 = vmatprep.subr.mxu0 0.0
    %1387 = vmatpush1.msra.mxu0 %v618
    %1388 = vmatprep.subr.mxu0 0.0
    %1389 = vmatpush1.msra.mxu0 0.0
    %1390 = vmatprep.subr.mxu0 0.0
    %1391 = vmatpush1.msra.mxu0 0.0
    %1392 = vmatprep.subr.mxu0 0.0
    %1393 = vmatpush1.msra.mxu0 0.0
    %1394 = vmatprep.subr.mxu0 0.0
    %1395 = vmatpush1.msra.mxu0 0.0
    %1396 = vmatprep.subr.mxu0 0.0
    %1397 = vmatpush1.msra.mxu0 0.0
    %1398 = vmatprep.subr.mxu0 0.0
    %1399 = vmatpush1.msra.mxu0 0.0
    %1400 = vmatprep.subr.mxu0 0.0
    %1401 = vmatpush1.msra.mxu0 0.0
    %1402 = vmatprep.subr.mxu0 0.0
    %1403 = vmatpush1.msra.mxu0 0.0
    %1404 = vmatprep.subr.mxu0 0.0
    %1405 = vmatpush1.msra.mxu0 0.0
    %1406 = vmatprep.subr.mxu0 0.0
    %1407 = vmatpush1.msra.mxu0 0.0
    %1408 = vmatprep.subr.mxu0 0.0
    %1409 = vmatpush1.msra.mxu0 0.0
    %1410 = vmatprep.subr.mxu0 0.0
    %1411 = vmatpush1.msra.mxu0 0.0
    %1412 = vmatprep.subr.mxu0 0.0
    %1413 = vmatpush1.msra.mxu0 0.0
    %1414 = vmatprep.subr.mxu0 0.0
    %1415 = vmatpush1.msra.mxu0 0.0
    %1416 = vmatprep.mubr.f32.mxu0 %v1299
    %1417 = vmatmul.mubr.f32.gmra.mrb[0].mxu0 %v1262
    %v1418 = vpop.f32.mrb[0].mxu0
    %v1419 = vadd.f32 0.0, %v1418
    %v1420 = vpop.f32.mrb[0].mxu0
    %1421 = vmatprep.mubr.f32.mxu0 %v1302
    %1422 = vmatmul.mubr.f32.gmra.mrb[0].mxu0 %v1264
    %v1423 = vpop.f32.mrb[0].mxu0
    %v1424 = vadd.f32 0.0, %v1423
    %v1425 = vpop.f32.mrb[0].mxu0
    %1426 = vmatprep.mubr.f32.mxu0 %v1305
    %1427 = vmatmul.mubr.f32.gmra.mrb[0].mxu0 %v1266
    %v1428 = vpop.f32.mrb[0].mxu0
    %v1429 = vadd.f32 0.0, %v1428
    %v1430 = vpop.f32.mrb[0].mxu0
    %1431 = vmatprep.mubr.f32.mxu0 %v1308
    %1432 = vmatmul.mubr.f32.gmra.mrb[0].mxu0 %v1268
    %v1433 = vpop.f32.mrb[0].mxu0
    %v1434 = vadd.f32 0.0, %v1433
    %v1435 = vpop.f32.mrb[0].mxu0
    %1436 = vmatprep.mubr.f32.mxu0 %v1311
    %1437 = vmatmul.mubr.f32.gmra.mrb[0].mxu0 %v1270
    %v1438 = vpop.f32.mrb[0].mxu0
    %v1439 = vadd.f32 0.0, %v1438
    %v1440 = vpop.f32.mrb[0].mxu0
    %1441 = vmatprep.mubr.f32.mxu0 %v1314
    %1442 = vmatmul.mubr.f32.gmra.mrb[0].mxu0 %v1272
    %v1443 = vpop.f32.mrb[0].mxu0
    %v1444 = vadd.f32 0.0, %v1443
    %v1445 = vpop.f32.mrb[0].mxu0
    %1446 = vmatprep.mubr.f32.mxu0 %v1317
    %1447 = vmatmul.mubr.f32.gmra.mrb[0].mxu0 %v1274
    %v1448 = vpop.f32.mrb[0].mxu0
    %v1449 = vadd.f32 0.0, %v1448
    %v1450 = vpop.f32.mrb[0].mxu0
    %1451 = vmatprep.mubr.f32.mxu0 %v1320
    %1452 = vmatmul.mubr.f32.gmra.mrb[0].mxu0 %v1276
    %v1453 = vpop.f32.mrb[0].mxu0
    %v1454 = vadd.f32 0.0, %v1453
    %v1455 = vpop.f32.mrb[0].mxu0
    %1456 = vmatprep.mubr.f32.mxu0 %v1323
    %1457 = vmatmul.mubr.f32.gmra.mrb[0].mxu0 %v1278
    %v1458 = vpop.f32.mrb[0].mxu0
    %v1459 = vadd.f32 0.0, %v1458
    %v1460 = vpop.f32.mrb[0].mxu0
    %1461 = vmatprep.mubr.f32.mxu0 %v1326
    %1462 = vmatmul.mubr.f32.gmra.mrb[0].mxu0 %v1280
    %v1463 = vpop.f32.mrb[0].mxu0
    %v1464 = vadd.f32 0.0, %v1463
    %v1465 = vpop.f32.mrb[0].mxu0
    %1466 = vmatprep.mubr.f32.mxu0 %v1329
    %1467 = vmatmul.mubr.f32.gmra.mrb[0].mxu0 %v1282
    %v1468 = vpop.f32.mrb[0].mxu0
    %v1469 = vadd.f32 0.0, %v1468
    %v1470 = vpop.f32.mrb[0].mxu0
    %1471 = vmatprep.mubr.f32.mxu0 %v1332
    %1472 = vmatmul.mubr.f32.gmra.mrb[0].mxu0 %v1284
    %v1473 = vpop.f32.mrb[0].mxu0
    %v1474 = vadd.f32 0.0, %v1473
    %v1475 = vpop.f32.mrb[0].mxu0
    %1476 = vmatprep.mubr.f32.mxu0 %v1335
    %1477 = vmatmul.mubr.f32.gmra.mrb[0].mxu0 %v1286
    %v1478 = vpop.f32.mrb[0].mxu0
    %v1479 = vadd.f32 0.0, %v1478
    %v1480 = vpop.f32.mrb[0].mxu0
    %1481 = vmatprep.mubr.f32.mxu0 %v1338
    %1482 = vmatmul.mubr.f32.gmra.mrb[0].mxu0 %v1288
    %v1483 = vpop.f32.mrb[0].mxu0
    %v1484 = vadd.f32 0.0, %v1483
    %v1485 = vpop.f32.mrb[0].mxu0
    %1486 = vmatprep.mubr.f32.mxu0 %v1341
    %1487 = vmatmul.mubr.f32.gmra.mrb[0].mxu0 %v1290
    %v1488 = vpop.f32.mrb[0].mxu0
    %v1489 = vadd.f32 0.0, %v1488
    %v1490 = vpop.f32.mrb[0].mxu0
    %1491 = vmatprep.mubr.f32.mxu0 %v1344
    %1492 = vmatmul.mubr.f32.gmra.mrb[0].mxu0 %v1292
    %v1493 = vpop.f32.mrb[0].mxu0
    %v1494 = vadd.f32 0.0, %v1493
    %v1495 = vpop.f32.mrb[0].mxu0
    %1496 = vmatprep.mubr.f32.mxu0 %v1347
    %1497 = vmatmul.mubr.f32.gmra.mrb[0].mxu0 %v1294
    %v1498 = vpop.f32.mrb[0].mxu0
    %v1499 = vadd.f32 0.0, %v1498
    %v1500 = vpop.f32.mrb[0].mxu0
    %1501 = vmatprep.mubr.f32.mxu0 %v1350
    %1502 = vmatmul.mubr.f32.gmra.mrb[0].mxu0 %v1296
    %v1503 = vpop.f32.mrb[0].mxu0
    %v1504 = vadd.f32 0.0, %v1503
    %v1505 = vpop.f32.mrb[0].mxu0
    %1506 = vdwg.mxu0
    %1507 = vrot.lane.b32.xlu0 %v532, 112
    %v1508 = vpop.permute.xlu0 %1507
    %1509 = vrot.lane.b32.xlu0 %v536, 112
    %v1510 = vpop.permute.xlu0 %1509
    %1511 = vrot.lane.b32.xlu0 %v542, 112
    %v1512 = vpop.permute.xlu0 %1511
    %1513 = vrot.lane.b32.xlu0 %v546, 112
    %v1514 = vpop.permute.xlu0 %1513
    %1515 = vrot.lane.b32.xlu0 %v552, 112
    %v1516 = vpop.permute.xlu0 %1515
    %1517 = vrot.lane.b32.xlu0 %v556, 112
    %v1518 = vpop.permute.xlu0 %1517
    %1519 = vrot.lane.b32.xlu0 %v562, 112
    %v1520 = vpop.permute.xlu0 %1519
    %1521 = vrot.lane.b32.xlu0 %v566, 112
    %v1522 = vpop.permute.xlu0 %1521
    %1523 = vrot.lane.b32.xlu0 %v572, 112
    %v1524 = vpop.permute.xlu0 %1523
    %1525 = vrot.lane.b32.xlu0 %v576, 112
    %v1526 = vpop.permute.xlu0 %1525
    %1527 = vrot.lane.b32.xlu0 %v582, 112
    %v1528 = vpop.permute.xlu0 %1527
    %1529 = vrot.lane.b32.xlu0 %v586, 112
    %v1530 = vpop.permute.xlu0 %1529
    %1531 = vrot.lane.b32.xlu0 %v592, 112
    %v1532 = vpop.permute.xlu0 %1531
    %1533 = vrot.lane.b32.xlu0 %v596, 112
    %v1534 = vpop.permute.xlu0 %1533
    %1535 = vrot.lane.b32.xlu0 %v602, 112
    %v1536 = vpop.permute.xlu0 %1535
    %1537 = vrot.lane.b32.xlu0 %v606, 112
    %v1538 = vpop.permute.xlu0 %1537
    %1539 = vrot.lane.b32.xlu0 %v612, 112
    %v1540 = vpop.permute.xlu0 %1539
    %1541 = vrot.lane.b32.xlu0 %v616, 112
    %v1542 = vpop.permute.xlu0 %1541
    %1543 = vrot.lane.b32.xlu0 %v532, 48
    %v1544 = vpop.permute.xlu0 %1543
    %1545 = vrot.lane.b32.xlu0 %v536, 48
    %v1546 = vpop.permute.xlu0 %1545
    %1547 = vrot.lane.b32.xlu0 %v542, 48
    %v1548 = vpop.permute.xlu0 %1547
    %1549 = vrot.lane.b32.xlu0 %v546, 48
    %v1550 = vpop.permute.xlu0 %1549
    %1551 = vrot.lane.b32.xlu0 %v552, 48
    %v1552 = vpop.permute.xlu0 %1551
    %1553 = vrot.lane.b32.xlu0 %v556, 48
    %v1554 = vpop.permute.xlu0 %1553
    %1555 = vrot.lane.b32.xlu0 %v562, 48
    %v1556 = vpop.permute.xlu0 %1555
    %1557 = vrot.lane.b32.xlu0 %v566, 48
    %v1558 = vpop.permute.xlu0 %1557
    %1559 = vrot.lane.b32.xlu0 %v572, 48
    %v1560 = vpop.permute.xlu0 %1559
    %1561 = vrot.lane.b32.xlu0 %v576, 48
    %v1562 = vpop.permute.xlu0 %1561
    %1563 = vrot.lane.b32.xlu0 %v582, 48
    %v1564 = vpop.permute.xlu0 %1563
    %1565 = vrot.lane.b32.xlu0 %v586, 48
    %v1566 = vpop.permute.xlu0 %1565
    %1567 = vrot.lane.b32.xlu0 %v592, 48
    %v1568 = vpop.permute.xlu0 %1567
    %1569 = vrot.lane.b32.xlu0 %v596, 48
    %v1570 = vpop.permute.xlu0 %1569
    %1571 = vrot.lane.b32.xlu0 %v602, 48
    %v1572 = vpop.permute.xlu0 %1571
    %1573 = vrot.lane.b32.xlu0 %v606, 48
    %v1574 = vpop.permute.xlu0 %1573
    %1575 = vrot.lane.b32.xlu0 %v612, 48
    %v1576 = vpop.permute.xlu0 %1575
    %1577 = vrot.lane.b32.xlu0 %v616, 48
    %v1578 = vpop.permute.xlu0 %1577
    %v1579 = vsel %vm674, %v1508, 0
    %v1581 = vsel %vm674, %v1510, 0
    %v1583 = vsel %vm674, %v1512, 0
    %v1585 = vsel %vm674, %v1514, 0
    %v1587 = vsel %vm674, %v1516, 0
    %v1589 = vsel %vm674, %v1518, 0
    %v1591 = vsel %vm674, %v1520, 0
    %v1593 = vsel %vm674, %v1522, 0
    %v1595 = vsel %vm674, %v1524, 0
    %v1597 = vsel %vm674, %v1526, 0
    %v1599 = vsel %vm674, %v1528, 0
    %v1601 = vsel %vm674, %v1530, 0
    %v1603 = vsel %vm674, %v1532, 0
    %v1605 = vsel %vm674, %v1534, 0
    %v1607 = vsel %vm674, %v1536, 0
    %v1609 = vsel %vm674, %v1538, 0
    %v1611 = vsel %vm674, %v1540, 0
    %v1613 = vsel %vm674, %v1542, 0
    %v1615 = vsel %vm674, %v1544, 0
    %v1617 = vsel %vm674, %v1546, 0
    %v1619 = vsel %vm674, %v1548, 0
    %v1621 = vsel %vm674, %v1550, 0
    %v1623 = vsel %vm674, %v1552, 0
    %v1625 = vsel %vm674, %v1554, 0
    %v1627 = vsel %vm674, %v1556, 0
    %v1629 = vsel %vm674, %v1558, 0
    %v1631 = vsel %vm674, %v1560, 0
    %v1633 = vsel %vm674, %v1562, 0
    %v1635 = vsel %vm674, %v1564, 0
    %v1637 = vsel %vm674, %v1566, 0
    %v1639 = vsel %vm674, %v1568, 0
    %v1641 = vsel %vm674, %v1570, 0
    %v1643 = vsel %vm674, %v1572, 0
    %v1645 = vsel %vm674, %v1574, 0
    %v1647 = vsel %vm674, %v1576, 0
    %v1649 = vsel %vm674, %v1578, 0
    %1651 = vmatprep.subr.mxu0 0.0
    %1652 = vmatpush1.xpose.msra.mxu0 %v1615
    %1653 = vmatprep.subr.mxu0 0.0
    %1654 = vmatpush1.xpose.msra.mxu0 %v1617
    %1655 = vmatprep.subr.mxu0 0.0
    %1656 = vmatpush1.xpose.msra.mxu0 %v1619
    %1657 = vmatprep.subr.mxu0 0.0
    %1658 = vmatpush1.xpose.msra.mxu0 %v1621
    %1659 = vmatprep.subr.mxu0 0.0
    %1660 = vmatpush1.xpose.msra.mxu0 %v1623
    %1661 = vmatprep.subr.mxu0 0.0
    %1662 = vmatpush1.xpose.msra.mxu0 %v1625
    %1663 = vmatprep.subr.mxu0 0.0
    %1664 = vmatpush1.xpose.msra.mxu0 %v1627
    %1665 = vmatprep.subr.mxu0 0.0
    %1666 = vmatpush1.xpose.msra.mxu0 %v1629
    %1667 = vmatprep.subr.mxu0 0.0
    %1668 = vmatpush1.xpose.msra.mxu0 %v1631
    %1669 = vmatprep.subr.mxu0 0.0
    %1670 = vmatpush1.xpose.msra.mxu0 %v1633
    %1671 = vmatprep.subr.mxu0 0.0
    %1672 = vmatpush1.xpose.msra.mxu0 %v1635
    %1673 = vmatprep.subr.mxu0 0.0
    %1674 = vmatpush1.xpose.msra.mxu0 %v1637
    %1675 = vmatprep.subr.mxu0 0.0
    %1676 = vmatpush1.xpose.msra.mxu0 %v1639
    %1677 = vmatprep.subr.mxu0 0.0
    %1678 = vmatpush1.xpose.msra.mxu0 %v1641
    %1679 = vmatprep.subr.mxu0 0.0
    %1680 = vmatpush1.xpose.msra.mxu0 %v1643
    %1681 = vmatprep.subr.mxu0 0.0
    %1682 = vmatpush1.xpose.msra.mxu0 %v1645
    %1683 = vmatprep.subr.mxu0 0.0
    %1684 = vmatpush1.xpose.msra.mxu0 %v1647
    %1685 = vmatprep.subr.mxu0 0.0
    %1686 = vmatpush1.xpose.msra.mxu0 %v1649
    %1687 = vmatprep.subr.mxu0 0.0
    %1688 = vmatpush1.xpose.msra.mxu0 0.0
    %1689 = vmatprep.subr.mxu0 0.0
    %1690 = vmatpush1.xpose.msra.mxu0 0.0
    %1691 = vmatprep.subr.mxu0 0.0
    %1692 = vmatpush1.xpose.msra.mxu0 0.0
    %1693 = vmatprep.subr.mxu0 0.0
    %1694 = vmatpush1.xpose.msra.mxu0 0.0
    %1695 = vmatprep.subr.mxu0 0.0
    %1696 = vmatpush1.xpose.msra.mxu0 0.0
    %1697 = vmatprep.subr.mxu0 0.0
    %1698 = vmatpush1.xpose.msra.mxu0 0.0
    %1699 = vmatprep.subr.mxu0 0.0
    %1700 = vmatpush1.xpose.msra.mxu0 0.0
    %1701 = vmatprep.subr.mxu0 0.0
    %1702 = vmatpush1.xpose.msra.mxu0 0.0
    %1703 = vmatprep.subr.mxu0 0.0
    %1704 = vmatpush1.xpose.msra.mxu0 0.0
    %1705 = vmatprep.subr.mxu0 0.0
    %1706 = vmatpush1.xpose.msra.mxu0 0.0
    %1707 = vmatprep.subr.mxu0 0.0
    %1708 = vmatpush1.xpose.msra.mxu0 0.0
    %1709 = vmatprep.subr.mxu0 0.0
    %1710 = vmatpush1.xpose.msra.mxu0 0.0
    %1711 = vmatprep.subr.mxu0 0.0
    %1712 = vmatpush1.xpose.msra.mxu0 0.0
    %1713 = vmatprep.subr.mxu0 0.0
    %1714 = vmatpush1.xpose.msra.mxu0 0.0
    %1715 = vmatprep.mubr.f32.mxu0 0.0
    %1716 = vmatmul.mubr.f32.gmra.mrb[0].mxu0 %v1579
    %v1717 = vpop.f32.mrb[0].mxu0
    %v1718 = vadd.f32 0.0, %v1717
    %v1719 = vpop.f32.mrb[0].mxu0
    %v1720 = vadd.f32 0.0, %v1719
    %1721 = vmatprep.mubr.f32.mxu0 0.0
    %1722 = vmatmul.mubr.f32.gmra.mrb[0].mxu0 %v1581
    %v1723 = vpop.f32.mrb[0].mxu0
    %v1724 = vadd.f32 0.0, %v1723
    %v1725 = vpop.f32.mrb[0].mxu0
    %v1726 = vadd.f32 0.0, %v1725
    %1727 = vmatprep.mubr.f32.mxu0 0.0
    %1728 = vmatmul.mubr.f32.gmra.mrb[0].mxu0 %v1583
    %v1729 = vpop.f32.mrb[0].mxu0
    %v1730 = vadd.f32 0.0, %v1729
    %v1731 = vpop.f32.mrb[0].mxu0
    %v1732 = vadd.f32 0.0, %v1731
    %1733 = vmatprep.mubr.f32.mxu0 0.0
    %1734 = vmatmul.mubr.f32.gmra.mrb[0].mxu0 %v1585
    %v1735 = vpop.f32.mrb[0].mxu0
    %v1736 = vadd.f32 0.0, %v1735
    %v1737 = vpop.f32.mrb[0].mxu0
    %v1738 = vadd.f32 0.0, %v1737
    %1739 = vmatprep.mubr.f32.mxu0 0.0
    %1740 = vmatmul.mubr.f32.gmra.mrb[0].mxu0 %v1587
    %v1741 = vpop.f32.mrb[0].mxu0
    %v1742 = vadd.f32 0.0, %v1741
    %v1743 = vpop.f32.mrb[0].mxu0
    %v1744 = vadd.f32 0.0, %v1743
    %1745 = vmatprep.mubr.f32.mxu0 0.0
    %1746 = vmatmul.mubr.f32.gmra.mrb[0].mxu0 %v1589
    %v1747 = vpop.f32.mrb[0].mxu0
    %v1748 = vadd.f32 0.0, %v1747
    %v1749 = vpop.f32.mrb[0].mxu0
    %v1750 = vadd.f32 0.0, %v1749
    %1751 = vmatprep.mubr.f32.mxu0 0.0
    %1752 = vmatmul.mubr.f32.gmra.mrb[0].mxu0 %v1591
    %v1753 = vpop.f32.mrb[0].mxu0
    %v1754 = vadd.f32 0.0, %v1753
    %v1755 = vpop.f32.mrb[0].mxu0
    %v1756 = vadd.f32 0.0, %v1755
    %1757 = vmatprep.mubr.f32.mxu0 0.0
    %1758 = vmatmul.mubr.f32.gmra.mrb[0].mxu0 %v1593
    %v1759 = vpop.f32.mrb[0].mxu0
    %v1760 = vadd.f32 0.0, %v1759
    %v1761 = vpop.f32.mrb[0].mxu0
    %v1762 = vadd.f32 0.0, %v1761
    %1763 = vmatprep.mubr.f32.mxu0 0.0
    %1764 = vmatmul.mubr.f32.gmra.mrb[0].mxu0 %v1595
    %v1765 = vpop.f32.mrb[0].mxu0
    %v1766 = vadd.f32 0.0, %v1765
    %v1767 = vpop.f32.mrb[0].mxu0
    %v1768 = vadd.f32 0.0, %v1767
    %1769 = vmatprep.mubr.f32.mxu0 0.0
    %1770 = vmatmul.mubr.f32.gmra.mrb[0].mxu0 %v1597
    %v1771 = vpop.f32.mrb[0].mxu0
    %v1772 = vadd.f32 0.0, %v1771
    %v1773 = vpop.f32.mrb[0].mxu0
    %v1774 = vadd.f32 0.0, %v1773
    %1775 = vmatprep.mubr.f32.mxu0 0.0
    %1776 = vmatmul.mubr.f32.gmra.mrb[0].mxu0 %v1599
    %v1777 = vpop.f32.mrb[0].mxu0
    %v1778 = vadd.f32 0.0, %v1777
    %v1779 = vpop.f32.mrb[0].mxu0
    %v1780 = vadd.f32 0.0, %v1779
    %1781 = vmatprep.mubr.f32.mxu0 0.0
    %1782 = vmatmul.mubr.f32.gmra.mrb[0].mxu0 %v1601
    %v1783 = vpop.f32.mrb[0].mxu0
    %v1784 = vadd.f32 0.0, %v1783
    %v1785 = vpop.f32.mrb[0].mxu0
    %v1786 = vadd.f32 0.0, %v1785
    %1787 = vmatprep.mubr.f32.mxu0 0.0
    %1788 = vmatmul.mubr.f32.gmra.mrb[0].mxu0 %v1603
    %v1789 = vpop.f32.mrb[0].mxu0
    %v1790 = vadd.f32 0.0, %v1789
    %v1791 = vpop.f32.mrb[0].mxu0
    %v1792 = vadd.f32 0.0, %v1791
    %1793 = vmatprep.mubr.f32.mxu0 0.0
    %1794 = vmatmul.mubr.f32.gmra.mrb[0].mxu0 %v1605
    %v1795 = vpop.f32.mrb[0].mxu0
    %v1796 = vadd.f32 0.0, %v1795
    %v1797 = vpop.f32.mrb[0].mxu0
    %v1798 = vadd.f32 0.0, %v1797
    %1799 = vmatprep.mubr.f32.mxu0 0.0
    %1800 = vmatmul.mubr.f32.gmra.mrb[0].mxu0 %v1607
    %v1801 = vpop.f32.mrb[0].mxu0
    %v1802 = vadd.f32 0.0, %v1801
    %v1803 = vpop.f32.mrb[0].mxu0
    %v1804 = vadd.f32 0.0, %v1803
    %1805 = vmatprep.mubr.f32.mxu0 0.0
    %1806 = vmatmul.mubr.f32.gmra.mrb[0].mxu0 %v1609
    %v1807 = vpop.f32.mrb[0].mxu0
    %v1808 = vadd.f32 0.0, %v1807
    %v1809 = vpop.f32.mrb[0].mxu0
    %v1810 = vadd.f32 0.0, %v1809
    %1811 = vmatprep.mubr.f32.mxu0 0.0
    %1812 = vmatmul.mubr.f32.gmra.mrb[0].mxu0 %v1611
    %v1813 = vpop.f32.mrb[0].mxu0
    %v1814 = vadd.f32 0.0, %v1813
    %v1815 = vpop.f32.mrb[0].mxu0
    %v1816 = vadd.f32 0.0, %v1815
    %1817 = vmatprep.mubr.f32.mxu0 0.0
    %1818 = vmatmul.mubr.f32.gmra.mrb[0].mxu0 %v1613
    %v1819 = vpop.f32.mrb[0].mxu0
    %v1820 = vadd.f32 0.0, %v1819
    %v1821 = vpop.f32.mrb[0].mxu0
    %v1822 = vadd.f32 0.0, %v1821
    %1823 = vdwg.mxu0
    %v1824 = vmul.f32 %v1718, 0.25
    %v1825 = vmul.f32 %v1720, 0.25
    %v1826 = vmul.f32 %v1724, 0.25
    %v1827 = vmul.f32 %v1726, 0.25
    %v1828 = vmul.f32 %v1730, 0.25
    %v1829 = vmul.f32 %v1732, 0.25
    %v1830 = vmul.f32 %v1736, 0.25
    %v1831 = vmul.f32 %v1738, 0.25
    %v1832 = vmul.f32 %v1742, 0.25
    %v1833 = vmul.f32 %v1744, 0.25
    %v1834 = vmul.f32 %v1748, 0.25
    %v1835 = vmul.f32 %v1750, 0.25
    %v1836 = vmul.f32 %v1754, 0.25
    %v1837 = vmul.f32 %v1756, 0.25
    %v1838 = vmul.f32 %v1760, 0.25
    %v1839 = vmul.f32 %v1762, 0.25
    %v1840 = vmul.f32 %v1766, 0.25
    %v1841 = vmul.f32 %v1768, 0.25
    %v1842 = vmul.f32 %v1772, 0.25
    %v1843 = vmul.f32 %v1774, 0.25
    %v1844 = vmul.f32 %v1778, 0.25
    %v1845 = vmul.f32 %v1780, 0.25
    %v1846 = vmul.f32 %v1784, 0.25
    %v1847 = vmul.f32 %v1786, 0.25
    %v1848 = vmul.f32 %v1790, 0.25
    %v1849 = vmul.f32 %v1792, 0.25
    %v1850 = vmul.f32 %v1796, 0.25
    %v1851 = vmul.f32 %v1798, 0.25
    %v1852 = vmul.f32 %v1802, 0.25
    %v1853 = vmul.f32 %v1804, 0.25
    %v1854 = vmul.f32 %v1808, 0.25
    %v1855 = vmul.f32 %v1810, 0.25
    %v1856 = vmul.f32 %v1814, 0.25
    %v1857 = vmul.f32 %v1816, 0.25
    %v1858 = vmul.f32 %v1820, 0.25
    %v1859 = vmul.f32 %v1822, 0.25
    %v1860 = vadd.f32 %v1824, %v97
    %v1861 = vadd.f32 %v1825, %v98
    %v1862 = vadd.f32 %v1826, %v99
    %v1863 = vadd.f32 %v1827, %v100
    %v1864 = vadd.f32 %v1828, %v101
    %v1865 = vadd.f32 %v1829, %v102
    %v1866 = vadd.f32 %v1830, %v103
    %v1867 = vadd.f32 %v1831, %v104
    %v1868 = vadd.f32 %v1832, %v105
    %v1869 = vadd.f32 %v1833, %v106
    %v1870 = vadd.f32 %v1834, %v107
    %v1871 = vadd.f32 %v1835, %v108
    %v1872 = vadd.f32 %v1836, %v109
    %v1873 = vadd.f32 %v1837, %v110
    %v1874 = vadd.f32 %v1838, %v111
    %v1875 = vadd.f32 %v1839, %v112
    %v1876 = vadd.f32 %v1840, %v113
    %v1877 = vadd.f32 %v1841, %v114
    %v1878 = vadd.f32 %v1842, %v115
    %v1879 = vadd.f32 %v1843, %v116
    %v1880 = vadd.f32 %v1844, %v117
    %v1881 = vadd.f32 %v1845, %v118
    %v1882 = vadd.f32 %v1846, %v119
    %v1883 = vadd.f32 %v1847, %v120
    %v1884 = vadd.f32 %v1848, %v121
    %v1885 = vadd.f32 %v1849, %v122
    %v1886 = vadd.f32 %v1850, %v123
    %v1887 = vadd.f32 %v1851, %v124
    %v1888 = vadd.f32 %v1852, %v125
    %v1889 = vadd.f32 %v1853, %v126
    %v1890 = vadd.f32 %v1854, %v127
    %v1891 = vadd.f32 %v1855, %v128
    %v1892 = vadd.f32 %v1856, %v129
    %v1893 = vadd.f32 %v1857, %v130
    %v1894 = vadd.f32 %v1858, %v131
    %v1895 = vadd.f32 %v1859, %v132
    %v1896 = vsel %vm674, %v1861, -inf
    %v1897 = vmax.f32 %v1860, %v1896
    %1898 = vmax.xlane.f32.xlu0 %v1897
    %v1899 = vpop.xlane.xlu0 %1898
    %v1900 = vsel %vm674, %v1863, -inf
    %v1901 = vmax.f32 %v1862, %v1900
    %1902 = vmax.xlane.f32.xlu0 %v1901
    %v1903 = vpop.xlane.xlu0 %1902
    %v1904 = vsel %vm674, %v1865, -inf
    %v1905 = vmax.f32 %v1864, %v1904
    %1906 = vmax.xlane.f32.xlu0 %v1905
    %v1907 = vpop.xlane.xlu0 %1906
    %v1908 = vsel %vm674, %v1867, -inf
    %v1909 = vmax.f32 %v1866, %v1908
    %1910 = vmax.xlane.f32.xlu0 %v1909
    %v1911 = vpop.xlane.xlu0 %1910
    %v1912 = vsel %vm674, %v1869, -inf
    %v1913 = vmax.f32 %v1868, %v1912
    %1914 = vmax.xlane.f32.xlu0 %v1913
    %v1915 = vpop.xlane.xlu0 %1914
    %v1916 = vsel %vm674, %v1871, -inf
    %v1917 = vmax.f32 %v1870, %v1916
    %1918 = vmax.xlane.f32.xlu0 %v1917
    %v1919 = vpop.xlane.xlu0 %1918
    %v1920 = vsel %vm674, %v1873, -inf
    %v1921 = vmax.f32 %v1872, %v1920
    %1922 = vmax.xlane.f32.xlu0 %v1921
    %v1923 = vpop.xlane.xlu0 %1922
    %v1924 = vsel %vm674, %v1875, -inf
    %v1925 = vmax.f32 %v1874, %v1924
    %1926 = vmax.xlane.f32.xlu0 %v1925
    %v1927 = vpop.xlane.xlu0 %1926
    %v1928 = vsel %vm674, %v1877, -inf
    %v1929 = vmax.f32 %v1876, %v1928
    %1930 = vmax.xlane.f32.xlu0 %v1929
    %v1931 = vpop.xlane.xlu0 %1930
    %v1932 = vsel %vm674, %v1879, -inf
    %v1933 = vmax.f32 %v1878, %v1932
    %1934 = vmax.xlane.f32.xlu0 %v1933
    %v1935 = vpop.xlane.xlu0 %1934
    %v1936 = vsel %vm674, %v1881, -inf
    %v1937 = vmax.f32 %v1880, %v1936
    %1938 = vmax.xlane.f32.xlu0 %v1937
    %v1939 = vpop.xlane.xlu0 %1938
    %v1940 = vsel %vm674, %v1883, -inf
    %v1941 = vmax.f32 %v1882, %v1940
    %1942 = vmax.xlane.f32.xlu0 %v1941
    %v1943 = vpop.xlane.xlu0 %1942
    %v1944 = vsel %vm674, %v1885, -inf
    %v1945 = vmax.f32 %v1884, %v1944
    %1946 = vmax.xlane.f32.xlu0 %v1945
    %v1947 = vpop.xlane.xlu0 %1946
    %v1948 = vsel %vm674, %v1887, -inf
    %v1949 = vmax.f32 %v1886, %v1948
    %1950 = vmax.xlane.f32.xlu0 %v1949
    %v1951 = vpop.xlane.xlu0 %1950
    %v1952 = vsel %vm674, %v1889, -inf
    %v1953 = vmax.f32 %v1888, %v1952
    %1954 = vmax.xlane.f32.xlu0 %v1953
    %v1955 = vpop.xlane.xlu0 %1954
    %v1956 = vsel %vm674, %v1891, -inf
    %v1957 = vmax.f32 %v1890, %v1956
    %1958 = vmax.xlane.f32.xlu0 %v1957
    %v1959 = vpop.xlane.xlu0 %1958
    %v1960 = vsel %vm674, %v1893, -inf
    %v1961 = vmax.f32 %v1892, %v1960
    %1962 = vmax.xlane.f32.xlu0 %v1961
    %v1963 = vpop.xlane.xlu0 %1962
    %v1964 = vsel %vm674, %v1895, -inf
    %v1965 = vmax.f32 %v1894, %v1964
    %1966 = vmax.xlane.f32.xlu0 %v1965
    %v1967 = vpop.xlane.xlu0 %1966
    %v1968 = vsub.f32 %v1860, %v1899
    %v1969 = vsub.f32 %v1861, %v1899
    %v1970 = vsub.f32 %v1862, %v1903
    %v1971 = vsub.f32 %v1863, %v1903
    %v1972 = vsub.f32 %v1864, %v1907
    %v1973 = vsub.f32 %v1865, %v1907
    %v1974 = vsub.f32 %v1866, %v1911
    %v1975 = vsub.f32 %v1867, %v1911
    %v1976 = vsub.f32 %v1868, %v1915
    %v1977 = vsub.f32 %v1869, %v1915
    %v1978 = vsub.f32 %v1870, %v1919
    %v1979 = vsub.f32 %v1871, %v1919
    %v1980 = vsub.f32 %v1872, %v1923
    %v1981 = vsub.f32 %v1873, %v1923
    %v1982 = vsub.f32 %v1874, %v1927
    %v1983 = vsub.f32 %v1875, %v1927
    %v1984 = vsub.f32 %v1876, %v1931
    %v1985 = vsub.f32 %v1877, %v1931
    %v1986 = vsub.f32 %v1878, %v1935
    %v1987 = vsub.f32 %v1879, %v1935
    %v1988 = vsub.f32 %v1880, %v1939
    %v1989 = vsub.f32 %v1881, %v1939
    %v1990 = vsub.f32 %v1882, %v1943
    %v1991 = vsub.f32 %v1883, %v1943
    %v1992 = vsub.f32 %v1884, %v1947
    %v1993 = vsub.f32 %v1885, %v1947
    %v1994 = vsub.f32 %v1886, %v1951
    %v1995 = vsub.f32 %v1887, %v1951
    %v1996 = vsub.f32 %v1888, %v1955
    %v1997 = vsub.f32 %v1889, %v1955
    %v1998 = vsub.f32 %v1890, %v1959
    %v1999 = vsub.f32 %v1891, %v1959
    %v2000 = vsub.f32 %v1892, %v1963
    %v2001 = vsub.f32 %v1893, %v1963
    %v2002 = vsub.f32 %v1894, %v1967
    %v2003 = vsub.f32 %v1895, %v1967
    %v2004 = vmul.f32 %v1968, 1.442695
    %v2005 = vpow.pop %v2004
    %v2006 = vmul.f32 %v1969, 1.442695
    %v2007 = vpow.pop %v2006
    %v2008 = vmul.f32 %v1970, 1.442695
    %v2009 = vpow.pop %v2008
    %v2010 = vmul.f32 %v1971, 1.442695
    %v2011 = vpow.pop %v2010
    %v2012 = vmul.f32 %v1972, 1.442695
    %v2013 = vpow.pop %v2012
    %v2014 = vmul.f32 %v1973, 1.442695
    %v2015 = vpow.pop %v2014
    %v2016 = vmul.f32 %v1974, 1.442695
    %v2017 = vpow.pop %v2016
    %v2018 = vmul.f32 %v1975, 1.442695
    %v2019 = vpow.pop %v2018
    %v2020 = vmul.f32 %v1976, 1.442695
    %v2021 = vpow.pop %v2020
    %v2022 = vmul.f32 %v1977, 1.442695
    %v2023 = vpow.pop %v2022
    %v2024 = vmul.f32 %v1978, 1.442695
    %v2025 = vpow.pop %v2024
    %v2026 = vmul.f32 %v1979, 1.442695
    %v2027 = vpow.pop %v2026
    %v2028 = vmul.f32 %v1980, 1.442695
    %v2029 = vpow.pop %v2028
    %v2030 = vmul.f32 %v1981, 1.442695
    %v2031 = vpow.pop %v2030
    %v2032 = vmul.f32 %v1982, 1.442695
    %v2033 = vpow.pop %v2032
    %v2034 = vmul.f32 %v1983, 1.442695
    %v2035 = vpow.pop %v2034
    %v2036 = vmul.f32 %v1984, 1.442695
    %v2037 = vpow.pop %v2036
    %v2038 = vmul.f32 %v1985, 1.442695
    %v2039 = vpow.pop %v2038
    %v2040 = vmul.f32 %v1986, 1.442695
    %v2041 = vpow.pop %v2040
    %v2042 = vmul.f32 %v1987, 1.442695
    %v2043 = vpow.pop %v2042
    %v2044 = vmul.f32 %v1988, 1.442695
    %v2045 = vpow.pop %v2044
    %v2046 = vmul.f32 %v1989, 1.442695
    %v2047 = vpow.pop %v2046
    %v2048 = vmul.f32 %v1990, 1.442695
    %v2049 = vpow.pop %v2048
    %v2050 = vmul.f32 %v1991, 1.442695
    %v2051 = vpow.pop %v2050
    %v2052 = vmul.f32 %v1992, 1.442695
    %v2053 = vpow.pop %v2052
    %v2054 = vmul.f32 %v1993, 1.442695
    %v2055 = vpow.pop %v2054
    %v2056 = vmul.f32 %v1994, 1.442695
    %v2057 = vpow.pop %v2056
    %v2058 = vmul.f32 %v1995, 1.442695
    %v2059 = vpow.pop %v2058
    %v2060 = vmul.f32 %v1996, 1.442695
    %v2061 = vpow.pop %v2060
    %v2062 = vmul.f32 %v1997, 1.442695
    %v2063 = vpow.pop %v2062
    %v2064 = vmul.f32 %v1998, 1.442695
    %v2065 = vpow.pop %v2064
    %v2066 = vmul.f32 %v1999, 1.442695
    %v2067 = vpow.pop %v2066
    %v2068 = vmul.f32 %v2000, 1.442695
    %v2069 = vpow.pop %v2068
    %v2070 = vmul.f32 %v2001, 1.442695
    %v2071 = vpow.pop %v2070
    %v2072 = vmul.f32 %v2002, 1.442695
    %v2073 = vpow.pop %v2072
    %v2074 = vmul.f32 %v2003, 1.442695
    %v2075 = vpow.pop %v2074
    %v2076 = vsel %vm674, %v2007, 0.0
    %v2077 = vadd.f32 %v2005, %v2076
    %2078 = vadd.xlane.f32.xlu0 %v2077
    %v2079 = vpop.xlane.xlu0 %2078
    %v2080 = vsel %vm674, %v2011, 0.0
    %v2081 = vadd.f32 %v2009, %v2080
    %2082 = vadd.xlane.f32.xlu0 %v2081
    %v2083 = vpop.xlane.xlu0 %2082
    %v2084 = vsel %vm674, %v2015, 0.0
    %v2085 = vadd.f32 %v2013, %v2084
    %2086 = vadd.xlane.f32.xlu0 %v2085
    %v2087 = vpop.xlane.xlu0 %2086
    %v2088 = vsel %vm674, %v2019, 0.0
    %v2089 = vadd.f32 %v2017, %v2088
    %2090 = vadd.xlane.f32.xlu0 %v2089
    %v2091 = vpop.xlane.xlu0 %2090
    %v2092 = vsel %vm674, %v2023, 0.0
    %v2093 = vadd.f32 %v2021, %v2092
    %2094 = vadd.xlane.f32.xlu0 %v2093
    %v2095 = vpop.xlane.xlu0 %2094
    %v2096 = vsel %vm674, %v2027, 0.0
    %v2097 = vadd.f32 %v2025, %v2096
    %2098 = vadd.xlane.f32.xlu0 %v2097
    %v2099 = vpop.xlane.xlu0 %2098
    %v2100 = vsel %vm674, %v2031, 0.0
    %v2101 = vadd.f32 %v2029, %v2100
    %2102 = vadd.xlane.f32.xlu0 %v2101
    %v2103 = vpop.xlane.xlu0 %2102
    %v2104 = vsel %vm674, %v2035, 0.0
    %v2105 = vadd.f32 %v2033, %v2104
    %2106 = vadd.xlane.f32.xlu0 %v2105
    %v2107 = vpop.xlane.xlu0 %2106
    %v2108 = vsel %vm674, %v2039, 0.0
    %v2109 = vadd.f32 %v2037, %v2108
    %2110 = vadd.xlane.f32.xlu0 %v2109
    %v2111 = vpop.xlane.xlu0 %2110
    %v2112 = vsel %vm674, %v2043, 0.0
    %v2113 = vadd.f32 %v2041, %v2112
    %2114 = vadd.xlane.f32.xlu0 %v2113
    %v2115 = vpop.xlane.xlu0 %2114
    %v2116 = vsel %vm674, %v2047, 0.0
    %v2117 = vadd.f32 %v2045, %v2116
    %2118 = vadd.xlane.f32.xlu0 %v2117
    %v2119 = vpop.xlane.xlu0 %2118
    %v2120 = vsel %vm674, %v2051, 0.0
    %v2121 = vadd.f32 %v2049, %v2120
    %2122 = vadd.xlane.f32.xlu0 %v2121
    %v2123 = vpop.xlane.xlu0 %2122
    %v2124 = vsel %vm674, %v2055, 0.0
    %v2125 = vadd.f32 %v2053, %v2124
    %2126 = vadd.xlane.f32.xlu0 %v2125
    %v2127 = vpop.xlane.xlu0 %2126
    %v2128 = vsel %vm674, %v2059, 0.0
    %v2129 = vadd.f32 %v2057, %v2128
    %2130 = vadd.xlane.f32.xlu0 %v2129
    %v2131 = vpop.xlane.xlu0 %2130
    %v2132 = vsel %vm674, %v2063, 0.0
    %v2133 = vadd.f32 %v2061, %v2132
    %2134 = vadd.xlane.f32.xlu0 %v2133
    %v2135 = vpop.xlane.xlu0 %2134
    %v2136 = vsel %vm674, %v2067, 0.0
    %v2137 = vadd.f32 %v2065, %v2136
    %2138 = vadd.xlane.f32.xlu0 %v2137
    %v2139 = vpop.xlane.xlu0 %2138
    %v2140 = vsel %vm674, %v2071, 0.0
    %v2141 = vadd.f32 %v2069, %v2140
    %2142 = vadd.xlane.f32.xlu0 %v2141
    %v2143 = vpop.xlane.xlu0 %2142
    %v2144 = vsel %vm674, %v2075, 0.0
    %v2145 = vadd.f32 %v2073, %v2144
    %2146 = vadd.xlane.f32.xlu0 %v2145
    %v2147 = vpop.xlane.xlu0 %2146
    %v2148 = vrcp.pop %v2079
    %v2149 = vrcp.pop %v2083
    %v2150 = vrcp.pop %v2087
    %v2151 = vrcp.pop %v2091
    %v2152 = vrcp.pop %v2095
    %v2153 = vrcp.pop %v2099
    %v2154 = vrcp.pop %v2103
    %v2155 = vrcp.pop %v2107
    %v2156 = vrcp.pop %v2111
    %v2157 = vrcp.pop %v2115
    %v2158 = vrcp.pop %v2119
    %v2159 = vrcp.pop %v2123
    %v2160 = vrcp.pop %v2127
    %v2161 = vrcp.pop %v2131
    %v2162 = vrcp.pop %v2135
    %v2163 = vrcp.pop %v2139
    %v2164 = vrcp.pop %v2143
    %v2165 = vrcp.pop %v2147
    %v2166 = vmul.f32 %v2005, %v2148
    %v2167 = vmul.f32 %v2007, %v2148
    %v2168 = vmul.f32 %v2009, %v2149
    %v2169 = vmul.f32 %v2011, %v2149
    %v2170 = vmul.f32 %v2013, %v2150
    %v2171 = vmul.f32 %v2015, %v2150
    %v2172 = vmul.f32 %v2017, %v2151
    %v2173 = vmul.f32 %v2019, %v2151
    %v2174 = vmul.f32 %v2021, %v2152
    %v2175 = vmul.f32 %v2023, %v2152
    %v2176 = vmul.f32 %v2025, %v2153
    %v2177 = vmul.f32 %v2027, %v2153
    %v2178 = vmul.f32 %v2029, %v2154
    %v2179 = vmul.f32 %v2031, %v2154
    %v2180 = vmul.f32 %v2033, %v2155
    %v2181 = vmul.f32 %v2035, %v2155
    %v2182 = vmul.f32 %v2037, %v2156
    %v2183 = vmul.f32 %v2039, %v2156
    %v2184 = vmul.f32 %v2041, %v2157
    %v2185 = vmul.f32 %v2043, %v2157
    %v2186 = vmul.f32 %v2045, %v2158
    %v2187 = vmul.f32 %v2047, %v2158
    %v2188 = vmul.f32 %v2049, %v2159
    %v2189 = vmul.f32 %v2051, %v2159
    %v2190 = vmul.f32 %v2053, %v2160
    %v2191 = vmul.f32 %v2055, %v2160
    %v2192 = vmul.f32 %v2057, %v2161
    %v2193 = vmul.f32 %v2059, %v2161
    %v2194 = vmul.f32 %v2061, %v2162
    %v2195 = vmul.f32 %v2063, %v2162
    %v2196 = vmul.f32 %v2065, %v2163
    %v2197 = vmul.f32 %v2067, %v2163
    %v2198 = vmul.f32 %v2069, %v2164
    %v2199 = vmul.f32 %v2071, %v2164
    %v2200 = vmul.f32 %v2073, %v2165
    %v2201 = vmul.f32 %v2075, %v2165
    %2220 = vrot.lane.b32.xlu0 %v534, 112
    %v2221 = vpop.permute.xlu0 %2220
    %2222 = vrot.lane.b32.xlu0 %v538, 112
    %v2223 = vpop.permute.xlu0 %2222
    %2224 = vrot.lane.b32.xlu0 %v544, 112
    %v2225 = vpop.permute.xlu0 %2224
    %2226 = vrot.lane.b32.xlu0 %v548, 112
    %v2227 = vpop.permute.xlu0 %2226
    %2228 = vrot.lane.b32.xlu0 %v554, 112
    %v2229 = vpop.permute.xlu0 %2228
    %2230 = vrot.lane.b32.xlu0 %v558, 112
    %v2231 = vpop.permute.xlu0 %2230
    %2232 = vrot.lane.b32.xlu0 %v564, 112
    %v2233 = vpop.permute.xlu0 %2232
    %2234 = vrot.lane.b32.xlu0 %v568, 112
    %v2235 = vpop.permute.xlu0 %2234
    %2236 = vrot.lane.b32.xlu0 %v574, 112
    %v2237 = vpop.permute.xlu0 %2236
    %2238 = vrot.lane.b32.xlu0 %v578, 112
    %v2239 = vpop.permute.xlu0 %2238
    %2240 = vrot.lane.b32.xlu0 %v584, 112
    %v2241 = vpop.permute.xlu0 %2240
    %2242 = vrot.lane.b32.xlu0 %v588, 112
    %v2243 = vpop.permute.xlu0 %2242
    %2244 = vrot.lane.b32.xlu0 %v594, 112
    %v2245 = vpop.permute.xlu0 %2244
    %2246 = vrot.lane.b32.xlu0 %v598, 112
    %v2247 = vpop.permute.xlu0 %2246
    %2248 = vrot.lane.b32.xlu0 %v604, 112
    %v2249 = vpop.permute.xlu0 %2248
    %2250 = vrot.lane.b32.xlu0 %v608, 112
    %v2251 = vpop.permute.xlu0 %2250
    %2252 = vrot.lane.b32.xlu0 %v614, 112
    %v2253 = vpop.permute.xlu0 %2252
    %2254 = vrot.lane.b32.xlu0 %v618, 112
    %v2255 = vpop.permute.xlu0 %2254
    %v2275 = vsel %vm674, %v2167, 0
    %v2278 = vsel %vm674, %v2169, 0
    %v2281 = vsel %vm674, %v2171, 0
    %v2284 = vsel %vm674, %v2173, 0
    %v2287 = vsel %vm674, %v2175, 0
    %v2290 = vsel %vm674, %v2177, 0
    %v2293 = vsel %vm674, %v2179, 0
    %v2296 = vsel %vm674, %v2181, 0
    %v2299 = vsel %vm674, %v2183, 0
    %v2302 = vsel %vm674, %v2185, 0
    %v2305 = vsel %vm674, %v2187, 0
    %v2308 = vsel %vm674, %v2189, 0
    %v2311 = vsel %vm674, %v2191, 0
    %v2314 = vsel %vm674, %v2193, 0
    %v2317 = vsel %vm674, %v2195, 0
    %v2320 = vsel %vm674, %v2197, 0
    %v2323 = vsel %vm674, %v2199, 0
    %v2326 = vsel %vm674, %v2201, 0
    %2328 = vmatprep.subr.mxu0 0.0
    %2329 = vmatpush1.msra.mxu0 %v2221
    %2330 = vmatprep.subr.mxu0 0.0
    %2331 = vmatpush1.msra.mxu0 %v2223
    %2332 = vmatprep.subr.mxu0 0.0
    %2333 = vmatpush1.msra.mxu0 %v2225
    %2334 = vmatprep.subr.mxu0 0.0
    %2335 = vmatpush1.msra.mxu0 %v2227
    %2336 = vmatprep.subr.mxu0 0.0
    %2337 = vmatpush1.msra.mxu0 %v2229
    %2338 = vmatprep.subr.mxu0 0.0
    %2339 = vmatpush1.msra.mxu0 %v2231
    %2340 = vmatprep.subr.mxu0 0.0
    %2341 = vmatpush1.msra.mxu0 %v2233
    %2342 = vmatprep.subr.mxu0 0.0
    %2343 = vmatpush1.msra.mxu0 %v2235
    %2344 = vmatprep.subr.mxu0 0.0
    %2345 = vmatpush1.msra.mxu0 %v2237
    %2346 = vmatprep.subr.mxu0 0.0
    %2347 = vmatpush1.msra.mxu0 %v2239
    %2348 = vmatprep.subr.mxu0 0.0
    %2349 = vmatpush1.msra.mxu0 %v2241
    %2350 = vmatprep.subr.mxu0 0.0
    %2351 = vmatpush1.msra.mxu0 %v2243
    %2352 = vmatprep.subr.mxu0 0.0
    %2353 = vmatpush1.msra.mxu0 %v2245
    %2354 = vmatprep.subr.mxu0 0.0
    %2355 = vmatpush1.msra.mxu0 %v2247
    %2356 = vmatprep.subr.mxu0 0.0
    %2357 = vmatpush1.msra.mxu0 %v2249
    %2358 = vmatprep.subr.mxu0 0.0
    %2359 = vmatpush1.msra.mxu0 %v2251
    %2360 = vmatprep.subr.mxu0 0.0
    %2361 = vmatpush1.msra.mxu0 %v2253
    %2362 = vmatprep.subr.mxu0 0.0
    %2363 = vmatpush1.msra.mxu0 %v2255
    %2364 = vmatprep.subr.mxu0 0.0
    %2365 = vmatpush1.msra.mxu0 0.0
    %2366 = vmatprep.subr.mxu0 0.0
    %2367 = vmatpush1.msra.mxu0 0.0
    %2368 = vmatprep.subr.mxu0 0.0
    %2369 = vmatpush1.msra.mxu0 0.0
    %2370 = vmatprep.subr.mxu0 0.0
    %2371 = vmatpush1.msra.mxu0 0.0
    %2372 = vmatprep.subr.mxu0 0.0
    %2373 = vmatpush1.msra.mxu0 0.0
    %2374 = vmatprep.subr.mxu0 0.0
    %2375 = vmatpush1.msra.mxu0 0.0
    %2376 = vmatprep.subr.mxu0 0.0
    %2377 = vmatpush1.msra.mxu0 0.0
    %2378 = vmatprep.subr.mxu0 0.0
    %2379 = vmatpush1.msra.mxu0 0.0
    %2380 = vmatprep.subr.mxu0 0.0
    %2381 = vmatpush1.msra.mxu0 0.0
    %2382 = vmatprep.subr.mxu0 0.0
    %2383 = vmatpush1.msra.mxu0 0.0
    %2384 = vmatprep.subr.mxu0 0.0
    %2385 = vmatpush1.msra.mxu0 0.0
    %2386 = vmatprep.subr.mxu0 0.0
    %2387 = vmatpush1.msra.mxu0 0.0
    %2388 = vmatprep.subr.mxu0 0.0
    %2389 = vmatpush1.msra.mxu0 0.0
    %2390 = vmatprep.subr.mxu0 0.0
    %2391 = vmatpush1.msra.mxu0 0.0
    %2392 = vmatprep.mubr.f32.mxu0 %v2275
    %2393 = vmatmul.mubr.f32.gmra.mrb[0].mxu0 %v2166
    %v2394 = vpop.f32.mrb[0].mxu0
    %v2395 = vadd.f32 0.0, %v2394
    %v2396 = vpop.f32.mrb[0].mxu0
    %2397 = vmatprep.mubr.f32.mxu0 %v2278
    %2398 = vmatmul.mubr.f32.gmra.mrb[0].mxu0 %v2168
    %v2399 = vpop.f32.mrb[0].mxu0
    %v2400 = vadd.f32 0.0, %v2399
    %v2401 = vpop.f32.mrb[0].mxu0
    %2402 = vmatprep.mubr.f32.mxu0 %v2281
    %2403 = vmatmul.mubr.f32.gmra.mrb[0].mxu0 %v2170
    %v2404 = vpop.f32.mrb[0].mxu0
    %v2405 = vadd.f32 0.0, %v2404
    %v2406 = vpop.f32.mrb[0].mxu0
    %2407 = vmatprep.mubr.f32.mxu0 %v2284
    %2408 = vmatmul.mubr.f32.gmra.mrb[0].mxu0 %v2172
    %v2409 = vpop.f32.mrb[0].mxu0
    %v2410 = vadd.f32 0.0, %v2409
    %v2411 = vpop.f32.mrb[0].mxu0
    %2412 = vmatprep.mubr.f32.mxu0 %v2287
    %2413 = vmatmul.mubr.f32.gmra.mrb[0].mxu0 %v2174
    %v2414 = vpop.f32.mrb[0].mxu0
    %v2415 = vadd.f32 0.0, %v2414
    %v2416 = vpop.f32.mrb[0].mxu0
    %2417 = vmatprep.mubr.f32.mxu0 %v2290
    %2418 = vmatmul.mubr.f32.gmra.mrb[0].mxu0 %v2176
    %v2419 = vpop.f32.mrb[0].mxu0
    %v2420 = vadd.f32 0.0, %v2419
    %v2421 = vpop.f32.mrb[0].mxu0
    %2422 = vmatprep.mubr.f32.mxu0 %v2293
    %2423 = vmatmul.mubr.f32.gmra.mrb[0].mxu0 %v2178
    %v2424 = vpop.f32.mrb[0].mxu0
    %v2425 = vadd.f32 0.0, %v2424
    %v2426 = vpop.f32.mrb[0].mxu0
    %2427 = vmatprep.mubr.f32.mxu0 %v2296
    %2428 = vmatmul.mubr.f32.gmra.mrb[0].mxu0 %v2180
    %v2429 = vpop.f32.mrb[0].mxu0
    %v2430 = vadd.f32 0.0, %v2429
    %v2431 = vpop.f32.mrb[0].mxu0
    %2432 = vmatprep.mubr.f32.mxu0 %v2299
    %2433 = vmatmul.mubr.f32.gmra.mrb[0].mxu0 %v2182
    %v2434 = vpop.f32.mrb[0].mxu0
    %v2435 = vadd.f32 0.0, %v2434
    %v2436 = vpop.f32.mrb[0].mxu0
    %2437 = vmatprep.mubr.f32.mxu0 %v2302
    %2438 = vmatmul.mubr.f32.gmra.mrb[0].mxu0 %v2184
    %v2439 = vpop.f32.mrb[0].mxu0
    %v2440 = vadd.f32 0.0, %v2439
    %v2441 = vpop.f32.mrb[0].mxu0
    %2442 = vmatprep.mubr.f32.mxu0 %v2305
    %2443 = vmatmul.mubr.f32.gmra.mrb[0].mxu0 %v2186
    %v2444 = vpop.f32.mrb[0].mxu0
    %v2445 = vadd.f32 0.0, %v2444
    %v2446 = vpop.f32.mrb[0].mxu0
    %2447 = vmatprep.mubr.f32.mxu0 %v2308
    %2448 = vmatmul.mubr.f32.gmra.mrb[0].mxu0 %v2188
    %v2449 = vpop.f32.mrb[0].mxu0
    %v2450 = vadd.f32 0.0, %v2449
    %v2451 = vpop.f32.mrb[0].mxu0
    %2452 = vmatprep.mubr.f32.mxu0 %v2311
    %2453 = vmatmul.mubr.f32.gmra.mrb[0].mxu0 %v2190
    %v2454 = vpop.f32.mrb[0].mxu0
    %v2455 = vadd.f32 0.0, %v2454
    %v2456 = vpop.f32.mrb[0].mxu0
    %2457 = vmatprep.mubr.f32.mxu0 %v2314
    %2458 = vmatmul.mubr.f32.gmra.mrb[0].mxu0 %v2192
    %v2459 = vpop.f32.mrb[0].mxu0
    %v2460 = vadd.f32 0.0, %v2459
    %v2461 = vpop.f32.mrb[0].mxu0
    %2462 = vmatprep.mubr.f32.mxu0 %v2317
    %2463 = vmatmul.mubr.f32.gmra.mrb[0].mxu0 %v2194
    %v2464 = vpop.f32.mrb[0].mxu0
    %v2465 = vadd.f32 0.0, %v2464
    %v2466 = vpop.f32.mrb[0].mxu0
    %2467 = vmatprep.mubr.f32.mxu0 %v2320
    %2468 = vmatmul.mubr.f32.gmra.mrb[0].mxu0 %v2196
    %v2469 = vpop.f32.mrb[0].mxu0
    %v2470 = vadd.f32 0.0, %v2469
    %v2471 = vpop.f32.mrb[0].mxu0
    %2472 = vmatprep.mubr.f32.mxu0 %v2323
    %2473 = vmatmul.mubr.f32.gmra.mrb[0].mxu0 %v2198
    %v2474 = vpop.f32.mrb[0].mxu0
    %v2475 = vadd.f32 0.0, %v2474
    %v2476 = vpop.f32.mrb[0].mxu0
    %2477 = vmatprep.mubr.f32.mxu0 %v2326
    %2478 = vmatmul.mubr.f32.gmra.mrb[0].mxu0 %v2200
    %v2479 = vpop.f32.mrb[0].mxu0
    %v2480 = vadd.f32 0.0, %v2479
    %v2481 = vpop.f32.mrb[0].mxu0
    %2482 = vdwg.mxu0
    %2483 = vrot.lane.b32.xlu0 %v532, 96
    %v2484 = vpop.permute.xlu0 %2483
    %2485 = vrot.lane.b32.xlu0 %v536, 96
    %v2486 = vpop.permute.xlu0 %2485
    %2487 = vrot.lane.b32.xlu0 %v542, 96
    %v2488 = vpop.permute.xlu0 %2487
    %2489 = vrot.lane.b32.xlu0 %v546, 96
    %v2490 = vpop.permute.xlu0 %2489
    %2491 = vrot.lane.b32.xlu0 %v552, 96
    %v2492 = vpop.permute.xlu0 %2491
    %2493 = vrot.lane.b32.xlu0 %v556, 96
    %v2494 = vpop.permute.xlu0 %2493
    %2495 = vrot.lane.b32.xlu0 %v562, 96
    %v2496 = vpop.permute.xlu0 %2495
    %2497 = vrot.lane.b32.xlu0 %v566, 96
    %v2498 = vpop.permute.xlu0 %2497
    %2499 = vrot.lane.b32.xlu0 %v572, 96
    %v2500 = vpop.permute.xlu0 %2499
    %2501 = vrot.lane.b32.xlu0 %v576, 96
    %v2502 = vpop.permute.xlu0 %2501
    %2503 = vrot.lane.b32.xlu0 %v582, 96
    %v2504 = vpop.permute.xlu0 %2503
    %2505 = vrot.lane.b32.xlu0 %v586, 96
    %v2506 = vpop.permute.xlu0 %2505
    %2507 = vrot.lane.b32.xlu0 %v592, 96
    %v2508 = vpop.permute.xlu0 %2507
    %2509 = vrot.lane.b32.xlu0 %v596, 96
    %v2510 = vpop.permute.xlu0 %2509
    %2511 = vrot.lane.b32.xlu0 %v602, 96
    %v2512 = vpop.permute.xlu0 %2511
    %2513 = vrot.lane.b32.xlu0 %v606, 96
    %v2514 = vpop.permute.xlu0 %2513
    %2515 = vrot.lane.b32.xlu0 %v612, 96
    %v2516 = vpop.permute.xlu0 %2515
    %2517 = vrot.lane.b32.xlu0 %v616, 96
    %v2518 = vpop.permute.xlu0 %2517
    %2519 = vrot.lane.b32.xlu0 %v532, 32
    %v2520 = vpop.permute.xlu0 %2519
    %2521 = vrot.lane.b32.xlu0 %v536, 32
    %v2522 = vpop.permute.xlu0 %2521
    %2523 = vrot.lane.b32.xlu0 %v542, 32
    %v2524 = vpop.permute.xlu0 %2523
    %2525 = vrot.lane.b32.xlu0 %v546, 32
    %v2526 = vpop.permute.xlu0 %2525
    %2527 = vrot.lane.b32.xlu0 %v552, 32
    %v2528 = vpop.permute.xlu0 %2527
    %2529 = vrot.lane.b32.xlu0 %v556, 32
    %v2530 = vpop.permute.xlu0 %2529
    %2531 = vrot.lane.b32.xlu0 %v562, 32
    %v2532 = vpop.permute.xlu0 %2531
    %2533 = vrot.lane.b32.xlu0 %v566, 32
    %v2534 = vpop.permute.xlu0 %2533
    %2535 = vrot.lane.b32.xlu0 %v572, 32
    %v2536 = vpop.permute.xlu0 %2535
    %2537 = vrot.lane.b32.xlu0 %v576, 32
    %v2538 = vpop.permute.xlu0 %2537
    %2539 = vrot.lane.b32.xlu0 %v582, 32
    %v2540 = vpop.permute.xlu0 %2539
    %2541 = vrot.lane.b32.xlu0 %v586, 32
    %v2542 = vpop.permute.xlu0 %2541
    %2543 = vrot.lane.b32.xlu0 %v592, 32
    %v2544 = vpop.permute.xlu0 %2543
    %2545 = vrot.lane.b32.xlu0 %v596, 32
    %v2546 = vpop.permute.xlu0 %2545
    %2547 = vrot.lane.b32.xlu0 %v602, 32
    %v2548 = vpop.permute.xlu0 %2547
    %2549 = vrot.lane.b32.xlu0 %v606, 32
    %v2550 = vpop.permute.xlu0 %2549
    %2551 = vrot.lane.b32.xlu0 %v612, 32
    %v2552 = vpop.permute.xlu0 %2551
    %2553 = vrot.lane.b32.xlu0 %v616, 32
    %v2554 = vpop.permute.xlu0 %2553
    %v2555 = vsel %vm674, %v2484, 0
    %v2557 = vsel %vm674, %v2486, 0
    %v2559 = vsel %vm674, %v2488, 0
    %v2561 = vsel %vm674, %v2490, 0
    %v2563 = vsel %vm674, %v2492, 0
    %v2565 = vsel %vm674, %v2494, 0
    %v2567 = vsel %vm674, %v2496, 0
    %v2569 = vsel %vm674, %v2498, 0
    %v2571 = vsel %vm674, %v2500, 0
    %v2573 = vsel %vm674, %v2502, 0
    %v2575 = vsel %vm674, %v2504, 0
    %v2577 = vsel %vm674, %v2506, 0
    %v2579 = vsel %vm674, %v2508, 0
    %v2581 = vsel %vm674, %v2510, 0
    %v2583 = vsel %vm674, %v2512, 0
    %v2585 = vsel %vm674, %v2514, 0
    %v2587 = vsel %vm674, %v2516, 0
    %v2589 = vsel %vm674, %v2518, 0
    %v2591 = vsel %vm674, %v2520, 0
    %v2593 = vsel %vm674, %v2522, 0
    %v2595 = vsel %vm674, %v2524, 0
    %v2597 = vsel %vm674, %v2526, 0
    %v2599 = vsel %vm674, %v2528, 0
    %v2601 = vsel %vm674, %v2530, 0
    %v2603 = vsel %vm674, %v2532, 0
    %v2605 = vsel %vm674, %v2534, 0
    %v2607 = vsel %vm674, %v2536, 0
    %v2609 = vsel %vm674, %v2538, 0
    %v2611 = vsel %vm674, %v2540, 0
    %v2613 = vsel %vm674, %v2542, 0
    %v2615 = vsel %vm674, %v2544, 0
    %v2617 = vsel %vm674, %v2546, 0
    %v2619 = vsel %vm674, %v2548, 0
    %v2621 = vsel %vm674, %v2550, 0
    %v2623 = vsel %vm674, %v2552, 0
    %v2625 = vsel %vm674, %v2554, 0
    %2627 = vmatprep.subr.mxu0 0.0
    %2628 = vmatpush1.xpose.msra.mxu0 %v2591
    %2629 = vmatprep.subr.mxu0 0.0
    %2630 = vmatpush1.xpose.msra.mxu0 %v2593
    %2631 = vmatprep.subr.mxu0 0.0
    %2632 = vmatpush1.xpose.msra.mxu0 %v2595
    %2633 = vmatprep.subr.mxu0 0.0
    %2634 = vmatpush1.xpose.msra.mxu0 %v2597
    %2635 = vmatprep.subr.mxu0 0.0
    %2636 = vmatpush1.xpose.msra.mxu0 %v2599
    %2637 = vmatprep.subr.mxu0 0.0
    %2638 = vmatpush1.xpose.msra.mxu0 %v2601
    %2639 = vmatprep.subr.mxu0 0.0
    %2640 = vmatpush1.xpose.msra.mxu0 %v2603
    %2641 = vmatprep.subr.mxu0 0.0
    %2642 = vmatpush1.xpose.msra.mxu0 %v2605
    %2643 = vmatprep.subr.mxu0 0.0
    %2644 = vmatpush1.xpose.msra.mxu0 %v2607
    %2645 = vmatprep.subr.mxu0 0.0
    %2646 = vmatpush1.xpose.msra.mxu0 %v2609
    %2647 = vmatprep.subr.mxu0 0.0
    %2648 = vmatpush1.xpose.msra.mxu0 %v2611
    %2649 = vmatprep.subr.mxu0 0.0
    %2650 = vmatpush1.xpose.msra.mxu0 %v2613
    %2651 = vmatprep.subr.mxu0 0.0
    %2652 = vmatpush1.xpose.msra.mxu0 %v2615
    %2653 = vmatprep.subr.mxu0 0.0
    %2654 = vmatpush1.xpose.msra.mxu0 %v2617
    %2655 = vmatprep.subr.mxu0 0.0
    %2656 = vmatpush1.xpose.msra.mxu0 %v2619
    %2657 = vmatprep.subr.mxu0 0.0
    %2658 = vmatpush1.xpose.msra.mxu0 %v2621
    %2659 = vmatprep.subr.mxu0 0.0
    %2660 = vmatpush1.xpose.msra.mxu0 %v2623
    %2661 = vmatprep.subr.mxu0 0.0
    %2662 = vmatpush1.xpose.msra.mxu0 %v2625
    %2663 = vmatprep.subr.mxu0 0.0
    %2664 = vmatpush1.xpose.msra.mxu0 0.0
    %2665 = vmatprep.subr.mxu0 0.0
    %2666 = vmatpush1.xpose.msra.mxu0 0.0
    %2667 = vmatprep.subr.mxu0 0.0
    %2668 = vmatpush1.xpose.msra.mxu0 0.0
    %2669 = vmatprep.subr.mxu0 0.0
    %2670 = vmatpush1.xpose.msra.mxu0 0.0
    %2671 = vmatprep.subr.mxu0 0.0
    %2672 = vmatpush1.xpose.msra.mxu0 0.0
    %2673 = vmatprep.subr.mxu0 0.0
    %2674 = vmatpush1.xpose.msra.mxu0 0.0
    %2675 = vmatprep.subr.mxu0 0.0
    %2676 = vmatpush1.xpose.msra.mxu0 0.0
    %2677 = vmatprep.subr.mxu0 0.0
    %2678 = vmatpush1.xpose.msra.mxu0 0.0
    %2679 = vmatprep.subr.mxu0 0.0
    %2680 = vmatpush1.xpose.msra.mxu0 0.0
    %2681 = vmatprep.subr.mxu0 0.0
    %2682 = vmatpush1.xpose.msra.mxu0 0.0
    %2683 = vmatprep.subr.mxu0 0.0
    %2684 = vmatpush1.xpose.msra.mxu0 0.0
    %2685 = vmatprep.subr.mxu0 0.0
    %2686 = vmatpush1.xpose.msra.mxu0 0.0
    %2687 = vmatprep.subr.mxu0 0.0
    %2688 = vmatpush1.xpose.msra.mxu0 0.0
    %2689 = vmatprep.subr.mxu0 0.0
    %2690 = vmatpush1.xpose.msra.mxu0 0.0
    %2691 = vmatprep.mubr.f32.mxu0 0.0
    %2692 = vmatmul.mubr.f32.gmra.mrb[0].mxu0 %v2555
    %v2693 = vpop.f32.mrb[0].mxu0
    %v2694 = vadd.f32 0.0, %v2693
    %v2695 = vpop.f32.mrb[0].mxu0
    %v2696 = vadd.f32 0.0, %v2695
    %2697 = vmatprep.mubr.f32.mxu0 0.0
    %2698 = vmatmul.mubr.f32.gmra.mrb[0].mxu0 %v2557
    %v2699 = vpop.f32.mrb[0].mxu0
    %v2700 = vadd.f32 0.0, %v2699
    %v2701 = vpop.f32.mrb[0].mxu0
    %v2702 = vadd.f32 0.0, %v2701
    %2703 = vmatprep.mubr.f32.mxu0 0.0
    %2704 = vmatmul.mubr.f32.gmra.mrb[0].mxu0 %v2559
    %v2705 = vpop.f32.mrb[0].mxu0
    %v2706 = vadd.f32 0.0, %v2705
    %v2707 = vpop.f32.mrb[0].mxu0
    %v2708 = vadd.f32 0.0, %v2707
    %2709 = vmatprep.mubr.f32.mxu0 0.0
    %2710 = vmatmul.mubr.f32.gmra.mrb[0].mxu0 %v2561
    %v2711 = vpop.f32.mrb[0].mxu0
    %v2712 = vadd.f32 0.0, %v2711
    %v2713 = vpop.f32.mrb[0].mxu0
    %v2714 = vadd.f32 0.0, %v2713
    %2715 = vmatprep.mubr.f32.mxu0 0.0
    %2716 = vmatmul.mubr.f32.gmra.mrb[0].mxu0 %v2563
    %v2717 = vpop.f32.mrb[0].mxu0
    %v2718 = vadd.f32 0.0, %v2717
    %v2719 = vpop.f32.mrb[0].mxu0
    %v2720 = vadd.f32 0.0, %v2719
    %2721 = vmatprep.mubr.f32.mxu0 0.0
    %2722 = vmatmul.mubr.f32.gmra.mrb[0].mxu0 %v2565
    %v2723 = vpop.f32.mrb[0].mxu0
    %v2724 = vadd.f32 0.0, %v2723
    %v2725 = vpop.f32.mrb[0].mxu0
    %v2726 = vadd.f32 0.0, %v2725
    %2727 = vmatprep.mubr.f32.mxu0 0.0
    %2728 = vmatmul.mubr.f32.gmra.mrb[0].mxu0 %v2567
    %v2729 = vpop.f32.mrb[0].mxu0
    %v2730 = vadd.f32 0.0, %v2729
    %v2731 = vpop.f32.mrb[0].mxu0
    %v2732 = vadd.f32 0.0, %v2731
    %2733 = vmatprep.mubr.f32.mxu0 0.0
    %2734 = vmatmul.mubr.f32.gmra.mrb[0].mxu0 %v2569
    %v2735 = vpop.f32.mrb[0].mxu0
    %v2736 = vadd.f32 0.0, %v2735
    %v2737 = vpop.f32.mrb[0].mxu0
    %v2738 = vadd.f32 0.0, %v2737
    %2739 = vmatprep.mubr.f32.mxu0 0.0
    %2740 = vmatmul.mubr.f32.gmra.mrb[0].mxu0 %v2571
    %v2741 = vpop.f32.mrb[0].mxu0
    %v2742 = vadd.f32 0.0, %v2741
    %v2743 = vpop.f32.mrb[0].mxu0
    %v2744 = vadd.f32 0.0, %v2743
    %2745 = vmatprep.mubr.f32.mxu0 0.0
    %2746 = vmatmul.mubr.f32.gmra.mrb[0].mxu0 %v2573
    %v2747 = vpop.f32.mrb[0].mxu0
    %v2748 = vadd.f32 0.0, %v2747
    %v2749 = vpop.f32.mrb[0].mxu0
    %v2750 = vadd.f32 0.0, %v2749
    %2751 = vmatprep.mubr.f32.mxu0 0.0
    %2752 = vmatmul.mubr.f32.gmra.mrb[0].mxu0 %v2575
    %v2753 = vpop.f32.mrb[0].mxu0
    %v2754 = vadd.f32 0.0, %v2753
    %v2755 = vpop.f32.mrb[0].mxu0
    %v2756 = vadd.f32 0.0, %v2755
    %2757 = vmatprep.mubr.f32.mxu0 0.0
    %2758 = vmatmul.mubr.f32.gmra.mrb[0].mxu0 %v2577
    %v2759 = vpop.f32.mrb[0].mxu0
    %v2760 = vadd.f32 0.0, %v2759
    %v2761 = vpop.f32.mrb[0].mxu0
    %v2762 = vadd.f32 0.0, %v2761
    %2763 = vmatprep.mubr.f32.mxu0 0.0
    %2764 = vmatmul.mubr.f32.gmra.mrb[0].mxu0 %v2579
    %v2765 = vpop.f32.mrb[0].mxu0
    %v2766 = vadd.f32 0.0, %v2765
    %v2767 = vpop.f32.mrb[0].mxu0
    %v2768 = vadd.f32 0.0, %v2767
    %2769 = vmatprep.mubr.f32.mxu0 0.0
    %2770 = vmatmul.mubr.f32.gmra.mrb[0].mxu0 %v2581
    %v2771 = vpop.f32.mrb[0].mxu0
    %v2772 = vadd.f32 0.0, %v2771
    %v2773 = vpop.f32.mrb[0].mxu0
    %v2774 = vadd.f32 0.0, %v2773
    %2775 = vmatprep.mubr.f32.mxu0 0.0
    %2776 = vmatmul.mubr.f32.gmra.mrb[0].mxu0 %v2583
    %v2777 = vpop.f32.mrb[0].mxu0
    %v2778 = vadd.f32 0.0, %v2777
    %v2779 = vpop.f32.mrb[0].mxu0
    %v2780 = vadd.f32 0.0, %v2779
    %2781 = vmatprep.mubr.f32.mxu0 0.0
    %2782 = vmatmul.mubr.f32.gmra.mrb[0].mxu0 %v2585
    %v2783 = vpop.f32.mrb[0].mxu0
    %v2784 = vadd.f32 0.0, %v2783
    %v2785 = vpop.f32.mrb[0].mxu0
    %v2786 = vadd.f32 0.0, %v2785
    %2787 = vmatprep.mubr.f32.mxu0 0.0
    %2788 = vmatmul.mubr.f32.gmra.mrb[0].mxu0 %v2587
    %v2789 = vpop.f32.mrb[0].mxu0
    %v2790 = vadd.f32 0.0, %v2789
    %v2791 = vpop.f32.mrb[0].mxu0
    %v2792 = vadd.f32 0.0, %v2791
    %2793 = vmatprep.mubr.f32.mxu0 0.0
    %2794 = vmatmul.mubr.f32.gmra.mrb[0].mxu0 %v2589
    %v2795 = vpop.f32.mrb[0].mxu0
    %v2796 = vadd.f32 0.0, %v2795
    %v2797 = vpop.f32.mrb[0].mxu0
    %v2798 = vadd.f32 0.0, %v2797
    %2799 = vdwg.mxu0
    %v2800 = vmul.f32 %v2694, 0.25
    %v2801 = vmul.f32 %v2696, 0.25
    %v2802 = vmul.f32 %v2700, 0.25
    %v2803 = vmul.f32 %v2702, 0.25
    %v2804 = vmul.f32 %v2706, 0.25
    %v2805 = vmul.f32 %v2708, 0.25
    %v2806 = vmul.f32 %v2712, 0.25
    %v2807 = vmul.f32 %v2714, 0.25
    %v2808 = vmul.f32 %v2718, 0.25
    %v2809 = vmul.f32 %v2720, 0.25
    %v2810 = vmul.f32 %v2724, 0.25
    %v2811 = vmul.f32 %v2726, 0.25
    %v2812 = vmul.f32 %v2730, 0.25
    %v2813 = vmul.f32 %v2732, 0.25
    %v2814 = vmul.f32 %v2736, 0.25
    %v2815 = vmul.f32 %v2738, 0.25
    %v2816 = vmul.f32 %v2742, 0.25
    %v2817 = vmul.f32 %v2744, 0.25
    %v2818 = vmul.f32 %v2748, 0.25
    %v2819 = vmul.f32 %v2750, 0.25
    %v2820 = vmul.f32 %v2754, 0.25
    %v2821 = vmul.f32 %v2756, 0.25
    %v2822 = vmul.f32 %v2760, 0.25
    %v2823 = vmul.f32 %v2762, 0.25
    %v2824 = vmul.f32 %v2766, 0.25
    %v2825 = vmul.f32 %v2768, 0.25
    %v2826 = vmul.f32 %v2772, 0.25
    %v2827 = vmul.f32 %v2774, 0.25
    %v2828 = vmul.f32 %v2778, 0.25
    %v2829 = vmul.f32 %v2780, 0.25
    %v2830 = vmul.f32 %v2784, 0.25
    %v2831 = vmul.f32 %v2786, 0.25
    %v2832 = vmul.f32 %v2790, 0.25
    %v2833 = vmul.f32 %v2792, 0.25
    %v2834 = vmul.f32 %v2796, 0.25
    %v2835 = vmul.f32 %v2798, 0.25
    %v2836 = vadd.f32 %v2800, %v97
    %v2837 = vadd.f32 %v2801, %v98
    %v2838 = vadd.f32 %v2802, %v99
    %v2839 = vadd.f32 %v2803, %v100
    %v2840 = vadd.f32 %v2804, %v101
    %v2841 = vadd.f32 %v2805, %v102
    %v2842 = vadd.f32 %v2806, %v103
    %v2843 = vadd.f32 %v2807, %v104
    %v2844 = vadd.f32 %v2808, %v105
    %v2845 = vadd.f32 %v2809, %v106
    %v2846 = vadd.f32 %v2810, %v107
    %v2847 = vadd.f32 %v2811, %v108
    %v2848 = vadd.f32 %v2812, %v109
    %v2849 = vadd.f32 %v2813, %v110
    %v2850 = vadd.f32 %v2814, %v111
    %v2851 = vadd.f32 %v2815, %v112
    %v2852 = vadd.f32 %v2816, %v113
    %v2853 = vadd.f32 %v2817, %v114
    %v2854 = vadd.f32 %v2818, %v115
    %v2855 = vadd.f32 %v2819, %v116
    %v2856 = vadd.f32 %v2820, %v117
    %v2857 = vadd.f32 %v2821, %v118
    %v2858 = vadd.f32 %v2822, %v119
    %v2859 = vadd.f32 %v2823, %v120
    %v2860 = vadd.f32 %v2824, %v121
    %v2861 = vadd.f32 %v2825, %v122
    %v2862 = vadd.f32 %v2826, %v123
    %v2863 = vadd.f32 %v2827, %v124
    %v2864 = vadd.f32 %v2828, %v125
    %v2865 = vadd.f32 %v2829, %v126
    %v2866 = vadd.f32 %v2830, %v127
    %v2867 = vadd.f32 %v2831, %v128
    %v2868 = vadd.f32 %v2832, %v129
    %v2869 = vadd.f32 %v2833, %v130
    %v2870 = vadd.f32 %v2834, %v131
    %v2871 = vadd.f32 %v2835, %v132
    %v2872 = vsel %vm674, %v2837, -inf
    %v2873 = vmax.f32 %v2836, %v2872
    %2874 = vmax.xlane.f32.xlu0 %v2873
    %v2875 = vpop.xlane.xlu0 %2874
    %v2876 = vsel %vm674, %v2839, -inf
    %v2877 = vmax.f32 %v2838, %v2876
    %2878 = vmax.xlane.f32.xlu0 %v2877
    %v2879 = vpop.xlane.xlu0 %2878
    %v2880 = vsel %vm674, %v2841, -inf
    %v2881 = vmax.f32 %v2840, %v2880
    %2882 = vmax.xlane.f32.xlu0 %v2881
    %v2883 = vpop.xlane.xlu0 %2882
    %v2884 = vsel %vm674, %v2843, -inf
    %v2885 = vmax.f32 %v2842, %v2884
    %2886 = vmax.xlane.f32.xlu0 %v2885
    %v2887 = vpop.xlane.xlu0 %2886
    %v2888 = vsel %vm674, %v2845, -inf
    %v2889 = vmax.f32 %v2844, %v2888
    %2890 = vmax.xlane.f32.xlu0 %v2889
    %v2891 = vpop.xlane.xlu0 %2890
    %v2892 = vsel %vm674, %v2847, -inf
    %v2893 = vmax.f32 %v2846, %v2892
    %2894 = vmax.xlane.f32.xlu0 %v2893
    %v2895 = vpop.xlane.xlu0 %2894
    %v2896 = vsel %vm674, %v2849, -inf
    %v2897 = vmax.f32 %v2848, %v2896
    %2898 = vmax.xlane.f32.xlu0 %v2897
    %v2899 = vpop.xlane.xlu0 %2898
    %v2900 = vsel %vm674, %v2851, -inf
    %v2901 = vmax.f32 %v2850, %v2900
    %2902 = vmax.xlane.f32.xlu0 %v2901
    %v2903 = vpop.xlane.xlu0 %2902
    %v2904 = vsel %vm674, %v2853, -inf
    %v2905 = vmax.f32 %v2852, %v2904
    %2906 = vmax.xlane.f32.xlu0 %v2905
    %v2907 = vpop.xlane.xlu0 %2906
    %v2908 = vsel %vm674, %v2855, -inf
    %v2909 = vmax.f32 %v2854, %v2908
    %2910 = vmax.xlane.f32.xlu0 %v2909
    %v2911 = vpop.xlane.xlu0 %2910
    %v2912 = vsel %vm674, %v2857, -inf
    %v2913 = vmax.f32 %v2856, %v2912
    %2914 = vmax.xlane.f32.xlu0 %v2913
    %v2915 = vpop.xlane.xlu0 %2914
    %v2916 = vsel %vm674, %v2859, -inf
    %v2917 = vmax.f32 %v2858, %v2916
    %2918 = vmax.xlane.f32.xlu0 %v2917
    %v2919 = vpop.xlane.xlu0 %2918
    %v2920 = vsel %vm674, %v2861, -inf
    %v2921 = vmax.f32 %v2860, %v2920
    %2922 = vmax.xlane.f32.xlu0 %v2921
    %v2923 = vpop.xlane.xlu0 %2922
    %v2924 = vsel %vm674, %v2863, -inf
    %v2925 = vmax.f32 %v2862, %v2924
    %2926 = vmax.xlane.f32.xlu0 %v2925
    %v2927 = vpop.xlane.xlu0 %2926
    %v2928 = vsel %vm674, %v2865, -inf
    %v2929 = vmax.f32 %v2864, %v2928
    %2930 = vmax.xlane.f32.xlu0 %v2929
    %v2931 = vpop.xlane.xlu0 %2930
    %v2932 = vsel %vm674, %v2867, -inf
    %v2933 = vmax.f32 %v2866, %v2932
    %2934 = vmax.xlane.f32.xlu0 %v2933
    %v2935 = vpop.xlane.xlu0 %2934
    %v2936 = vsel %vm674, %v2869, -inf
    %v2937 = vmax.f32 %v2868, %v2936
    %2938 = vmax.xlane.f32.xlu0 %v2937
    %v2939 = vpop.xlane.xlu0 %2938
    %v2940 = vsel %vm674, %v2871, -inf
    %v2941 = vmax.f32 %v2870, %v2940
    %2942 = vmax.xlane.f32.xlu0 %v2941
    %v2943 = vpop.xlane.xlu0 %2942
    %v2944 = vsub.f32 %v2836, %v2875
    %v2945 = vsub.f32 %v2837, %v2875
    %v2946 = vsub.f32 %v2838, %v2879
    %v2947 = vsub.f32 %v2839, %v2879
    %v2948 = vsub.f32 %v2840, %v2883
    %v2949 = vsub.f32 %v2841, %v2883
    %v2950 = vsub.f32 %v2842, %v2887
    %v2951 = vsub.f32 %v2843, %v2887
    %v2952 = vsub.f32 %v2844, %v2891
    %v2953 = vsub.f32 %v2845, %v2891
    %v2954 = vsub.f32 %v2846, %v2895
    %v2955 = vsub.f32 %v2847, %v2895
    %v2956 = vsub.f32 %v2848, %v2899
    %v2957 = vsub.f32 %v2849, %v2899
    %v2958 = vsub.f32 %v2850, %v2903
    %v2959 = vsub.f32 %v2851, %v2903
    %v2960 = vsub.f32 %v2852, %v2907
    %v2961 = vsub.f32 %v2853, %v2907
    %v2962 = vsub.f32 %v2854, %v2911
    %v2963 = vsub.f32 %v2855, %v2911
    %v2964 = vsub.f32 %v2856, %v2915
    %v2965 = vsub.f32 %v2857, %v2915
    %v2966 = vsub.f32 %v2858, %v2919
    %v2967 = vsub.f32 %v2859, %v2919
    %v2968 = vsub.f32 %v2860, %v2923
    %v2969 = vsub.f32 %v2861, %v2923
    %v2970 = vsub.f32 %v2862, %v2927
    %v2971 = vsub.f32 %v2863, %v2927
    %v2972 = vsub.f32 %v2864, %v2931
    %v2973 = vsub.f32 %v2865, %v2931
    %v2974 = vsub.f32 %v2866, %v2935
    %v2975 = vsub.f32 %v2867, %v2935
    %v2976 = vsub.f32 %v2868, %v2939
    %v2977 = vsub.f32 %v2869, %v2939
    %v2978 = vsub.f32 %v2870, %v2943
    %v2979 = vsub.f32 %v2871, %v2943
    %v2980 = vmul.f32 %v2944, 1.442695
    %v2981 = vpow.pop %v2980
    %v2982 = vmul.f32 %v2945, 1.442695
    %v2983 = vpow.pop %v2982
    %v2984 = vmul.f32 %v2946, 1.442695
    %v2985 = vpow.pop %v2984
    %v2986 = vmul.f32 %v2947, 1.442695
    %v2987 = vpow.pop %v2986
    %v2988 = vmul.f32 %v2948, 1.442695
    %v2989 = vpow.pop %v2988
    %v2990 = vmul.f32 %v2949, 1.442695
    %v2991 = vpow.pop %v2990
    %v2992 = vmul.f32 %v2950, 1.442695
    %v2993 = vpow.pop %v2992
    %v2994 = vmul.f32 %v2951, 1.442695
    %v2995 = vpow.pop %v2994
    %v2996 = vmul.f32 %v2952, 1.442695
    %v2997 = vpow.pop %v2996
    %v2998 = vmul.f32 %v2953, 1.442695
    %v2999 = vpow.pop %v2998
    %v3000 = vmul.f32 %v2954, 1.442695
    %v3001 = vpow.pop %v3000
    %v3002 = vmul.f32 %v2955, 1.442695
    %v3003 = vpow.pop %v3002
    %v3004 = vmul.f32 %v2956, 1.442695
    %v3005 = vpow.pop %v3004
    %v3006 = vmul.f32 %v2957, 1.442695
    %v3007 = vpow.pop %v3006
    %v3008 = vmul.f32 %v2958, 1.442695
    %v3009 = vpow.pop %v3008
    %v3010 = vmul.f32 %v2959, 1.442695
    %v3011 = vpow.pop %v3010
    %v3012 = vmul.f32 %v2960, 1.442695
    %v3013 = vpow.pop %v3012
    %v3014 = vmul.f32 %v2961, 1.442695
    %v3015 = vpow.pop %v3014
    %v3016 = vmul.f32 %v2962, 1.442695
    %v3017 = vpow.pop %v3016
    %v3018 = vmul.f32 %v2963, 1.442695
    %v3019 = vpow.pop %v3018
    %v3020 = vmul.f32 %v2964, 1.442695
    %v3021 = vpow.pop %v3020
    %v3022 = vmul.f32 %v2965, 1.442695
    %v3023 = vpow.pop %v3022
    %v3024 = vmul.f32 %v2966, 1.442695
    %v3025 = vpow.pop %v3024
    %v3026 = vmul.f32 %v2967, 1.442695
    %v3027 = vpow.pop %v3026
    %v3028 = vmul.f32 %v2968, 1.442695
    %v3029 = vpow.pop %v3028
    %v3030 = vmul.f32 %v2969, 1.442695
    %v3031 = vpow.pop %v3030
    %v3032 = vmul.f32 %v2970, 1.442695
    %v3033 = vpow.pop %v3032
    %v3034 = vmul.f32 %v2971, 1.442695
    %v3035 = vpow.pop %v3034
    %v3036 = vmul.f32 %v2972, 1.442695
    %v3037 = vpow.pop %v3036
    %v3038 = vmul.f32 %v2973, 1.442695
    %v3039 = vpow.pop %v3038
    %v3040 = vmul.f32 %v2974, 1.442695
    %v3041 = vpow.pop %v3040
    %v3042 = vmul.f32 %v2975, 1.442695
    %v3043 = vpow.pop %v3042
    %v3044 = vmul.f32 %v2976, 1.442695
    %v3045 = vpow.pop %v3044
    %v3046 = vmul.f32 %v2977, 1.442695
    %v3047 = vpow.pop %v3046
    %v3048 = vmul.f32 %v2978, 1.442695
    %v3049 = vpow.pop %v3048
    %v3050 = vmul.f32 %v2979, 1.442695
    %v3051 = vpow.pop %v3050
    %v3052 = vsel %vm674, %v2983, 0.0
    %v3053 = vadd.f32 %v2981, %v3052
    %3054 = vadd.xlane.f32.xlu0 %v3053
    %v3055 = vpop.xlane.xlu0 %3054
    %v3056 = vsel %vm674, %v2987, 0.0
    %v3057 = vadd.f32 %v2985, %v3056
    %3058 = vadd.xlane.f32.xlu0 %v3057
    %v3059 = vpop.xlane.xlu0 %3058
    %v3060 = vsel %vm674, %v2991, 0.0
    %v3061 = vadd.f32 %v2989, %v3060
    %3062 = vadd.xlane.f32.xlu0 %v3061
    %v3063 = vpop.xlane.xlu0 %3062
    %v3064 = vsel %vm674, %v2995, 0.0
    %v3065 = vadd.f32 %v2993, %v3064
    %3066 = vadd.xlane.f32.xlu0 %v3065
    %v3067 = vpop.xlane.xlu0 %3066
    %v3068 = vsel %vm674, %v2999, 0.0
    %v3069 = vadd.f32 %v2997, %v3068
    %3070 = vadd.xlane.f32.xlu0 %v3069
    %v3071 = vpop.xlane.xlu0 %3070
    %v3072 = vsel %vm674, %v3003, 0.0
    %v3073 = vadd.f32 %v3001, %v3072
    %3074 = vadd.xlane.f32.xlu0 %v3073
    %v3075 = vpop.xlane.xlu0 %3074
    %v3076 = vsel %vm674, %v3007, 0.0
    %v3077 = vadd.f32 %v3005, %v3076
    %3078 = vadd.xlane.f32.xlu0 %v3077
    %v3079 = vpop.xlane.xlu0 %3078
    %v3080 = vsel %vm674, %v3011, 0.0
    %v3081 = vadd.f32 %v3009, %v3080
    %3082 = vadd.xlane.f32.xlu0 %v3081
    %v3083 = vpop.xlane.xlu0 %3082
    %v3084 = vsel %vm674, %v3015, 0.0
    %v3085 = vadd.f32 %v3013, %v3084
    %3086 = vadd.xlane.f32.xlu0 %v3085
    %v3087 = vpop.xlane.xlu0 %3086
    %v3088 = vsel %vm674, %v3019, 0.0
    %v3089 = vadd.f32 %v3017, %v3088
    %3090 = vadd.xlane.f32.xlu0 %v3089
    %v3091 = vpop.xlane.xlu0 %3090
    %v3092 = vsel %vm674, %v3023, 0.0
    %v3093 = vadd.f32 %v3021, %v3092
    %3094 = vadd.xlane.f32.xlu0 %v3093
    %v3095 = vpop.xlane.xlu0 %3094
    %v3096 = vsel %vm674, %v3027, 0.0
    %v3097 = vadd.f32 %v3025, %v3096
    %3098 = vadd.xlane.f32.xlu0 %v3097
    %v3099 = vpop.xlane.xlu0 %3098
    %v3100 = vsel %vm674, %v3031, 0.0
    %v3101 = vadd.f32 %v3029, %v3100
    %3102 = vadd.xlane.f32.xlu0 %v3101
    %v3103 = vpop.xlane.xlu0 %3102
    %v3104 = vsel %vm674, %v3035, 0.0
    %v3105 = vadd.f32 %v3033, %v3104
    %3106 = vadd.xlane.f32.xlu0 %v3105
    %v3107 = vpop.xlane.xlu0 %3106
    %v3108 = vsel %vm674, %v3039, 0.0
    %v3109 = vadd.f32 %v3037, %v3108
    %3110 = vadd.xlane.f32.xlu0 %v3109
    %v3111 = vpop.xlane.xlu0 %3110
    %v3112 = vsel %vm674, %v3043, 0.0
    %v3113 = vadd.f32 %v3041, %v3112
    %3114 = vadd.xlane.f32.xlu0 %v3113
    %v3115 = vpop.xlane.xlu0 %3114
    %v3116 = vsel %vm674, %v3047, 0.0
    %v3117 = vadd.f32 %v3045, %v3116
    %3118 = vadd.xlane.f32.xlu0 %v3117
    %v3119 = vpop.xlane.xlu0 %3118
    %v3120 = vsel %vm674, %v3051, 0.0
    %v3121 = vadd.f32 %v3049, %v3120
    %3122 = vadd.xlane.f32.xlu0 %v3121
    %v3123 = vpop.xlane.xlu0 %3122
    %v3124 = vrcp.pop %v3055
    %v3125 = vrcp.pop %v3059
    %v3126 = vrcp.pop %v3063
    %v3127 = vrcp.pop %v3067
    %v3128 = vrcp.pop %v3071
    %v3129 = vrcp.pop %v3075
    %v3130 = vrcp.pop %v3079
    %v3131 = vrcp.pop %v3083
    %v3132 = vrcp.pop %v3087
    %v3133 = vrcp.pop %v3091
    %v3134 = vrcp.pop %v3095
    %v3135 = vrcp.pop %v3099
    %v3136 = vrcp.pop %v3103
    %v3137 = vrcp.pop %v3107
    %v3138 = vrcp.pop %v3111
    %v3139 = vrcp.pop %v3115
    %v3140 = vrcp.pop %v3119
    %v3141 = vrcp.pop %v3123
    %v3142 = vmul.f32 %v2981, %v3124
    %v3143 = vmul.f32 %v2983, %v3124
    %v3144 = vmul.f32 %v2985, %v3125
    %v3145 = vmul.f32 %v2987, %v3125
    %v3146 = vmul.f32 %v2989, %v3126
    %v3147 = vmul.f32 %v2991, %v3126
    %v3148 = vmul.f32 %v2993, %v3127
    %v3149 = vmul.f32 %v2995, %v3127
    %v3150 = vmul.f32 %v2997, %v3128
    %v3151 = vmul.f32 %v2999, %v3128
    %v3152 = vmul.f32 %v3001, %v3129
    %v3153 = vmul.f32 %v3003, %v3129
    %v3154 = vmul.f32 %v3005, %v3130
    %v3155 = vmul.f32 %v3007, %v3130
    %v3156 = vmul.f32 %v3009, %v3131
    %v3157 = vmul.f32 %v3011, %v3131
    %v3158 = vmul.f32 %v3013, %v3132
    %v3159 = vmul.f32 %v3015, %v3132
    %v3160 = vmul.f32 %v3017, %v3133
    %v3161 = vmul.f32 %v3019, %v3133
    %v3162 = vmul.f32 %v3021, %v3134
    %v3163 = vmul.f32 %v3023, %v3134
    %v3164 = vmul.f32 %v3025, %v3135
    %v3165 = vmul.f32 %v3027, %v3135
    %v3166 = vmul.f32 %v3029, %v3136
    %v3167 = vmul.f32 %v3031, %v3136
    %v3168 = vmul.f32 %v3033, %v3137
    %v3169 = vmul.f32 %v3035, %v3137
    %v3170 = vmul.f32 %v3037, %v3138
    %v3171 = vmul.f32 %v3039, %v3138
    %v3172 = vmul.f32 %v3041, %v3139
    %v3173 = vmul.f32 %v3043, %v3139
    %v3174 = vmul.f32 %v3045, %v3140
    %v3175 = vmul.f32 %v3047, %v3140
    %v3176 = vmul.f32 %v3049, %v3141
    %v3177 = vmul.f32 %v3051, %v3141
    %3178 = vrot.lane.b32.xlu0 %v534, 96
    %v3179 = vpop.permute.xlu0 %3178
    %3180 = vrot.lane.b32.xlu0 %v538, 96
    %v3181 = vpop.permute.xlu0 %3180
    %3182 = vrot.lane.b32.xlu0 %v544, 96
    %v3183 = vpop.permute.xlu0 %3182
    %3184 = vrot.lane.b32.xlu0 %v548, 96
    %v3185 = vpop.permute.xlu0 %3184
    %3186 = vrot.lane.b32.xlu0 %v554, 96
    %v3187 = vpop.permute.xlu0 %3186
    %3188 = vrot.lane.b32.xlu0 %v558, 96
    %v3189 = vpop.permute.xlu0 %3188
    %3190 = vrot.lane.b32.xlu0 %v564, 96
    %v3191 = vpop.permute.xlu0 %3190
    %3192 = vrot.lane.b32.xlu0 %v568, 96
    %v3193 = vpop.permute.xlu0 %3192
    %3194 = vrot.lane.b32.xlu0 %v574, 96
    %v3195 = vpop.permute.xlu0 %3194
    %3196 = vrot.lane.b32.xlu0 %v578, 96
    %v3197 = vpop.permute.xlu0 %3196
    %3198 = vrot.lane.b32.xlu0 %v584, 96
    %v3199 = vpop.permute.xlu0 %3198
    %3200 = vrot.lane.b32.xlu0 %v588, 96
    %v3201 = vpop.permute.xlu0 %3200
    %3202 = vrot.lane.b32.xlu0 %v594, 96
    %v3203 = vpop.permute.xlu0 %3202
    %3204 = vrot.lane.b32.xlu0 %v598, 96
    %v3205 = vpop.permute.xlu0 %3204
    %3206 = vrot.lane.b32.xlu0 %v604, 96
    %v3207 = vpop.permute.xlu0 %3206
    %3208 = vrot.lane.b32.xlu0 %v608, 96
    %v3209 = vpop.permute.xlu0 %3208
    %3210 = vrot.lane.b32.xlu0 %v614, 96
    %v3211 = vpop.permute.xlu0 %3210
    %3212 = vrot.lane.b32.xlu0 %v618, 96
    %v3213 = vpop.permute.xlu0 %3212
    %v3233 = vsel %vm674, %v3143, 0
    %v3236 = vsel %vm674, %v3145, 0
    %v3239 = vsel %vm674, %v3147, 0
    %v3242 = vsel %vm674, %v3149, 0
    %v3245 = vsel %vm674, %v3151, 0
    %v3248 = vsel %vm674, %v3153, 0
    %v3251 = vsel %vm674, %v3155, 0
    %v3254 = vsel %vm674, %v3157, 0
    %v3257 = vsel %vm674, %v3159, 0
    %v3260 = vsel %vm674, %v3161, 0
    %v3263 = vsel %vm674, %v3163, 0
    %v3266 = vsel %vm674, %v3165, 0
    %v3269 = vsel %vm674, %v3167, 0
    %v3272 = vsel %vm674, %v3169, 0
    %v3275 = vsel %vm674, %v3171, 0
    %v3278 = vsel %vm674, %v3173, 0
    %v3281 = vsel %vm674, %v3175, 0
    %v3284 = vsel %vm674, %v3177, 0
    %3286 = vmatprep.subr.mxu0 0.0
    %3287 = vmatpush1.msra.mxu0 %v3179
    %3288 = vmatprep.subr.mxu0 0.0
    %3289 = vmatpush1.msra.mxu0 %v3181
    %3290 = vmatprep.subr.mxu0 0.0
    %3291 = vmatpush1.msra.mxu0 %v3183
    %3292 = vmatprep.subr.mxu0 0.0
    %3293 = vmatpush1.msra.mxu0 %v3185
    %3294 = vmatprep.subr.mxu0 0.0
    %3295 = vmatpush1.msra.mxu0 %v3187
    %3296 = vmatprep.subr.mxu0 0.0
    %3297 = vmatpush1.msra.mxu0 %v3189
    %3298 = vmatprep.subr.mxu0 0.0
    %3299 = vmatpush1.msra.mxu0 %v3191
    %3300 = vmatprep.subr.mxu0 0.0
    %3301 = vmatpush1.msra.mxu0 %v3193
    %3302 = vmatprep.subr.mxu0 0.0
    %3303 = vmatpush1.msra.mxu0 %v3195
    %3304 = vmatprep.subr.mxu0 0.0
    %3305 = vmatpush1.msra.mxu0 %v3197
    %3306 = vmatprep.subr.mxu0 0.0
    %3307 = vmatpush1.msra.mxu0 %v3199
    %3308 = vmatprep.subr.mxu0 0.0
    %3309 = vmatpush1.msra.mxu0 %v3201
    %3310 = vmatprep.subr.mxu0 0.0
    %3311 = vmatpush1.msra.mxu0 %v3203
    %3312 = vmatprep.subr.mxu0 0.0
    %3313 = vmatpush1.msra.mxu0 %v3205
    %3314 = vmatprep.subr.mxu0 0.0
    %3315 = vmatpush1.msra.mxu0 %v3207
    %3316 = vmatprep.subr.mxu0 0.0
    %3317 = vmatpush1.msra.mxu0 %v3209
    %3318 = vmatprep.subr.mxu0 0.0
    %3319 = vmatpush1.msra.mxu0 %v3211
    %3320 = vmatprep.subr.mxu0 0.0
    %3321 = vmatpush1.msra.mxu0 %v3213
    %3322 = vmatprep.subr.mxu0 0.0
    %3323 = vmatpush1.msra.mxu0 0.0
    %3324 = vmatprep.subr.mxu0 0.0
    %3325 = vmatpush1.msra.mxu0 0.0
    %3326 = vmatprep.subr.mxu0 0.0
    %3327 = vmatpush1.msra.mxu0 0.0
    %3328 = vmatprep.subr.mxu0 0.0
    %3329 = vmatpush1.msra.mxu0 0.0
    %3330 = vmatprep.subr.mxu0 0.0
    %3331 = vmatpush1.msra.mxu0 0.0
    %3332 = vmatprep.subr.mxu0 0.0
    %3333 = vmatpush1.msra.mxu0 0.0
    %3334 = vmatprep.subr.mxu0 0.0
    %3335 = vmatpush1.msra.mxu0 0.0
    %3336 = vmatprep.subr.mxu0 0.0
    %3337 = vmatpush1.msra.mxu0 0.0
    %3338 = vmatprep.subr.mxu0 0.0
    %3339 = vmatpush1.msra.mxu0 0.0
    %3340 = vmatprep.subr.mxu0 0.0
    %3341 = vmatpush1.msra.mxu0 0.0
    %3342 = vmatprep.subr.mxu0 0.0
    %3343 = vmatpush1.msra.mxu0 0.0
    %3344 = vmatprep.subr.mxu0 0.0
    %3345 = vmatpush1.msra.mxu0 0.0
    %3346 = vmatprep.subr.mxu0 0.0
    %3347 = vmatpush1.msra.mxu0 0.0
    %3348 = vmatprep.subr.mxu0 0.0
    %3349 = vmatpush1.msra.mxu0 0.0
    %3350 = vmatprep.mubr.f32.mxu0 %v3233
    %3351 = vmatmul.mubr.f32.gmra.mrb[0].mxu0 %v3142
    %v3352 = vpop.f32.mrb[0].mxu0
    %v3353 = vadd.f32 0.0, %v3352
    %v3354 = vpop.f32.mrb[0].mxu0
    %3355 = vmatprep.mubr.f32.mxu0 %v3236
    %3356 = vmatmul.mubr.f32.gmra.mrb[0].mxu0 %v3144
    %v3357 = vpop.f32.mrb[0].mxu0
    %v3358 = vadd.f32 0.0, %v3357
    %v3359 = vpop.f32.mrb[0].mxu0
    %3360 = vmatprep.mubr.f32.mxu0 %v3239
    %3361 = vmatmul.mubr.f32.gmra.mrb[0].mxu0 %v3146
    %v3362 = vpop.f32.mrb[0].mxu0
    %v3363 = vadd.f32 0.0, %v3362
    %v3364 = vpop.f32.mrb[0].mxu0
    %3365 = vmatprep.mubr.f32.mxu0 %v3242
    %3366 = vmatmul.mubr.f32.gmra.mrb[0].mxu0 %v3148
    %v3367 = vpop.f32.mrb[0].mxu0
    %v3368 = vadd.f32 0.0, %v3367
    %v3369 = vpop.f32.mrb[0].mxu0
    %3370 = vmatprep.mubr.f32.mxu0 %v3245
    %3371 = vmatmul.mubr.f32.gmra.mrb[0].mxu0 %v3150
    %v3372 = vpop.f32.mrb[0].mxu0
    %v3373 = vadd.f32 0.0, %v3372
    %v3374 = vpop.f32.mrb[0].mxu0
    %3375 = vmatprep.mubr.f32.mxu0 %v3248
    %3376 = vmatmul.mubr.f32.gmra.mrb[0].mxu0 %v3152
    %v3377 = vpop.f32.mrb[0].mxu0
    %v3378 = vadd.f32 0.0, %v3377
    %v3379 = vpop.f32.mrb[0].mxu0
    %3380 = vmatprep.mubr.f32.mxu0 %v3251
    %3381 = vmatmul.mubr.f32.gmra.mrb[0].mxu0 %v3154
    %v3382 = vpop.f32.mrb[0].mxu0
    %v3383 = vadd.f32 0.0, %v3382
    %v3384 = vpop.f32.mrb[0].mxu0
    %3385 = vmatprep.mubr.f32.mxu0 %v3254
    %3386 = vmatmul.mubr.f32.gmra.mrb[0].mxu0 %v3156
    %v3387 = vpop.f32.mrb[0].mxu0
    %v3388 = vadd.f32 0.0, %v3387
    %v3389 = vpop.f32.mrb[0].mxu0
    %3390 = vmatprep.mubr.f32.mxu0 %v3257
    %3391 = vmatmul.mubr.f32.gmra.mrb[0].mxu0 %v3158
    %v3392 = vpop.f32.mrb[0].mxu0
    %v3393 = vadd.f32 0.0, %v3392
    %v3394 = vpop.f32.mrb[0].mxu0
    %3395 = vmatprep.mubr.f32.mxu0 %v3260
    %3396 = vmatmul.mubr.f32.gmra.mrb[0].mxu0 %v3160
    %v3397 = vpop.f32.mrb[0].mxu0
    %v3398 = vadd.f32 0.0, %v3397
    %v3399 = vpop.f32.mrb[0].mxu0
    %3400 = vmatprep.mubr.f32.mxu0 %v3263
    %3401 = vmatmul.mubr.f32.gmra.mrb[0].mxu0 %v3162
    %v3402 = vpop.f32.mrb[0].mxu0
    %v3403 = vadd.f32 0.0, %v3402
    %v3404 = vpop.f32.mrb[0].mxu0
    %3405 = vmatprep.mubr.f32.mxu0 %v3266
    %3406 = vmatmul.mubr.f32.gmra.mrb[0].mxu0 %v3164
    %v3407 = vpop.f32.mrb[0].mxu0
    %v3408 = vadd.f32 0.0, %v3407
    %v3409 = vpop.f32.mrb[0].mxu0
    %3410 = vmatprep.mubr.f32.mxu0 %v3269
    %3411 = vmatmul.mubr.f32.gmra.mrb[0].mxu0 %v3166
    %v3412 = vpop.f32.mrb[0].mxu0
    %v3413 = vadd.f32 0.0, %v3412
    %v3414 = vpop.f32.mrb[0].mxu0
    %3415 = vmatprep.mubr.f32.mxu0 %v3272
    %3416 = vmatmul.mubr.f32.gmra.mrb[0].mxu0 %v3168
    %v3417 = vpop.f32.mrb[0].mxu0
    %v3418 = vadd.f32 0.0, %v3417
    %v3419 = vpop.f32.mrb[0].mxu0
    %3420 = vmatprep.mubr.f32.mxu0 %v3275
    %3421 = vmatmul.mubr.f32.gmra.mrb[0].mxu0 %v3170
    %v3422 = vpop.f32.mrb[0].mxu0
    %v3423 = vadd.f32 0.0, %v3422
    %v3424 = vpop.f32.mrb[0].mxu0
    %3425 = vmatprep.mubr.f32.mxu0 %v3278
    %3426 = vmatmul.mubr.f32.gmra.mrb[0].mxu0 %v3172
    %v3427 = vpop.f32.mrb[0].mxu0
    %v3428 = vadd.f32 0.0, %v3427
    %v3429 = vpop.f32.mrb[0].mxu0
    %3430 = vmatprep.mubr.f32.mxu0 %v3281
    %3431 = vmatmul.mubr.f32.gmra.mrb[0].mxu0 %v3174
    %v3432 = vpop.f32.mrb[0].mxu0
    %v3433 = vadd.f32 0.0, %v3432
    %v3434 = vpop.f32.mrb[0].mxu0
    %3435 = vmatprep.mubr.f32.mxu0 %v3284
    %3436 = vmatmul.mubr.f32.gmra.mrb[0].mxu0 %v3176
    %v3437 = vpop.f32.mrb[0].mxu0
    %v3438 = vadd.f32 0.0, %v3437
    %v3439 = vpop.f32.mrb[0].mxu0
    %3440 = vdwg.mxu0
    %3441 = vrot.lane.b32.xlu0 %v532, 80
    %v3442 = vpop.permute.xlu0 %3441
    %3443 = vrot.lane.b32.xlu0 %v536, 80
    %v3444 = vpop.permute.xlu0 %3443
    %3445 = vrot.lane.b32.xlu0 %v542, 80
    %v3446 = vpop.permute.xlu0 %3445
    %3447 = vrot.lane.b32.xlu0 %v546, 80
    %v3448 = vpop.permute.xlu0 %3447
    %3449 = vrot.lane.b32.xlu0 %v552, 80
    %v3450 = vpop.permute.xlu0 %3449
    %3451 = vrot.lane.b32.xlu0 %v556, 80
    %v3452 = vpop.permute.xlu0 %3451
    %3453 = vrot.lane.b32.xlu0 %v562, 80
    %v3454 = vpop.permute.xlu0 %3453
    %3455 = vrot.lane.b32.xlu0 %v566, 80
    %v3456 = vpop.permute.xlu0 %3455
    %3457 = vrot.lane.b32.xlu0 %v572, 80
    %v3458 = vpop.permute.xlu0 %3457
    %3459 = vrot.lane.b32.xlu0 %v576, 80
    %v3460 = vpop.permute.xlu0 %3459
    %3461 = vrot.lane.b32.xlu0 %v582, 80
    %v3462 = vpop.permute.xlu0 %3461
    %3463 = vrot.lane.b32.xlu0 %v586, 80
    %v3464 = vpop.permute.xlu0 %3463
    %3465 = vrot.lane.b32.xlu0 %v592, 80
    %v3466 = vpop.permute.xlu0 %3465
    %3467 = vrot.lane.b32.xlu0 %v596, 80
    %v3468 = vpop.permute.xlu0 %3467
    %3469 = vrot.lane.b32.xlu0 %v602, 80
    %v3470 = vpop.permute.xlu0 %3469
    %3471 = vrot.lane.b32.xlu0 %v606, 80
    %v3472 = vpop.permute.xlu0 %3471
    %3473 = vrot.lane.b32.xlu0 %v612, 80
    %v3474 = vpop.permute.xlu0 %3473
    %3475 = vrot.lane.b32.xlu0 %v616, 80
    %v3476 = vpop.permute.xlu0 %3475
    %3477 = vrot.lane.b32.xlu0 %v532, 16
    %v3478 = vpop.permute.xlu0 %3477
    %3479 = vrot.lane.b32.xlu0 %v536, 16
    %v3480 = vpop.permute.xlu0 %3479
    %3481 = vrot.lane.b32.xlu0 %v542, 16
    %v3482 = vpop.permute.xlu0 %3481
    %3483 = vrot.lane.b32.xlu0 %v546, 16
    %v3484 = vpop.permute.xlu0 %3483
    %3485 = vrot.lane.b32.xlu0 %v552, 16
    %v3486 = vpop.permute.xlu0 %3485
    %3487 = vrot.lane.b32.xlu0 %v556, 16
    %v3488 = vpop.permute.xlu0 %3487
    %3489 = vrot.lane.b32.xlu0 %v562, 16
    %v3490 = vpop.permute.xlu0 %3489
    %3491 = vrot.lane.b32.xlu0 %v566, 16
    %v3492 = vpop.permute.xlu0 %3491
    %3493 = vrot.lane.b32.xlu0 %v572, 16
    %v3494 = vpop.permute.xlu0 %3493
    %3495 = vrot.lane.b32.xlu0 %v576, 16
    %v3496 = vpop.permute.xlu0 %3495
    %3497 = vrot.lane.b32.xlu0 %v582, 16
    %v3498 = vpop.permute.xlu0 %3497
    %3499 = vrot.lane.b32.xlu0 %v586, 16
    %v3500 = vpop.permute.xlu0 %3499
    %3501 = vrot.lane.b32.xlu0 %v592, 16
    %v3502 = vpop.permute.xlu0 %3501
    %3503 = vrot.lane.b32.xlu0 %v596, 16
    %v3504 = vpop.permute.xlu0 %3503
    %3505 = vrot.lane.b32.xlu0 %v602, 16
    %v3506 = vpop.permute.xlu0 %3505
    %3507 = vrot.lane.b32.xlu0 %v606, 16
    %v3508 = vpop.permute.xlu0 %3507
    %3509 = vrot.lane.b32.xlu0 %v612, 16
    %v3510 = vpop.permute.xlu0 %3509
    %3511 = vrot.lane.b32.xlu0 %v616, 16
    %v3512 = vpop.permute.xlu0 %3511
    %v3513 = vsel %vm674, %v3442, 0
    %v3515 = vsel %vm674, %v3444, 0
    %v3517 = vsel %vm674, %v3446, 0
    %v3519 = vsel %vm674, %v3448, 0
    %v3521 = vsel %vm674, %v3450, 0
    %v3523 = vsel %vm674, %v3452, 0
    %v3525 = vsel %vm674, %v3454, 0
    %v3527 = vsel %vm674, %v3456, 0
    %v3529 = vsel %vm674, %v3458, 0
    %v3531 = vsel %vm674, %v3460, 0
    %v3533 = vsel %vm674, %v3462, 0
    %v3535 = vsel %vm674, %v3464, 0
    %v3537 = vsel %vm674, %v3466, 0
    %v3539 = vsel %vm674, %v3468, 0
    %v3541 = vsel %vm674, %v3470, 0
    %v3543 = vsel %vm674, %v3472, 0
    %v3545 = vsel %vm674, %v3474, 0
    %v3547 = vsel %vm674, %v3476, 0
    %v3549 = vsel %vm674, %v3478, 0
    %v3551 = vsel %vm674, %v3480, 0
    %v3553 = vsel %vm674, %v3482, 0
    %v3555 = vsel %vm674, %v3484, 0
    %v3557 = vsel %vm674, %v3486, 0
    %v3559 = vsel %vm674, %v3488, 0
    %v3561 = vsel %vm674, %v3490, 0
    %v3563 = vsel %vm674, %v3492, 0
    %v3565 = vsel %vm674, %v3494, 0
    %v3567 = vsel %vm674, %v3496, 0
    %v3569 = vsel %vm674, %v3498, 0
    %v3571 = vsel %vm674, %v3500, 0
    %v3573 = vsel %vm674, %v3502, 0
    %v3575 = vsel %vm674, %v3504, 0
    %v3577 = vsel %vm674, %v3506, 0
    %v3579 = vsel %vm674, %v3508, 0
    %v3581 = vsel %vm674, %v3510, 0
    %v3583 = vsel %vm674, %v3512, 0
    %3585 = vmatprep.subr.mxu0 0.0
    %3586 = vmatpush1.xpose.msra.mxu0 %v3549
    %3587 = vmatprep.subr.mxu0 0.0
    %3588 = vmatpush1.xpose.msra.mxu0 %v3551
    %3589 = vmatprep.subr.mxu0 0.0
    %3590 = vmatpush1.xpose.msra.mxu0 %v3553
    %3591 = vmatprep.subr.mxu0 0.0
    %3592 = vmatpush1.xpose.msra.mxu0 %v3555
    %3593 = vmatprep.subr.mxu0 0.0
    %3594 = vmatpush1.xpose.msra.mxu0 %v3557
    %3595 = vmatprep.subr.mxu0 0.0
    %3596 = vmatpush1.xpose.msra.mxu0 %v3559
    %3597 = vmatprep.subr.mxu0 0.0
    %3598 = vmatpush1.xpose.msra.mxu0 %v3561
    %3599 = vmatprep.subr.mxu0 0.0
    %3600 = vmatpush1.xpose.msra.mxu0 %v3563
    %3601 = vmatprep.subr.mxu0 0.0
    %3602 = vmatpush1.xpose.msra.mxu0 %v3565
    %3603 = vmatprep.subr.mxu0 0.0
    %3604 = vmatpush1.xpose.msra.mxu0 %v3567
    %3605 = vmatprep.subr.mxu0 0.0
    %3606 = vmatpush1.xpose.msra.mxu0 %v3569
    %3607 = vmatprep.subr.mxu0 0.0
    %3608 = vmatpush1.xpose.msra.mxu0 %v3571
    %3609 = vmatprep.subr.mxu0 0.0
    %3610 = vmatpush1.xpose.msra.mxu0 %v3573
    %3611 = vmatprep.subr.mxu0 0.0
    %3612 = vmatpush1.xpose.msra.mxu0 %v3575
    %3613 = vmatprep.subr.mxu0 0.0
    %3614 = vmatpush1.xpose.msra.mxu0 %v3577
    %3615 = vmatprep.subr.mxu0 0.0
    %3616 = vmatpush1.xpose.msra.mxu0 %v3579
    %3617 = vmatprep.subr.mxu0 0.0
    %3618 = vmatpush1.xpose.msra.mxu0 %v3581
    %3619 = vmatprep.subr.mxu0 0.0
    %3620 = vmatpush1.xpose.msra.mxu0 %v3583
    %3621 = vmatprep.subr.mxu0 0.0
    %3622 = vmatpush1.xpose.msra.mxu0 0.0
    %3623 = vmatprep.subr.mxu0 0.0
    %3624 = vmatpush1.xpose.msra.mxu0 0.0
    %3625 = vmatprep.subr.mxu0 0.0
    %3626 = vmatpush1.xpose.msra.mxu0 0.0
    %3627 = vmatprep.subr.mxu0 0.0
    %3628 = vmatpush1.xpose.msra.mxu0 0.0
    %3629 = vmatprep.subr.mxu0 0.0
    %3630 = vmatpush1.xpose.msra.mxu0 0.0
    %3631 = vmatprep.subr.mxu0 0.0
    %3632 = vmatpush1.xpose.msra.mxu0 0.0
    %3633 = vmatprep.subr.mxu0 0.0
    %3634 = vmatpush1.xpose.msra.mxu0 0.0
    %3635 = vmatprep.subr.mxu0 0.0
    %3636 = vmatpush1.xpose.msra.mxu0 0.0
    %3637 = vmatprep.subr.mxu0 0.0
    %3638 = vmatpush1.xpose.msra.mxu0 0.0
    %3639 = vmatprep.subr.mxu0 0.0
    %3640 = vmatpush1.xpose.msra.mxu0 0.0
    %3641 = vmatprep.subr.mxu0 0.0
    %3642 = vmatpush1.xpose.msra.mxu0 0.0
    %3643 = vmatprep.subr.mxu0 0.0
    %3644 = vmatpush1.xpose.msra.mxu0 0.0
    %3645 = vmatprep.subr.mxu0 0.0
    %3646 = vmatpush1.xpose.msra.mxu0 0.0
    %3647 = vmatprep.subr.mxu0 0.0
    %3648 = vmatpush1.xpose.msra.mxu0 0.0
    %3649 = vmatprep.mubr.f32.mxu0 0.0
    %3650 = vmatmul.mubr.f32.gmra.mrb[0].mxu0 %v3513
    %v3651 = vpop.f32.mrb[0].mxu0
    %v3652 = vadd.f32 0.0, %v3651
    %v3653 = vpop.f32.mrb[0].mxu0
    %v3654 = vadd.f32 0.0, %v3653
    %3655 = vmatprep.mubr.f32.mxu0 0.0
    %3656 = vmatmul.mubr.f32.gmra.mrb[0].mxu0 %v3515
    %v3657 = vpop.f32.mrb[0].mxu0
    %v3658 = vadd.f32 0.0, %v3657
    %v3659 = vpop.f32.mrb[0].mxu0
    %v3660 = vadd.f32 0.0, %v3659
    %3661 = vmatprep.mubr.f32.mxu0 0.0
    %3662 = vmatmul.mubr.f32.gmra.mrb[0].mxu0 %v3517
    %v3663 = vpop.f32.mrb[0].mxu0
    %v3664 = vadd.f32 0.0, %v3663
    %v3665 = vpop.f32.mrb[0].mxu0
    %v3666 = vadd.f32 0.0, %v3665
    %3667 = vmatprep.mubr.f32.mxu0 0.0
    %3668 = vmatmul.mubr.f32.gmra.mrb[0].mxu0 %v3519
    %v3669 = vpop.f32.mrb[0].mxu0
    %v3670 = vadd.f32 0.0, %v3669
    %v3671 = vpop.f32.mrb[0].mxu0
    %v3672 = vadd.f32 0.0, %v3671
    %3673 = vmatprep.mubr.f32.mxu0 0.0
    %3674 = vmatmul.mubr.f32.gmra.mrb[0].mxu0 %v3521
    %v3675 = vpop.f32.mrb[0].mxu0
    %v3676 = vadd.f32 0.0, %v3675
    %v3677 = vpop.f32.mrb[0].mxu0
    %v3678 = vadd.f32 0.0, %v3677
    %3679 = vmatprep.mubr.f32.mxu0 0.0
    %3680 = vmatmul.mubr.f32.gmra.mrb[0].mxu0 %v3523
    %v3681 = vpop.f32.mrb[0].mxu0
    %v3682 = vadd.f32 0.0, %v3681
    %v3683 = vpop.f32.mrb[0].mxu0
    %v3684 = vadd.f32 0.0, %v3683
    %3685 = vmatprep.mubr.f32.mxu0 0.0
    %3686 = vmatmul.mubr.f32.gmra.mrb[0].mxu0 %v3525
    %v3687 = vpop.f32.mrb[0].mxu0
    %v3688 = vadd.f32 0.0, %v3687
    %v3689 = vpop.f32.mrb[0].mxu0
    %v3690 = vadd.f32 0.0, %v3689
    %3691 = vmatprep.mubr.f32.mxu0 0.0
    %3692 = vmatmul.mubr.f32.gmra.mrb[0].mxu0 %v3527
    %v3693 = vpop.f32.mrb[0].mxu0
    %v3694 = vadd.f32 0.0, %v3693
    %v3695 = vpop.f32.mrb[0].mxu0
    %v3696 = vadd.f32 0.0, %v3695
    %3697 = vmatprep.mubr.f32.mxu0 0.0
    %3698 = vmatmul.mubr.f32.gmra.mrb[0].mxu0 %v3529
    %v3699 = vpop.f32.mrb[0].mxu0
    %v3700 = vadd.f32 0.0, %v3699
    %v3701 = vpop.f32.mrb[0].mxu0
    %v3702 = vadd.f32 0.0, %v3701
    %3703 = vmatprep.mubr.f32.mxu0 0.0
    %3704 = vmatmul.mubr.f32.gmra.mrb[0].mxu0 %v3531
    %v3705 = vpop.f32.mrb[0].mxu0
    %v3706 = vadd.f32 0.0, %v3705
    %v3707 = vpop.f32.mrb[0].mxu0
    %v3708 = vadd.f32 0.0, %v3707
    %3709 = vmatprep.mubr.f32.mxu0 0.0
    %3710 = vmatmul.mubr.f32.gmra.mrb[0].mxu0 %v3533
    %v3711 = vpop.f32.mrb[0].mxu0
    %v3712 = vadd.f32 0.0, %v3711
    %v3713 = vpop.f32.mrb[0].mxu0
    %v3714 = vadd.f32 0.0, %v3713
    %3715 = vmatprep.mubr.f32.mxu0 0.0
    %3716 = vmatmul.mubr.f32.gmra.mrb[0].mxu0 %v3535
    %v3717 = vpop.f32.mrb[0].mxu0
    %v3718 = vadd.f32 0.0, %v3717
    %v3719 = vpop.f32.mrb[0].mxu0
    %v3720 = vadd.f32 0.0, %v3719
    %3721 = vmatprep.mubr.f32.mxu0 0.0
    %3722 = vmatmul.mubr.f32.gmra.mrb[0].mxu0 %v3537
    %v3723 = vpop.f32.mrb[0].mxu0
    %v3724 = vadd.f32 0.0, %v3723
    %v3725 = vpop.f32.mrb[0].mxu0
    %v3726 = vadd.f32 0.0, %v3725
    %3727 = vmatprep.mubr.f32.mxu0 0.0
    %3728 = vmatmul.mubr.f32.gmra.mrb[0].mxu0 %v3539
    %v3729 = vpop.f32.mrb[0].mxu0
    %v3730 = vadd.f32 0.0, %v3729
    %v3731 = vpop.f32.mrb[0].mxu0
    %v3732 = vadd.f32 0.0, %v3731
    %3733 = vmatprep.mubr.f32.mxu0 0.0
    %3734 = vmatmul.mubr.f32.gmra.mrb[0].mxu0 %v3541
    %v3735 = vpop.f32.mrb[0].mxu0
    %v3736 = vadd.f32 0.0, %v3735
    %v3737 = vpop.f32.mrb[0].mxu0
    %v3738 = vadd.f32 0.0, %v3737
    %3739 = vmatprep.mubr.f32.mxu0 0.0
    %3740 = vmatmul.mubr.f32.gmra.mrb[0].mxu0 %v3543
    %v3741 = vpop.f32.mrb[0].mxu0
    %v3742 = vadd.f32 0.0, %v3741
    %v3743 = vpop.f32.mrb[0].mxu0
    %v3744 = vadd.f32 0.0, %v3743
    %3745 = vmatprep.mubr.f32.mxu0 0.0
    %3746 = vmatmul.mubr.f32.gmra.mrb[0].mxu0 %v3545
    %v3747 = vpop.f32.mrb[0].mxu0
    %v3748 = vadd.f32 0.0, %v3747
    %v3749 = vpop.f32.mrb[0].mxu0
    %v3750 = vadd.f32 0.0, %v3749
    %3751 = vmatprep.mubr.f32.mxu0 0.0
    %3752 = vmatmul.mubr.f32.gmra.mrb[0].mxu0 %v3547
    %v3753 = vpop.f32.mrb[0].mxu0
    %v3754 = vadd.f32 0.0, %v3753
    %v3755 = vpop.f32.mrb[0].mxu0
    %v3756 = vadd.f32 0.0, %v3755
    %3757 = vdwg.mxu0
    %v3758 = vmul.f32 %v3652, 0.25
    %v3759 = vmul.f32 %v3654, 0.25
    %v3760 = vmul.f32 %v3658, 0.25
    %v3761 = vmul.f32 %v3660, 0.25
    %v3762 = vmul.f32 %v3664, 0.25
    %v3763 = vmul.f32 %v3666, 0.25
    %v3764 = vmul.f32 %v3670, 0.25
    %v3765 = vmul.f32 %v3672, 0.25
    %v3766 = vmul.f32 %v3676, 0.25
    %v3767 = vmul.f32 %v3678, 0.25
    %v3768 = vmul.f32 %v3682, 0.25
    %v3769 = vmul.f32 %v3684, 0.25
    %v3770 = vmul.f32 %v3688, 0.25
    %v3771 = vmul.f32 %v3690, 0.25
    %v3772 = vmul.f32 %v3694, 0.25
    %v3773 = vmul.f32 %v3696, 0.25
    %v3774 = vmul.f32 %v3700, 0.25
    %v3775 = vmul.f32 %v3702, 0.25
    %v3776 = vmul.f32 %v3706, 0.25
    %v3777 = vmul.f32 %v3708, 0.25
    %v3778 = vmul.f32 %v3712, 0.25
    %v3779 = vmul.f32 %v3714, 0.25
    %v3780 = vmul.f32 %v3718, 0.25
    %v3781 = vmul.f32 %v3720, 0.25
    %v3782 = vmul.f32 %v3724, 0.25
    %v3783 = vmul.f32 %v3726, 0.25
    %v3784 = vmul.f32 %v3730, 0.25
    %v3785 = vmul.f32 %v3732, 0.25
    %v3786 = vmul.f32 %v3736, 0.25
    %v3787 = vmul.f32 %v3738, 0.25
    %v3788 = vmul.f32 %v3742, 0.25
    %v3789 = vmul.f32 %v3744, 0.25
    %v3790 = vmul.f32 %v3748, 0.25
    %v3791 = vmul.f32 %v3750, 0.25
    %v3792 = vmul.f32 %v3754, 0.25
    %v3793 = vmul.f32 %v3756, 0.25
    %v3794 = vadd.f32 %v3758, %v97
    %v3795 = vadd.f32 %v3759, %v98
    %v3796 = vadd.f32 %v3760, %v99
    %v3797 = vadd.f32 %v3761, %v100
    %v3798 = vadd.f32 %v3762, %v101
    %v3799 = vadd.f32 %v3763, %v102
    %v3800 = vadd.f32 %v3764, %v103
    %v3801 = vadd.f32 %v3765, %v104
    %v3802 = vadd.f32 %v3766, %v105
    %v3803 = vadd.f32 %v3767, %v106
    %v3804 = vadd.f32 %v3768, %v107
    %v3805 = vadd.f32 %v3769, %v108
    %v3806 = vadd.f32 %v3770, %v109
    %v3807 = vadd.f32 %v3771, %v110
    %v3808 = vadd.f32 %v3772, %v111
    %v3809 = vadd.f32 %v3773, %v112
    %v3810 = vadd.f32 %v3774, %v113
    %v3811 = vadd.f32 %v3775, %v114
    %v3812 = vadd.f32 %v3776, %v115
    %v3813 = vadd.f32 %v3777, %v116
    %v3814 = vadd.f32 %v3778, %v117
    %v3815 = vadd.f32 %v3779, %v118
    %v3816 = vadd.f32 %v3780, %v119
    %v3817 = vadd.f32 %v3781, %v120
    %v3818 = vadd.f32 %v3782, %v121
    %v3819 = vadd.f32 %v3783, %v122
    %v3820 = vadd.f32 %v3784, %v123
    %v3821 = vadd.f32 %v3785, %v124
    %v3822 = vadd.f32 %v3786, %v125
    %v3823 = vadd.f32 %v3787, %v126
    %v3824 = vadd.f32 %v3788, %v127
    %v3825 = vadd.f32 %v3789, %v128
    %v3826 = vadd.f32 %v3790, %v129
    %v3827 = vadd.f32 %v3791, %v130
    %v3828 = vadd.f32 %v3792, %v131
    %v3829 = vadd.f32 %v3793, %v132
    %v3830 = vsel %vm674, %v3795, -inf
    %v3831 = vmax.f32 %v3794, %v3830
    %3832 = vmax.xlane.f32.xlu0 %v3831
    %v3833 = vpop.xlane.xlu0 %3832
    %v3834 = vsel %vm674, %v3797, -inf
    %v3835 = vmax.f32 %v3796, %v3834
    %3836 = vmax.xlane.f32.xlu0 %v3835
    %v3837 = vpop.xlane.xlu0 %3836
    %v3838 = vsel %vm674, %v3799, -inf
    %v3839 = vmax.f32 %v3798, %v3838
    %3840 = vmax.xlane.f32.xlu0 %v3839
    %v3841 = vpop.xlane.xlu0 %3840
    %v3842 = vsel %vm674, %v3801, -inf
    %v3843 = vmax.f32 %v3800, %v3842
    %3844 = vmax.xlane.f32.xlu0 %v3843
    %v3845 = vpop.xlane.xlu0 %3844
    %v3846 = vsel %vm674, %v3803, -inf
    %v3847 = vmax.f32 %v3802, %v3846
    %3848 = vmax.xlane.f32.xlu0 %v3847
    %v3849 = vpop.xlane.xlu0 %3848
    %v3850 = vsel %vm674, %v3805, -inf
    %v3851 = vmax.f32 %v3804, %v3850
    %3852 = vmax.xlane.f32.xlu0 %v3851
    %v3853 = vpop.xlane.xlu0 %3852
    %v3854 = vsel %vm674, %v3807, -inf
    %v3855 = vmax.f32 %v3806, %v3854
    %3856 = vmax.xlane.f32.xlu0 %v3855
    %v3857 = vpop.xlane.xlu0 %3856
    %v3858 = vsel %vm674, %v3809, -inf
    %v3859 = vmax.f32 %v3808, %v3858
    %3860 = vmax.xlane.f32.xlu0 %v3859
    %v3861 = vpop.xlane.xlu0 %3860
    %v3862 = vsel %vm674, %v3811, -inf
    %v3863 = vmax.f32 %v3810, %v3862
    %3864 = vmax.xlane.f32.xlu0 %v3863
    %v3865 = vpop.xlane.xlu0 %3864
    %v3866 = vsel %vm674, %v3813, -inf
    %v3867 = vmax.f32 %v3812, %v3866
    %3868 = vmax.xlane.f32.xlu0 %v3867
    %v3869 = vpop.xlane.xlu0 %3868
    %v3870 = vsel %vm674, %v3815, -inf
    %v3871 = vmax.f32 %v3814, %v3870
    %3872 = vmax.xlane.f32.xlu0 %v3871
    %v3873 = vpop.xlane.xlu0 %3872
    %v3874 = vsel %vm674, %v3817, -inf
    %v3875 = vmax.f32 %v3816, %v3874
    %3876 = vmax.xlane.f32.xlu0 %v3875
    %v3877 = vpop.xlane.xlu0 %3876
    %v3878 = vsel %vm674, %v3819, -inf
    %v3879 = vmax.f32 %v3818, %v3878
    %3880 = vmax.xlane.f32.xlu0 %v3879
    %v3881 = vpop.xlane.xlu0 %3880
    %v3882 = vsel %vm674, %v3821, -inf
    %v3883 = vmax.f32 %v3820, %v3882
    %3884 = vmax.xlane.f32.xlu0 %v3883
    %v3885 = vpop.xlane.xlu0 %3884
    %v3886 = vsel %vm674, %v3823, -inf
    %v3887 = vmax.f32 %v3822, %v3886
    %3888 = vmax.xlane.f32.xlu0 %v3887
    %v3889 = vpop.xlane.xlu0 %3888
    %v3890 = vsel %vm674, %v3825, -inf
    %v3891 = vmax.f32 %v3824, %v3890
    %3892 = vmax.xlane.f32.xlu0 %v3891
    %v3893 = vpop.xlane.xlu0 %3892
    %v3894 = vsel %vm674, %v3827, -inf
    %v3895 = vmax.f32 %v3826, %v3894
    %3896 = vmax.xlane.f32.xlu0 %v3895
    %v3897 = vpop.xlane.xlu0 %3896
    %v3898 = vsel %vm674, %v3829, -inf
    %v3899 = vmax.f32 %v3828, %v3898
    %3900 = vmax.xlane.f32.xlu0 %v3899
    %v3901 = vpop.xlane.xlu0 %3900
    %v3902 = vsub.f32 %v3794, %v3833
    %v3903 = vsub.f32 %v3795, %v3833
    %v3904 = vsub.f32 %v3796, %v3837
    %v3905 = vsub.f32 %v3797, %v3837
    %v3906 = vsub.f32 %v3798, %v3841
    %v3907 = vsub.f32 %v3799, %v3841
    %v3908 = vsub.f32 %v3800, %v3845
    %v3909 = vsub.f32 %v3801, %v3845
    %v3910 = vsub.f32 %v3802, %v3849
    %v3911 = vsub.f32 %v3803, %v3849
    %v3912 = vsub.f32 %v3804, %v3853
    %v3913 = vsub.f32 %v3805, %v3853
    %v3914 = vsub.f32 %v3806, %v3857
    %v3915 = vsub.f32 %v3807, %v3857
    %v3916 = vsub.f32 %v3808, %v3861
    %v3917 = vsub.f32 %v3809, %v3861
    %v3918 = vsub.f32 %v3810, %v3865
    %v3919 = vsub.f32 %v3811, %v3865
    %v3920 = vsub.f32 %v3812, %v3869
    %v3921 = vsub.f32 %v3813, %v3869
    %v3922 = vsub.f32 %v3814, %v3873
    %v3923 = vsub.f32 %v3815, %v3873
    %v3924 = vsub.f32 %v3816, %v3877
    %v3925 = vsub.f32 %v3817, %v3877
    %v3926 = vsub.f32 %v3818, %v3881
    %v3927 = vsub.f32 %v3819, %v3881
    %v3928 = vsub.f32 %v3820, %v3885
    %v3929 = vsub.f32 %v3821, %v3885
    %v3930 = vsub.f32 %v3822, %v3889
    %v3931 = vsub.f32 %v3823, %v3889
    %v3932 = vsub.f32 %v3824, %v3893
    %v3933 = vsub.f32 %v3825, %v3893
    %v3934 = vsub.f32 %v3826, %v3897
    %v3935 = vsub.f32 %v3827, %v3897
    %v3936 = vsub.f32 %v3828, %v3901
    %v3937 = vsub.f32 %v3829, %v3901
    %v3938 = vmul.f32 %v3902, 1.442695
    %v3939 = vpow.pop %v3938
    %v3940 = vmul.f32 %v3903, 1.442695
    %v3941 = vpow.pop %v3940
    %v3942 = vmul.f32 %v3904, 1.442695
    %v3943 = vpow.pop %v3942
    %v3944 = vmul.f32 %v3905, 1.442695
    %v3945 = vpow.pop %v3944
    %v3946 = vmul.f32 %v3906, 1.442695
    %v3947 = vpow.pop %v3946
    %v3948 = vmul.f32 %v3907, 1.442695
    %v3949 = vpow.pop %v3948
    %v3950 = vmul.f32 %v3908, 1.442695
    %v3951 = vpow.pop %v3950
    %v3952 = vmul.f32 %v3909, 1.442695
    %v3953 = vpow.pop %v3952
    %v3954 = vmul.f32 %v3910, 1.442695
    %v3955 = vpow.pop %v3954
    %v3956 = vmul.f32 %v3911, 1.442695
    %v3957 = vpow.pop %v3956
    %v3958 = vmul.f32 %v3912, 1.442695
    %v3959 = vpow.pop %v3958
    %v3960 = vmul.f32 %v3913, 1.442695
    %v3961 = vpow.pop %v3960
    %v3962 = vmul.f32 %v3914, 1.442695
    %v3963 = vpow.pop %v3962
    %v3964 = vmul.f32 %v3915, 1.442695
    %v3965 = vpow.pop %v3964
    %v3966 = vmul.f32 %v3916, 1.442695
    %v3967 = vpow.pop %v3966
    %v3968 = vmul.f32 %v3917, 1.442695
    %v3969 = vpow.pop %v3968
    %v3970 = vmul.f32 %v3918, 1.442695
    %v3971 = vpow.pop %v3970
    %v3972 = vmul.f32 %v3919, 1.442695
    %v3973 = vpow.pop %v3972
    %v3974 = vmul.f32 %v3920, 1.442695
    %v3975 = vpow.pop %v3974
    %v3976 = vmul.f32 %v3921, 1.442695
    %v3977 = vpow.pop %v3976
    %v3978 = vmul.f32 %v3922, 1.442695
    %v3979 = vpow.pop %v3978
    %v3980 = vmul.f32 %v3923, 1.442695
    %v3981 = vpow.pop %v3980
    %v3982 = vmul.f32 %v3924, 1.442695
    %v3983 = vpow.pop %v3982
    %v3984 = vmul.f32 %v3925, 1.442695
    %v3985 = vpow.pop %v3984
    %v3986 = vmul.f32 %v3926, 1.442695
    %v3987 = vpow.pop %v3986
    %v3988 = vmul.f32 %v3927, 1.442695
    %v3989 = vpow.pop %v3988
    %v3990 = vmul.f32 %v3928, 1.442695
    %v3991 = vpow.pop %v3990
    %v3992 = vmul.f32 %v3929, 1.442695
    %v3993 = vpow.pop %v3992
    %v3994 = vmul.f32 %v3930, 1.442695
    %v3995 = vpow.pop %v3994
    %v3996 = vmul.f32 %v3931, 1.442695
    %v3997 = vpow.pop %v3996
    %v3998 = vmul.f32 %v3932, 1.442695
    %v3999 = vpow.pop %v3998
    %v4000 = vmul.f32 %v3933, 1.442695
    %v4001 = vpow.pop %v4000
    %v4002 = vmul.f32 %v3934, 1.442695
    %v4003 = vpow.pop %v4002
    %v4004 = vmul.f32 %v3935, 1.442695
    %v4005 = vpow.pop %v4004
    %v4006 = vmul.f32 %v3936, 1.442695
    %v4007 = vpow.pop %v4006
    %v4008 = vmul.f32 %v3937, 1.442695
    %v4009 = vpow.pop %v4008
    %v4010 = vsel %vm674, %v3941, 0.0
    %v4011 = vadd.f32 %v3939, %v4010
    %4012 = vadd.xlane.f32.xlu0 %v4011
    %v4013 = vpop.xlane.xlu0 %4012
    %v4014 = vsel %vm674, %v3945, 0.0
    %v4015 = vadd.f32 %v3943, %v4014
    %4016 = vadd.xlane.f32.xlu0 %v4015
    %v4017 = vpop.xlane.xlu0 %4016
    %v4018 = vsel %vm674, %v3949, 0.0
    %v4019 = vadd.f32 %v3947, %v4018
    %4020 = vadd.xlane.f32.xlu0 %v4019
    %v4021 = vpop.xlane.xlu0 %4020
    %v4022 = vsel %vm674, %v3953, 0.0
    %v4023 = vadd.f32 %v3951, %v4022
    %4024 = vadd.xlane.f32.xlu0 %v4023
    %v4025 = vpop.xlane.xlu0 %4024
    %v4026 = vsel %vm674, %v3957, 0.0
    %v4027 = vadd.f32 %v3955, %v4026
    %4028 = vadd.xlane.f32.xlu0 %v4027
    %v4029 = vpop.xlane.xlu0 %4028
    %v4030 = vsel %vm674, %v3961, 0.0
    %v4031 = vadd.f32 %v3959, %v4030
    %4032 = vadd.xlane.f32.xlu0 %v4031
    %v4033 = vpop.xlane.xlu0 %4032
    %v4034 = vsel %vm674, %v3965, 0.0
    %v4035 = vadd.f32 %v3963, %v4034
    %4036 = vadd.xlane.f32.xlu0 %v4035
    %v4037 = vpop.xlane.xlu0 %4036
    %v4038 = vsel %vm674, %v3969, 0.0
    %v4039 = vadd.f32 %v3967, %v4038
    %4040 = vadd.xlane.f32.xlu0 %v4039
    %v4041 = vpop.xlane.xlu0 %4040
    %v4042 = vsel %vm674, %v3973, 0.0
    %v4043 = vadd.f32 %v3971, %v4042
    %4044 = vadd.xlane.f32.xlu0 %v4043
    %v4045 = vpop.xlane.xlu0 %4044
    %v4046 = vsel %vm674, %v3977, 0.0
    %v4047 = vadd.f32 %v3975, %v4046
    %4048 = vadd.xlane.f32.xlu0 %v4047
    %v4049 = vpop.xlane.xlu0 %4048
    %v4050 = vsel %vm674, %v3981, 0.0
    %v4051 = vadd.f32 %v3979, %v4050
    %4052 = vadd.xlane.f32.xlu0 %v4051
    %v4053 = vpop.xlane.xlu0 %4052
    %v4054 = vsel %vm674, %v3985, 0.0
    %v4055 = vadd.f32 %v3983, %v4054
    %4056 = vadd.xlane.f32.xlu0 %v4055
    %v4057 = vpop.xlane.xlu0 %4056
    %v4058 = vsel %vm674, %v3989, 0.0
    %v4059 = vadd.f32 %v3987, %v4058
    %4060 = vadd.xlane.f32.xlu0 %v4059
    %v4061 = vpop.xlane.xlu0 %4060
    %v4062 = vsel %vm674, %v3993, 0.0
    %v4063 = vadd.f32 %v3991, %v4062
    %4064 = vadd.xlane.f32.xlu0 %v4063
    %v4065 = vpop.xlane.xlu0 %4064
    %v4066 = vsel %vm674, %v3997, 0.0
    %v4067 = vadd.f32 %v3995, %v4066
    %4068 = vadd.xlane.f32.xlu0 %v4067
    %v4069 = vpop.xlane.xlu0 %4068
    %v4070 = vsel %vm674, %v4001, 0.0
    %v4071 = vadd.f32 %v3999, %v4070
    %4072 = vadd.xlane.f32.xlu0 %v4071
    %v4073 = vpop.xlane.xlu0 %4072
    %v4074 = vsel %vm674, %v4005, 0.0
    %v4075 = vadd.f32 %v4003, %v4074
    %4076 = vadd.xlane.f32.xlu0 %v4075
    %v4077 = vpop.xlane.xlu0 %4076
    %v4078 = vsel %vm674, %v4009, 0.0
    %v4079 = vadd.f32 %v4007, %v4078
    %4080 = vadd.xlane.f32.xlu0 %v4079
    %v4081 = vpop.xlane.xlu0 %4080
    %v4082 = vrcp.pop %v4013
    %v4083 = vrcp.pop %v4017
    %v4084 = vrcp.pop %v4021
    %v4085 = vrcp.pop %v4025
    %v4086 = vrcp.pop %v4029
    %v4087 = vrcp.pop %v4033
    %v4088 = vrcp.pop %v4037
    %v4089 = vrcp.pop %v4041
    %v4090 = vrcp.pop %v4045
    %v4091 = vrcp.pop %v4049
    %v4092 = vrcp.pop %v4053
    %v4093 = vrcp.pop %v4057
    %v4094 = vrcp.pop %v4061
    %v4095 = vrcp.pop %v4065
    %v4096 = vrcp.pop %v4069
    %v4097 = vrcp.pop %v4073
    %v4098 = vrcp.pop %v4077
    %v4099 = vrcp.pop %v4081
    %v4100 = vmul.f32 %v3939, %v4082
    %v4101 = vmul.f32 %v3941, %v4082
    %v4102 = vmul.f32 %v3943, %v4083
    %v4103 = vmul.f32 %v3945, %v4083
    %v4104 = vmul.f32 %v3947, %v4084
    %v4105 = vmul.f32 %v3949, %v4084
    %v4106 = vmul.f32 %v3951, %v4085
    %v4107 = vmul.f32 %v3953, %v4085
    %v4108 = vmul.f32 %v3955, %v4086
    %v4109 = vmul.f32 %v3957, %v4086
    %v4110 = vmul.f32 %v3959, %v4087
    %v4111 = vmul.f32 %v3961, %v4087
    %v4112 = vmul.f32 %v3963, %v4088
    %v4113 = vmul.f32 %v3965, %v4088
    %v4114 = vmul.f32 %v3967, %v4089
    %v4115 = vmul.f32 %v3969, %v4089
    %v4116 = vmul.f32 %v3971, %v4090
    %v4117 = vmul.f32 %v3973, %v4090
    %v4118 = vmul.f32 %v3975, %v4091
    %v4119 = vmul.f32 %v3977, %v4091
    %v4120 = vmul.f32 %v3979, %v4092
    %v4121 = vmul.f32 %v3981, %v4092
    %v4122 = vmul.f32 %v3983, %v4093
    %v4123 = vmul.f32 %v3985, %v4093
    %v4124 = vmul.f32 %v3987, %v4094
    %v4125 = vmul.f32 %v3989, %v4094
    %v4126 = vmul.f32 %v3991, %v4095
    %v4127 = vmul.f32 %v3993, %v4095
    %v4128 = vmul.f32 %v3995, %v4096
    %v4129 = vmul.f32 %v3997, %v4096
    %v4130 = vmul.f32 %v3999, %v4097
    %v4131 = vmul.f32 %v4001, %v4097
    %v4132 = vmul.f32 %v4003, %v4098
    %v4133 = vmul.f32 %v4005, %v4098
    %v4134 = vmul.f32 %v4007, %v4099
    %v4135 = vmul.f32 %v4009, %v4099
    %4136 = vrot.lane.b32.xlu0 %v534, 80
    %v4137 = vpop.permute.xlu0 %4136
    %4138 = vrot.lane.b32.xlu0 %v538, 80
    %v4139 = vpop.permute.xlu0 %4138
    %4140 = vrot.lane.b32.xlu0 %v544, 80
    %v4141 = vpop.permute.xlu0 %4140
    %4142 = vrot.lane.b32.xlu0 %v548, 80
    %v4143 = vpop.permute.xlu0 %4142
    %4144 = vrot.lane.b32.xlu0 %v554, 80
    %v4145 = vpop.permute.xlu0 %4144
    %4146 = vrot.lane.b32.xlu0 %v558, 80
    %v4147 = vpop.permute.xlu0 %4146
    %4148 = vrot.lane.b32.xlu0 %v564, 80
    %v4149 = vpop.permute.xlu0 %4148
    %4150 = vrot.lane.b32.xlu0 %v568, 80
    %v4151 = vpop.permute.xlu0 %4150
    %4152 = vrot.lane.b32.xlu0 %v574, 80
    %v4153 = vpop.permute.xlu0 %4152
    %4154 = vrot.lane.b32.xlu0 %v578, 80
    %v4155 = vpop.permute.xlu0 %4154
    %4156 = vrot.lane.b32.xlu0 %v584, 80
    %v4157 = vpop.permute.xlu0 %4156
    %4158 = vrot.lane.b32.xlu0 %v588, 80
    %v4159 = vpop.permute.xlu0 %4158
    %4160 = vrot.lane.b32.xlu0 %v594, 80
    %v4161 = vpop.permute.xlu0 %4160
    %4162 = vrot.lane.b32.xlu0 %v598, 80
    %v4163 = vpop.permute.xlu0 %4162
    %4164 = vrot.lane.b32.xlu0 %v604, 80
    %v4165 = vpop.permute.xlu0 %4164
    %4166 = vrot.lane.b32.xlu0 %v608, 80
    %v4167 = vpop.permute.xlu0 %4166
    %4168 = vrot.lane.b32.xlu0 %v614, 80
    %v4169 = vpop.permute.xlu0 %4168
    %4170 = vrot.lane.b32.xlu0 %v618, 80
    %v4171 = vpop.permute.xlu0 %4170
    %v4191 = vsel %vm674, %v4101, 0
    %v4194 = vsel %vm674, %v4103, 0
    %v4197 = vsel %vm674, %v4105, 0
    %v4200 = vsel %vm674, %v4107, 0
    %v4203 = vsel %vm674, %v4109, 0
    %v4206 = vsel %vm674, %v4111, 0
    %v4209 = vsel %vm674, %v4113, 0
    %v4212 = vsel %vm674, %v4115, 0
    %v4215 = vsel %vm674, %v4117, 0
    %v4218 = vsel %vm674, %v4119, 0
    %v4221 = vsel %vm674, %v4121, 0
    %v4224 = vsel %vm674, %v4123, 0
    %v4227 = vsel %vm674, %v4125, 0
    %v4230 = vsel %vm674, %v4127, 0
    %v4233 = vsel %vm674, %v4129, 0
    %v4236 = vsel %vm674, %v4131, 0
    %v4239 = vsel %vm674, %v4133, 0
    %v4242 = vsel %vm674, %v4135, 0
    %4244 = vmatprep.subr.mxu0 0.0
    %4245 = vmatpush1.msra.mxu0 %v4137
    %4246 = vmatprep.subr.mxu0 0.0
    %4247 = vmatpush1.msra.mxu0 %v4139
    %4248 = vmatprep.subr.mxu0 0.0
    %4249 = vmatpush1.msra.mxu0 %v4141
    %4250 = vmatprep.subr.mxu0 0.0
    %4251 = vmatpush1.msra.mxu0 %v4143
    %4252 = vmatprep.subr.mxu0 0.0
    %4253 = vmatpush1.msra.mxu0 %v4145
    %4254 = vmatprep.subr.mxu0 0.0
    %4255 = vmatpush1.msra.mxu0 %v4147
    %4256 = vmatprep.subr.mxu0 0.0
    %4257 = vmatpush1.msra.mxu0 %v4149
    %4258 = vmatprep.subr.mxu0 0.0
    %4259 = vmatpush1.msra.mxu0 %v4151
    %4260 = vmatprep.subr.mxu0 0.0
    %4261 = vmatpush1.msra.mxu0 %v4153
    %4262 = vmatprep.subr.mxu0 0.0
    %4263 = vmatpush1.msra.mxu0 %v4155
    %4264 = vmatprep.subr.mxu0 0.0
    %4265 = vmatpush1.msra.mxu0 %v4157
    %4266 = vmatprep.subr.mxu0 0.0
    %4267 = vmatpush1.msra.mxu0 %v4159
    %4268 = vmatprep.subr.mxu0 0.0
    %4269 = vmatpush1.msra.mxu0 %v4161
    %4270 = vmatprep.subr.mxu0 0.0
    %4271 = vmatpush1.msra.mxu0 %v4163
    %4272 = vmatprep.subr.mxu0 0.0
    %4273 = vmatpush1.msra.mxu0 %v4165
    %4274 = vmatprep.subr.mxu0 0.0
    %4275 = vmatpush1.msra.mxu0 %v4167
    %4276 = vmatprep.subr.mxu0 0.0
    %4277 = vmatpush1.msra.mxu0 %v4169
    %4278 = vmatprep.subr.mxu0 0.0
    %4279 = vmatpush1.msra.mxu0 %v4171
    %4280 = vmatprep.subr.mxu0 0.0
    %4281 = vmatpush1.msra.mxu0 0.0
    %4282 = vmatprep.subr.mxu0 0.0
    %4283 = vmatpush1.msra.mxu0 0.0
    %4284 = vmatprep.subr.mxu0 0.0
    %4285 = vmatpush1.msra.mxu0 0.0
    %4286 = vmatprep.subr.mxu0 0.0
    %4287 = vmatpush1.msra.mxu0 0.0
    %4288 = vmatprep.subr.mxu0 0.0
    %4289 = vmatpush1.msra.mxu0 0.0
    %4290 = vmatprep.subr.mxu0 0.0
    %4291 = vmatpush1.msra.mxu0 0.0
    %4292 = vmatprep.subr.mxu0 0.0
    %4293 = vmatpush1.msra.mxu0 0.0
    %4294 = vmatprep.subr.mxu0 0.0
    %4295 = vmatpush1.msra.mxu0 0.0
    %4296 = vmatprep.subr.mxu0 0.0
    %4297 = vmatpush1.msra.mxu0 0.0
    %4298 = vmatprep.subr.mxu0 0.0
    %4299 = vmatpush1.msra.mxu0 0.0
    %4300 = vmatprep.subr.mxu0 0.0
    %4301 = vmatpush1.msra.mxu0 0.0
    %4302 = vmatprep.subr.mxu0 0.0
    %4303 = vmatpush1.msra.mxu0 0.0
    %4304 = vmatprep.subr.mxu0 0.0
    %4305 = vmatpush1.msra.mxu0 0.0
    %4306 = vmatprep.subr.mxu0 0.0
    %4307 = vmatpush1.msra.mxu0 0.0
    %4308 = vmatprep.mubr.f32.mxu0 %v4191
    %4309 = vmatmul.mubr.f32.gmra.mrb[0].mxu0 %v4100
    %v4310 = vpop.f32.mrb[0].mxu0
    %v4311 = vadd.f32 0.0, %v4310
    %v4312 = vpop.f32.mrb[0].mxu0
    %4313 = vmatprep.mubr.f32.mxu0 %v4194
    %4314 = vmatmul.mubr.f32.gmra.mrb[0].mxu0 %v4102
    %v4315 = vpop.f32.mrb[0].mxu0
    %v4316 = vadd.f32 0.0, %v4315
    %v4317 = vpop.f32.mrb[0].mxu0
    %4318 = vmatprep.mubr.f32.mxu0 %v4197
    %4319 = vmatmul.mubr.f32.gmra.mrb[0].mxu0 %v4104
    %v4320 = vpop.f32.mrb[0].mxu0
    %v4321 = vadd.f32 0.0, %v4320
    %v4322 = vpop.f32.mrb[0].mxu0
    %4323 = vmatprep.mubr.f32.mxu0 %v4200
    %4324 = vmatmul.mubr.f32.gmra.mrb[0].mxu0 %v4106
    %v4325 = vpop.f32.mrb[0].mxu0
    %v4326 = vadd.f32 0.0, %v4325
    %v4327 = vpop.f32.mrb[0].mxu0
    %4328 = vmatprep.mubr.f32.mxu0 %v4203
    %4329 = vmatmul.mubr.f32.gmra.mrb[0].mxu0 %v4108
    %v4330 = vpop.f32.mrb[0].mxu0
    %v4331 = vadd.f32 0.0, %v4330
    %v4332 = vpop.f32.mrb[0].mxu0
    %4333 = vmatprep.mubr.f32.mxu0 %v4206
    %4334 = vmatmul.mubr.f32.gmra.mrb[0].mxu0 %v4110
    %v4335 = vpop.f32.mrb[0].mxu0
    %v4336 = vadd.f32 0.0, %v4335
    %v4337 = vpop.f32.mrb[0].mxu0
    %4338 = vmatprep.mubr.f32.mxu0 %v4209
    %4339 = vmatmul.mubr.f32.gmra.mrb[0].mxu0 %v4112
    %v4340 = vpop.f32.mrb[0].mxu0
    %v4341 = vadd.f32 0.0, %v4340
    %v4342 = vpop.f32.mrb[0].mxu0
    %4343 = vmatprep.mubr.f32.mxu0 %v4212
    %4344 = vmatmul.mubr.f32.gmra.mrb[0].mxu0 %v4114
    %v4345 = vpop.f32.mrb[0].mxu0
    %v4346 = vadd.f32 0.0, %v4345
    %v4347 = vpop.f32.mrb[0].mxu0
    %4348 = vmatprep.mubr.f32.mxu0 %v4215
    %4349 = vmatmul.mubr.f32.gmra.mrb[0].mxu0 %v4116
    %v4350 = vpop.f32.mrb[0].mxu0
    %v4351 = vadd.f32 0.0, %v4350
    %v4352 = vpop.f32.mrb[0].mxu0
    %4353 = vmatprep.mubr.f32.mxu0 %v4218
    %4354 = vmatmul.mubr.f32.gmra.mrb[0].mxu0 %v4118
    %v4355 = vpop.f32.mrb[0].mxu0
    %v4356 = vadd.f32 0.0, %v4355
    %v4357 = vpop.f32.mrb[0].mxu0
    %4358 = vmatprep.mubr.f32.mxu0 %v4221
    %4359 = vmatmul.mubr.f32.gmra.mrb[0].mxu0 %v4120
    %v4360 = vpop.f32.mrb[0].mxu0
    %v4361 = vadd.f32 0.0, %v4360
    %v4362 = vpop.f32.mrb[0].mxu0
    %4363 = vmatprep.mubr.f32.mxu0 %v4224
    %4364 = vmatmul.mubr.f32.gmra.mrb[0].mxu0 %v4122
    %v4365 = vpop.f32.mrb[0].mxu0
    %v4366 = vadd.f32 0.0, %v4365
    %v4367 = vpop.f32.mrb[0].mxu0
    %4368 = vmatprep.mubr.f32.mxu0 %v4227
    %4369 = vmatmul.mubr.f32.gmra.mrb[0].mxu0 %v4124
    %v4370 = vpop.f32.mrb[0].mxu0
    %v4371 = vadd.f32 0.0, %v4370
    %v4372 = vpop.f32.mrb[0].mxu0
    %4373 = vmatprep.mubr.f32.mxu0 %v4230
    %4374 = vmatmul.mubr.f32.gmra.mrb[0].mxu0 %v4126
    %v4375 = vpop.f32.mrb[0].mxu0
    %v4376 = vadd.f32 0.0, %v4375
    %v4377 = vpop.f32.mrb[0].mxu0
    %4378 = vmatprep.mubr.f32.mxu0 %v4233
    %4379 = vmatmul.mubr.f32.gmra.mrb[0].mxu0 %v4128
    %v4380 = vpop.f32.mrb[0].mxu0
    %v4381 = vadd.f32 0.0, %v4380
    %v4382 = vpop.f32.mrb[0].mxu0
    %4383 = vmatprep.mubr.f32.mxu0 %v4236
    %4384 = vmatmul.mubr.f32.gmra.mrb[0].mxu0 %v4130
    %v4385 = vpop.f32.mrb[0].mxu0
    %v4386 = vadd.f32 0.0, %v4385
    %v4387 = vpop.f32.mrb[0].mxu0
    %4388 = vmatprep.mubr.f32.mxu0 %v4239
    %4389 = vmatmul.mubr.f32.gmra.mrb[0].mxu0 %v4132
    %v4390 = vpop.f32.mrb[0].mxu0
    %v4391 = vadd.f32 0.0, %v4390
    %v4392 = vpop.f32.mrb[0].mxu0
    %4393 = vmatprep.mubr.f32.mxu0 %v4242
    %4394 = vmatmul.mubr.f32.gmra.mrb[0].mxu0 %v4134
    %v4395 = vpop.f32.mrb[0].mxu0
    %v4396 = vadd.f32 0.0, %v4395
    %v4397 = vpop.f32.mrb[0].mxu0
    %4398 = vdwg.mxu0
    %4417 = vrot.lane.b32.xlu0 %v2395, 16
    %v4418 = vpop.permute.xlu0 %4417
    %4419 = vrot.lane.b32.xlu0 %v2400, 16
    %v4420 = vpop.permute.xlu0 %4419
    %4421 = vrot.lane.b32.xlu0 %v2405, 16
    %v4422 = vpop.permute.xlu0 %4421
    %4423 = vrot.lane.b32.xlu0 %v2410, 16
    %v4424 = vpop.permute.xlu0 %4423
    %4425 = vrot.lane.b32.xlu0 %v2415, 16
    %v4426 = vpop.permute.xlu0 %4425
    %4427 = vrot.lane.b32.xlu0 %v2420, 16
    %v4428 = vpop.permute.xlu0 %4427
    %4429 = vrot.lane.b32.xlu0 %v2425, 16
    %v4430 = vpop.permute.xlu0 %4429
    %4431 = vrot.lane.b32.xlu0 %v2430, 16
    %v4432 = vpop.permute.xlu0 %4431
    %4433 = vrot.lane.b32.xlu0 %v2435, 16
    %v4434 = vpop.permute.xlu0 %4433
    %4435 = vrot.lane.b32.xlu0 %v2440, 16
    %v4436 = vpop.permute.xlu0 %4435
    %4437 = vrot.lane.b32.xlu0 %v2445, 16
    %v4438 = vpop.permute.xlu0 %4437
    %4439 = vrot.lane.b32.xlu0 %v2450, 16
    %v4440 = vpop.permute.xlu0 %4439
    %4441 = vrot.lane.b32.xlu0 %v2455, 16
    %v4442 = vpop.permute.xlu0 %4441
    %4443 = vrot.lane.b32.xlu0 %v2460, 16
    %v4444 = vpop.permute.xlu0 %4443
    %4445 = vrot.lane.b32.xlu0 %v2465, 16
    %v4446 = vpop.permute.xlu0 %4445
    %4447 = vrot.lane.b32.xlu0 %v2470, 16
    %v4448 = vpop.permute.xlu0 %4447
    %4449 = vrot.lane.b32.xlu0 %v2475, 16
    %v4450 = vpop.permute.xlu0 %4449
    %4451 = vrot.lane.b32.xlu0 %v2480, 16
    %v4452 = vpop.permute.xlu0 %4451
    %4489 = vrot.lane.b32.xlu0 %v3353, 32
    %v4490 = vpop.permute.xlu0 %4489
    %4491 = vrot.lane.b32.xlu0 %v3358, 32
    %v4492 = vpop.permute.xlu0 %4491
    %4493 = vrot.lane.b32.xlu0 %v3363, 32
    %v4494 = vpop.permute.xlu0 %4493
    %4495 = vrot.lane.b32.xlu0 %v3368, 32
    %v4496 = vpop.permute.xlu0 %4495
    %4497 = vrot.lane.b32.xlu0 %v3373, 32
    %v4498 = vpop.permute.xlu0 %4497
    %4499 = vrot.lane.b32.xlu0 %v3378, 32
    %v4500 = vpop.permute.xlu0 %4499
    %4501 = vrot.lane.b32.xlu0 %v3383, 32
    %v4502 = vpop.permute.xlu0 %4501
    %4503 = vrot.lane.b32.xlu0 %v3388, 32
    %v4504 = vpop.permute.xlu0 %4503
    %4505 = vrot.lane.b32.xlu0 %v3393, 32
    %v4506 = vpop.permute.xlu0 %4505
    %4507 = vrot.lane.b32.xlu0 %v3398, 32
    %v4508 = vpop.permute.xlu0 %4507
    %4509 = vrot.lane.b32.xlu0 %v3403, 32
    %v4510 = vpop.permute.xlu0 %4509
    %4511 = vrot.lane.b32.xlu0 %v3408, 32
    %v4512 = vpop.permute.xlu0 %4511
    %4513 = vrot.lane.b32.xlu0 %v3413, 32
    %v4514 = vpop.permute.xlu0 %4513
    %4515 = vrot.lane.b32.xlu0 %v3418, 32
    %v4516 = vpop.permute.xlu0 %4515
    %4517 = vrot.lane.b32.xlu0 %v3423, 32
    %v4518 = vpop.permute.xlu0 %4517
    %4519 = vrot.lane.b32.xlu0 %v3428, 32
    %v4520 = vpop.permute.xlu0 %4519
    %4521 = vrot.lane.b32.xlu0 %v3433, 32
    %v4522 = vpop.permute.xlu0 %4521
    %4523 = vrot.lane.b32.xlu0 %v3438, 32
    %v4524 = vpop.permute.xlu0 %4523
    %4561 = vrot.lane.b32.xlu0 %v4311, 48
    %v4562 = vpop.permute.xlu0 %4561
    %4563 = vrot.lane.b32.xlu0 %v4316, 48
    %v4564 = vpop.permute.xlu0 %4563
    %4565 = vrot.lane.b32.xlu0 %v4321, 48
    %v4566 = vpop.permute.xlu0 %4565
    %4567 = vrot.lane.b32.xlu0 %v4326, 48
    %v4568 = vpop.permute.xlu0 %4567
    %4569 = vrot.lane.b32.xlu0 %v4331, 48
    %v4570 = vpop.permute.xlu0 %4569
    %4571 = vrot.lane.b32.xlu0 %v4336, 48
    %v4572 = vpop.permute.xlu0 %4571
    %4573 = vrot.lane.b32.xlu0 %v4341, 48
    %v4574 = vpop.permute.xlu0 %4573
    %4575 = vrot.lane.b32.xlu0 %v4346, 48
    %v4576 = vpop.permute.xlu0 %4575
    %4577 = vrot.lane.b32.xlu0 %v4351, 48
    %v4578 = vpop.permute.xlu0 %4577
    %4579 = vrot.lane.b32.xlu0 %v4356, 48
    %v4580 = vpop.permute.xlu0 %4579
    %4581 = vrot.lane.b32.xlu0 %v4361, 48
    %v4582 = vpop.permute.xlu0 %4581
    %4583 = vrot.lane.b32.xlu0 %v4366, 48
    %v4584 = vpop.permute.xlu0 %4583
    %4585 = vrot.lane.b32.xlu0 %v4371, 48
    %v4586 = vpop.permute.xlu0 %4585
    %4587 = vrot.lane.b32.xlu0 %v4376, 48
    %v4588 = vpop.permute.xlu0 %4587
    %4589 = vrot.lane.b32.xlu0 %v4381, 48
    %v4590 = vpop.permute.xlu0 %4589
    %4591 = vrot.lane.b32.xlu0 %v4386, 48
    %v4592 = vpop.permute.xlu0 %4591
    %4593 = vrot.lane.b32.xlu0 %v4391, 48
    %v4594 = vpop.permute.xlu0 %4593
    %4595 = vrot.lane.b32.xlu0 %v4396, 48
    %v4596 = vpop.permute.xlu0 %4595
    %v4615 = vsel %vm674, %v1419, %v4418
    %v4616 = vsel %vm674, %v1424, %v4420
    %v4617 = vsel %vm674, %v1429, %v4422
    %v4618 = vsel %vm674, %v1434, %v4424
    %v4619 = vsel %vm674, %v1439, %v4426
    %v4620 = vsel %vm674, %v1444, %v4428
    %v4621 = vsel %vm674, %v1449, %v4430
    %v4622 = vsel %vm674, %v1454, %v4432
    %v4623 = vsel %vm674, %v1459, %v4434
    %v4624 = vsel %vm674, %v1464, %v4436
    %v4625 = vsel %vm674, %v1469, %v4438
    %v4626 = vsel %vm674, %v1474, %v4440
    %v4627 = vsel %vm674, %v1479, %v4442
    %v4628 = vsel %vm674, %v1484, %v4444
    %v4629 = vsel %vm674, %v1489, %v4446
    %v4630 = vsel %vm674, %v1494, %v4448
    %v4631 = vsel %vm674, %v1499, %v4450
    %v4632 = vsel %vm674, %v1504, %v4452
    %v4633 = vsel %vm153, %v4615, %v4490
    %v4634 = vsel %vm153, %v4616, %v4492
    %v4635 = vsel %vm153, %v4617, %v4494
    %v4636 = vsel %vm153, %v4618, %v4496
    %v4637 = vsel %vm153, %v4619, %v4498
    %v4638 = vsel %vm153, %v4620, %v4500
    %v4639 = vsel %vm153, %v4621, %v4502
    %v4640 = vsel %vm153, %v4622, %v4504
    %v4641 = vsel %vm153, %v4623, %v4506
    %v4642 = vsel %vm153, %v4624, %v4508
    %v4643 = vsel %vm153, %v4625, %v4510
    %v4644 = vsel %vm153, %v4626, %v4512
    %v4645 = vsel %vm153, %v4627, %v4514
    %v4646 = vsel %vm153, %v4628, %v4516
    %v4647 = vsel %vm153, %v4629, %v4518
    %v4648 = vsel %vm153, %v4630, %v4520
    %v4649 = vsel %vm153, %v4631, %v4522
    %v4650 = vsel %vm153, %v4632, %v4524
    %vm4651 = vcmask 392192
    %v4652 = vsel %vm4651, %v4633, %v4562
    %v4653 = vsel %vm4651, %v4634, %v4564
    %v4654 = vsel %vm4651, %v4635, %v4566
    %v4655 = vsel %vm4651, %v4636, %v4568
    %v4656 = vsel %vm4651, %v4637, %v4570
    %v4657 = vsel %vm4651, %v4638, %v4572
    %v4658 = vsel %vm4651, %v4639, %v4574
    %v4659 = vsel %vm4651, %v4640, %v4576
    %v4660 = vsel %vm4651, %v4641, %v4578
    %v4661 = vsel %vm4651, %v4642, %v4580
    %v4662 = vsel %vm4651, %v4643, %v4582
    %v4663 = vsel %vm4651, %v4644, %v4584
    %v4664 = vsel %vm4651, %v4645, %v4586
    %v4665 = vsel %vm4651, %v4646, %v4588
    %v4666 = vsel %vm4651, %v4647, %v4590
    %v4667 = vsel %vm4651, %v4648, %v4592
    %v4668 = vsel %vm4651, %v4649, %v4594
    %v4669 = vsel %vm4651, %v4650, %v4596
    %v4670 = vpack.c.bf16 %v4653, %v4652
    %v4671 = vpack.c.bf16 %v4655, %v4654
    %v4672 = vpack.c.bf16 %v4657, %v4656
    %v4673 = vpack.c.bf16 %v4659, %v4658
    %v4674 = vpack.c.bf16 %v4661, %v4660
    %v4675 = vpack.c.bf16 %v4663, %v4662
    %v4676 = vpack.c.bf16 %v4665, %v4664
    %v4677 = vpack.c.bf16 %v4667, %v4666
    %v4678 = vpack.c.bf16 %v4669, %v4668
    %v4679 = vld [vmem:[%s8] sm:$0xf]
    %v4680 = vld [vmem:[%s8 + $0x4] sm:$0xf]
    %v4681 = vld [vmem:[%s8 + $0x8] sm:$0xf]
    %v4682 = vld [vmem:[%s8 + $0xc] sm:$0xf]
    %v4683 = vld [vmem:[%s8 + $0x10] sm:$0xf]
    %v4684 = vld [vmem:[%s8 + $0x14] sm:$0xf]
    %v4685 = vld [vmem:[%s8 + $0x18] sm:$0xf]
    %v4686 = vld [vmem:[%s8 + $0x1c] sm:$0xf]
    %v4687 = vld [vmem:[%s9] sm:$0x1]
    %v4689 = vlaneseq
    %v4690 = vshrl.u32 %v4689, 7
    %v4691 = vsub.s32 0, %v4690
    %v4692 = vrot.slane %v4687, %v4691
    %v4702 = vunpack.c.l.b16 %v4679
    %v4703 = vunpack.c.l.b16 %v4680
    %v4704 = vunpack.c.l.b16 %v4681
    %v4705 = vunpack.c.l.b16 %v4682
    %v4706 = vunpack.c.l.b16 %v4683
    %v4707 = vunpack.c.l.b16 %v4684
    %v4708 = vunpack.c.l.b16 %v4685
    %v4709 = vunpack.c.l.b16 %v4686
    %v4710 = vpack.c.b16 %v4703, %v4702
    %v4711 = vpack.c.b16 %v4705, %v4704
    %v4712 = vpack.c.b16 %v4707, %v4706
    %v4713 = vpack.c.b16 %v4709, %v4708
    %vm4718 = vcmask 523264
    %v4720 = vsel %vm4718, %v4670, 0
    %v4723 = vsel %vm4718, %v4671, 0
    %v4726 = vsel %vm4718, %v4672, 0
    %v4729 = vsel %vm4718, %v4673, 0
    %v4732 = vsel %vm4718, %v4674, 0
    %v4735 = vsel %vm4718, %v4675, 0
    %v4738 = vsel %vm4718, %v4676, 0
    %v4741 = vsel %vm4718, %v4677, 0
    %v4744 = vsel %vm4718, %v4678, 0
    %4746 = vmatprep.subr.bf16.mxu0 0
    %4747 = vmatpush1.bf16.msra.mxu0 %v4710
    %4748 = vmatprep.subr.bf16.mxu0 0
    %4749 = vmatpush1.bf16.msra.mxu0 %v4711
    %4750 = vmatprep.subr.bf16.mxu0 0
    %4751 = vmatpush1.bf16.msra.mxu0 %v4712
    %4752 = vmatprep.subr.bf16.mxu0 0
    %4753 = vmatpush1.bf16.msra.mxu0 %v4713
    %4754 = vmatprep.subr.bf16.mxu0 0
    %4755 = vmatpush1.bf16.msra.mxu0 0
    %4756 = vmatprep.subr.bf16.mxu0 0
    %4757 = vmatpush1.bf16.msra.mxu0 0
    %4758 = vmatprep.subr.bf16.mxu0 0
    %4759 = vmatpush1.bf16.msra.mxu0 0
    %4760 = vmatprep.subr.bf16.mxu0 0
    %4761 = vmatpush1.bf16.msra.mxu0 0
    %4762 = vmatprep.subr.bf16.mxu0 0
    %4763 = vmatpush1.bf16.msra.mxu0 0
    %4764 = vmatprep.subr.bf16.mxu0 0
    %4765 = vmatpush1.bf16.msra.mxu0 0
    %4766 = vmatprep.subr.bf16.mxu0 0
    %4767 = vmatpush1.bf16.msra.mxu0 0
    %4768 = vmatprep.subr.bf16.mxu0 0
    %4769 = vmatpush1.bf16.msra.mxu0 0
    %4770 = vmatprep.subr.bf16.mxu0 0
    %4771 = vmatpush1.bf16.msra.mxu0 0
    %4772 = vmatprep.subr.bf16.mxu0 0
    %4773 = vmatpush1.bf16.msra.mxu0 0
    %4774 = vmatprep.subr.bf16.mxu0 0
    %4775 = vmatpush1.bf16.msra.mxu0 0
    %4776 = vmatprep.subr.bf16.mxu0 0
    %4777 = vmatpush1.bf16.msra.mxu0 0
    %4778 = vmatprep.mubr.bf16.mxu0 0
    %4779 = vmatmul.mubr.bf16.gmra.mrb[0].mxu0 %v4720
    %v4780 = vpop.f32.mrb[0].mxu0
    %v4781 = vadd.f32 %v4692, %v4780
    %v4782 = vpop.f32.mrb[0].mxu0
    %v4783 = vpop.f32.mrb[0].mxu0
    %v4784 = vadd.f32 %v4692, %v4783
    %v4785 = vpop.f32.mrb[0].mxu0
    %4786 = vmatprep.mubr.bf16.mxu0 0
    %4787 = vmatmul.mubr.bf16.gmra.mrb[0].mxu0 %v4723
    %v4788 = vpop.f32.mrb[0].mxu0
    %v4789 = vadd.f32 %v4692, %v4788
    %v4790 = vpop.f32.mrb[0].mxu0
    %v4791 = vpop.f32.mrb[0].mxu0
    %v4792 = vadd.f32 %v4692, %v4791
    %v4793 = vpop.f32.mrb[0].mxu0
    %4794 = vmatprep.mubr.bf16.mxu0 0
    %4795 = vmatmul.mubr.bf16.gmra.mrb[0].mxu0 %v4726
    %v4796 = vpop.f32.mrb[0].mxu0
    %v4797 = vadd.f32 %v4692, %v4796
    %v4798 = vpop.f32.mrb[0].mxu0
    %v4799 = vpop.f32.mrb[0].mxu0
    %v4800 = vadd.f32 %v4692, %v4799
    %v4801 = vpop.f32.mrb[0].mxu0
    %4802 = vmatprep.mubr.bf16.mxu0 0
    %4803 = vmatmul.mubr.bf16.gmra.mrb[0].mxu0 %v4729
    %v4804 = vpop.f32.mrb[0].mxu0
    %v4805 = vadd.f32 %v4692, %v4804
    %v4806 = vpop.f32.mrb[0].mxu0
    %v4807 = vpop.f32.mrb[0].mxu0
    %v4808 = vadd.f32 %v4692, %v4807
    %v4809 = vpop.f32.mrb[0].mxu0
    %4810 = vmatprep.mubr.bf16.mxu0 0
    %4811 = vmatmul.mubr.bf16.gmra.mrb[0].mxu0 %v4732
    %v4812 = vpop.f32.mrb[0].mxu0
    %v4813 = vadd.f32 %v4692, %v4812
    %v4814 = vpop.f32.mrb[0].mxu0
    %v4815 = vpop.f32.mrb[0].mxu0
    %v4816 = vadd.f32 %v4692, %v4815
    %v4817 = vpop.f32.mrb[0].mxu0
    %4818 = vmatprep.mubr.bf16.mxu0 0
    %4819 = vmatmul.mubr.bf16.gmra.mrb[0].mxu0 %v4735
    %v4820 = vpop.f32.mrb[0].mxu0
    %v4821 = vadd.f32 %v4692, %v4820
    %v4822 = vpop.f32.mrb[0].mxu0
    %v4823 = vpop.f32.mrb[0].mxu0
    %v4824 = vadd.f32 %v4692, %v4823
    %v4825 = vpop.f32.mrb[0].mxu0
    %4826 = vmatprep.mubr.bf16.mxu0 0
    %4827 = vmatmul.mubr.bf16.gmra.mrb[0].mxu0 %v4738
    %v4828 = vpop.f32.mrb[0].mxu0
    %v4829 = vadd.f32 %v4692, %v4828
    %v4830 = vpop.f32.mrb[0].mxu0
    %v4831 = vpop.f32.mrb[0].mxu0
    %v4832 = vadd.f32 %v4692, %v4831
    %v4833 = vpop.f32.mrb[0].mxu0
    %4834 = vmatprep.mubr.bf16.mxu0 0
    %4835 = vmatmul.mubr.bf16.gmra.mrb[0].mxu0 %v4741
    %v4836 = vpop.f32.mrb[0].mxu0
    %v4837 = vadd.f32 %v4692, %v4836
    %v4838 = vpop.f32.mrb[0].mxu0
    %v4839 = vpop.f32.mrb[0].mxu0
    %v4840 = vadd.f32 %v4692, %v4839
    %v4841 = vpop.f32.mrb[0].mxu0
    %4842 = vmatprep.mubr.bf16.mxu0 0
    %4843 = vmatmul.mubr.bf16.gmra.mrb[0].mxu0 %v4744
    %v4844 = vpop.f32.mrb[0].mxu0
    %v4845 = vadd.f32 %v4692, %v4844
    %v4846 = vpop.f32.mrb[0].mxu0
    %v4847 = vpop.f32.mrb[0].mxu0
    %v4848 = vadd.f32 %v4692, %v4847
    %v4849 = vpop.f32.mrb[0].mxu0
    %4850 = vdwg.mxu0
    %4852 = vset.pattern.permute.xlu0 0
    %4853 = vperm.xlu0 %4852, %v133
    %v4854 = vpop.permute.xlu0 %4853
    %4857 = vset.pattern.permute.xlu0 0
    %4858 = vperm.xlu0 %4857, %v134
    %v4859 = vpop.permute.xlu0 %4858
    %4862 = vset.pattern.permute.xlu0 0
    %4863 = vperm.xlu0 %4862, %v135
    %v4864 = vpop.permute.xlu0 %4863
    %4867 = vset.pattern.permute.xlu0 0
    %4868 = vperm.xlu0 %4867, %v136
    %v4869 = vpop.permute.xlu0 %4868
    %4872 = vset.pattern.permute.xlu0 0
    %4873 = vperm.xlu0 %4872, %v137
    %v4874 = vpop.permute.xlu0 %4873
    %4877 = vset.pattern.permute.xlu0 0
    %4878 = vperm.xlu0 %4877, %v138
    %v4879 = vpop.permute.xlu0 %4878
    %4882 = vset.pattern.permute.xlu0 0
    %4883 = vperm.xlu0 %4882, %v139
    %v4884 = vpop.permute.xlu0 %4883
    %4887 = vset.pattern.permute.xlu0 0
    %4888 = vperm.xlu0 %4887, %v140
    %v4889 = vpop.permute.xlu0 %4888
    %4892 = vset.pattern.permute.xlu0 0
    %4893 = vperm.xlu0 %4892, %v141
    %v4894 = vpop.permute.xlu0 %4893
    %4897 = vset.pattern.permute.xlu0 0
    %4898 = vperm.xlu0 %4897, %v142
    %v4899 = vpop.permute.xlu0 %4898
    %4902 = vset.pattern.permute.xlu0 0
    %4903 = vperm.xlu0 %4902, %v143
    %v4904 = vpop.permute.xlu0 %4903
    %4907 = vset.pattern.permute.xlu0 0
    %4908 = vperm.xlu0 %4907, %v144
    %v4909 = vpop.permute.xlu0 %4908
    %4912 = vset.pattern.permute.xlu0 0
    %4913 = vperm.xlu0 %4912, %v145
    %v4914 = vpop.permute.xlu0 %4913
    %4917 = vset.pattern.permute.xlu0 0
    %4918 = vperm.xlu0 %4917, %v146
    %v4919 = vpop.permute.xlu0 %4918
    %4922 = vset.pattern.permute.xlu0 0
    %4923 = vperm.xlu0 %4922, %v147
    %v4924 = vpop.permute.xlu0 %4923
    %4927 = vset.pattern.permute.xlu0 0
    %4928 = vperm.xlu0 %4927, %v148
    %v4929 = vpop.permute.xlu0 %4928
    %4932 = vset.pattern.permute.xlu0 0
    %4933 = vperm.xlu0 %4932, %v149
    %v4934 = vpop.permute.xlu0 %4933
    %4937 = vset.pattern.permute.xlu0 0
    %4938 = vperm.xlu0 %4937, %v150
    %v4939 = vpop.permute.xlu0 %4938
    %v4941 = vmul.f32 %v4781, %v4854
    %v4942 = vmul.f32 %v4784, %v4859
    %v4943 = vmul.f32 %v4789, %v4864
    %v4944 = vmul.f32 %v4792, %v4869
    %v4945 = vmul.f32 %v4797, %v4874
    %v4946 = vmul.f32 %v4800, %v4879
    %v4947 = vmul.f32 %v4805, %v4884
    %v4948 = vmul.f32 %v4808, %v4889
    %v4949 = vmul.f32 %v4813, %v4894
    %v4950 = vmul.f32 %v4816, %v4899
    %v4951 = vmul.f32 %v4821, %v4904
    %v4952 = vmul.f32 %v4824, %v4909
    %v4953 = vmul.f32 %v4829, %v4914
    %v4954 = vmul.f32 %v4832, %v4919
    %v4955 = vmul.f32 %v4837, %v4924
    %v4956 = vmul.f32 %v4840, %v4929
    %v4957 = vmul.f32 %v4845, %v4934
    %v4958 = vmul.f32 %v4848, %v4939
    %v4959 = vadd.f32 %v79, %v4941
    %v4960 = vadd.f32 %v80, %v4942
    %v4961 = vadd.f32 %v81, %v4943
    %v4962 = vadd.f32 %v82, %v4944
    %v4963 = vadd.f32 %v83, %v4945
    %v4964 = vadd.f32 %v84, %v4946
    %v4965 = vadd.f32 %v85, %v4947
    %v4966 = vadd.f32 %v86, %v4948
    %v4967 = vadd.f32 %v87, %v4949
    %v4968 = vadd.f32 %v88, %v4950
    %v4969 = vadd.f32 %v89, %v4951
    %v4970 = vadd.f32 %v90, %v4952
    %v4971 = vadd.f32 %v91, %v4953
    %v4972 = vadd.f32 %v92, %v4954
    %v4973 = vadd.f32 %v93, %v4955
    %v4974 = vadd.f32 %v94, %v4956
    %v4975 = vadd.f32 %v95, %v4957
    %v4976 = vadd.f32 %v96, %v4958
    %v4977 = vld [vmem:[%s3] sm:$0x1]
    %v4978 = vld [vmem:[%s3 + $0x1] sm:$0x1]
    %v4979 = vld [vmem:[%s3 + $0x2] sm:$0x1]
    %v4980 = vrot.slane %v4959, 7
    %v4981 = vrot.slane %v4960, 7
    %v4982 = vrot.slane %v4961, 7
    %v4983 = vrot.slane %v4962, 7
    %v4984 = vrot.slane %v4963, 7
    %v4985 = vrot.slane %v4964, 7
    %v4986 = vrot.slane %v4965, 7
    %v4987 = vrot.slane %v4966, 7
    %v4988 = vrot.slane %v4967, 7
    %v4989 = vrot.slane %v4968, 7
    %v4990 = vrot.slane %v4969, 7
    %v4991 = vrot.slane %v4970, 7
    %v4992 = vrot.slane %v4971, 7
    %v4993 = vrot.slane %v4972, 7
    %v4994 = vrot.slane %v4973, 7
    %v4995 = vrot.slane %v4974, 7
    %v4996 = vrot.slane %v4975, 7
    %v4997 = vrot.slane %v4976, 7
    %v4998 = vlaneseq
    %v4999 = vshrl.u32 %v4998, 7
    %vm5000 = vcmp.lt.s32.totalorder %v4999, 1
    %v5001 = vsel %vm5000, %v4996, %v4997
    %v5002 = vsel %vm5000, %v4995, %v4996
    %v5003 = vsel %vm5000, %v4994, %v4995
    %v5004 = vsel %vm5000, %v4993, %v4994
    %v5005 = vsel %vm5000, %v4992, %v4993
    %v5006 = vsel %vm5000, %v4991, %v4992
    %v5007 = vsel %vm5000, %v4990, %v4991
    %v5008 = vsel %vm5000, %v4989, %v4990
    %v5009 = vsel %vm5000, %v4988, %v4989
    %v5010 = vsel %vm5000, %v4987, %v4988
    %v5011 = vsel %vm5000, %v4986, %v4987
    %v5012 = vsel %vm5000, %v4985, %v4986
    %v5013 = vsel %vm5000, %v4984, %v4985
    %v5014 = vsel %vm5000, %v4983, %v4984
    %v5015 = vsel %vm5000, %v4982, %v4983
    %v5016 = vsel %vm5000, %v4981, %v4982
    %v5017 = vsel %vm5000, %v4980, %v4981
    %v5018 = vsel %vm5000, %v4997, %v4980
    %v5019 = vrot.slane %v4959, 1
    %v5020 = vrot.slane %v4960, 1
    %v5021 = vrot.slane %v4961, 1
    %v5022 = vrot.slane %v4962, 1
    %v5023 = vrot.slane %v4963, 1
    %v5024 = vrot.slane %v4964, 1
    %v5025 = vrot.slane %v4965, 1
    %v5026 = vrot.slane %v4966, 1
    %v5027 = vrot.slane %v4967, 1
    %v5028 = vrot.slane %v4968, 1
    %v5029 = vrot.slane %v4969, 1
    %v5030 = vrot.slane %v4970, 1
    %v5031 = vrot.slane %v4971, 1
    %v5032 = vrot.slane %v4972, 1
    %v5033 = vrot.slane %v4973, 1
    %v5034 = vrot.slane %v4974, 1
    %v5035 = vrot.slane %v4975, 1
    %v5036 = vrot.slane %v4976, 1
    %vm5037 = vcmp.lt.s32.totalorder %v4999, 7
    %v5038 = vsel %vm5037, %v5035, %v5036
    %v5039 = vsel %vm5037, %v5034, %v5035
    %v5040 = vsel %vm5037, %v5033, %v5034
    %v5041 = vsel %vm5037, %v5032, %v5033
    %v5042 = vsel %vm5037, %v5031, %v5032
    %v5043 = vsel %vm5037, %v5030, %v5031
    %v5044 = vsel %vm5037, %v5029, %v5030
    %v5045 = vsel %vm5037, %v5028, %v5029
    %v5046 = vsel %vm5037, %v5027, %v5028
    %v5047 = vsel %vm5037, %v5026, %v5027
    %v5048 = vsel %vm5037, %v5025, %v5026
    %v5049 = vsel %vm5037, %v5024, %v5025
    %v5050 = vsel %vm5037, %v5023, %v5024
    %v5051 = vsel %vm5037, %v5022, %v5023
    %v5052 = vsel %vm5037, %v5021, %v5022
    %v5053 = vsel %vm5037, %v5020, %v5021
    %v5054 = vsel %vm5037, %v5019, %v5020
    %v5055 = vsel %vm5037, %v5036, %v5019
    %v5057 = vlaneseq
    %v5058 = vshrl.u32 %v5057, 7
    %v5059 = vsub.s32 0, %v5058
    %v5060 = vrot.slane %v4977, %v5059
    %5061 = vset.pattern.permute.xlu0 0
    %5062 = vperm.xlu0 %5061, %v5060
    %v5063 = vpop.permute.xlu0 %5062
    %v5065 = vmul.f32 %v5063, %v5018
    %v5066 = vmul.f32 %v5063, %v5017
    %v5067 = vmul.f32 %v5063, %v5016
    %v5068 = vmul.f32 %v5063, %v5015
    %v5069 = vmul.f32 %v5063, %v5014
    %v5070 = vmul.f32 %v5063, %v5013
    %v5071 = vmul.f32 %v5063, %v5012
    %v5072 = vmul.f32 %v5063, %v5011
    %v5073 = vmul.f32 %v5063, %v5010
    %v5074 = vmul.f32 %v5063, %v5009
    %v5075 = vmul.f32 %v5063, %v5008
    %v5076 = vmul.f32 %v5063, %v5007
    %v5077 = vmul.f32 %v5063, %v5006
    %v5078 = vmul.f32 %v5063, %v5005
    %v5079 = vmul.f32 %v5063, %v5004
    %v5080 = vmul.f32 %v5063, %v5003
    %v5081 = vmul.f32 %v5063, %v5002
    %v5082 = vmul.f32 %v5063, %v5001
    %v5084 = vlaneseq
    %v5085 = vshrl.u32 %v5084, 7
    %v5086 = vsub.s32 0, %v5085
    %v5087 = vrot.slane %v4978, %v5086
    %5088 = vset.pattern.permute.xlu0 0
    %5089 = vperm.xlu0 %5088, %v5087
    %v5090 = vpop.permute.xlu0 %5089
    %v5092 = vmul.f32 %v5090, %v4959
    %v5093 = vmul.f32 %v5090, %v4960
    %v5094 = vmul.f32 %v5090, %v4961
    %v5095 = vmul.f32 %v5090, %v4962
    %v5096 = vmul.f32 %v5090, %v4963
    %v5097 = vmul.f32 %v5090, %v4964
    %v5098 = vmul.f32 %v5090, %v4965
    %v5099 = vmul.f32 %v5090, %v4966
    %v5100 = vmul.f32 %v5090, %v4967
    %v5101 = vmul.f32 %v5090, %v4968
    %v5102 = vmul.f32 %v5090, %v4969
    %v5103 = vmul.f32 %v5090, %v4970
    %v5104 = vmul.f32 %v5090, %v4971
    %v5105 = vmul.f32 %v5090, %v4972
    %v5106 = vmul.f32 %v5090, %v4973
    %v5107 = vmul.f32 %v5090, %v4974
    %v5108 = vmul.f32 %v5090, %v4975
    %v5109 = vmul.f32 %v5090, %v4976
    %v5110 = vadd.f32 %v5065, %v5092
    %v5111 = vadd.f32 %v5066, %v5093
    %v5112 = vadd.f32 %v5067, %v5094
    %v5113 = vadd.f32 %v5068, %v5095
    %v5114 = vadd.f32 %v5069, %v5096
    %v5115 = vadd.f32 %v5070, %v5097
    %v5116 = vadd.f32 %v5071, %v5098
    %v5117 = vadd.f32 %v5072, %v5099
    %v5118 = vadd.f32 %v5073, %v5100
    %v5119 = vadd.f32 %v5074, %v5101
    %v5120 = vadd.f32 %v5075, %v5102
    %v5121 = vadd.f32 %v5076, %v5103
    %v5122 = vadd.f32 %v5077, %v5104
    %v5123 = vadd.f32 %v5078, %v5105
    %v5124 = vadd.f32 %v5079, %v5106
    %v5125 = vadd.f32 %v5080, %v5107
    %v5126 = vadd.f32 %v5081, %v5108
    %v5127 = vadd.f32 %v5082, %v5109
    %v5129 = vlaneseq
    %v5130 = vshrl.u32 %v5129, 7
    %v5131 = vsub.s32 0, %v5130
    %v5132 = vrot.slane %v4979, %v5131
    %5133 = vset.pattern.permute.xlu0 0
    %5134 = vperm.xlu0 %5133, %v5132
    %v5135 = vpop.permute.xlu0 %5134
    %v5137 = vmul.f32 %v5135, %v5054
    %v5138 = vmul.f32 %v5135, %v5053
    %v5139 = vmul.f32 %v5135, %v5052
    %v5140 = vmul.f32 %v5135, %v5051
    %v5141 = vmul.f32 %v5135, %v5050
    %v5142 = vmul.f32 %v5135, %v5049
    %v5143 = vmul.f32 %v5135, %v5048
    %v5144 = vmul.f32 %v5135, %v5047
    %v5145 = vmul.f32 %v5135, %v5046
    %v5146 = vmul.f32 %v5135, %v5045
    %v5147 = vmul.f32 %v5135, %v5044
    %v5148 = vmul.f32 %v5135, %v5043
    %v5149 = vmul.f32 %v5135, %v5042
    %v5150 = vmul.f32 %v5135, %v5041
    %v5151 = vmul.f32 %v5135, %v5040
    %v5152 = vmul.f32 %v5135, %v5039
    %v5153 = vmul.f32 %v5135, %v5038
    %v5154 = vmul.f32 %v5135, %v5055
    %v5155 = vadd.f32 %v5110, %v5137
    %v5156 = vadd.f32 %v5111, %v5138
    %v5157 = vadd.f32 %v5112, %v5139
    %v5158 = vadd.f32 %v5113, %v5140
    %v5159 = vadd.f32 %v5114, %v5141
    %v5160 = vadd.f32 %v5115, %v5142
    %v5161 = vadd.f32 %v5116, %v5143
    %v5162 = vadd.f32 %v5117, %v5144
    %v5163 = vadd.f32 %v5118, %v5145
    %v5164 = vadd.f32 %v5119, %v5146
    %v5165 = vadd.f32 %v5120, %v5147
    %v5166 = vadd.f32 %v5121, %v5148
    %v5167 = vadd.f32 %v5122, %v5149
    %v5168 = vadd.f32 %v5123, %v5150
    %v5169 = vadd.f32 %v5124, %v5151
    %v5170 = vadd.f32 %v5125, %v5152
    %v5171 = vadd.f32 %v5126, %v5153
    %v5172 = vadd.f32 %v5127, %v5154
    %v5173 = vld [vmem:[%s4] sm:$0x1]
    %v5175 = vlaneseq
    %v5176 = vshrl.u32 %v5175, 7
    %v5177 = vsub.s32 0, %v5176
    %v5178 = vrot.slane %v5173, %v5177
    %5179 = vset.pattern.permute.xlu0 0
    %5180 = vperm.xlu0 %5179, %v5178
    %v5181 = vpop.permute.xlu0 %5180
    %v5183 = vadd.f32 %v5155, %v5181
    %v5184 = vadd.f32 %v5156, %v5181
    %v5185 = vadd.f32 %v5157, %v5181
    %v5186 = vadd.f32 %v5158, %v5181
    %v5187 = vadd.f32 %v5159, %v5181
    %v5188 = vadd.f32 %v5160, %v5181
    %v5189 = vadd.f32 %v5161, %v5181
    %v5190 = vadd.f32 %v5162, %v5181
    %v5191 = vadd.f32 %v5163, %v5181
    %v5192 = vadd.f32 %v5164, %v5181
    %v5193 = vadd.f32 %v5165, %v5181
    %v5194 = vadd.f32 %v5166, %v5181
    %v5195 = vadd.f32 %v5167, %v5181
    %v5196 = vadd.f32 %v5168, %v5181
    %v5197 = vadd.f32 %v5169, %v5181
    %v5198 = vadd.f32 %v5170, %v5181
    %v5199 = vadd.f32 %v5171, %v5181
    %v5200 = vadd.f32 %v5172, %v5181
    %v5201 = vmul.f32 %v5183, %v4854
    %v5202 = vmul.f32 %v5184, %v4859
    %v5203 = vmul.f32 %v5185, %v4864
    %v5204 = vmul.f32 %v5186, %v4869
    %v5205 = vmul.f32 %v5187, %v4874
    %v5206 = vmul.f32 %v5188, %v4879
    %v5207 = vmul.f32 %v5189, %v4884
    %v5208 = vmul.f32 %v5190, %v4889
    %v5209 = vmul.f32 %v5191, %v4894
    %v5210 = vmul.f32 %v5192, %v4899
    %v5211 = vmul.f32 %v5193, %v4904
    %v5212 = vmul.f32 %v5194, %v4909
    %v5213 = vmul.f32 %v5195, %v4914
    %v5214 = vmul.f32 %v5196, %v4919
    %v5215 = vmul.f32 %v5197, %v4924
    %v5216 = vmul.f32 %v5198, %v4929
    %v5217 = vmul.f32 %v5199, %v4934
    %v5218 = vmul.f32 %v5200, %v4939
    %v5219 = vadd.f32 %v4959, %v5201
    %v5220 = vadd.f32 %v4960, %v5202
    %v5221 = vadd.f32 %v4961, %v5203
    %v5222 = vadd.f32 %v4962, %v5204
    %v5223 = vadd.f32 %v4963, %v5205
    %v5224 = vadd.f32 %v4964, %v5206
    %v5225 = vadd.f32 %v4965, %v5207
    %v5226 = vadd.f32 %v4966, %v5208
    %v5227 = vadd.f32 %v4967, %v5209
    %v5228 = vadd.f32 %v4968, %v5210
    %v5229 = vadd.f32 %v4969, %v5211
    %v5230 = vadd.f32 %v4970, %v5212
    %v5231 = vadd.f32 %v4971, %v5213
    %v5232 = vadd.f32 %v4972, %v5214
    %v5233 = vadd.f32 %v4973, %v5215
    %v5234 = vadd.f32 %v4974, %v5216
    %v5235 = vadd.f32 %v4975, %v5217
    %v5236 = vadd.f32 %v4976, %v5218
    %v5237 = vld [vmem:[%s10] sm:$0x1]
    %v5238 = vld [vmem:[%s11] sm:$0x1]
    %v5239 = vsel %vm153, %v5219, 0.0
    %5240 = vadd.xlane.f32.xlu0 %v5239
    %v5241 = vpop.xlane.xlu0 %5240
    %v5242 = vsel %vm153, %v5220, 0.0
    %5243 = vadd.xlane.f32.xlu0 %v5242
    %v5244 = vpop.xlane.xlu0 %5243
    %v5245 = vsel %vm153, %v5221, 0.0
    %5246 = vadd.xlane.f32.xlu0 %v5245
    %v5247 = vpop.xlane.xlu0 %5246
    %v5248 = vsel %vm153, %v5222, 0.0
    %5249 = vadd.xlane.f32.xlu0 %v5248
    %v5250 = vpop.xlane.xlu0 %5249
    %v5251 = vsel %vm153, %v5223, 0.0
    %5252 = vadd.xlane.f32.xlu0 %v5251
    %v5253 = vpop.xlane.xlu0 %5252
    %v5254 = vsel %vm153, %v5224, 0.0
    %5255 = vadd.xlane.f32.xlu0 %v5254
    %v5256 = vpop.xlane.xlu0 %5255
    %v5257 = vsel %vm153, %v5225, 0.0
    %5258 = vadd.xlane.f32.xlu0 %v5257
    %v5259 = vpop.xlane.xlu0 %5258
    %v5260 = vsel %vm153, %v5226, 0.0
    %5261 = vadd.xlane.f32.xlu0 %v5260
    %v5262 = vpop.xlane.xlu0 %5261
    %v5263 = vsel %vm153, %v5227, 0.0
    %5264 = vadd.xlane.f32.xlu0 %v5263
    %v5265 = vpop.xlane.xlu0 %5264
    %v5266 = vsel %vm153, %v5228, 0.0
    %5267 = vadd.xlane.f32.xlu0 %v5266
    %v5268 = vpop.xlane.xlu0 %5267
    %v5269 = vsel %vm153, %v5229, 0.0
    %5270 = vadd.xlane.f32.xlu0 %v5269
    %v5271 = vpop.xlane.xlu0 %5270
    %v5272 = vsel %vm153, %v5230, 0.0
    %5273 = vadd.xlane.f32.xlu0 %v5272
    %v5274 = vpop.xlane.xlu0 %5273
    %v5275 = vsel %vm153, %v5231, 0.0
    %5276 = vadd.xlane.f32.xlu0 %v5275
    %v5277 = vpop.xlane.xlu0 %5276
    %v5278 = vsel %vm153, %v5232, 0.0
    %5279 = vadd.xlane.f32.xlu0 %v5278
    %v5280 = vpop.xlane.xlu0 %5279
    %v5281 = vsel %vm153, %v5233, 0.0
    %5282 = vadd.xlane.f32.xlu0 %v5281
    %v5283 = vpop.xlane.xlu0 %5282
    %v5284 = vsel %vm153, %v5234, 0.0
    %5285 = vadd.xlane.f32.xlu0 %v5284
    %v5286 = vpop.xlane.xlu0 %5285
    %v5287 = vsel %vm153, %v5235, 0.0
    %5288 = vadd.xlane.f32.xlu0 %v5287
    %v5289 = vpop.xlane.xlu0 %5288
    %v5290 = vsel %vm153, %v5236, 0.0
    %5291 = vadd.xlane.f32.xlu0 %v5290
    %v5292 = vpop.xlane.xlu0 %5291
    %v5293 = vmul.f32 %v5241, %v208
    %v5294 = vmul.f32 %v5244, %v208
    %v5295 = vmul.f32 %v5247, %v208
    %v5296 = vmul.f32 %v5250, %v208
    %v5297 = vmul.f32 %v5253, %v208
    %v5298 = vmul.f32 %v5256, %v208
    %v5299 = vmul.f32 %v5259, %v208
    %v5300 = vmul.f32 %v5262, %v208
    %v5301 = vmul.f32 %v5265, %v208
    %v5302 = vmul.f32 %v5268, %v208
    %v5303 = vmul.f32 %v5271, %v208
    %v5304 = vmul.f32 %v5274, %v208
    %v5305 = vmul.f32 %v5277, %v208
    %v5306 = vmul.f32 %v5280, %v208
    %v5307 = vmul.f32 %v5283, %v208
    %v5308 = vmul.f32 %v5286, %v208
    %v5309 = vmul.f32 %v5289, %v208
    %v5310 = vmul.f32 %v5292, %v208
    %v5311 = vsub.f32 %v5219, %v5293
    %v5312 = vsub.f32 %v5220, %v5294
    %v5313 = vsub.f32 %v5221, %v5295
    %v5314 = vsub.f32 %v5222, %v5296
    %v5315 = vsub.f32 %v5223, %v5297
    %v5316 = vsub.f32 %v5224, %v5298
    %v5317 = vsub.f32 %v5225, %v5299
    %v5318 = vsub.f32 %v5226, %v5300
    %v5319 = vsub.f32 %v5227, %v5301
    %v5320 = vsub.f32 %v5228, %v5302
    %v5321 = vsub.f32 %v5229, %v5303
    %v5322 = vsub.f32 %v5230, %v5304
    %v5323 = vsub.f32 %v5231, %v5305
    %v5324 = vsub.f32 %v5232, %v5306
    %v5325 = vsub.f32 %v5233, %v5307
    %v5326 = vsub.f32 %v5234, %v5308
    %v5327 = vsub.f32 %v5235, %v5309
    %v5328 = vsub.f32 %v5236, %v5310
    %v5329 = vmul.f32 %v5311, %v5311
    %v5330 = vmul.f32 %v5312, %v5312
    %v5331 = vmul.f32 %v5313, %v5313
    %v5332 = vmul.f32 %v5314, %v5314
    %v5333 = vmul.f32 %v5315, %v5315
    %v5334 = vmul.f32 %v5316, %v5316
    %v5335 = vmul.f32 %v5317, %v5317
    %v5336 = vmul.f32 %v5318, %v5318
    %v5337 = vmul.f32 %v5319, %v5319
    %v5338 = vmul.f32 %v5320, %v5320
    %v5339 = vmul.f32 %v5321, %v5321
    %v5340 = vmul.f32 %v5322, %v5322
    %v5341 = vmul.f32 %v5323, %v5323
    %v5342 = vmul.f32 %v5324, %v5324
    %v5343 = vmul.f32 %v5325, %v5325
    %v5344 = vmul.f32 %v5326, %v5326
    %v5345 = vmul.f32 %v5327, %v5327
    %v5346 = vmul.f32 %v5328, %v5328
    %v5347 = vsel %vm153, %v5329, 0.0
    %5348 = vadd.xlane.f32.xlu0 %v5347
    %v5349 = vpop.xlane.xlu0 %5348
    %v5350 = vsel %vm153, %v5330, 0.0
    %5351 = vadd.xlane.f32.xlu0 %v5350
    %v5352 = vpop.xlane.xlu0 %5351
    %v5353 = vsel %vm153, %v5331, 0.0
    %5354 = vadd.xlane.f32.xlu0 %v5353
    %v5355 = vpop.xlane.xlu0 %5354
    %v5356 = vsel %vm153, %v5332, 0.0
    %5357 = vadd.xlane.f32.xlu0 %v5356
    %v5358 = vpop.xlane.xlu0 %5357
    %v5359 = vsel %vm153, %v5333, 0.0
    %5360 = vadd.xlane.f32.xlu0 %v5359
    %v5361 = vpop.xlane.xlu0 %5360
    %v5362 = vsel %vm153, %v5334, 0.0
    %5363 = vadd.xlane.f32.xlu0 %v5362
    %v5364 = vpop.xlane.xlu0 %5363
    %v5365 = vsel %vm153, %v5335, 0.0
    %5366 = vadd.xlane.f32.xlu0 %v5365
    %v5367 = vpop.xlane.xlu0 %5366
    %v5368 = vsel %vm153, %v5336, 0.0
    %5369 = vadd.xlane.f32.xlu0 %v5368
    %v5370 = vpop.xlane.xlu0 %5369
    %v5371 = vsel %vm153, %v5337, 0.0
    %5372 = vadd.xlane.f32.xlu0 %v5371
    %v5373 = vpop.xlane.xlu0 %5372
    %v5374 = vsel %vm153, %v5338, 0.0
    %5375 = vadd.xlane.f32.xlu0 %v5374
    %v5376 = vpop.xlane.xlu0 %5375
    %v5377 = vsel %vm153, %v5339, 0.0
    %5378 = vadd.xlane.f32.xlu0 %v5377
    %v5379 = vpop.xlane.xlu0 %5378
    %v5380 = vsel %vm153, %v5340, 0.0
    %5381 = vadd.xlane.f32.xlu0 %v5380
    %v5382 = vpop.xlane.xlu0 %5381
    %v5383 = vsel %vm153, %v5341, 0.0
    %5384 = vadd.xlane.f32.xlu0 %v5383
    %v5385 = vpop.xlane.xlu0 %5384
    %v5386 = vsel %vm153, %v5342, 0.0
    %5387 = vadd.xlane.f32.xlu0 %v5386
    %v5388 = vpop.xlane.xlu0 %5387
    %v5389 = vsel %vm153, %v5343, 0.0
    %5390 = vadd.xlane.f32.xlu0 %v5389
    %v5391 = vpop.xlane.xlu0 %5390
    %v5392 = vsel %vm153, %v5344, 0.0
    %5393 = vadd.xlane.f32.xlu0 %v5392
    %v5394 = vpop.xlane.xlu0 %5393
    %v5395 = vsel %vm153, %v5345, 0.0
    %5396 = vadd.xlane.f32.xlu0 %v5395
    %v5397 = vpop.xlane.xlu0 %5396
    %v5398 = vsel %vm153, %v5346, 0.0
    %5399 = vadd.xlane.f32.xlu0 %v5398
    %v5400 = vpop.xlane.xlu0 %5399
    %v5401 = vmul.f32 %v5349, %v208
    %v5402 = vmul.f32 %v5352, %v208
    %v5403 = vmul.f32 %v5355, %v208
    %v5404 = vmul.f32 %v5358, %v208
    %v5405 = vmul.f32 %v5361, %v208
    %v5406 = vmul.f32 %v5364, %v208
    %v5407 = vmul.f32 %v5367, %v208
    %v5408 = vmul.f32 %v5370, %v208
    %v5409 = vmul.f32 %v5373, %v208
    %v5410 = vmul.f32 %v5376, %v208
    %v5411 = vmul.f32 %v5379, %v208
    %v5412 = vmul.f32 %v5382, %v208
    %v5413 = vmul.f32 %v5385, %v208
    %v5414 = vmul.f32 %v5388, %v208
    %v5415 = vmul.f32 %v5391, %v208
    %v5416 = vmul.f32 %v5394, %v208
    %v5417 = vmul.f32 %v5397, %v208
    %v5418 = vmul.f32 %v5400, %v208
    %v5419 = vadd.f32 %v5401, 1e-05
    %v5420 = vadd.f32 %v5402, 1e-05
    %v5421 = vadd.f32 %v5403, 1e-05
    %v5422 = vadd.f32 %v5404, 1e-05
    %v5423 = vadd.f32 %v5405, 1e-05
    %v5424 = vadd.f32 %v5406, 1e-05
    %v5425 = vadd.f32 %v5407, 1e-05
    %v5426 = vadd.f32 %v5408, 1e-05
    %v5427 = vadd.f32 %v5409, 1e-05
    %v5428 = vadd.f32 %v5410, 1e-05
    %v5429 = vadd.f32 %v5411, 1e-05
    %v5430 = vadd.f32 %v5412, 1e-05
    %v5431 = vadd.f32 %v5413, 1e-05
    %v5432 = vadd.f32 %v5414, 1e-05
    %v5433 = vadd.f32 %v5415, 1e-05
    %v5434 = vadd.f32 %v5416, 1e-05
    %v5435 = vadd.f32 %v5417, 1e-05
    %v5436 = vadd.f32 %v5418, 1e-05
    %v5437 = vrsqrt.pop %v5419
    %v5438 = vrsqrt.pop %v5420
    %v5439 = vrsqrt.pop %v5421
    %v5440 = vrsqrt.pop %v5422
    %v5441 = vrsqrt.pop %v5423
    %v5442 = vrsqrt.pop %v5424
    %v5443 = vrsqrt.pop %v5425
    %v5444 = vrsqrt.pop %v5426
    %v5445 = vrsqrt.pop %v5427
    %v5446 = vrsqrt.pop %v5428
    %v5447 = vrsqrt.pop %v5429
    %v5448 = vrsqrt.pop %v5430
    %v5449 = vrsqrt.pop %v5431
    %v5450 = vrsqrt.pop %v5432
    %v5451 = vrsqrt.pop %v5433
    %v5452 = vrsqrt.pop %v5434
    %v5453 = vrsqrt.pop %v5435
    %v5454 = vrsqrt.pop %v5436
    %v5455 = vmul.f32 %v5311, %v5437
    %v5456 = vmul.f32 %v5312, %v5438
    %v5457 = vmul.f32 %v5313, %v5439
    %v5458 = vmul.f32 %v5314, %v5440
    %v5459 = vmul.f32 %v5315, %v5441
    %v5460 = vmul.f32 %v5316, %v5442
    %v5461 = vmul.f32 %v5317, %v5443
    %v5462 = vmul.f32 %v5318, %v5444
    %v5463 = vmul.f32 %v5319, %v5445
    %v5464 = vmul.f32 %v5320, %v5446
    %v5465 = vmul.f32 %v5321, %v5447
    %v5466 = vmul.f32 %v5322, %v5448
    %v5467 = vmul.f32 %v5323, %v5449
    %v5468 = vmul.f32 %v5324, %v5450
    %v5469 = vmul.f32 %v5325, %v5451
    %v5470 = vmul.f32 %v5326, %v5452
    %v5471 = vmul.f32 %v5327, %v5453
    %v5472 = vmul.f32 %v5328, %v5454
    %v5474 = vlaneseq
    %v5475 = vshrl.u32 %v5474, 7
    %v5476 = vsub.s32 0, %v5475
    %v5477 = vrot.slane %v5237, %v5476
    %v5479 = vmul.f32 %v5455, %v5477
    %v5480 = vmul.f32 %v5456, %v5477
    %v5481 = vmul.f32 %v5457, %v5477
    %v5482 = vmul.f32 %v5458, %v5477
    %v5483 = vmul.f32 %v5459, %v5477
    %v5484 = vmul.f32 %v5460, %v5477
    %v5485 = vmul.f32 %v5461, %v5477
    %v5486 = vmul.f32 %v5462, %v5477
    %v5487 = vmul.f32 %v5463, %v5477
    %v5488 = vmul.f32 %v5464, %v5477
    %v5489 = vmul.f32 %v5465, %v5477
    %v5490 = vmul.f32 %v5466, %v5477
    %v5491 = vmul.f32 %v5467, %v5477
    %v5492 = vmul.f32 %v5468, %v5477
    %v5493 = vmul.f32 %v5469, %v5477
    %v5494 = vmul.f32 %v5470, %v5477
    %v5495 = vmul.f32 %v5471, %v5477
    %v5496 = vmul.f32 %v5472, %v5477
    %v5498 = vlaneseq
    %v5499 = vshrl.u32 %v5498, 7
    %v5500 = vsub.s32 0, %v5499
    %v5501 = vrot.slane %v5238, %v5500
    %v5503 = vadd.f32 %v5479, %v5501
    %v5504 = vadd.f32 %v5480, %v5501
    %v5505 = vadd.f32 %v5481, %v5501
    %v5506 = vadd.f32 %v5482, %v5501
    %v5507 = vadd.f32 %v5483, %v5501
    %v5508 = vadd.f32 %v5484, %v5501
    %v5509 = vadd.f32 %v5485, %v5501
    %v5510 = vadd.f32 %v5486, %v5501
    %v5511 = vadd.f32 %v5487, %v5501
    %v5512 = vadd.f32 %v5488, %v5501
    %v5513 = vadd.f32 %v5489, %v5501
    %v5514 = vadd.f32 %v5490, %v5501
    %v5515 = vadd.f32 %v5491, %v5501
    %v5516 = vadd.f32 %v5492, %v5501
    %v5517 = vadd.f32 %v5493, %v5501
    %v5518 = vadd.f32 %v5494, %v5501
    %v5519 = vadd.f32 %v5495, %v5501
    %v5520 = vadd.f32 %v5496, %v5501
    %v5521 = vpack.c.bf16 %v5504, %v5503
    %v5522 = vpack.c.bf16 %v5506, %v5505
    %v5523 = vpack.c.bf16 %v5508, %v5507
    %v5524 = vpack.c.bf16 %v5510, %v5509
    %v5525 = vpack.c.bf16 %v5512, %v5511
    %v5526 = vpack.c.bf16 %v5514, %v5513
    %v5527 = vpack.c.bf16 %v5516, %v5515
    %v5528 = vpack.c.bf16 %v5518, %v5517
    %v5529 = vpack.c.bf16 %v5520, %v5519
    %v5530 = vld [vmem:[%s12] sm:$0xf]
    %v5531 = vld [vmem:[%s12 + $0x4] sm:$0xf]
    %v5532 = vld [vmem:[%s12 + $0x8] sm:$0xf]
    %v5533 = vld [vmem:[%s12 + $0xc] sm:$0xf]
    %v5534 = vld [vmem:[%s13] sm:$0x1]
    %v5536 = vlaneseq
    %v5537 = vshrl.u32 %v5536, 7
    %v5538 = vsub.s32 0, %v5537
    %v5539 = vrot.slane %v5534, %v5538
    %v5545 = vunpack.c.l.b16 %v5530
    %v5546 = vunpack.c.l.b16 %v5531
    %v5547 = vunpack.c.l.b16 %v5532
    %v5548 = vunpack.c.l.b16 %v5533
    %v5549 = vpack.c.b16 %v5546, %v5545
    %v5550 = vpack.c.b16 %v5548, %v5547
    %v5554 = vsel %vm153, %v5521, 0
    %v5557 = vsel %vm153, %v5522, 0
    %v5560 = vsel %vm153, %v5523, 0
    %v5563 = vsel %vm153, %v5524, 0
    %v5566 = vsel %vm153, %v5525, 0
    %v5569 = vsel %vm153, %v5526, 0
    %v5572 = vsel %vm153, %v5527, 0
    %v5575 = vsel %vm153, %v5528, 0
    %v5578 = vsel %vm153, %v5529, 0
    %5580 = vmatprep.subr.bf16.mxu0 0
    %5581 = vmatpush1.bf16.msra.mxu0 %v5549
    %5582 = vmatprep.subr.bf16.mxu0 0
    %5583 = vmatpush1.bf16.msra.mxu0 %v5550
    %5584 = vmatprep.subr.bf16.mxu0 0
    %5585 = vmatpush1.bf16.msra.mxu0 0
    %5586 = vmatprep.subr.bf16.mxu0 0
    %5587 = vmatpush1.bf16.msra.mxu0 0
    %5588 = vmatprep.subr.bf16.mxu0 0
    %5589 = vmatpush1.bf16.msra.mxu0 0
    %5590 = vmatprep.subr.bf16.mxu0 0
    %5591 = vmatpush1.bf16.msra.mxu0 0
    %5592 = vmatprep.subr.bf16.mxu0 0
    %5593 = vmatpush1.bf16.msra.mxu0 0
    %5594 = vmatprep.subr.bf16.mxu0 0
    %5595 = vmatpush1.bf16.msra.mxu0 0
    %5596 = vmatprep.subr.bf16.mxu0 0
    %5597 = vmatpush1.bf16.msra.mxu0 0
    %5598 = vmatprep.subr.bf16.mxu0 0
    %5599 = vmatpush1.bf16.msra.mxu0 0
    %5600 = vmatprep.subr.bf16.mxu0 0
    %5601 = vmatpush1.bf16.msra.mxu0 0
    %5602 = vmatprep.subr.bf16.mxu0 0
    %5603 = vmatpush1.bf16.msra.mxu0 0
    %5604 = vmatprep.subr.bf16.mxu0 0
    %5605 = vmatpush1.bf16.msra.mxu0 0
    %5606 = vmatprep.subr.bf16.mxu0 0
    %5607 = vmatpush1.bf16.msra.mxu0 0
    %5608 = vmatprep.subr.bf16.mxu0 0
    %5609 = vmatpush1.bf16.msra.mxu0 0
    %5610 = vmatprep.subr.bf16.mxu0 0
    %5611 = vmatpush1.bf16.msra.mxu0 0
    %5612 = vmatprep.mubr.bf16.mxu0 0
    %5613 = vmatmul.mubr.bf16.gmra.mrb[0].mxu0 %v5554
    %v5614 = vpop.f32.mrb[0].mxu0
    %v5615 = vadd.f32 %v5539, %v5614
    %v5616 = vpop.f32.mrb[0].mxu0
    %v5617 = vpop.f32.mrb[0].mxu0
    %v5618 = vadd.f32 %v5539, %v5617
    %v5619 = vpop.f32.mrb[0].mxu0
    %5620 = vmatprep.mubr.bf16.mxu0 0
    %5621 = vmatmul.mubr.bf16.gmra.mrb[0].mxu0 %v5557
    %v5622 = vpop.f32.mrb[0].mxu0
    %v5623 = vadd.f32 %v5539, %v5622
    %v5624 = vpop.f32.mrb[0].mxu0
    %v5625 = vpop.f32.mrb[0].mxu0
    %v5626 = vadd.f32 %v5539, %v5625
    %v5627 = vpop.f32.mrb[0].mxu0
    %5628 = vmatprep.mubr.bf16.mxu0 0
    %5629 = vmatmul.mubr.bf16.gmra.mrb[0].mxu0 %v5560
    %v5630 = vpop.f32.mrb[0].mxu0
    %v5631 = vadd.f32 %v5539, %v5630
    %v5632 = vpop.f32.mrb[0].mxu0
    %v5633 = vpop.f32.mrb[0].mxu0
    %v5634 = vadd.f32 %v5539, %v5633
    %v5635 = vpop.f32.mrb[0].mxu0
    %5636 = vmatprep.mubr.bf16.mxu0 0
    %5637 = vmatmul.mubr.bf16.gmra.mrb[0].mxu0 %v5563
    %v5638 = vpop.f32.mrb[0].mxu0
    %v5639 = vadd.f32 %v5539, %v5638
    %v5640 = vpop.f32.mrb[0].mxu0
    %v5641 = vpop.f32.mrb[0].mxu0
    %v5642 = vadd.f32 %v5539, %v5641
    %v5643 = vpop.f32.mrb[0].mxu0
    %5644 = vmatprep.mubr.bf16.mxu0 0
    %5645 = vmatmul.mubr.bf16.gmra.mrb[0].mxu0 %v5566
    %v5646 = vpop.f32.mrb[0].mxu0
    %v5647 = vadd.f32 %v5539, %v5646
    %v5648 = vpop.f32.mrb[0].mxu0
    %v5649 = vpop.f32.mrb[0].mxu0
    %v5650 = vadd.f32 %v5539, %v5649
    %v5651 = vpop.f32.mrb[0].mxu0
    %5652 = vmatprep.mubr.bf16.mxu0 0
    %5653 = vmatmul.mubr.bf16.gmra.mrb[0].mxu0 %v5569
    %v5654 = vpop.f32.mrb[0].mxu0
    %v5655 = vadd.f32 %v5539, %v5654
    %v5656 = vpop.f32.mrb[0].mxu0
    %v5657 = vpop.f32.mrb[0].mxu0
    %v5658 = vadd.f32 %v5539, %v5657
    %v5659 = vpop.f32.mrb[0].mxu0
    %5660 = vmatprep.mubr.bf16.mxu0 0
    %5661 = vmatmul.mubr.bf16.gmra.mrb[0].mxu0 %v5572
    %v5662 = vpop.f32.mrb[0].mxu0
    %v5663 = vadd.f32 %v5539, %v5662
    %v5664 = vpop.f32.mrb[0].mxu0
    %v5665 = vpop.f32.mrb[0].mxu0
    %v5666 = vadd.f32 %v5539, %v5665
    %v5667 = vpop.f32.mrb[0].mxu0
    %5668 = vmatprep.mubr.bf16.mxu0 0
    %5669 = vmatmul.mubr.bf16.gmra.mrb[0].mxu0 %v5575
    %v5670 = vpop.f32.mrb[0].mxu0
    %v5671 = vadd.f32 %v5539, %v5670
    %v5672 = vpop.f32.mrb[0].mxu0
    %v5673 = vpop.f32.mrb[0].mxu0
    %v5674 = vadd.f32 %v5539, %v5673
    %v5675 = vpop.f32.mrb[0].mxu0
    %5676 = vmatprep.mubr.bf16.mxu0 0
    %5677 = vmatmul.mubr.bf16.gmra.mrb[0].mxu0 %v5578
    %v5678 = vpop.f32.mrb[0].mxu0
    %v5679 = vadd.f32 %v5539, %v5678
    %v5680 = vpop.f32.mrb[0].mxu0
    %v5681 = vpop.f32.mrb[0].mxu0
    %v5682 = vadd.f32 %v5539, %v5681
    %v5683 = vpop.f32.mrb[0].mxu0
    %5684 = vdwg.mxu0
    %v5685 = vmul.f32 %v5615, %v5615
    %v5686 = vmul.f32 %v5618, %v5618
    %v5687 = vmul.f32 %v5623, %v5623
    %v5688 = vmul.f32 %v5626, %v5626
    %v5689 = vmul.f32 %v5631, %v5631
    %v5690 = vmul.f32 %v5634, %v5634
    %v5691 = vmul.f32 %v5639, %v5639
    %v5692 = vmul.f32 %v5642, %v5642
    %v5693 = vmul.f32 %v5647, %v5647
    %v5694 = vmul.f32 %v5650, %v5650
    %v5695 = vmul.f32 %v5655, %v5655
    %v5696 = vmul.f32 %v5658, %v5658
    %v5697 = vmul.f32 %v5663, %v5663
    %v5698 = vmul.f32 %v5666, %v5666
    %v5699 = vmul.f32 %v5671, %v5671
    %v5700 = vmul.f32 %v5674, %v5674
    %v5701 = vmul.f32 %v5679, %v5679
    %v5702 = vmul.f32 %v5682, %v5682
    %v5703 = vmul.f32 %v5615, %v5685
    %v5704 = vmul.f32 %v5618, %v5686
    %v5705 = vmul.f32 %v5623, %v5687
    %v5706 = vmul.f32 %v5626, %v5688
    %v5707 = vmul.f32 %v5631, %v5689
    %v5708 = vmul.f32 %v5634, %v5690
    %v5709 = vmul.f32 %v5639, %v5691
    %v5710 = vmul.f32 %v5642, %v5692
    %v5711 = vmul.f32 %v5647, %v5693
    %v5712 = vmul.f32 %v5650, %v5694
    %v5713 = vmul.f32 %v5655, %v5695
    %v5714 = vmul.f32 %v5658, %v5696
    %v5715 = vmul.f32 %v5663, %v5697
    %v5716 = vmul.f32 %v5666, %v5698
    %v5717 = vmul.f32 %v5671, %v5699
    %v5718 = vmul.f32 %v5674, %v5700
    %v5719 = vmul.f32 %v5679, %v5701
    %v5720 = vmul.f32 %v5682, %v5702
    %v5721 = vmul.f32 %v5703, 0.044715
    %v5722 = vmul.f32 %v5704, 0.044715
    %v5723 = vmul.f32 %v5705, 0.044715
    %v5724 = vmul.f32 %v5706, 0.044715
    %v5725 = vmul.f32 %v5707, 0.044715
    %v5726 = vmul.f32 %v5708, 0.044715
    %v5727 = vmul.f32 %v5709, 0.044715
    %v5728 = vmul.f32 %v5710, 0.044715
    %v5729 = vmul.f32 %v5711, 0.044715
    %v5730 = vmul.f32 %v5712, 0.044715
    %v5731 = vmul.f32 %v5713, 0.044715
    %v5732 = vmul.f32 %v5714, 0.044715
    %v5733 = vmul.f32 %v5715, 0.044715
    %v5734 = vmul.f32 %v5716, 0.044715
    %v5735 = vmul.f32 %v5717, 0.044715
    %v5736 = vmul.f32 %v5718, 0.044715
    %v5737 = vmul.f32 %v5719, 0.044715
    %v5738 = vmul.f32 %v5720, 0.044715
    %v5739 = vadd.f32 %v5615, %v5721
    %v5740 = vadd.f32 %v5618, %v5722
    %v5741 = vadd.f32 %v5623, %v5723
    %v5742 = vadd.f32 %v5626, %v5724
    %v5743 = vadd.f32 %v5631, %v5725
    %v5744 = vadd.f32 %v5634, %v5726
    %v5745 = vadd.f32 %v5639, %v5727
    %v5746 = vadd.f32 %v5642, %v5728
    %v5747 = vadd.f32 %v5647, %v5729
    %v5748 = vadd.f32 %v5650, %v5730
    %v5749 = vadd.f32 %v5655, %v5731
    %v5750 = vadd.f32 %v5658, %v5732
    %v5751 = vadd.f32 %v5663, %v5733
    %v5752 = vadd.f32 %v5666, %v5734
    %v5753 = vadd.f32 %v5671, %v5735
    %v5754 = vadd.f32 %v5674, %v5736
    %v5755 = vadd.f32 %v5679, %v5737
    %v5756 = vadd.f32 %v5682, %v5738
    %v5757 = vmul.f32 %v5739, 0.7978846
    %v5758 = vmul.f32 %v5740, 0.7978846
    %v5759 = vmul.f32 %v5741, 0.7978846
    %v5760 = vmul.f32 %v5742, 0.7978846
    %v5761 = vmul.f32 %v5743, 0.7978846
    %v5762 = vmul.f32 %v5744, 0.7978846
    %v5763 = vmul.f32 %v5745, 0.7978846
    %v5764 = vmul.f32 %v5746, 0.7978846
    %v5765 = vmul.f32 %v5747, 0.7978846
    %v5766 = vmul.f32 %v5748, 0.7978846
    %v5767 = vmul.f32 %v5749, 0.7978846
    %v5768 = vmul.f32 %v5750, 0.7978846
    %v5769 = vmul.f32 %v5751, 0.7978846
    %v5770 = vmul.f32 %v5752, 0.7978846
    %v5771 = vmul.f32 %v5753, 0.7978846
    %v5772 = vmul.f32 %v5754, 0.7978846
    %v5773 = vmul.f32 %v5755, 0.7978846
    %v5774 = vmul.f32 %v5756, 0.7978846
    %v5775 = vtanh.pop %v5757
    %v5776 = vtanh.pop %v5758
    %v5777 = vtanh.pop %v5759
    %v5778 = vtanh.pop %v5760
    %v5779 = vtanh.pop %v5761
    %v5780 = vtanh.pop %v5762
    %v5781 = vtanh.pop %v5763
    %v5782 = vtanh.pop %v5764
    %v5783 = vtanh.pop %v5765
    %v5784 = vtanh.pop %v5766
    %v5785 = vtanh.pop %v5767
    %v5786 = vtanh.pop %v5768
    %v5787 = vtanh.pop %v5769
    %v5788 = vtanh.pop %v5770
    %v5789 = vtanh.pop %v5771
    %v5790 = vtanh.pop %v5772
    %v5791 = vtanh.pop %v5773
    %v5792 = vtanh.pop %v5774
    %v5793 = vadd.f32 %v5775, 1.0
    %v5794 = vadd.f32 %v5776, 1.0
    %v5795 = vadd.f32 %v5777, 1.0
    %v5796 = vadd.f32 %v5778, 1.0
    %v5797 = vadd.f32 %v5779, 1.0
    %v5798 = vadd.f32 %v5780, 1.0
    %v5799 = vadd.f32 %v5781, 1.0
    %v5800 = vadd.f32 %v5782, 1.0
    %v5801 = vadd.f32 %v5783, 1.0
    %v5802 = vadd.f32 %v5784, 1.0
    %v5803 = vadd.f32 %v5785, 1.0
    %v5804 = vadd.f32 %v5786, 1.0
    %v5805 = vadd.f32 %v5787, 1.0
    %v5806 = vadd.f32 %v5788, 1.0
    %v5807 = vadd.f32 %v5789, 1.0
    %v5808 = vadd.f32 %v5790, 1.0
    %v5809 = vadd.f32 %v5791, 1.0
    %v5810 = vadd.f32 %v5792, 1.0
    %v5811 = vmul.f32 %v5793, 0.5
    %v5812 = vmul.f32 %v5794, 0.5
    %v5813 = vmul.f32 %v5795, 0.5
    %v5814 = vmul.f32 %v5796, 0.5
    %v5815 = vmul.f32 %v5797, 0.5
    %v5816 = vmul.f32 %v5798, 0.5
    %v5817 = vmul.f32 %v5799, 0.5
    %v5818 = vmul.f32 %v5800, 0.5
    %v5819 = vmul.f32 %v5801, 0.5
    %v5820 = vmul.f32 %v5802, 0.5
    %v5821 = vmul.f32 %v5803, 0.5
    %v5822 = vmul.f32 %v5804, 0.5
    %v5823 = vmul.f32 %v5805, 0.5
    %v5824 = vmul.f32 %v5806, 0.5
    %v5825 = vmul.f32 %v5807, 0.5
    %v5826 = vmul.f32 %v5808, 0.5
    %v5827 = vmul.f32 %v5809, 0.5
    %v5828 = vmul.f32 %v5810, 0.5
    %v5829 = vmul.f32 %v5615, %v5811
    %v5830 = vmul.f32 %v5618, %v5812
    %v5831 = vmul.f32 %v5623, %v5813
    %v5832 = vmul.f32 %v5626, %v5814
    %v5833 = vmul.f32 %v5631, %v5815
    %v5834 = vmul.f32 %v5634, %v5816
    %v5835 = vmul.f32 %v5639, %v5817
    %v5836 = vmul.f32 %v5642, %v5818
    %v5837 = vmul.f32 %v5647, %v5819
    %v5838 = vmul.f32 %v5650, %v5820
    %v5839 = vmul.f32 %v5655, %v5821
    %v5840 = vmul.f32 %v5658, %v5822
    %v5841 = vmul.f32 %v5663, %v5823
    %v5842 = vmul.f32 %v5666, %v5824
    %v5843 = vmul.f32 %v5671, %v5825
    %v5844 = vmul.f32 %v5674, %v5826
    %v5845 = vmul.f32 %v5679, %v5827
    %v5846 = vmul.f32 %v5682, %v5828
    %v5847 = vpack.c.bf16 %v5830, %v5829
    %v5848 = vpack.c.bf16 %v5832, %v5831
    %v5849 = vpack.c.bf16 %v5834, %v5833
    %v5850 = vpack.c.bf16 %v5836, %v5835
    %v5851 = vpack.c.bf16 %v5838, %v5837
    %v5852 = vpack.c.bf16 %v5840, %v5839
    %v5853 = vpack.c.bf16 %v5842, %v5841
    %v5854 = vpack.c.bf16 %v5844, %v5843
    %v5855 = vpack.c.bf16 %v5846, %v5845
    %v5856 = vld [vmem:[%s14] sm:$0xf]
    %v5857 = vld [vmem:[%s14 + $0x4] sm:$0xf]
    %v5858 = vld [vmem:[%s15] sm:$0x1]
    %v5860 = vlaneseq
    %v5861 = vshrl.u32 %v5860, 7
    %v5862 = vsub.s32 0, %v5861
    %v5863 = vrot.slane %v5858, %v5862
    %v5867 = vunpack.c.l.b16 %v5856
    %v5868 = vunpack.c.l.b16 %v5857
    %v5869 = vpack.c.b16 %v5868, %v5867
    %v5872 = vsel %vm674, %v5847, 0
    %v5875 = vsel %vm674, %v5848, 0
    %v5878 = vsel %vm674, %v5849, 0
    %v5881 = vsel %vm674, %v5850, 0
    %v5884 = vsel %vm674, %v5851, 0
    %v5887 = vsel %vm674, %v5852, 0
    %v5890 = vsel %vm674, %v5853, 0
    %v5893 = vsel %vm674, %v5854, 0
    %v5896 = vsel %vm674, %v5855, 0
    %5898 = vmatprep.subr.bf16.mxu0 0
    %5899 = vmatpush1.bf16.msra.mxu0 %v5869
    %5900 = vmatprep.subr.bf16.mxu0 0
    %5901 = vmatpush1.bf16.msra.mxu0 0
    %5902 = vmatprep.subr.bf16.mxu0 0
    %5903 = vmatpush1.bf16.msra.mxu0 0
    %5904 = vmatprep.subr.bf16.mxu0 0
    %5905 = vmatpush1.bf16.msra.mxu0 0
    %5906 = vmatprep.subr.bf16.mxu0 0
    %5907 = vmatpush1.bf16.msra.mxu0 0
    %5908 = vmatprep.subr.bf16.mxu0 0
    %5909 = vmatpush1.bf16.msra.mxu0 0
    %5910 = vmatprep.subr.bf16.mxu0 0
    %5911 = vmatpush1.bf16.msra.mxu0 0
    %5912 = vmatprep.subr.bf16.mxu0 0
    %5913 = vmatpush1.bf16.msra.mxu0 0
    %5914 = vmatprep.subr.bf16.mxu0 0
    %5915 = vmatpush1.bf16.msra.mxu0 0
    %5916 = vmatprep.subr.bf16.mxu0 0
    %5917 = vmatpush1.bf16.msra.mxu0 0
    %5918 = vmatprep.subr.bf16.mxu0 0
    %5919 = vmatpush1.bf16.msra.mxu0 0
    %5920 = vmatprep.subr.bf16.mxu0 0
    %5921 = vmatpush1.bf16.msra.mxu0 0
    %5922 = vmatprep.subr.bf16.mxu0 0
    %5923 = vmatpush1.bf16.msra.mxu0 0
    %5924 = vmatprep.subr.bf16.mxu0 0
    %5925 = vmatpush1.bf16.msra.mxu0 0
    %5926 = vmatprep.subr.bf16.mxu0 0
    %5927 = vmatpush1.bf16.msra.mxu0 0
    %5928 = vmatprep.subr.bf16.mxu0 0
    %5929 = vmatpush1.bf16.msra.mxu0 0
    %5930 = vmatprep.mubr.bf16.mxu0 0
    %5931 = vmatmul.mubr.bf16.gmra.mrb[0].mxu0 %v5872
    %v5932 = vpop.f32.mrb[0].mxu0
    %v5933 = vadd.f32 %v5863, %v5932
    %v5934 = vpop.f32.mrb[0].mxu0
    %v5935 = vpop.f32.mrb[0].mxu0
    %v5936 = vadd.f32 %v5863, %v5935
    %v5937 = vpop.f32.mrb[0].mxu0
    %5938 = vmatprep.mubr.bf16.mxu0 0
    %5939 = vmatmul.mubr.bf16.gmra.mrb[0].mxu0 %v5875
    %v5940 = vpop.f32.mrb[0].mxu0
    %v5941 = vadd.f32 %v5863, %v5940
    %v5942 = vpop.f32.mrb[0].mxu0
    %v5943 = vpop.f32.mrb[0].mxu0
    %v5944 = vadd.f32 %v5863, %v5943
    %v5945 = vpop.f32.mrb[0].mxu0
    %5946 = vmatprep.mubr.bf16.mxu0 0
    %5947 = vmatmul.mubr.bf16.gmra.mrb[0].mxu0 %v5878
    %v5948 = vpop.f32.mrb[0].mxu0
    %v5949 = vadd.f32 %v5863, %v5948
    %v5950 = vpop.f32.mrb[0].mxu0
    %v5951 = vpop.f32.mrb[0].mxu0
    %v5952 = vadd.f32 %v5863, %v5951
    %v5953 = vpop.f32.mrb[0].mxu0
    %5954 = vmatprep.mubr.bf16.mxu0 0
    %5955 = vmatmul.mubr.bf16.gmra.mrb[0].mxu0 %v5881
    %v5956 = vpop.f32.mrb[0].mxu0
    %v5957 = vadd.f32 %v5863, %v5956
    %v5958 = vpop.f32.mrb[0].mxu0
    %v5959 = vpop.f32.mrb[0].mxu0
    %v5960 = vadd.f32 %v5863, %v5959
    %v5961 = vpop.f32.mrb[0].mxu0
    %5962 = vmatprep.mubr.bf16.mxu0 0
    %5963 = vmatmul.mubr.bf16.gmra.mrb[0].mxu0 %v5884
    %v5964 = vpop.f32.mrb[0].mxu0
    %v5965 = vadd.f32 %v5863, %v5964
    %v5966 = vpop.f32.mrb[0].mxu0
    %v5967 = vpop.f32.mrb[0].mxu0
    %v5968 = vadd.f32 %v5863, %v5967
    %v5969 = vpop.f32.mrb[0].mxu0
    %5970 = vmatprep.mubr.bf16.mxu0 0
    %5971 = vmatmul.mubr.bf16.gmra.mrb[0].mxu0 %v5887
    %v5972 = vpop.f32.mrb[0].mxu0
    %v5973 = vadd.f32 %v5863, %v5972
    %v5974 = vpop.f32.mrb[0].mxu0
    %v5975 = vpop.f32.mrb[0].mxu0
    %v5976 = vadd.f32 %v5863, %v5975
    %v5977 = vpop.f32.mrb[0].mxu0
    %5978 = vmatprep.mubr.bf16.mxu0 0
    %5979 = vmatmul.mubr.bf16.gmra.mrb[0].mxu0 %v5890
    %v5980 = vpop.f32.mrb[0].mxu0
    %v5981 = vadd.f32 %v5863, %v5980
    %v5982 = vpop.f32.mrb[0].mxu0
    %v5983 = vpop.f32.mrb[0].mxu0
    %v5984 = vadd.f32 %v5863, %v5983
    %v5985 = vpop.f32.mrb[0].mxu0
    %5986 = vmatprep.mubr.bf16.mxu0 0
    %5987 = vmatmul.mubr.bf16.gmra.mrb[0].mxu0 %v5893
    %v5988 = vpop.f32.mrb[0].mxu0
    %v5989 = vadd.f32 %v5863, %v5988
    %v5990 = vpop.f32.mrb[0].mxu0
    %v5991 = vpop.f32.mrb[0].mxu0
    %v5992 = vadd.f32 %v5863, %v5991
    %v5993 = vpop.f32.mrb[0].mxu0
    %5994 = vmatprep.mubr.bf16.mxu0 0
    %5995 = vmatmul.mubr.bf16.gmra.mrb[0].mxu0 %v5896
    %v5996 = vpop.f32.mrb[0].mxu0
    %v5997 = vadd.f32 %v5863, %v5996
    %v5998 = vpop.f32.mrb[0].mxu0
    %v5999 = vpop.f32.mrb[0].mxu0
    %v6000 = vadd.f32 %v5863, %v5999
    %v6001 = vpop.f32.mrb[0].mxu0
    %6002 = vdwg.mxu0
    %v6003 = vmul.f32 %v5933, %v4854
    %v6004 = vmul.f32 %v5936, %v4859
    %v6005 = vmul.f32 %v5941, %v4864
    %v6006 = vmul.f32 %v5944, %v4869
    %v6007 = vmul.f32 %v5949, %v4874
    %v6008 = vmul.f32 %v5952, %v4879
    %v6009 = vmul.f32 %v5957, %v4884
    %v6010 = vmul.f32 %v5960, %v4889
    %v6011 = vmul.f32 %v5965, %v4894
    %v6012 = vmul.f32 %v5968, %v4899
    %v6013 = vmul.f32 %v5973, %v4904
    %v6014 = vmul.f32 %v5976, %v4909
    %v6015 = vmul.f32 %v5981, %v4914
    %v6016 = vmul.f32 %v5984, %v4919
    %v6017 = vmul.f32 %v5989, %v4924
    %v6018 = vmul.f32 %v5992, %v4929
    %v6019 = vmul.f32 %v5997, %v4934
    %v6020 = vmul.f32 %v6000, %v4939
    %v6021 = vadd.f32 %v5219, %v6003
    %v6022 = vadd.f32 %v5220, %v6004
    %v6023 = vadd.f32 %v5221, %v6005
    %v6024 = vadd.f32 %v5222, %v6006
    %v6025 = vadd.f32 %v5223, %v6007
    %v6026 = vadd.f32 %v5224, %v6008
    %v6027 = vadd.f32 %v5225, %v6009
    %v6028 = vadd.f32 %v5226, %v6010
    %v6029 = vadd.f32 %v5227, %v6011
    %v6030 = vadd.f32 %v5228, %v6012
    %v6031 = vadd.f32 %v5229, %v6013
    %v6032 = vadd.f32 %v5230, %v6014
    %v6033 = vadd.f32 %v5231, %v6015
    %v6034 = vadd.f32 %v5232, %v6016
    %v6035 = vadd.f32 %v5233, %v6017
    %v6036 = vadd.f32 %v5234, %v6018
    %v6037 = vadd.f32 %v5235, %v6019
    %v6038 = vadd.f32 %v5236, %v6020
    %s6039 = scalar_lea.vmem %s5, 1
    %v6040 = vld [vmem:[%s6039] sm:$0x1]
    %s6041 = scalar_lea.vmem %s6, 1
    %v6042 = vld [vmem:[%s6041] sm:$0x1]
    %v6043 = vsel %vm153, %v6021, 0.0
    %6044 = vadd.xlane.f32.xlu0 %v6043
    %v6045 = vpop.xlane.xlu0 %6044
    %v6046 = vsel %vm153, %v6022, 0.0
    %6047 = vadd.xlane.f32.xlu0 %v6046
    %v6048 = vpop.xlane.xlu0 %6047
    %v6049 = vsel %vm153, %v6023, 0.0
    %6050 = vadd.xlane.f32.xlu0 %v6049
    %v6051 = vpop.xlane.xlu0 %6050
    %v6052 = vsel %vm153, %v6024, 0.0
    %6053 = vadd.xlane.f32.xlu0 %v6052
    %v6054 = vpop.xlane.xlu0 %6053
    %v6055 = vsel %vm153, %v6025, 0.0
    %6056 = vadd.xlane.f32.xlu0 %v6055
    %v6057 = vpop.xlane.xlu0 %6056
    %v6058 = vsel %vm153, %v6026, 0.0
    %6059 = vadd.xlane.f32.xlu0 %v6058
    %v6060 = vpop.xlane.xlu0 %6059
    %v6061 = vsel %vm153, %v6027, 0.0
    %6062 = vadd.xlane.f32.xlu0 %v6061
    %v6063 = vpop.xlane.xlu0 %6062
    %v6064 = vsel %vm153, %v6028, 0.0
    %6065 = vadd.xlane.f32.xlu0 %v6064
    %v6066 = vpop.xlane.xlu0 %6065
    %v6067 = vsel %vm153, %v6029, 0.0
    %6068 = vadd.xlane.f32.xlu0 %v6067
    %v6069 = vpop.xlane.xlu0 %6068
    %v6070 = vsel %vm153, %v6030, 0.0
    %6071 = vadd.xlane.f32.xlu0 %v6070
    %v6072 = vpop.xlane.xlu0 %6071
    %v6073 = vsel %vm153, %v6031, 0.0
    %6074 = vadd.xlane.f32.xlu0 %v6073
    %v6075 = vpop.xlane.xlu0 %6074
    %v6076 = vsel %vm153, %v6032, 0.0
    %6077 = vadd.xlane.f32.xlu0 %v6076
    %v6078 = vpop.xlane.xlu0 %6077
    %v6079 = vsel %vm153, %v6033, 0.0
    %6080 = vadd.xlane.f32.xlu0 %v6079
    %v6081 = vpop.xlane.xlu0 %6080
    %v6082 = vsel %vm153, %v6034, 0.0
    %6083 = vadd.xlane.f32.xlu0 %v6082
    %v6084 = vpop.xlane.xlu0 %6083
    %v6085 = vsel %vm153, %v6035, 0.0
    %6086 = vadd.xlane.f32.xlu0 %v6085
    %v6087 = vpop.xlane.xlu0 %6086
    %v6088 = vsel %vm153, %v6036, 0.0
    %6089 = vadd.xlane.f32.xlu0 %v6088
    %v6090 = vpop.xlane.xlu0 %6089
    %v6091 = vsel %vm153, %v6037, 0.0
    %6092 = vadd.xlane.f32.xlu0 %v6091
    %v6093 = vpop.xlane.xlu0 %6092
    %v6094 = vsel %vm153, %v6038, 0.0
    %6095 = vadd.xlane.f32.xlu0 %v6094
    %v6096 = vpop.xlane.xlu0 %6095
    %v6097 = vmul.f32 %v6045, %v208
    %v6098 = vmul.f32 %v6048, %v208
    %v6099 = vmul.f32 %v6051, %v208
    %v6100 = vmul.f32 %v6054, %v208
    %v6101 = vmul.f32 %v6057, %v208
    %v6102 = vmul.f32 %v6060, %v208
    %v6103 = vmul.f32 %v6063, %v208
    %v6104 = vmul.f32 %v6066, %v208
    %v6105 = vmul.f32 %v6069, %v208
    %v6106 = vmul.f32 %v6072, %v208
    %v6107 = vmul.f32 %v6075, %v208
    %v6108 = vmul.f32 %v6078, %v208
    %v6109 = vmul.f32 %v6081, %v208
    %v6110 = vmul.f32 %v6084, %v208
    %v6111 = vmul.f32 %v6087, %v208
    %v6112 = vmul.f32 %v6090, %v208
    %v6113 = vmul.f32 %v6093, %v208
    %v6114 = vmul.f32 %v6096, %v208
    %v6115 = vsub.f32 %v6021, %v6097
    %v6116 = vsub.f32 %v6022, %v6098
    %v6117 = vsub.f32 %v6023, %v6099
    %v6118 = vsub.f32 %v6024, %v6100
    %v6119 = vsub.f32 %v6025, %v6101
    %v6120 = vsub.f32 %v6026, %v6102
    %v6121 = vsub.f32 %v6027, %v6103
    %v6122 = vsub.f32 %v6028, %v6104
    %v6123 = vsub.f32 %v6029, %v6105
    %v6124 = vsub.f32 %v6030, %v6106
    %v6125 = vsub.f32 %v6031, %v6107
    %v6126 = vsub.f32 %v6032, %v6108
    %v6127 = vsub.f32 %v6033, %v6109
    %v6128 = vsub.f32 %v6034, %v6110
    %v6129 = vsub.f32 %v6035, %v6111
    %v6130 = vsub.f32 %v6036, %v6112
    %v6131 = vsub.f32 %v6037, %v6113
    %v6132 = vsub.f32 %v6038, %v6114
    %v6133 = vmul.f32 %v6115, %v6115
    %v6134 = vmul.f32 %v6116, %v6116
    %v6135 = vmul.f32 %v6117, %v6117
    %v6136 = vmul.f32 %v6118, %v6118
    %v6137 = vmul.f32 %v6119, %v6119
    %v6138 = vmul.f32 %v6120, %v6120
    %v6139 = vmul.f32 %v6121, %v6121
    %v6140 = vmul.f32 %v6122, %v6122
    %v6141 = vmul.f32 %v6123, %v6123
    %v6142 = vmul.f32 %v6124, %v6124
    %v6143 = vmul.f32 %v6125, %v6125
    %v6144 = vmul.f32 %v6126, %v6126
    %v6145 = vmul.f32 %v6127, %v6127
    %v6146 = vmul.f32 %v6128, %v6128
    %v6147 = vmul.f32 %v6129, %v6129
    %v6148 = vmul.f32 %v6130, %v6130
    %v6149 = vmul.f32 %v6131, %v6131
    %v6150 = vmul.f32 %v6132, %v6132
    %v6151 = vsel %vm153, %v6133, 0.0
    %6152 = vadd.xlane.f32.xlu0 %v6151
    %v6153 = vpop.xlane.xlu0 %6152
    %v6154 = vsel %vm153, %v6134, 0.0
    %6155 = vadd.xlane.f32.xlu0 %v6154
    %v6156 = vpop.xlane.xlu0 %6155
    %v6157 = vsel %vm153, %v6135, 0.0
    %6158 = vadd.xlane.f32.xlu0 %v6157
    %v6159 = vpop.xlane.xlu0 %6158
    %v6160 = vsel %vm153, %v6136, 0.0
    %6161 = vadd.xlane.f32.xlu0 %v6160
    %v6162 = vpop.xlane.xlu0 %6161
    %v6163 = vsel %vm153, %v6137, 0.0
    %6164 = vadd.xlane.f32.xlu0 %v6163
    %v6165 = vpop.xlane.xlu0 %6164
    %v6166 = vsel %vm153, %v6138, 0.0
    %6167 = vadd.xlane.f32.xlu0 %v6166
    %v6168 = vpop.xlane.xlu0 %6167
    %v6169 = vsel %vm153, %v6139, 0.0
    %6170 = vadd.xlane.f32.xlu0 %v6169
    %v6171 = vpop.xlane.xlu0 %6170
    %v6172 = vsel %vm153, %v6140, 0.0
    %6173 = vadd.xlane.f32.xlu0 %v6172
    %v6174 = vpop.xlane.xlu0 %6173
    %v6175 = vsel %vm153, %v6141, 0.0
    %6176 = vadd.xlane.f32.xlu0 %v6175
    %v6177 = vpop.xlane.xlu0 %6176
    %v6178 = vsel %vm153, %v6142, 0.0
    %6179 = vadd.xlane.f32.xlu0 %v6178
    %v6180 = vpop.xlane.xlu0 %6179
    %v6181 = vsel %vm153, %v6143, 0.0
    %6182 = vadd.xlane.f32.xlu0 %v6181
    %v6183 = vpop.xlane.xlu0 %6182
    %v6184 = vsel %vm153, %v6144, 0.0
    %6185 = vadd.xlane.f32.xlu0 %v6184
    %v6186 = vpop.xlane.xlu0 %6185
    %v6187 = vsel %vm153, %v6145, 0.0
    %6188 = vadd.xlane.f32.xlu0 %v6187
    %v6189 = vpop.xlane.xlu0 %6188
    %v6190 = vsel %vm153, %v6146, 0.0
    %6191 = vadd.xlane.f32.xlu0 %v6190
    %v6192 = vpop.xlane.xlu0 %6191
    %v6193 = vsel %vm153, %v6147, 0.0
    %6194 = vadd.xlane.f32.xlu0 %v6193
    %v6195 = vpop.xlane.xlu0 %6194
    %v6196 = vsel %vm153, %v6148, 0.0
    %6197 = vadd.xlane.f32.xlu0 %v6196
    %v6198 = vpop.xlane.xlu0 %6197
    %v6199 = vsel %vm153, %v6149, 0.0
    %6200 = vadd.xlane.f32.xlu0 %v6199
    %v6201 = vpop.xlane.xlu0 %6200
    %v6202 = vsel %vm153, %v6150, 0.0
    %6203 = vadd.xlane.f32.xlu0 %v6202
    %v6204 = vpop.xlane.xlu0 %6203
    %v6205 = vmul.f32 %v6153, %v208
    %v6206 = vmul.f32 %v6156, %v208
    %v6207 = vmul.f32 %v6159, %v208
    %v6208 = vmul.f32 %v6162, %v208
    %v6209 = vmul.f32 %v6165, %v208
    %v6210 = vmul.f32 %v6168, %v208
    %v6211 = vmul.f32 %v6171, %v208
    %v6212 = vmul.f32 %v6174, %v208
    %v6213 = vmul.f32 %v6177, %v208
    %v6214 = vmul.f32 %v6180, %v208
    %v6215 = vmul.f32 %v6183, %v208
    %v6216 = vmul.f32 %v6186, %v208
    %v6217 = vmul.f32 %v6189, %v208
    %v6218 = vmul.f32 %v6192, %v208
    %v6219 = vmul.f32 %v6195, %v208
    %v6220 = vmul.f32 %v6198, %v208
    %v6221 = vmul.f32 %v6201, %v208
    %v6222 = vmul.f32 %v6204, %v208
    %v6223 = vadd.f32 %v6205, 1e-05
    %v6224 = vadd.f32 %v6206, 1e-05
    %v6225 = vadd.f32 %v6207, 1e-05
    %v6226 = vadd.f32 %v6208, 1e-05
    %v6227 = vadd.f32 %v6209, 1e-05
    %v6228 = vadd.f32 %v6210, 1e-05
    %v6229 = vadd.f32 %v6211, 1e-05
    %v6230 = vadd.f32 %v6212, 1e-05
    %v6231 = vadd.f32 %v6213, 1e-05
    %v6232 = vadd.f32 %v6214, 1e-05
    %v6233 = vadd.f32 %v6215, 1e-05
    %v6234 = vadd.f32 %v6216, 1e-05
    %v6235 = vadd.f32 %v6217, 1e-05
    %v6236 = vadd.f32 %v6218, 1e-05
    %v6237 = vadd.f32 %v6219, 1e-05
    %v6238 = vadd.f32 %v6220, 1e-05
    %v6239 = vadd.f32 %v6221, 1e-05
    %v6240 = vadd.f32 %v6222, 1e-05
    %v6241 = vrsqrt.pop %v6223
    %v6242 = vrsqrt.pop %v6224
    %v6243 = vrsqrt.pop %v6225
    %v6244 = vrsqrt.pop %v6226
    %v6245 = vrsqrt.pop %v6227
    %v6246 = vrsqrt.pop %v6228
    %v6247 = vrsqrt.pop %v6229
    %v6248 = vrsqrt.pop %v6230
    %v6249 = vrsqrt.pop %v6231
    %v6250 = vrsqrt.pop %v6232
    %v6251 = vrsqrt.pop %v6233
    %v6252 = vrsqrt.pop %v6234
    %v6253 = vrsqrt.pop %v6235
    %v6254 = vrsqrt.pop %v6236
    %v6255 = vrsqrt.pop %v6237
    %v6256 = vrsqrt.pop %v6238
    %v6257 = vrsqrt.pop %v6239
    %v6258 = vrsqrt.pop %v6240
    %v6259 = vmul.f32 %v6115, %v6241
    %v6260 = vmul.f32 %v6116, %v6242
    %v6261 = vmul.f32 %v6117, %v6243
    %v6262 = vmul.f32 %v6118, %v6244
    %v6263 = vmul.f32 %v6119, %v6245
    %v6264 = vmul.f32 %v6120, %v6246
    %v6265 = vmul.f32 %v6121, %v6247
    %v6266 = vmul.f32 %v6122, %v6248
    %v6267 = vmul.f32 %v6123, %v6249
    %v6268 = vmul.f32 %v6124, %v6250
    %v6269 = vmul.f32 %v6125, %v6251
    %v6270 = vmul.f32 %v6126, %v6252
    %v6271 = vmul.f32 %v6127, %v6253
    %v6272 = vmul.f32 %v6128, %v6254
    %v6273 = vmul.f32 %v6129, %v6255
    %v6274 = vmul.f32 %v6130, %v6256
    %v6275 = vmul.f32 %v6131, %v6257
    %v6276 = vmul.f32 %v6132, %v6258
    %v6278 = vlaneseq
    %v6279 = vshrl.u32 %v6278, 7
    %v6280 = vsub.s32 0, %v6279
    %v6281 = vrot.slane %v6040, %v6280
    %v6283 = vmul.f32 %v6259, %v6281
    %v6284 = vmul.f32 %v6260, %v6281
    %v6285 = vmul.f32 %v6261, %v6281
    %v6286 = vmul.f32 %v6262, %v6281
    %v6287 = vmul.f32 %v6263, %v6281
    %v6288 = vmul.f32 %v6264, %v6281
    %v6289 = vmul.f32 %v6265, %v6281
    %v6290 = vmul.f32 %v6266, %v6281
    %v6291 = vmul.f32 %v6267, %v6281
    %v6292 = vmul.f32 %v6268, %v6281
    %v6293 = vmul.f32 %v6269, %v6281
    %v6294 = vmul.f32 %v6270, %v6281
    %v6295 = vmul.f32 %v6271, %v6281
    %v6296 = vmul.f32 %v6272, %v6281
    %v6297 = vmul.f32 %v6273, %v6281
    %v6298 = vmul.f32 %v6274, %v6281
    %v6299 = vmul.f32 %v6275, %v6281
    %v6300 = vmul.f32 %v6276, %v6281
    %v6302 = vlaneseq
    %v6303 = vshrl.u32 %v6302, 7
    %v6304 = vsub.s32 0, %v6303
    %v6305 = vrot.slane %v6042, %v6304
    %v6307 = vadd.f32 %v6283, %v6305
    %v6308 = vadd.f32 %v6284, %v6305
    %v6309 = vadd.f32 %v6285, %v6305
    %v6310 = vadd.f32 %v6286, %v6305
    %v6311 = vadd.f32 %v6287, %v6305
    %v6312 = vadd.f32 %v6288, %v6305
    %v6313 = vadd.f32 %v6289, %v6305
    %v6314 = vadd.f32 %v6290, %v6305
    %v6315 = vadd.f32 %v6291, %v6305
    %v6316 = vadd.f32 %v6292, %v6305
    %v6317 = vadd.f32 %v6293, %v6305
    %v6318 = vadd.f32 %v6294, %v6305
    %v6319 = vadd.f32 %v6295, %v6305
    %v6320 = vadd.f32 %v6296, %v6305
    %v6321 = vadd.f32 %v6297, %v6305
    %v6322 = vadd.f32 %v6298, %v6305
    %v6323 = vadd.f32 %v6299, %v6305
    %v6324 = vadd.f32 %v6300, %v6305
    %v6325 = vpack.c.bf16 %v6308, %v6307
    %v6326 = vpack.c.bf16 %v6310, %v6309
    %v6327 = vpack.c.bf16 %v6312, %v6311
    %v6328 = vpack.c.bf16 %v6314, %v6313
    %v6329 = vpack.c.bf16 %v6316, %v6315
    %v6330 = vpack.c.bf16 %v6318, %v6317
    %v6331 = vpack.c.bf16 %v6320, %v6319
    %v6332 = vpack.c.bf16 %v6322, %v6321
    %v6333 = vpack.c.bf16 %v6324, %v6323
    %s6334 = scalar_lea.vmem %s7, 32
    %v6335 = vld [vmem:[%s6334] sm:$0xff]
    %v6336 = vld [vmem:[%s6334 + $0x8] sm:$0xff]
    %v6337 = vld [vmem:[%s6334 + $0x10] sm:$0xff]
    %v6338 = vld [vmem:[%s6334 + $0x18] sm:$0xff]
    %v6343 = vunpack.c.l.b16 %v6335
    %v6344 = vunpack.c.h.b16 %v6335
    %v6345 = vunpack.c.l.b16 %v6336
    %v6346 = vunpack.c.h.b16 %v6336
    %v6347 = vunpack.c.l.b16 %v6337
    %v6348 = vunpack.c.h.b16 %v6337
    %v6349 = vunpack.c.l.b16 %v6338
    %v6350 = vunpack.c.h.b16 %v6338
    %v6351 = vpack.c.b16 %v6345, %v6343
    %v6352 = vpack.c.b16 %v6346, %v6344
    %v6353 = vpack.c.b16 %v6349, %v6347
    %v6354 = vpack.c.b16 %v6350, %v6348
    %v6360 = vsel %vm153, %v6325, 0
    %v6363 = vsel %vm153, %v6326, 0
    %v6366 = vsel %vm153, %v6327, 0
    %v6369 = vsel %vm153, %v6328, 0
    %v6372 = vsel %vm153, %v6329, 0
    %v6375 = vsel %vm153, %v6330, 0
    %v6378 = vsel %vm153, %v6331, 0
    %v6381 = vsel %vm153, %v6332, 0
    %v6384 = vsel %vm153, %v6333, 0
    %6386 = vmatprep.subr.bf16.mxu0 %v6352
    %6387 = vmatpush1.bf16.msra.mxu0 %v6351
    %6388 = vmatprep.subr.bf16.mxu0 %v6354
    %6389 = vmatpush1.bf16.msra.mxu0 %v6353
    %6390 = vmatprep.subr.bf16.mxu0 0
    %6391 = vmatpush1.bf16.msra.mxu0 0
    %6392 = vmatprep.subr.bf16.mxu0 0
    %6393 = vmatpush1.bf16.msra.mxu0 0
    %6394 = vmatprep.subr.bf16.mxu0 0
    %6395 = vmatpush1.bf16.msra.mxu0 0
    %6396 = vmatprep.subr.bf16.mxu0 0
    %6397 = vmatpush1.bf16.msra.mxu0 0
    %6398 = vmatprep.subr.bf16.mxu0 0
    %6399 = vmatpush1.bf16.msra.mxu0 0
    %6400 = vmatprep.subr.bf16.mxu0 0
    %6401 = vmatpush1.bf16.msra.mxu0 0
    %6402 = vmatprep.subr.bf16.mxu0 0
    %6403 = vmatpush1.bf16.msra.mxu0 0
    %6404 = vmatprep.subr.bf16.mxu0 0
    %6405 = vmatpush1.bf16.msra.mxu0 0
    %6406 = vmatprep.subr.bf16.mxu0 0
    %6407 = vmatpush1.bf16.msra.mxu0 0
    %6408 = vmatprep.subr.bf16.mxu0 0
    %6409 = vmatpush1.bf16.msra.mxu0 0
    %6410 = vmatprep.subr.bf16.mxu0 0
    %6411 = vmatpush1.bf16.msra.mxu0 0
    %6412 = vmatprep.subr.bf16.mxu0 0
    %6413 = vmatpush1.bf16.msra.mxu0 0
    %6414 = vmatprep.subr.bf16.mxu0 0
    %6415 = vmatpush1.bf16.msra.mxu0 0
    %6416 = vmatprep.subr.bf16.mxu0 0
    %6417 = vmatpush1.bf16.msra.mxu0 0
    %6418 = vmatprep.mubr.bf16.mxu0 0
    %6419 = vmatmul.mubr.bf16.gmra.mrb[0].mxu0 %v6360
    %v6420 = vpop.f32.mrb[0].mxu0
    %v6421 = vadd.f32 0.0, %v6420
    %v6422 = vpop.f32.mrb[0].mxu0
    %v6423 = vadd.f32 0.0, %v6422
    %v6424 = vpop.f32.mrb[0].mxu0
    %v6425 = vadd.f32 0.0, %v6424
    %v6426 = vpop.f32.mrb[0].mxu0
    %v6427 = vadd.f32 0.0, %v6426
    %6428 = vmatprep.mubr.bf16.mxu0 0
    %6429 = vmatmul.mubr.bf16.gmra.mrb[0].mxu0 %v6363
    %v6430 = vpop.f32.mrb[0].mxu0
    %v6431 = vadd.f32 0.0, %v6430
    %v6432 = vpop.f32.mrb[0].mxu0
    %v6433 = vadd.f32 0.0, %v6432
    %v6434 = vpop.f32.mrb[0].mxu0
    %v6435 = vadd.f32 0.0, %v6434
    %v6436 = vpop.f32.mrb[0].mxu0
    %v6437 = vadd.f32 0.0, %v6436
    %6438 = vmatprep.mubr.bf16.mxu0 0
    %6439 = vmatmul.mubr.bf16.gmra.mrb[0].mxu0 %v6366
    %v6440 = vpop.f32.mrb[0].mxu0
    %v6441 = vadd.f32 0.0, %v6440
    %v6442 = vpop.f32.mrb[0].mxu0
    %v6443 = vadd.f32 0.0, %v6442
    %v6444 = vpop.f32.mrb[0].mxu0
    %v6445 = vadd.f32 0.0, %v6444
    %v6446 = vpop.f32.mrb[0].mxu0
    %v6447 = vadd.f32 0.0, %v6446
    %6448 = vmatprep.mubr.bf16.mxu0 0
    %6449 = vmatmul.mubr.bf16.gmra.mrb[0].mxu0 %v6369
    %v6450 = vpop.f32.mrb[0].mxu0
    %v6451 = vadd.f32 0.0, %v6450
    %v6452 = vpop.f32.mrb[0].mxu0
    %v6453 = vadd.f32 0.0, %v6452
    %v6454 = vpop.f32.mrb[0].mxu0
    %v6455 = vadd.f32 0.0, %v6454
    %v6456 = vpop.f32.mrb[0].mxu0
    %v6457 = vadd.f32 0.0, %v6456
    %6458 = vmatprep.mubr.bf16.mxu0 0
    %6459 = vmatmul.mubr.bf16.gmra.mrb[0].mxu0 %v6372
    %v6460 = vpop.f32.mrb[0].mxu0
    %v6461 = vadd.f32 0.0, %v6460
    %v6462 = vpop.f32.mrb[0].mxu0
    %v6463 = vadd.f32 0.0, %v6462
    %v6464 = vpop.f32.mrb[0].mxu0
    %v6465 = vadd.f32 0.0, %v6464
    %v6466 = vpop.f32.mrb[0].mxu0
    %v6467 = vadd.f32 0.0, %v6466
    %6468 = vmatprep.mubr.bf16.mxu0 0
    %6469 = vmatmul.mubr.bf16.gmra.mrb[0].mxu0 %v6375
    %v6470 = vpop.f32.mrb[0].mxu0
    %v6471 = vadd.f32 0.0, %v6470
    %v6472 = vpop.f32.mrb[0].mxu0
    %v6473 = vadd.f32 0.0, %v6472
    %v6474 = vpop.f32.mrb[0].mxu0
    %v6475 = vadd.f32 0.0, %v6474
    %v6476 = vpop.f32.mrb[0].mxu0
    %v6477 = vadd.f32 0.0, %v6476
    %6478 = vmatprep.mubr.bf16.mxu0 0
    %6479 = vmatmul.mubr.bf16.gmra.mrb[0].mxu0 %v6378
    %v6480 = vpop.f32.mrb[0].mxu0
    %v6481 = vadd.f32 0.0, %v6480
    %v6482 = vpop.f32.mrb[0].mxu0
    %v6483 = vadd.f32 0.0, %v6482
    %v6484 = vpop.f32.mrb[0].mxu0
    %v6485 = vadd.f32 0.0, %v6484
    %v6486 = vpop.f32.mrb[0].mxu0
    %v6487 = vadd.f32 0.0, %v6486
    %6488 = vmatprep.mubr.bf16.mxu0 0
    %6489 = vmatmul.mubr.bf16.gmra.mrb[0].mxu0 %v6381
    %v6490 = vpop.f32.mrb[0].mxu0
    %v6491 = vadd.f32 0.0, %v6490
    %v6492 = vpop.f32.mrb[0].mxu0
    %v6493 = vadd.f32 0.0, %v6492
    %v6494 = vpop.f32.mrb[0].mxu0
    %v6495 = vadd.f32 0.0, %v6494
    %v6496 = vpop.f32.mrb[0].mxu0
    %v6497 = vadd.f32 0.0, %v6496
    %6498 = vmatprep.mubr.bf16.mxu0 0
    %6499 = vmatmul.mubr.bf16.gmra.mrb[0].mxu0 %v6384
    %v6500 = vpop.f32.mrb[0].mxu0
    %v6501 = vadd.f32 0.0, %v6500
    %v6502 = vpop.f32.mrb[0].mxu0
    %v6503 = vadd.f32 0.0, %v6502
    %v6504 = vpop.f32.mrb[0].mxu0
    %v6505 = vadd.f32 0.0, %v6504
    %v6506 = vpop.f32.mrb[0].mxu0
    %v6507 = vadd.f32 0.0, %v6506
    %6508 = vdwg.mxu0
    %6527 = vrot.lane.b32.xlu0 %v6421, 64
    %v6528 = vpop.permute.xlu0 %6527
    %6529 = vrot.lane.b32.xlu0 %v6425, 64
    %v6530 = vpop.permute.xlu0 %6529
    %6531 = vrot.lane.b32.xlu0 %v6431, 64
    %v6532 = vpop.permute.xlu0 %6531
    %6533 = vrot.lane.b32.xlu0 %v6435, 64
    %v6534 = vpop.permute.xlu0 %6533
    %6535 = vrot.lane.b32.xlu0 %v6441, 64
    %v6536 = vpop.permute.xlu0 %6535
    %6537 = vrot.lane.b32.xlu0 %v6445, 64
    %v6538 = vpop.permute.xlu0 %6537
    %6539 = vrot.lane.b32.xlu0 %v6451, 64
    %v6540 = vpop.permute.xlu0 %6539
    %6541 = vrot.lane.b32.xlu0 %v6455, 64
    %v6542 = vpop.permute.xlu0 %6541
    %6543 = vrot.lane.b32.xlu0 %v6461, 64
    %v6544 = vpop.permute.xlu0 %6543
    %6545 = vrot.lane.b32.xlu0 %v6465, 64
    %v6546 = vpop.permute.xlu0 %6545
    %6547 = vrot.lane.b32.xlu0 %v6471, 64
    %v6548 = vpop.permute.xlu0 %6547
    %6549 = vrot.lane.b32.xlu0 %v6475, 64
    %v6550 = vpop.permute.xlu0 %6549
    %6551 = vrot.lane.b32.xlu0 %v6481, 64
    %v6552 = vpop.permute.xlu0 %6551
    %6553 = vrot.lane.b32.xlu0 %v6485, 64
    %v6554 = vpop.permute.xlu0 %6553
    %6555 = vrot.lane.b32.xlu0 %v6491, 64
    %v6556 = vpop.permute.xlu0 %6555
    %6557 = vrot.lane.b32.xlu0 %v6495, 64
    %v6558 = vpop.permute.xlu0 %6557
    %6559 = vrot.lane.b32.xlu0 %v6501, 64
    %v6560 = vpop.permute.xlu0 %6559
    %6561 = vrot.lane.b32.xlu0 %v6505, 64
    %v6562 = vpop.permute.xlu0 %6561
    %v6563 = vsel %vm674, %v6421, 0
    %v6565 = vsel %vm674, %v6425, 0
    %v6567 = vsel %vm674, %v6431, 0
    %v6569 = vsel %vm674, %v6435, 0
    %v6571 = vsel %vm674, %v6441, 0
    %v6573 = vsel %vm674, %v6445, 0
    %v6575 = vsel %vm674, %v6451, 0
    %v6577 = vsel %vm674, %v6455, 0
    %v6579 = vsel %vm674, %v6461, 0
    %v6581 = vsel %vm674, %v6465, 0
    %v6583 = vsel %vm674, %v6471, 0
    %v6585 = vsel %vm674, %v6475, 0
    %v6587 = vsel %vm674, %v6481, 0
    %v6589 = vsel %vm674, %v6485, 0
    %v6591 = vsel %vm674, %v6491, 0
    %v6593 = vsel %vm674, %v6495, 0
    %v6595 = vsel %vm674, %v6501, 0
    %v6597 = vsel %vm674, %v6505, 0
    %v6599 = vsel %vm674, %v6528, 0
    %v6601 = vsel %vm674, %v6530, 0
    %v6603 = vsel %vm674, %v6532, 0
    %v6605 = vsel %vm674, %v6534, 0
    %v6607 = vsel %vm674, %v6536, 0
    %v6609 = vsel %vm674, %v6538, 0
    %v6611 = vsel %vm674, %v6540, 0
    %v6613 = vsel %vm674, %v6542, 0
    %v6615 = vsel %vm674, %v6544, 0
    %v6617 = vsel %vm674, %v6546, 0
    %v6619 = vsel %vm674, %v6548, 0
    %v6621 = vsel %vm674, %v6550, 0
    %v6623 = vsel %vm674, %v6552, 0
    %v6625 = vsel %vm674, %v6554, 0
    %v6627 = vsel %vm674, %v6556, 0
    %v6629 = vsel %vm674, %v6558, 0
    %v6631 = vsel %vm674, %v6560, 0
    %v6633 = vsel %vm674, %v6562, 0
    %6635 = vmatprep.subr.mxu0 0.0
    %6636 = vmatpush1.xpose.msra.mxu0 %v6599
    %6637 = vmatprep.subr.mxu0 0.0
    %6638 = vmatpush1.xpose.msra.mxu0 %v6601
    %6639 = vmatprep.subr.mxu0 0.0
    %6640 = vmatpush1.xpose.msra.mxu0 %v6603
    %6641 = vmatprep.subr.mxu0 0.0
    %6642 = vmatpush1.xpose.msra.mxu0 %v6605
    %6643 = vmatprep.subr.mxu0 0.0
    %6644 = vmatpush1.xpose.msra.mxu0 %v6607
    %6645 = vmatprep.subr.mxu0 0.0
    %6646 = vmatpush1.xpose.msra.mxu0 %v6609
    %6647 = vmatprep.subr.mxu0 0.0
    %6648 = vmatpush1.xpose.msra.mxu0 %v6611
    %6649 = vmatprep.subr.mxu0 0.0
    %6650 = vmatpush1.xpose.msra.mxu0 %v6613
    %6651 = vmatprep.subr.mxu0 0.0
    %6652 = vmatpush1.xpose.msra.mxu0 %v6615
    %6653 = vmatprep.subr.mxu0 0.0
    %6654 = vmatpush1.xpose.msra.mxu0 %v6617
    %6655 = vmatprep.subr.mxu0 0.0
    %6656 = vmatpush1.xpose.msra.mxu0 %v6619
    %6657 = vmatprep.subr.mxu0 0.0
    %6658 = vmatpush1.xpose.msra.mxu0 %v6621
    %6659 = vmatprep.subr.mxu0 0.0
    %6660 = vmatpush1.xpose.msra.mxu0 %v6623
    %6661 = vmatprep.subr.mxu0 0.0
    %6662 = vmatpush1.xpose.msra.mxu0 %v6625
    %6663 = vmatprep.subr.mxu0 0.0
    %6664 = vmatpush1.xpose.msra.mxu0 %v6627
    %6665 = vmatprep.subr.mxu0 0.0
    %6666 = vmatpush1.xpose.msra.mxu0 %v6629
    %6667 = vmatprep.subr.mxu0 0.0
    %6668 = vmatpush1.xpose.msra.mxu0 %v6631
    %6669 = vmatprep.subr.mxu0 0.0
    %6670 = vmatpush1.xpose.msra.mxu0 %v6633
    %6671 = vmatprep.subr.mxu0 0.0
    %6672 = vmatpush1.xpose.msra.mxu0 0.0
    %6673 = vmatprep.subr.mxu0 0.0
    %6674 = vmatpush1.xpose.msra.mxu0 0.0
    %6675 = vmatprep.subr.mxu0 0.0
    %6676 = vmatpush1.xpose.msra.mxu0 0.0
    %6677 = vmatprep.subr.mxu0 0.0
    %6678 = vmatpush1.xpose.msra.mxu0 0.0
    %6679 = vmatprep.subr.mxu0 0.0
    %6680 = vmatpush1.xpose.msra.mxu0 0.0
    %6681 = vmatprep.subr.mxu0 0.0
    %6682 = vmatpush1.xpose.msra.mxu0 0.0
    %6683 = vmatprep.subr.mxu0 0.0
    %6684 = vmatpush1.xpose.msra.mxu0 0.0
    %6685 = vmatprep.subr.mxu0 0.0
    %6686 = vmatpush1.xpose.msra.mxu0 0.0
    %6687 = vmatprep.subr.mxu0 0.0
    %6688 = vmatpush1.xpose.msra.mxu0 0.0
    %6689 = vmatprep.subr.mxu0 0.0
    %6690 = vmatpush1.xpose.msra.mxu0 0.0
    %6691 = vmatprep.subr.mxu0 0.0
    %6692 = vmatpush1.xpose.msra.mxu0 0.0
    %6693 = vmatprep.subr.mxu0 0.0
    %6694 = vmatpush1.xpose.msra.mxu0 0.0
    %6695 = vmatprep.subr.mxu0 0.0
    %6696 = vmatpush1.xpose.msra.mxu0 0.0
    %6697 = vmatprep.subr.mxu0 0.0
    %6698 = vmatpush1.xpose.msra.mxu0 0.0
    %6699 = vmatprep.mubr.f32.mxu0 0.0
    %6700 = vmatmul.mubr.f32.gmra.mrb[0].mxu0 %v6563
    %v6701 = vpop.f32.mrb[0].mxu0
    %v6702 = vadd.f32 0.0, %v6701
    %v6703 = vpop.f32.mrb[0].mxu0
    %v6704 = vadd.f32 0.0, %v6703
    %6705 = vmatprep.mubr.f32.mxu0 0.0
    %6706 = vmatmul.mubr.f32.gmra.mrb[0].mxu0 %v6565
    %v6707 = vpop.f32.mrb[0].mxu0
    %v6708 = vadd.f32 0.0, %v6707
    %v6709 = vpop.f32.mrb[0].mxu0
    %v6710 = vadd.f32 0.0, %v6709
    %6711 = vmatprep.mubr.f32.mxu0 0.0
    %6712 = vmatmul.mubr.f32.gmra.mrb[0].mxu0 %v6567
    %v6713 = vpop.f32.mrb[0].mxu0
    %v6714 = vadd.f32 0.0, %v6713
    %v6715 = vpop.f32.mrb[0].mxu0
    %v6716 = vadd.f32 0.0, %v6715
    %6717 = vmatprep.mubr.f32.mxu0 0.0
    %6718 = vmatmul.mubr.f32.gmra.mrb[0].mxu0 %v6569
    %v6719 = vpop.f32.mrb[0].mxu0
    %v6720 = vadd.f32 0.0, %v6719
    %v6721 = vpop.f32.mrb[0].mxu0
    %v6722 = vadd.f32 0.0, %v6721
    %6723 = vmatprep.mubr.f32.mxu0 0.0
    %6724 = vmatmul.mubr.f32.gmra.mrb[0].mxu0 %v6571
    %v6725 = vpop.f32.mrb[0].mxu0
    %v6726 = vadd.f32 0.0, %v6725
    %v6727 = vpop.f32.mrb[0].mxu0
    %v6728 = vadd.f32 0.0, %v6727
    %6729 = vmatprep.mubr.f32.mxu0 0.0
    %6730 = vmatmul.mubr.f32.gmra.mrb[0].mxu0 %v6573
    %v6731 = vpop.f32.mrb[0].mxu0
    %v6732 = vadd.f32 0.0, %v6731
    %v6733 = vpop.f32.mrb[0].mxu0
    %v6734 = vadd.f32 0.0, %v6733
    %6735 = vmatprep.mubr.f32.mxu0 0.0
    %6736 = vmatmul.mubr.f32.gmra.mrb[0].mxu0 %v6575
    %v6737 = vpop.f32.mrb[0].mxu0
    %v6738 = vadd.f32 0.0, %v6737
    %v6739 = vpop.f32.mrb[0].mxu0
    %v6740 = vadd.f32 0.0, %v6739
    %6741 = vmatprep.mubr.f32.mxu0 0.0
    %6742 = vmatmul.mubr.f32.gmra.mrb[0].mxu0 %v6577
    %v6743 = vpop.f32.mrb[0].mxu0
    %v6744 = vadd.f32 0.0, %v6743
    %v6745 = vpop.f32.mrb[0].mxu0
    %v6746 = vadd.f32 0.0, %v6745
    %6747 = vmatprep.mubr.f32.mxu0 0.0
    %6748 = vmatmul.mubr.f32.gmra.mrb[0].mxu0 %v6579
    %v6749 = vpop.f32.mrb[0].mxu0
    %v6750 = vadd.f32 0.0, %v6749
    %v6751 = vpop.f32.mrb[0].mxu0
    %v6752 = vadd.f32 0.0, %v6751
    %6753 = vmatprep.mubr.f32.mxu0 0.0
    %6754 = vmatmul.mubr.f32.gmra.mrb[0].mxu0 %v6581
    %v6755 = vpop.f32.mrb[0].mxu0
    %v6756 = vadd.f32 0.0, %v6755
    %v6757 = vpop.f32.mrb[0].mxu0
    %v6758 = vadd.f32 0.0, %v6757
    %6759 = vmatprep.mubr.f32.mxu0 0.0
    %6760 = vmatmul.mubr.f32.gmra.mrb[0].mxu0 %v6583
    %v6761 = vpop.f32.mrb[0].mxu0
    %v6762 = vadd.f32 0.0, %v6761
    %v6763 = vpop.f32.mrb[0].mxu0
    %v6764 = vadd.f32 0.0, %v6763
    %6765 = vmatprep.mubr.f32.mxu0 0.0
    %6766 = vmatmul.mubr.f32.gmra.mrb[0].mxu0 %v6585
    %v6767 = vpop.f32.mrb[0].mxu0
    %v6768 = vadd.f32 0.0, %v6767
    %v6769 = vpop.f32.mrb[0].mxu0
    %v6770 = vadd.f32 0.0, %v6769
    %6771 = vmatprep.mubr.f32.mxu0 0.0
    %6772 = vmatmul.mubr.f32.gmra.mrb[0].mxu0 %v6587
    %v6773 = vpop.f32.mrb[0].mxu0
    %v6774 = vadd.f32 0.0, %v6773
    %v6775 = vpop.f32.mrb[0].mxu0
    %v6776 = vadd.f32 0.0, %v6775
    %6777 = vmatprep.mubr.f32.mxu0 0.0
    %6778 = vmatmul.mubr.f32.gmra.mrb[0].mxu0 %v6589
    %v6779 = vpop.f32.mrb[0].mxu0
    %v6780 = vadd.f32 0.0, %v6779
    %v6781 = vpop.f32.mrb[0].mxu0
    %v6782 = vadd.f32 0.0, %v6781
    %6783 = vmatprep.mubr.f32.mxu0 0.0
    %6784 = vmatmul.mubr.f32.gmra.mrb[0].mxu0 %v6591
    %v6785 = vpop.f32.mrb[0].mxu0
    %v6786 = vadd.f32 0.0, %v6785
    %v6787 = vpop.f32.mrb[0].mxu0
    %v6788 = vadd.f32 0.0, %v6787
    %6789 = vmatprep.mubr.f32.mxu0 0.0
    %6790 = vmatmul.mubr.f32.gmra.mrb[0].mxu0 %v6593
    %v6791 = vpop.f32.mrb[0].mxu0
    %v6792 = vadd.f32 0.0, %v6791
    %v6793 = vpop.f32.mrb[0].mxu0
    %v6794 = vadd.f32 0.0, %v6793
    %6795 = vmatprep.mubr.f32.mxu0 0.0
    %6796 = vmatmul.mubr.f32.gmra.mrb[0].mxu0 %v6595
    %v6797 = vpop.f32.mrb[0].mxu0
    %v6798 = vadd.f32 0.0, %v6797
    %v6799 = vpop.f32.mrb[0].mxu0
    %v6800 = vadd.f32 0.0, %v6799
    %6801 = vmatprep.mubr.f32.mxu0 0.0
    %6802 = vmatmul.mubr.f32.gmra.mrb[0].mxu0 %v6597
    %v6803 = vpop.f32.mrb[0].mxu0
    %v6804 = vadd.f32 0.0, %v6803
    %v6805 = vpop.f32.mrb[0].mxu0
    %v6806 = vadd.f32 0.0, %v6805
    %6807 = vdwg.mxu0
    %v6808 = vmul.f32 %v6702, 0.25
    %v6809 = vmul.f32 %v6704, 0.25
    %v6810 = vmul.f32 %v6708, 0.25
    %v6811 = vmul.f32 %v6710, 0.25
    %v6812 = vmul.f32 %v6714, 0.25
    %v6813 = vmul.f32 %v6716, 0.25
    %v6814 = vmul.f32 %v6720, 0.25
    %v6815 = vmul.f32 %v6722, 0.25
    %v6816 = vmul.f32 %v6726, 0.25
    %v6817 = vmul.f32 %v6728, 0.25
    %v6818 = vmul.f32 %v6732, 0.25
    %v6819 = vmul.f32 %v6734, 0.25
    %v6820 = vmul.f32 %v6738, 0.25
    %v6821 = vmul.f32 %v6740, 0.25
    %v6822 = vmul.f32 %v6744, 0.25
    %v6823 = vmul.f32 %v6746, 0.25
    %v6824 = vmul.f32 %v6750, 0.25
    %v6825 = vmul.f32 %v6752, 0.25
    %v6826 = vmul.f32 %v6756, 0.25
    %v6827 = vmul.f32 %v6758, 0.25
    %v6828 = vmul.f32 %v6762, 0.25
    %v6829 = vmul.f32 %v6764, 0.25
    %v6830 = vmul.f32 %v6768, 0.25
    %v6831 = vmul.f32 %v6770, 0.25
    %v6832 = vmul.f32 %v6774, 0.25
    %v6833 = vmul.f32 %v6776, 0.25
    %v6834 = vmul.f32 %v6780, 0.25
    %v6835 = vmul.f32 %v6782, 0.25
    %v6836 = vmul.f32 %v6786, 0.25
    %v6837 = vmul.f32 %v6788, 0.25
    %v6838 = vmul.f32 %v6792, 0.25
    %v6839 = vmul.f32 %v6794, 0.25
    %v6840 = vmul.f32 %v6798, 0.25
    %v6841 = vmul.f32 %v6800, 0.25
    %v6842 = vmul.f32 %v6804, 0.25
    %v6843 = vmul.f32 %v6806, 0.25
    %v6844 = vadd.f32 %v6808, %v97
    %v6845 = vadd.f32 %v6809, %v98
    %v6846 = vadd.f32 %v6810, %v99
    %v6847 = vadd.f32 %v6811, %v100
    %v6848 = vadd.f32 %v6812, %v101
    %v6849 = vadd.f32 %v6813, %v102
    %v6850 = vadd.f32 %v6814, %v103
    %v6851 = vadd.f32 %v6815, %v104
    %v6852 = vadd.f32 %v6816, %v105
    %v6853 = vadd.f32 %v6817, %v106
    %v6854 = vadd.f32 %v6818, %v107
    %v6855 = vadd.f32 %v6819, %v108
    %v6856 = vadd.f32 %v6820, %v109
    %v6857 = vadd.f32 %v6821, %v110
    %v6858 = vadd.f32 %v6822, %v111
    %v6859 = vadd.f32 %v6823, %v112
    %v6860 = vadd.f32 %v6824, %v113
    %v6861 = vadd.f32 %v6825, %v114
    %v6862 = vadd.f32 %v6826, %v115
    %v6863 = vadd.f32 %v6827, %v116
    %v6864 = vadd.f32 %v6828, %v117
    %v6865 = vadd.f32 %v6829, %v118
    %v6866 = vadd.f32 %v6830, %v119
    %v6867 = vadd.f32 %v6831, %v120
    %v6868 = vadd.f32 %v6832, %v121
    %v6869 = vadd.f32 %v6833, %v122
    %v6870 = vadd.f32 %v6834, %v123
    %v6871 = vadd.f32 %v6835, %v124
    %v6872 = vadd.f32 %v6836, %v125
    %v6873 = vadd.f32 %v6837, %v126
    %v6874 = vadd.f32 %v6838, %v127
    %v6875 = vadd.f32 %v6839, %v128
    %v6876 = vadd.f32 %v6840, %v129
    %v6877 = vadd.f32 %v6841, %v130
    %v6878 = vadd.f32 %v6842, %v131
    %v6879 = vadd.f32 %v6843, %v132
    %v6880 = vsel %vm674, %v6845, -inf
    %v6881 = vmax.f32 %v6844, %v6880
    %6882 = vmax.xlane.f32.xlu0 %v6881
    %v6883 = vpop.xlane.xlu0 %6882
    %v6884 = vsel %vm674, %v6847, -inf
    %v6885 = vmax.f32 %v6846, %v6884
    %6886 = vmax.xlane.f32.xlu0 %v6885
    %v6887 = vpop.xlane.xlu0 %6886
    %v6888 = vsel %vm674, %v6849, -inf
    %v6889 = vmax.f32 %v6848, %v6888
    %6890 = vmax.xlane.f32.xlu0 %v6889
    %v6891 = vpop.xlane.xlu0 %6890
    %v6892 = vsel %vm674, %v6851, -inf
    %v6893 = vmax.f32 %v6850, %v6892
    %6894 = vmax.xlane.f32.xlu0 %v6893
    %v6895 = vpop.xlane.xlu0 %6894
    %v6896 = vsel %vm674, %v6853, -inf
    %v6897 = vmax.f32 %v6852, %v6896
    %6898 = vmax.xlane.f32.xlu0 %v6897
    %v6899 = vpop.xlane.xlu0 %6898
    %v6900 = vsel %vm674, %v6855, -inf
    %v6901 = vmax.f32 %v6854, %v6900
    %6902 = vmax.xlane.f32.xlu0 %v6901
    %v6903 = vpop.xlane.xlu0 %6902
    %v6904 = vsel %vm674, %v6857, -inf
    %v6905 = vmax.f32 %v6856, %v6904
    %6906 = vmax.xlane.f32.xlu0 %v6905
    %v6907 = vpop.xlane.xlu0 %6906
    %v6908 = vsel %vm674, %v6859, -inf
    %v6909 = vmax.f32 %v6858, %v6908
    %6910 = vmax.xlane.f32.xlu0 %v6909
    %v6911 = vpop.xlane.xlu0 %6910
    %v6912 = vsel %vm674, %v6861, -inf
    %v6913 = vmax.f32 %v6860, %v6912
    %6914 = vmax.xlane.f32.xlu0 %v6913
    %v6915 = vpop.xlane.xlu0 %6914
    %v6916 = vsel %vm674, %v6863, -inf
    %v6917 = vmax.f32 %v6862, %v6916
    %6918 = vmax.xlane.f32.xlu0 %v6917
    %v6919 = vpop.xlane.xlu0 %6918
    %v6920 = vsel %vm674, %v6865, -inf
    %v6921 = vmax.f32 %v6864, %v6920
    %6922 = vmax.xlane.f32.xlu0 %v6921
    %v6923 = vpop.xlane.xlu0 %6922
    %v6924 = vsel %vm674, %v6867, -inf
    %v6925 = vmax.f32 %v6866, %v6924
    %6926 = vmax.xlane.f32.xlu0 %v6925
    %v6927 = vpop.xlane.xlu0 %6926
    %v6928 = vsel %vm674, %v6869, -inf
    %v6929 = vmax.f32 %v6868, %v6928
    %6930 = vmax.xlane.f32.xlu0 %v6929
    %v6931 = vpop.xlane.xlu0 %6930
    %v6932 = vsel %vm674, %v6871, -inf
    %v6933 = vmax.f32 %v6870, %v6932
    %6934 = vmax.xlane.f32.xlu0 %v6933
    %v6935 = vpop.xlane.xlu0 %6934
    %v6936 = vsel %vm674, %v6873, -inf
    %v6937 = vmax.f32 %v6872, %v6936
    %6938 = vmax.xlane.f32.xlu0 %v6937
    %v6939 = vpop.xlane.xlu0 %6938
    %v6940 = vsel %vm674, %v6875, -inf
    %v6941 = vmax.f32 %v6874, %v6940
    %6942 = vmax.xlane.f32.xlu0 %v6941
    %v6943 = vpop.xlane.xlu0 %6942
    %v6944 = vsel %vm674, %v6877, -inf
    %v6945 = vmax.f32 %v6876, %v6944
    %6946 = vmax.xlane.f32.xlu0 %v6945
    %v6947 = vpop.xlane.xlu0 %6946
    %v6948 = vsel %vm674, %v6879, -inf
    %v6949 = vmax.f32 %v6878, %v6948
    %6950 = vmax.xlane.f32.xlu0 %v6949
    %v6951 = vpop.xlane.xlu0 %6950
    %v6952 = vsub.f32 %v6844, %v6883
    %v6953 = vsub.f32 %v6845, %v6883
    %v6954 = vsub.f32 %v6846, %v6887
    %v6955 = vsub.f32 %v6847, %v6887
    %v6956 = vsub.f32 %v6848, %v6891
    %v6957 = vsub.f32 %v6849, %v6891
    %v6958 = vsub.f32 %v6850, %v6895
    %v6959 = vsub.f32 %v6851, %v6895
    %v6960 = vsub.f32 %v6852, %v6899
    %v6961 = vsub.f32 %v6853, %v6899
    %v6962 = vsub.f32 %v6854, %v6903
    %v6963 = vsub.f32 %v6855, %v6903
    %v6964 = vsub.f32 %v6856, %v6907
    %v6965 = vsub.f32 %v6857, %v6907
    %v6966 = vsub.f32 %v6858, %v6911
    %v6967 = vsub.f32 %v6859, %v6911
    %v6968 = vsub.f32 %v6860, %v6915
    %v6969 = vsub.f32 %v6861, %v6915
    %v6970 = vsub.f32 %v6862, %v6919
    %v6971 = vsub.f32 %v6863, %v6919
    %v6972 = vsub.f32 %v6864, %v6923
    %v6973 = vsub.f32 %v6865, %v6923
    %v6974 = vsub.f32 %v6866, %v6927
    %v6975 = vsub.f32 %v6867, %v6927
    %v6976 = vsub.f32 %v6868, %v6931
    %v6977 = vsub.f32 %v6869, %v6931
    %v6978 = vsub.f32 %v6870, %v6935
    %v6979 = vsub.f32 %v6871, %v6935
    %v6980 = vsub.f32 %v6872, %v6939
    %v6981 = vsub.f32 %v6873, %v6939
    %v6982 = vsub.f32 %v6874, %v6943
    %v6983 = vsub.f32 %v6875, %v6943
    %v6984 = vsub.f32 %v6876, %v6947
    %v6985 = vsub.f32 %v6877, %v6947
    %v6986 = vsub.f32 %v6878, %v6951
    %v6987 = vsub.f32 %v6879, %v6951
    %v6988 = vmul.f32 %v6952, 1.442695
    %v6989 = vpow.pop %v6988
    %v6990 = vmul.f32 %v6953, 1.442695
    %v6991 = vpow.pop %v6990
    %v6992 = vmul.f32 %v6954, 1.442695
    %v6993 = vpow.pop %v6992
    %v6994 = vmul.f32 %v6955, 1.442695
    %v6995 = vpow.pop %v6994
    %v6996 = vmul.f32 %v6956, 1.442695
    %v6997 = vpow.pop %v6996
    %v6998 = vmul.f32 %v6957, 1.442695
    %v6999 = vpow.pop %v6998
    %v7000 = vmul.f32 %v6958, 1.442695
    %v7001 = vpow.pop %v7000
    %v7002 = vmul.f32 %v6959, 1.442695
    %v7003 = vpow.pop %v7002
    %v7004 = vmul.f32 %v6960, 1.442695
    %v7005 = vpow.pop %v7004
    %v7006 = vmul.f32 %v6961, 1.442695
    %v7007 = vpow.pop %v7006
    %v7008 = vmul.f32 %v6962, 1.442695
    %v7009 = vpow.pop %v7008
    %v7010 = vmul.f32 %v6963, 1.442695
    %v7011 = vpow.pop %v7010
    %v7012 = vmul.f32 %v6964, 1.442695
    %v7013 = vpow.pop %v7012
    %v7014 = vmul.f32 %v6965, 1.442695
    %v7015 = vpow.pop %v7014
    %v7016 = vmul.f32 %v6966, 1.442695
    %v7017 = vpow.pop %v7016
    %v7018 = vmul.f32 %v6967, 1.442695
    %v7019 = vpow.pop %v7018
    %v7020 = vmul.f32 %v6968, 1.442695
    %v7021 = vpow.pop %v7020
    %v7022 = vmul.f32 %v6969, 1.442695
    %v7023 = vpow.pop %v7022
    %v7024 = vmul.f32 %v6970, 1.442695
    %v7025 = vpow.pop %v7024
    %v7026 = vmul.f32 %v6971, 1.442695
    %v7027 = vpow.pop %v7026
    %v7028 = vmul.f32 %v6972, 1.442695
    %v7029 = vpow.pop %v7028
    %v7030 = vmul.f32 %v6973, 1.442695
    %v7031 = vpow.pop %v7030
    %v7032 = vmul.f32 %v6974, 1.442695
    %v7033 = vpow.pop %v7032
    %v7034 = vmul.f32 %v6975, 1.442695
    %v7035 = vpow.pop %v7034
    %v7036 = vmul.f32 %v6976, 1.442695
    %v7037 = vpow.pop %v7036
    %v7038 = vmul.f32 %v6977, 1.442695
    %v7039 = vpow.pop %v7038
    %v7040 = vmul.f32 %v6978, 1.442695
    %v7041 = vpow.pop %v7040
    %v7042 = vmul.f32 %v6979, 1.442695
    %v7043 = vpow.pop %v7042
    %v7044 = vmul.f32 %v6980, 1.442695
    %v7045 = vpow.pop %v7044
    %v7046 = vmul.f32 %v6981, 1.442695
    %v7047 = vpow.pop %v7046
    %v7048 = vmul.f32 %v6982, 1.442695
    %v7049 = vpow.pop %v7048
    %v7050 = vmul.f32 %v6983, 1.442695
    %v7051 = vpow.pop %v7050
    %v7052 = vmul.f32 %v6984, 1.442695
    %v7053 = vpow.pop %v7052
    %v7054 = vmul.f32 %v6985, 1.442695
    %v7055 = vpow.pop %v7054
    %v7056 = vmul.f32 %v6986, 1.442695
    %v7057 = vpow.pop %v7056
    %v7058 = vmul.f32 %v6987, 1.442695
    %v7059 = vpow.pop %v7058
    %v7060 = vsel %vm674, %v6991, 0.0
    %v7061 = vadd.f32 %v6989, %v7060
    %7062 = vadd.xlane.f32.xlu0 %v7061
    %v7063 = vpop.xlane.xlu0 %7062
    %v7064 = vsel %vm674, %v6995, 0.0
    %v7065 = vadd.f32 %v6993, %v7064
    %7066 = vadd.xlane.f32.xlu0 %v7065
    %v7067 = vpop.xlane.xlu0 %7066
    %v7068 = vsel %vm674, %v6999, 0.0
    %v7069 = vadd.f32 %v6997, %v7068
    %7070 = vadd.xlane.f32.xlu0 %v7069
    %v7071 = vpop.xlane.xlu0 %7070
    %v7072 = vsel %vm674, %v7003, 0.0
    %v7073 = vadd.f32 %v7001, %v7072
    %7074 = vadd.xlane.f32.xlu0 %v7073
    %v7075 = vpop.xlane.xlu0 %7074
    %v7076 = vsel %vm674, %v7007, 0.0
    %v7077 = vadd.f32 %v7005, %v7076
    %7078 = vadd.xlane.f32.xlu0 %v7077
    %v7079 = vpop.xlane.xlu0 %7078
    %v7080 = vsel %vm674, %v7011, 0.0
    %v7081 = vadd.f32 %v7009, %v7080
    %7082 = vadd.xlane.f32.xlu0 %v7081
    %v7083 = vpop.xlane.xlu0 %7082
    %v7084 = vsel %vm674, %v7015, 0.0
    %v7085 = vadd.f32 %v7013, %v7084
    %7086 = vadd.xlane.f32.xlu0 %v7085
    %v7087 = vpop.xlane.xlu0 %7086
    %v7088 = vsel %vm674, %v7019, 0.0
    %v7089 = vadd.f32 %v7017, %v7088
    %7090 = vadd.xlane.f32.xlu0 %v7089
    %v7091 = vpop.xlane.xlu0 %7090
    %v7092 = vsel %vm674, %v7023, 0.0
    %v7093 = vadd.f32 %v7021, %v7092
    %7094 = vadd.xlane.f32.xlu0 %v7093
    %v7095 = vpop.xlane.xlu0 %7094
    %v7096 = vsel %vm674, %v7027, 0.0
    %v7097 = vadd.f32 %v7025, %v7096
    %7098 = vadd.xlane.f32.xlu0 %v7097
    %v7099 = vpop.xlane.xlu0 %7098
    %v7100 = vsel %vm674, %v7031, 0.0
    %v7101 = vadd.f32 %v7029, %v7100
    %7102 = vadd.xlane.f32.xlu0 %v7101
    %v7103 = vpop.xlane.xlu0 %7102
    %v7104 = vsel %vm674, %v7035, 0.0
    %v7105 = vadd.f32 %v7033, %v7104
    %7106 = vadd.xlane.f32.xlu0 %v7105
    %v7107 = vpop.xlane.xlu0 %7106
    %v7108 = vsel %vm674, %v7039, 0.0
    %v7109 = vadd.f32 %v7037, %v7108
    %7110 = vadd.xlane.f32.xlu0 %v7109
    %v7111 = vpop.xlane.xlu0 %7110
    %v7112 = vsel %vm674, %v7043, 0.0
    %v7113 = vadd.f32 %v7041, %v7112
    %7114 = vadd.xlane.f32.xlu0 %v7113
    %v7115 = vpop.xlane.xlu0 %7114
    %v7116 = vsel %vm674, %v7047, 0.0
    %v7117 = vadd.f32 %v7045, %v7116
    %7118 = vadd.xlane.f32.xlu0 %v7117
    %v7119 = vpop.xlane.xlu0 %7118
    %v7120 = vsel %vm674, %v7051, 0.0
    %v7121 = vadd.f32 %v7049, %v7120
    %7122 = vadd.xlane.f32.xlu0 %v7121
    %v7123 = vpop.xlane.xlu0 %7122
    %v7124 = vsel %vm674, %v7055, 0.0
    %v7125 = vadd.f32 %v7053, %v7124
    %7126 = vadd.xlane.f32.xlu0 %v7125
    %v7127 = vpop.xlane.xlu0 %7126
    %v7128 = vsel %vm674, %v7059, 0.0
    %v7129 = vadd.f32 %v7057, %v7128
    %7130 = vadd.xlane.f32.xlu0 %v7129
    %v7131 = vpop.xlane.xlu0 %7130
    %v7132 = vrcp.pop %v7063
    %v7133 = vrcp.pop %v7067
    %v7134 = vrcp.pop %v7071
    %v7135 = vrcp.pop %v7075
    %v7136 = vrcp.pop %v7079
    %v7137 = vrcp.pop %v7083
    %v7138 = vrcp.pop %v7087
    %v7139 = vrcp.pop %v7091
    %v7140 = vrcp.pop %v7095
    %v7141 = vrcp.pop %v7099
    %v7142 = vrcp.pop %v7103
    %v7143 = vrcp.pop %v7107
    %v7144 = vrcp.pop %v7111
    %v7145 = vrcp.pop %v7115
    %v7146 = vrcp.pop %v7119
    %v7147 = vrcp.pop %v7123
    %v7148 = vrcp.pop %v7127
    %v7149 = vrcp.pop %v7131
    %v7150 = vmul.f32 %v6989, %v7132
    %v7151 = vmul.f32 %v6991, %v7132
    %v7152 = vmul.f32 %v6993, %v7133
    %v7153 = vmul.f32 %v6995, %v7133
    %v7154 = vmul.f32 %v6997, %v7134
    %v7155 = vmul.f32 %v6999, %v7134
    %v7156 = vmul.f32 %v7001, %v7135
    %v7157 = vmul.f32 %v7003, %v7135
    %v7158 = vmul.f32 %v7005, %v7136
    %v7159 = vmul.f32 %v7007, %v7136
    %v7160 = vmul.f32 %v7009, %v7137
    %v7161 = vmul.f32 %v7011, %v7137
    %v7162 = vmul.f32 %v7013, %v7138
    %v7163 = vmul.f32 %v7015, %v7138
    %v7164 = vmul.f32 %v7017, %v7139
    %v7165 = vmul.f32 %v7019, %v7139
    %v7166 = vmul.f32 %v7021, %v7140
    %v7167 = vmul.f32 %v7023, %v7140
    %v7168 = vmul.f32 %v7025, %v7141
    %v7169 = vmul.f32 %v7027, %v7141
    %v7170 = vmul.f32 %v7029, %v7142
    %v7171 = vmul.f32 %v7031, %v7142
    %v7172 = vmul.f32 %v7033, %v7143
    %v7173 = vmul.f32 %v7035, %v7143
    %v7174 = vmul.f32 %v7037, %v7144
    %v7175 = vmul.f32 %v7039, %v7144
    %v7176 = vmul.f32 %v7041, %v7145
    %v7177 = vmul.f32 %v7043, %v7145
    %v7178 = vmul.f32 %v7045, %v7146
    %v7179 = vmul.f32 %v7047, %v7146
    %v7180 = vmul.f32 %v7049, %v7147
    %v7181 = vmul.f32 %v7051, %v7147
    %v7182 = vmul.f32 %v7053, %v7148
    %v7183 = vmul.f32 %v7055, %v7148
    %v7184 = vmul.f32 %v7057, %v7149
    %v7185 = vmul.f32 %v7059, %v7149
    %v7187 = vsel %vm674, %v7151, 0
    %v7190 = vsel %vm674, %v7153, 0
    %v7193 = vsel %vm674, %v7155, 0
    %v7196 = vsel %vm674, %v7157, 0
    %v7199 = vsel %vm674, %v7159, 0
    %v7202 = vsel %vm674, %v7161, 0
    %v7205 = vsel %vm674, %v7163, 0
    %v7208 = vsel %vm674, %v7165, 0
    %v7211 = vsel %vm674, %v7167, 0
    %v7214 = vsel %vm674, %v7169, 0
    %v7217 = vsel %vm674, %v7171, 0
    %v7220 = vsel %vm674, %v7173, 0
    %v7223 = vsel %vm674, %v7175, 0
    %v7226 = vsel %vm674, %v7177, 0
    %v7229 = vsel %vm674, %v7179, 0
    %v7232 = vsel %vm674, %v7181, 0
    %v7235 = vsel %vm674, %v7183, 0
    %v7238 = vsel %vm674, %v7185, 0
    %7240 = vmatprep.subr.mxu0 0.0
    %7241 = vmatpush1.msra.mxu0 %v6423
    %7242 = vmatprep.subr.mxu0 0.0
    %7243 = vmatpush1.msra.mxu0 %v6427
    %7244 = vmatprep.subr.mxu0 0.0
    %7245 = vmatpush1.msra.mxu0 %v6433
    %7246 = vmatprep.subr.mxu0 0.0
    %7247 = vmatpush1.msra.mxu0 %v6437
    %7248 = vmatprep.subr.mxu0 0.0
    %7249 = vmatpush1.msra.mxu0 %v6443
    %7250 = vmatprep.subr.mxu0 0.0
    %7251 = vmatpush1.msra.mxu0 %v6447
    %7252 = vmatprep.subr.mxu0 0.0
    %7253 = vmatpush1.msra.mxu0 %v6453
    %7254 = vmatprep.subr.mxu0 0.0
    %7255 = vmatpush1.msra.mxu0 %v6457
    %7256 = vmatprep.subr.mxu0 0.0
    %7257 = vmatpush1.msra.mxu0 %v6463
    %7258 = vmatprep.subr.mxu0 0.0
    %7259 = vmatpush1.msra.mxu0 %v6467
    %7260 = vmatprep.subr.mxu0 0.0
    %7261 = vmatpush1.msra.mxu0 %v6473
    %7262 = vmatprep.subr.mxu0 0.0
    %7263 = vmatpush1.msra.mxu0 %v6477
    %7264 = vmatprep.subr.mxu0 0.0
    %7265 = vmatpush1.msra.mxu0 %v6483
    %7266 = vmatprep.subr.mxu0 0.0
    %7267 = vmatpush1.msra.mxu0 %v6487
    %7268 = vmatprep.subr.mxu0 0.0
    %7269 = vmatpush1.msra.mxu0 %v6493
    %7270 = vmatprep.subr.mxu0 0.0
    %7271 = vmatpush1.msra.mxu0 %v6497
    %7272 = vmatprep.subr.mxu0 0.0
    %7273 = vmatpush1.msra.mxu0 %v6503
    %7274 = vmatprep.subr.mxu0 0.0
    %7275 = vmatpush1.msra.mxu0 %v6507
    %7276 = vmatprep.subr.mxu0 0.0
    %7277 = vmatpush1.msra.mxu0 0.0
    %7278 = vmatprep.subr.mxu0 0.0
    %7279 = vmatpush1.msra.mxu0 0.0
    %7280 = vmatprep.subr.mxu0 0.0
    %7281 = vmatpush1.msra.mxu0 0.0
    %7282 = vmatprep.subr.mxu0 0.0
    %7283 = vmatpush1.msra.mxu0 0.0
    %7284 = vmatprep.subr.mxu0 0.0
    %7285 = vmatpush1.msra.mxu0 0.0
    %7286 = vmatprep.subr.mxu0 0.0
    %7287 = vmatpush1.msra.mxu0 0.0
    %7288 = vmatprep.subr.mxu0 0.0
    %7289 = vmatpush1.msra.mxu0 0.0
    %7290 = vmatprep.subr.mxu0 0.0
    %7291 = vmatpush1.msra.mxu0 0.0
    %7292 = vmatprep.subr.mxu0 0.0
    %7293 = vmatpush1.msra.mxu0 0.0
    %7294 = vmatprep.subr.mxu0 0.0
    %7295 = vmatpush1.msra.mxu0 0.0
    %7296 = vmatprep.subr.mxu0 0.0
    %7297 = vmatpush1.msra.mxu0 0.0
    %7298 = vmatprep.subr.mxu0 0.0
    %7299 = vmatpush1.msra.mxu0 0.0
    %7300 = vmatprep.subr.mxu0 0.0
    %7301 = vmatpush1.msra.mxu0 0.0
    %7302 = vmatprep.subr.mxu0 0.0
    %7303 = vmatpush1.msra.mxu0 0.0
    %7304 = vmatprep.mubr.f32.mxu0 %v7187
    %7305 = vmatmul.mubr.f32.gmra.mrb[0].mxu0 %v7150
    %v7306 = vpop.f32.mrb[0].mxu0
    %v7307 = vadd.f32 0.0, %v7306
    %v7308 = vpop.f32.mrb[0].mxu0
    %7309 = vmatprep.mubr.f32.mxu0 %v7190
    %7310 = vmatmul.mubr.f32.gmra.mrb[0].mxu0 %v7152
    %v7311 = vpop.f32.mrb[0].mxu0
    %v7312 = vadd.f32 0.0, %v7311
    %v7313 = vpop.f32.mrb[0].mxu0
    %7314 = vmatprep.mubr.f32.mxu0 %v7193
    %7315 = vmatmul.mubr.f32.gmra.mrb[0].mxu0 %v7154
    %v7316 = vpop.f32.mrb[0].mxu0
    %v7317 = vadd.f32 0.0, %v7316
    %v7318 = vpop.f32.mrb[0].mxu0
    %7319 = vmatprep.mubr.f32.mxu0 %v7196
    %7320 = vmatmul.mubr.f32.gmra.mrb[0].mxu0 %v7156
    %v7321 = vpop.f32.mrb[0].mxu0
    %v7322 = vadd.f32 0.0, %v7321
    %v7323 = vpop.f32.mrb[0].mxu0
    %7324 = vmatprep.mubr.f32.mxu0 %v7199
    %7325 = vmatmul.mubr.f32.gmra.mrb[0].mxu0 %v7158
    %v7326 = vpop.f32.mrb[0].mxu0
    %v7327 = vadd.f32 0.0, %v7326
    %v7328 = vpop.f32.mrb[0].mxu0
    %7329 = vmatprep.mubr.f32.mxu0 %v7202
    %7330 = vmatmul.mubr.f32.gmra.mrb[0].mxu0 %v7160
    %v7331 = vpop.f32.mrb[0].mxu0
    %v7332 = vadd.f32 0.0, %v7331
    %v7333 = vpop.f32.mrb[0].mxu0
    %7334 = vmatprep.mubr.f32.mxu0 %v7205
    %7335 = vmatmul.mubr.f32.gmra.mrb[0].mxu0 %v7162
    %v7336 = vpop.f32.mrb[0].mxu0
    %v7337 = vadd.f32 0.0, %v7336
    %v7338 = vpop.f32.mrb[0].mxu0
    %7339 = vmatprep.mubr.f32.mxu0 %v7208
    %7340 = vmatmul.mubr.f32.gmra.mrb[0].mxu0 %v7164
    %v7341 = vpop.f32.mrb[0].mxu0
    %v7342 = vadd.f32 0.0, %v7341
    %v7343 = vpop.f32.mrb[0].mxu0
    %7344 = vmatprep.mubr.f32.mxu0 %v7211
    %7345 = vmatmul.mubr.f32.gmra.mrb[0].mxu0 %v7166
    %v7346 = vpop.f32.mrb[0].mxu0
    %v7347 = vadd.f32 0.0, %v7346
    %v7348 = vpop.f32.mrb[0].mxu0
    %7349 = vmatprep.mubr.f32.mxu0 %v7214
    %7350 = vmatmul.mubr.f32.gmra.mrb[0].mxu0 %v7168
    %v7351 = vpop.f32.mrb[0].mxu0
    %v7352 = vadd.f32 0.0, %v7351
    %v7353 = vpop.f32.mrb[0].mxu0
    %7354 = vmatprep.mubr.f32.mxu0 %v7217
    %7355 = vmatmul.mubr.f32.gmra.mrb[0].mxu0 %v7170
    %v7356 = vpop.f32.mrb[0].mxu0
    %v7357 = vadd.f32 0.0, %v7356
    %v7358 = vpop.f32.mrb[0].mxu0
    %7359 = vmatprep.mubr.f32.mxu0 %v7220
    %7360 = vmatmul.mubr.f32.gmra.mrb[0].mxu0 %v7172
    %v7361 = vpop.f32.mrb[0].mxu0
    %v7362 = vadd.f32 0.0, %v7361
    %v7363 = vpop.f32.mrb[0].mxu0
    %7364 = vmatprep.mubr.f32.mxu0 %v7223
    %7365 = vmatmul.mubr.f32.gmra.mrb[0].mxu0 %v7174
    %v7366 = vpop.f32.mrb[0].mxu0
    %v7367 = vadd.f32 0.0, %v7366
    %v7368 = vpop.f32.mrb[0].mxu0
    %7369 = vmatprep.mubr.f32.mxu0 %v7226
    %7370 = vmatmul.mubr.f32.gmra.mrb[0].mxu0 %v7176
    %v7371 = vpop.f32.mrb[0].mxu0
    %v7372 = vadd.f32 0.0, %v7371
    %v7373 = vpop.f32.mrb[0].mxu0
    %7374 = vmatprep.mubr.f32.mxu0 %v7229
    %7375 = vmatmul.mubr.f32.gmra.mrb[0].mxu0 %v7178
    %v7376 = vpop.f32.mrb[0].mxu0
    %v7377 = vadd.f32 0.0, %v7376
    %v7378 = vpop.f32.mrb[0].mxu0
    %7379 = vmatprep.mubr.f32.mxu0 %v7232
    %7380 = vmatmul.mubr.f32.gmra.mrb[0].mxu0 %v7180
    %v7381 = vpop.f32.mrb[0].mxu0
    %v7382 = vadd.f32 0.0, %v7381
    %v7383 = vpop.f32.mrb[0].mxu0
    %7384 = vmatprep.mubr.f32.mxu0 %v7235
    %7385 = vmatmul.mubr.f32.gmra.mrb[0].mxu0 %v7182
    %v7386 = vpop.f32.mrb[0].mxu0
    %v7387 = vadd.f32 0.0, %v7386
    %v7388 = vpop.f32.mrb[0].mxu0
    %7389 = vmatprep.mubr.f32.mxu0 %v7238
    %7390 = vmatmul.mubr.f32.gmra.mrb[0].mxu0 %v7184
    %v7391 = vpop.f32.mrb[0].mxu0
    %v7392 = vadd.f32 0.0, %v7391
    %v7393 = vpop.f32.mrb[0].mxu0
    %7394 = vdwg.mxu0
    %7395 = vrot.lane.b32.xlu0 %v6421, 112
    %v7396 = vpop.permute.xlu0 %7395
    %7397 = vrot.lane.b32.xlu0 %v6425, 112
    %v7398 = vpop.permute.xlu0 %7397
    %7399 = vrot.lane.b32.xlu0 %v6431, 112
    %v7400 = vpop.permute.xlu0 %7399
    %7401 = vrot.lane.b32.xlu0 %v6435, 112
    %v7402 = vpop.permute.xlu0 %7401
    %7403 = vrot.lane.b32.xlu0 %v6441, 112
    %v7404 = vpop.permute.xlu0 %7403
    %7405 = vrot.lane.b32.xlu0 %v6445, 112
    %v7406 = vpop.permute.xlu0 %7405
    %7407 = vrot.lane.b32.xlu0 %v6451, 112
    %v7408 = vpop.permute.xlu0 %7407
    %7409 = vrot.lane.b32.xlu0 %v6455, 112
    %v7410 = vpop.permute.xlu0 %7409
    %7411 = vrot.lane.b32.xlu0 %v6461, 112
    %v7412 = vpop.permute.xlu0 %7411
    %7413 = vrot.lane.b32.xlu0 %v6465, 112
    %v7414 = vpop.permute.xlu0 %7413
    %7415 = vrot.lane.b32.xlu0 %v6471, 112
    %v7416 = vpop.permute.xlu0 %7415
    %7417 = vrot.lane.b32.xlu0 %v6475, 112
    %v7418 = vpop.permute.xlu0 %7417
    %7419 = vrot.lane.b32.xlu0 %v6481, 112
    %v7420 = vpop.permute.xlu0 %7419
    %7421 = vrot.lane.b32.xlu0 %v6485, 112
    %v7422 = vpop.permute.xlu0 %7421
    %7423 = vrot.lane.b32.xlu0 %v6491, 112
    %v7424 = vpop.permute.xlu0 %7423
    %7425 = vrot.lane.b32.xlu0 %v6495, 112
    %v7426 = vpop.permute.xlu0 %7425
    %7427 = vrot.lane.b32.xlu0 %v6501, 112
    %v7428 = vpop.permute.xlu0 %7427
    %7429 = vrot.lane.b32.xlu0 %v6505, 112
    %v7430 = vpop.permute.xlu0 %7429
    %7431 = vrot.lane.b32.xlu0 %v6421, 48
    %v7432 = vpop.permute.xlu0 %7431
    %7433 = vrot.lane.b32.xlu0 %v6425, 48
    %v7434 = vpop.permute.xlu0 %7433
    %7435 = vrot.lane.b32.xlu0 %v6431, 48
    %v7436 = vpop.permute.xlu0 %7435
    %7437 = vrot.lane.b32.xlu0 %v6435, 48
    %v7438 = vpop.permute.xlu0 %7437
    %7439 = vrot.lane.b32.xlu0 %v6441, 48
    %v7440 = vpop.permute.xlu0 %7439
    %7441 = vrot.lane.b32.xlu0 %v6445, 48
    %v7442 = vpop.permute.xlu0 %7441
    %7443 = vrot.lane.b32.xlu0 %v6451, 48
    %v7444 = vpop.permute.xlu0 %7443
    %7445 = vrot.lane.b32.xlu0 %v6455, 48
    %v7446 = vpop.permute.xlu0 %7445
    %7447 = vrot.lane.b32.xlu0 %v6461, 48
    %v7448 = vpop.permute.xlu0 %7447
    %7449 = vrot.lane.b32.xlu0 %v6465, 48
    %v7450 = vpop.permute.xlu0 %7449
    %7451 = vrot.lane.b32.xlu0 %v6471, 48
    %v7452 = vpop.permute.xlu0 %7451
    %7453 = vrot.lane.b32.xlu0 %v6475, 48
    %v7454 = vpop.permute.xlu0 %7453
    %7455 = vrot.lane.b32.xlu0 %v6481, 48
    %v7456 = vpop.permute.xlu0 %7455
    %7457 = vrot.lane.b32.xlu0 %v6485, 48
    %v7458 = vpop.permute.xlu0 %7457
    %7459 = vrot.lane.b32.xlu0 %v6491, 48
    %v7460 = vpop.permute.xlu0 %7459
    %7461 = vrot.lane.b32.xlu0 %v6495, 48
    %v7462 = vpop.permute.xlu0 %7461
    %7463 = vrot.lane.b32.xlu0 %v6501, 48
    %v7464 = vpop.permute.xlu0 %7463
    %7465 = vrot.lane.b32.xlu0 %v6505, 48
    %v7466 = vpop.permute.xlu0 %7465
    %v7467 = vsel %vm674, %v7396, 0
    %v7469 = vsel %vm674, %v7398, 0
    %v7471 = vsel %vm674, %v7400, 0
    %v7473 = vsel %vm674, %v7402, 0
    %v7475 = vsel %vm674, %v7404, 0
    %v7477 = vsel %vm674, %v7406, 0
    %v7479 = vsel %vm674, %v7408, 0
    %v7481 = vsel %vm674, %v7410, 0
    %v7483 = vsel %vm674, %v7412, 0
    %v7485 = vsel %vm674, %v7414, 0
    %v7487 = vsel %vm674, %v7416, 0
    %v7489 = vsel %vm674, %v7418, 0
    %v7491 = vsel %vm674, %v7420, 0
    %v7493 = vsel %vm674, %v7422, 0
    %v7495 = vsel %vm674, %v7424, 0
    %v7497 = vsel %vm674, %v7426, 0
    %v7499 = vsel %vm674, %v7428, 0
    %v7501 = vsel %vm674, %v7430, 0
    %v7503 = vsel %vm674, %v7432, 0
    %v7505 = vsel %vm674, %v7434, 0
    %v7507 = vsel %vm674, %v7436, 0
    %v7509 = vsel %vm674, %v7438, 0
    %v7511 = vsel %vm674, %v7440, 0
    %v7513 = vsel %vm674, %v7442, 0
    %v7515 = vsel %vm674, %v7444, 0
    %v7517 = vsel %vm674, %v7446, 0
    %v7519 = vsel %vm674, %v7448, 0
    %v7521 = vsel %vm674, %v7450, 0
    %v7523 = vsel %vm674, %v7452, 0
    %v7525 = vsel %vm674, %v7454, 0
    %v7527 = vsel %vm674, %v7456, 0
    %v7529 = vsel %vm674, %v7458, 0
    %v7531 = vsel %vm674, %v7460, 0
    %v7533 = vsel %vm674, %v7462, 0
    %v7535 = vsel %vm674, %v7464, 0
    %v7537 = vsel %vm674, %v7466, 0
    %7539 = vmatprep.subr.mxu0 0.0
    %7540 = vmatpush1.xpose.msra.mxu0 %v7503
    %7541 = vmatprep.subr.mxu0 0.0
    %7542 = vmatpush1.xpose.msra.mxu0 %v7505
    %7543 = vmatprep.subr.mxu0 0.0
    %7544 = vmatpush1.xpose.msra.mxu0 %v7507
    %7545 = vmatprep.subr.mxu0 0.0
    %7546 = vmatpush1.xpose.msra.mxu0 %v7509
    %7547 = vmatprep.subr.mxu0 0.0
    %7548 = vmatpush1.xpose.msra.mxu0 %v7511
    %7549 = vmatprep.subr.mxu0 0.0
    %7550 = vmatpush1.xpose.msra.mxu0 %v7513
    %7551 = vmatprep.subr.mxu0 0.0
    %7552 = vmatpush1.xpose.msra.mxu0 %v7515
    %7553 = vmatprep.subr.mxu0 0.0
    %7554 = vmatpush1.xpose.msra.mxu0 %v7517
    %7555 = vmatprep.subr.mxu0 0.0
    %7556 = vmatpush1.xpose.msra.mxu0 %v7519
    %7557 = vmatprep.subr.mxu0 0.0
    %7558 = vmatpush1.xpose.msra.mxu0 %v7521
    %7559 = vmatprep.subr.mxu0 0.0
    %7560 = vmatpush1.xpose.msra.mxu0 %v7523
    %7561 = vmatprep.subr.mxu0 0.0
    %7562 = vmatpush1.xpose.msra.mxu0 %v7525
    %7563 = vmatprep.subr.mxu0 0.0
    %7564 = vmatpush1.xpose.msra.mxu0 %v7527
    %7565 = vmatprep.subr.mxu0 0.0
    %7566 = vmatpush1.xpose.msra.mxu0 %v7529
    %7567 = vmatprep.subr.mxu0 0.0
    %7568 = vmatpush1.xpose.msra.mxu0 %v7531
    %7569 = vmatprep.subr.mxu0 0.0
    %7570 = vmatpush1.xpose.msra.mxu0 %v7533
    %7571 = vmatprep.subr.mxu0 0.0
    %7572 = vmatpush1.xpose.msra.mxu0 %v7535
    %7573 = vmatprep.subr.mxu0 0.0
    %7574 = vmatpush1.xpose.msra.mxu0 %v7537
    %7575 = vmatprep.subr.mxu0 0.0
    %7576 = vmatpush1.xpose.msra.mxu0 0.0
    %7577 = vmatprep.subr.mxu0 0.0
    %7578 = vmatpush1.xpose.msra.mxu0 0.0
    %7579 = vmatprep.subr.mxu0 0.0
    %7580 = vmatpush1.xpose.msra.mxu0 0.0
    %7581 = vmatprep.subr.mxu0 0.0
    %7582 = vmatpush1.xpose.msra.mxu0 0.0
    %7583 = vmatprep.subr.mxu0 0.0
    %7584 = vmatpush1.xpose.msra.mxu0 0.0
    %7585 = vmatprep.subr.mxu0 0.0
    %7586 = vmatpush1.xpose.msra.mxu0 0.0
    %7587 = vmatprep.subr.mxu0 0.0
    %7588 = vmatpush1.xpose.msra.mxu0 0.0
    %7589 = vmatprep.subr.mxu0 0.0
    %7590 = vmatpush1.xpose.msra.mxu0 0.0
    %7591 = vmatprep.subr.mxu0 0.0
    %7592 = vmatpush1.xpose.msra.mxu0 0.0
    %7593 = vmatprep.subr.mxu0 0.0
    %7594 = vmatpush1.xpose.msra.mxu0 0.0
    %7595 = vmatprep.subr.mxu0 0.0
    %7596 = vmatpush1.xpose.msra.mxu0 0.0
    %7597 = vmatprep.subr.mxu0 0.0
    %7598 = vmatpush1.xpose.msra.mxu0 0.0
    %7599 = vmatprep.subr.mxu0 0.0
    %7600 = vmatpush1.xpose.msra.mxu0 0.0
    %7601 = vmatprep.subr.mxu0 0.0
    %7602 = vmatpush1.xpose.msra.mxu0 0.0
    %7603 = vmatprep.mubr.f32.mxu0 0.0
    %7604 = vmatmul.mubr.f32.gmra.mrb[0].mxu0 %v7467
    %v7605 = vpop.f32.mrb[0].mxu0
    %v7606 = vadd.f32 0.0, %v7605
    %v7607 = vpop.f32.mrb[0].mxu0
    %v7608 = vadd.f32 0.0, %v7607
    %7609 = vmatprep.mubr.f32.mxu0 0.0
    %7610 = vmatmul.mubr.f32.gmra.mrb[0].mxu0 %v7469
    %v7611 = vpop.f32.mrb[0].mxu0
    %v7612 = vadd.f32 0.0, %v7611
    %v7613 = vpop.f32.mrb[0].mxu0
    %v7614 = vadd.f32 0.0, %v7613
    %7615 = vmatprep.mubr.f32.mxu0 0.0
    %7616 = vmatmul.mubr.f32.gmra.mrb[0].mxu0 %v7471
    %v7617 = vpop.f32.mrb[0].mxu0
    %v7618 = vadd.f32 0.0, %v7617
    %v7619 = vpop.f32.mrb[0].mxu0
    %v7620 = vadd.f32 0.0, %v7619
    %7621 = vmatprep.mubr.f32.mxu0 0.0
    %7622 = vmatmul.mubr.f32.gmra.mrb[0].mxu0 %v7473
    %v7623 = vpop.f32.mrb[0].mxu0
    %v7624 = vadd.f32 0.0, %v7623
    %v7625 = vpop.f32.mrb[0].mxu0
    %v7626 = vadd.f32 0.0, %v7625
    %7627 = vmatprep.mubr.f32.mxu0 0.0
    %7628 = vmatmul.mubr.f32.gmra.mrb[0].mxu0 %v7475
    %v7629 = vpop.f32.mrb[0].mxu0
    %v7630 = vadd.f32 0.0, %v7629
    %v7631 = vpop.f32.mrb[0].mxu0
    %v7632 = vadd.f32 0.0, %v7631
    %7633 = vmatprep.mubr.f32.mxu0 0.0
    %7634 = vmatmul.mubr.f32.gmra.mrb[0].mxu0 %v7477
    %v7635 = vpop.f32.mrb[0].mxu0
    %v7636 = vadd.f32 0.0, %v7635
    %v7637 = vpop.f32.mrb[0].mxu0
    %v7638 = vadd.f32 0.0, %v7637
    %7639 = vmatprep.mubr.f32.mxu0 0.0
    %7640 = vmatmul.mubr.f32.gmra.mrb[0].mxu0 %v7479
    %v7641 = vpop.f32.mrb[0].mxu0
    %v7642 = vadd.f32 0.0, %v7641
    %v7643 = vpop.f32.mrb[0].mxu0
    %v7644 = vadd.f32 0.0, %v7643
    %7645 = vmatprep.mubr.f32.mxu0 0.0
    %7646 = vmatmul.mubr.f32.gmra.mrb[0].mxu0 %v7481
    %v7647 = vpop.f32.mrb[0].mxu0
    %v7648 = vadd.f32 0.0, %v7647
    %v7649 = vpop.f32.mrb[0].mxu0
    %v7650 = vadd.f32 0.0, %v7649
    %7651 = vmatprep.mubr.f32.mxu0 0.0
    %7652 = vmatmul.mubr.f32.gmra.mrb[0].mxu0 %v7483
    %v7653 = vpop.f32.mrb[0].mxu0
    %v7654 = vadd.f32 0.0, %v7653
    %v7655 = vpop.f32.mrb[0].mxu0
    %v7656 = vadd.f32 0.0, %v7655
    %7657 = vmatprep.mubr.f32.mxu0 0.0
    %7658 = vmatmul.mubr.f32.gmra.mrb[0].mxu0 %v7485
    %v7659 = vpop.f32.mrb[0].mxu0
    %v7660 = vadd.f32 0.0, %v7659
    %v7661 = vpop.f32.mrb[0].mxu0
    %v7662 = vadd.f32 0.0, %v7661
    %7663 = vmatprep.mubr.f32.mxu0 0.0
    %7664 = vmatmul.mubr.f32.gmra.mrb[0].mxu0 %v7487
    %v7665 = vpop.f32.mrb[0].mxu0
    %v7666 = vadd.f32 0.0, %v7665
    %v7667 = vpop.f32.mrb[0].mxu0
    %v7668 = vadd.f32 0.0, %v7667
    %7669 = vmatprep.mubr.f32.mxu0 0.0
    %7670 = vmatmul.mubr.f32.gmra.mrb[0].mxu0 %v7489
    %v7671 = vpop.f32.mrb[0].mxu0
    %v7672 = vadd.f32 0.0, %v7671
    %v7673 = vpop.f32.mrb[0].mxu0
    %v7674 = vadd.f32 0.0, %v7673
    %7675 = vmatprep.mubr.f32.mxu0 0.0
    %7676 = vmatmul.mubr.f32.gmra.mrb[0].mxu0 %v7491
    %v7677 = vpop.f32.mrb[0].mxu0
    %v7678 = vadd.f32 0.0, %v7677
    %v7679 = vpop.f32.mrb[0].mxu0
    %v7680 = vadd.f32 0.0, %v7679
    %7681 = vmatprep.mubr.f32.mxu0 0.0
    %7682 = vmatmul.mubr.f32.gmra.mrb[0].mxu0 %v7493
    %v7683 = vpop.f32.mrb[0].mxu0
    %v7684 = vadd.f32 0.0, %v7683
    %v7685 = vpop.f32.mrb[0].mxu0
    %v7686 = vadd.f32 0.0, %v7685
    %7687 = vmatprep.mubr.f32.mxu0 0.0
    %7688 = vmatmul.mubr.f32.gmra.mrb[0].mxu0 %v7495
    %v7689 = vpop.f32.mrb[0].mxu0
    %v7690 = vadd.f32 0.0, %v7689
    %v7691 = vpop.f32.mrb[0].mxu0
    %v7692 = vadd.f32 0.0, %v7691
    %7693 = vmatprep.mubr.f32.mxu0 0.0
    %7694 = vmatmul.mubr.f32.gmra.mrb[0].mxu0 %v7497
    %v7695 = vpop.f32.mrb[0].mxu0
    %v7696 = vadd.f32 0.0, %v7695
    %v7697 = vpop.f32.mrb[0].mxu0
    %v7698 = vadd.f32 0.0, %v7697
    %7699 = vmatprep.mubr.f32.mxu0 0.0
    %7700 = vmatmul.mubr.f32.gmra.mrb[0].mxu0 %v7499
    %v7701 = vpop.f32.mrb[0].mxu0
    %v7702 = vadd.f32 0.0, %v7701
    %v7703 = vpop.f32.mrb[0].mxu0
    %v7704 = vadd.f32 0.0, %v7703
    %7705 = vmatprep.mubr.f32.mxu0 0.0
    %7706 = vmatmul.mubr.f32.gmra.mrb[0].mxu0 %v7501
    %v7707 = vpop.f32.mrb[0].mxu0
    %v7708 = vadd.f32 0.0, %v7707
    %v7709 = vpop.f32.mrb[0].mxu0
    %v7710 = vadd.f32 0.0, %v7709
    %7711 = vdwg.mxu0
    %v7712 = vmul.f32 %v7606, 0.25
    %v7713 = vmul.f32 %v7608, 0.25
    %v7714 = vmul.f32 %v7612, 0.25
    %v7715 = vmul.f32 %v7614, 0.25
    %v7716 = vmul.f32 %v7618, 0.25
    %v7717 = vmul.f32 %v7620, 0.25
    %v7718 = vmul.f32 %v7624, 0.25
    %v7719 = vmul.f32 %v7626, 0.25
    %v7720 = vmul.f32 %v7630, 0.25
    %v7721 = vmul.f32 %v7632, 0.25
    %v7722 = vmul.f32 %v7636, 0.25
    %v7723 = vmul.f32 %v7638, 0.25
    %v7724 = vmul.f32 %v7642, 0.25
    %v7725 = vmul.f32 %v7644, 0.25
    %v7726 = vmul.f32 %v7648, 0.25
    %v7727 = vmul.f32 %v7650, 0.25
    %v7728 = vmul.f32 %v7654, 0.25
    %v7729 = vmul.f32 %v7656, 0.25
    %v7730 = vmul.f32 %v7660, 0.25
    %v7731 = vmul.f32 %v7662, 0.25
    %v7732 = vmul.f32 %v7666, 0.25
    %v7733 = vmul.f32 %v7668, 0.25
    %v7734 = vmul.f32 %v7672, 0.25
    %v7735 = vmul.f32 %v7674, 0.25
    %v7736 = vmul.f32 %v7678, 0.25
    %v7737 = vmul.f32 %v7680, 0.25
    %v7738 = vmul.f32 %v7684, 0.25
    %v7739 = vmul.f32 %v7686, 0.25
    %v7740 = vmul.f32 %v7690, 0.25
    %v7741 = vmul.f32 %v7692, 0.25
    %v7742 = vmul.f32 %v7696, 0.25
    %v7743 = vmul.f32 %v7698, 0.25
    %v7744 = vmul.f32 %v7702, 0.25
    %v7745 = vmul.f32 %v7704, 0.25
    %v7746 = vmul.f32 %v7708, 0.25
    %v7747 = vmul.f32 %v7710, 0.25
    %v7748 = vadd.f32 %v7712, %v97
    %v7749 = vadd.f32 %v7713, %v98
    %v7750 = vadd.f32 %v7714, %v99
    %v7751 = vadd.f32 %v7715, %v100
    %v7752 = vadd.f32 %v7716, %v101
    %v7753 = vadd.f32 %v7717, %v102
    %v7754 = vadd.f32 %v7718, %v103
    %v7755 = vadd.f32 %v7719, %v104
    %v7756 = vadd.f32 %v7720, %v105
    %v7757 = vadd.f32 %v7721, %v106
    %v7758 = vadd.f32 %v7722, %v107
    %v7759 = vadd.f32 %v7723, %v108
    %v7760 = vadd.f32 %v7724, %v109
    %v7761 = vadd.f32 %v7725, %v110
    %v7762 = vadd.f32 %v7726, %v111
    %v7763 = vadd.f32 %v7727, %v112
    %v7764 = vadd.f32 %v7728, %v113
    %v7765 = vadd.f32 %v7729, %v114
    %v7766 = vadd.f32 %v7730, %v115
    %v7767 = vadd.f32 %v7731, %v116
    %v7768 = vadd.f32 %v7732, %v117
    %v7769 = vadd.f32 %v7733, %v118
    %v7770 = vadd.f32 %v7734, %v119
    %v7771 = vadd.f32 %v7735, %v120
    %v7772 = vadd.f32 %v7736, %v121
    %v7773 = vadd.f32 %v7737, %v122
    %v7774 = vadd.f32 %v7738, %v123
    %v7775 = vadd.f32 %v7739, %v124
    %v7776 = vadd.f32 %v7740, %v125
    %v7777 = vadd.f32 %v7741, %v126
    %v7778 = vadd.f32 %v7742, %v127
    %v7779 = vadd.f32 %v7743, %v128
    %v7780 = vadd.f32 %v7744, %v129
    %v7781 = vadd.f32 %v7745, %v130
    %v7782 = vadd.f32 %v7746, %v131
    %v7783 = vadd.f32 %v7747, %v132
    %v7784 = vsel %vm674, %v7749, -inf
    %v7785 = vmax.f32 %v7748, %v7784
    %7786 = vmax.xlane.f32.xlu0 %v7785
    %v7787 = vpop.xlane.xlu0 %7786
    %v7788 = vsel %vm674, %v7751, -inf
    %v7789 = vmax.f32 %v7750, %v7788
    %7790 = vmax.xlane.f32.xlu0 %v7789
    %v7791 = vpop.xlane.xlu0 %7790
    %v7792 = vsel %vm674, %v7753, -inf
    %v7793 = vmax.f32 %v7752, %v7792
    %7794 = vmax.xlane.f32.xlu0 %v7793
    %v7795 = vpop.xlane.xlu0 %7794
    %v7796 = vsel %vm674, %v7755, -inf
    %v7797 = vmax.f32 %v7754, %v7796
    %7798 = vmax.xlane.f32.xlu0 %v7797
    %v7799 = vpop.xlane.xlu0 %7798
    %v7800 = vsel %vm674, %v7757, -inf
    %v7801 = vmax.f32 %v7756, %v7800
    %7802 = vmax.xlane.f32.xlu0 %v7801
    %v7803 = vpop.xlane.xlu0 %7802
    %v7804 = vsel %vm674, %v7759, -inf
    %v7805 = vmax.f32 %v7758, %v7804
    %7806 = vmax.xlane.f32.xlu0 %v7805
    %v7807 = vpop.xlane.xlu0 %7806
    %v7808 = vsel %vm674, %v7761, -inf
    %v7809 = vmax.f32 %v7760, %v7808
    %7810 = vmax.xlane.f32.xlu0 %v7809
    %v7811 = vpop.xlane.xlu0 %7810
    %v7812 = vsel %vm674, %v7763, -inf
    %v7813 = vmax.f32 %v7762, %v7812
    %7814 = vmax.xlane.f32.xlu0 %v7813
    %v7815 = vpop.xlane.xlu0 %7814
    %v7816 = vsel %vm674, %v7765, -inf
    %v7817 = vmax.f32 %v7764, %v7816
    %7818 = vmax.xlane.f32.xlu0 %v7817
    %v7819 = vpop.xlane.xlu0 %7818
    %v7820 = vsel %vm674, %v7767, -inf
    %v7821 = vmax.f32 %v7766, %v7820
    %7822 = vmax.xlane.f32.xlu0 %v7821
    %v7823 = vpop.xlane.xlu0 %7822
    %v7824 = vsel %vm674, %v7769, -inf
    %v7825 = vmax.f32 %v7768, %v7824
    %7826 = vmax.xlane.f32.xlu0 %v7825
    %v7827 = vpop.xlane.xlu0 %7826
    %v7828 = vsel %vm674, %v7771, -inf
    %v7829 = vmax.f32 %v7770, %v7828
    %7830 = vmax.xlane.f32.xlu0 %v7829
    %v7831 = vpop.xlane.xlu0 %7830
    %v7832 = vsel %vm674, %v7773, -inf
    %v7833 = vmax.f32 %v7772, %v7832
    %7834 = vmax.xlane.f32.xlu0 %v7833
    %v7835 = vpop.xlane.xlu0 %7834
    %v7836 = vsel %vm674, %v7775, -inf
    %v7837 = vmax.f32 %v7774, %v7836
    %7838 = vmax.xlane.f32.xlu0 %v7837
    %v7839 = vpop.xlane.xlu0 %7838
    %v7840 = vsel %vm674, %v7777, -inf
    %v7841 = vmax.f32 %v7776, %v7840
    %7842 = vmax.xlane.f32.xlu0 %v7841
    %v7843 = vpop.xlane.xlu0 %7842
    %v7844 = vsel %vm674, %v7779, -inf
    %v7845 = vmax.f32 %v7778, %v7844
    %7846 = vmax.xlane.f32.xlu0 %v7845
    %v7847 = vpop.xlane.xlu0 %7846
    %v7848 = vsel %vm674, %v7781, -inf
    %v7849 = vmax.f32 %v7780, %v7848
    %7850 = vmax.xlane.f32.xlu0 %v7849
    %v7851 = vpop.xlane.xlu0 %7850
    %v7852 = vsel %vm674, %v7783, -inf
    %v7853 = vmax.f32 %v7782, %v7852
    %7854 = vmax.xlane.f32.xlu0 %v7853
    %v7855 = vpop.xlane.xlu0 %7854
    %v7856 = vsub.f32 %v7748, %v7787
    %v7857 = vsub.f32 %v7749, %v7787
    %v7858 = vsub.f32 %v7750, %v7791
    %v7859 = vsub.f32 %v7751, %v7791
    %v7860 = vsub.f32 %v7752, %v7795
    %v7861 = vsub.f32 %v7753, %v7795
    %v7862 = vsub.f32 %v7754, %v7799
    %v7863 = vsub.f32 %v7755, %v7799
    %v7864 = vsub.f32 %v7756, %v7803
    %v7865 = vsub.f32 %v7757, %v7803
    %v7866 = vsub.f32 %v7758, %v7807
    %v7867 = vsub.f32 %v7759, %v7807
    %v7868 = vsub.f32 %v7760, %v7811
    %v7869 = vsub.f32 %v7761, %v7811
    %v7870 = vsub.f32 %v7762, %v7815
    %v7871 = vsub.f32 %v7763, %v7815
    %v7872 = vsub.f32 %v7764, %v7819
    %v7873 = vsub.f32 %v7765, %v7819
    %v7874 = vsub.f32 %v7766, %v7823
    %v7875 = vsub.f32 %v7767, %v7823
    %v7876 = vsub.f32 %v7768, %v7827
    %v7877 = vsub.f32 %v7769, %v7827
    %v7878 = vsub.f32 %v7770, %v7831
    %v7879 = vsub.f32 %v7771, %v7831
    %v7880 = vsub.f32 %v7772, %v7835
    %v7881 = vsub.f32 %v7773, %v7835
    %v7882 = vsub.f32 %v7774, %v7839
    %v7883 = vsub.f32 %v7775, %v7839
    %v7884 = vsub.f32 %v7776, %v7843
    %v7885 = vsub.f32 %v7777, %v7843
    %v7886 = vsub.f32 %v7778, %v7847
    %v7887 = vsub.f32 %v7779, %v7847
    %v7888 = vsub.f32 %v7780, %v7851
    %v7889 = vsub.f32 %v7781, %v7851
    %v7890 = vsub.f32 %v7782, %v7855
    %v7891 = vsub.f32 %v7783, %v7855
    %v7892 = vmul.f32 %v7856, 1.442695
    %v7893 = vpow.pop %v7892
    %v7894 = vmul.f32 %v7857, 1.442695
    %v7895 = vpow.pop %v7894
    %v7896 = vmul.f32 %v7858, 1.442695
    %v7897 = vpow.pop %v7896
    %v7898 = vmul.f32 %v7859, 1.442695
    %v7899 = vpow.pop %v7898
    %v7900 = vmul.f32 %v7860, 1.442695
    %v7901 = vpow.pop %v7900
    %v7902 = vmul.f32 %v7861, 1.442695
    %v7903 = vpow.pop %v7902
    %v7904 = vmul.f32 %v7862, 1.442695
    %v7905 = vpow.pop %v7904
    %v7906 = vmul.f32 %v7863, 1.442695
    %v7907 = vpow.pop %v7906
    %v7908 = vmul.f32 %v7864, 1.442695
    %v7909 = vpow.pop %v7908
    %v7910 = vmul.f32 %v7865, 1.442695
    %v7911 = vpow.pop %v7910
    %v7912 = vmul.f32 %v7866, 1.442695
    %v7913 = vpow.pop %v7912
    %v7914 = vmul.f32 %v7867, 1.442695
    %v7915 = vpow.pop %v7914
    %v7916 = vmul.f32 %v7868, 1.442695
    %v7917 = vpow.pop %v7916
    %v7918 = vmul.f32 %v7869, 1.442695
    %v7919 = vpow.pop %v7918
    %v7920 = vmul.f32 %v7870, 1.442695
    %v7921 = vpow.pop %v7920
    %v7922 = vmul.f32 %v7871, 1.442695
    %v7923 = vpow.pop %v7922
    %v7924 = vmul.f32 %v7872, 1.442695
    %v7925 = vpow.pop %v7924
    %v7926 = vmul.f32 %v7873, 1.442695
    %v7927 = vpow.pop %v7926
    %v7928 = vmul.f32 %v7874, 1.442695
    %v7929 = vpow.pop %v7928
    %v7930 = vmul.f32 %v7875, 1.442695
    %v7931 = vpow.pop %v7930
    %v7932 = vmul.f32 %v7876, 1.442695
    %v7933 = vpow.pop %v7932
    %v7934 = vmul.f32 %v7877, 1.442695
    %v7935 = vpow.pop %v7934
    %v7936 = vmul.f32 %v7878, 1.442695
    %v7937 = vpow.pop %v7936
    %v7938 = vmul.f32 %v7879, 1.442695
    %v7939 = vpow.pop %v7938
    %v7940 = vmul.f32 %v7880, 1.442695
    %v7941 = vpow.pop %v7940
    %v7942 = vmul.f32 %v7881, 1.442695
    %v7943 = vpow.pop %v7942
    %v7944 = vmul.f32 %v7882, 1.442695
    %v7945 = vpow.pop %v7944
    %v7946 = vmul.f32 %v7883, 1.442695
    %v7947 = vpow.pop %v7946
    %v7948 = vmul.f32 %v7884, 1.442695
    %v7949 = vpow.pop %v7948
    %v7950 = vmul.f32 %v7885, 1.442695
    %v7951 = vpow.pop %v7950
    %v7952 = vmul.f32 %v7886, 1.442695
    %v7953 = vpow.pop %v7952
    %v7954 = vmul.f32 %v7887, 1.442695
    %v7955 = vpow.pop %v7954
    %v7956 = vmul.f32 %v7888, 1.442695
    %v7957 = vpow.pop %v7956
    %v7958 = vmul.f32 %v7889, 1.442695
    %v7959 = vpow.pop %v7958
    %v7960 = vmul.f32 %v7890, 1.442695
    %v7961 = vpow.pop %v7960
    %v7962 = vmul.f32 %v7891, 1.442695
    %v7963 = vpow.pop %v7962
    %v7964 = vsel %vm674, %v7895, 0.0
    %v7965 = vadd.f32 %v7893, %v7964
    %7966 = vadd.xlane.f32.xlu0 %v7965
    %v7967 = vpop.xlane.xlu0 %7966
    %v7968 = vsel %vm674, %v7899, 0.0
    %v7969 = vadd.f32 %v7897, %v7968
    %7970 = vadd.xlane.f32.xlu0 %v7969
    %v7971 = vpop.xlane.xlu0 %7970
    %v7972 = vsel %vm674, %v7903, 0.0
    %v7973 = vadd.f32 %v7901, %v7972
    %7974 = vadd.xlane.f32.xlu0 %v7973
    %v7975 = vpop.xlane.xlu0 %7974
    %v7976 = vsel %vm674, %v7907, 0.0
    %v7977 = vadd.f32 %v7905, %v7976
    %7978 = vadd.xlane.f32.xlu0 %v7977
    %v7979 = vpop.xlane.xlu0 %7978
    %v7980 = vsel %vm674, %v7911, 0.0
    %v7981 = vadd.f32 %v7909, %v7980
    %7982 = vadd.xlane.f32.xlu0 %v7981
    %v7983 = vpop.xlane.xlu0 %7982
    %v7984 = vsel %vm674, %v7915, 0.0
    %v7985 = vadd.f32 %v7913, %v7984
    %7986 = vadd.xlane.f32.xlu0 %v7985
    %v7987 = vpop.xlane.xlu0 %7986
    %v7988 = vsel %vm674, %v7919, 0.0
    %v7989 = vadd.f32 %v7917, %v7988
    %7990 = vadd.xlane.f32.xlu0 %v7989
    %v7991 = vpop.xlane.xlu0 %7990
    %v7992 = vsel %vm674, %v7923, 0.0
    %v7993 = vadd.f32 %v7921, %v7992
    %7994 = vadd.xlane.f32.xlu0 %v7993
    %v7995 = vpop.xlane.xlu0 %7994
    %v7996 = vsel %vm674, %v7927, 0.0
    %v7997 = vadd.f32 %v7925, %v7996
    %7998 = vadd.xlane.f32.xlu0 %v7997
    %v7999 = vpop.xlane.xlu0 %7998
    %v8000 = vsel %vm674, %v7931, 0.0
    %v8001 = vadd.f32 %v7929, %v8000
    %8002 = vadd.xlane.f32.xlu0 %v8001
    %v8003 = vpop.xlane.xlu0 %8002
    %v8004 = vsel %vm674, %v7935, 0.0
    %v8005 = vadd.f32 %v7933, %v8004
    %8006 = vadd.xlane.f32.xlu0 %v8005
    %v8007 = vpop.xlane.xlu0 %8006
    %v8008 = vsel %vm674, %v7939, 0.0
    %v8009 = vadd.f32 %v7937, %v8008
    %8010 = vadd.xlane.f32.xlu0 %v8009
    %v8011 = vpop.xlane.xlu0 %8010
    %v8012 = vsel %vm674, %v7943, 0.0
    %v8013 = vadd.f32 %v7941, %v8012
    %8014 = vadd.xlane.f32.xlu0 %v8013
    %v8015 = vpop.xlane.xlu0 %8014
    %v8016 = vsel %vm674, %v7947, 0.0
    %v8017 = vadd.f32 %v7945, %v8016
    %8018 = vadd.xlane.f32.xlu0 %v8017
    %v8019 = vpop.xlane.xlu0 %8018
    %v8020 = vsel %vm674, %v7951, 0.0
    %v8021 = vadd.f32 %v7949, %v8020
    %8022 = vadd.xlane.f32.xlu0 %v8021
    %v8023 = vpop.xlane.xlu0 %8022
    %v8024 = vsel %vm674, %v7955, 0.0
    %v8025 = vadd.f32 %v7953, %v8024
    %8026 = vadd.xlane.f32.xlu0 %v8025
    %v8027 = vpop.xlane.xlu0 %8026
    %v8028 = vsel %vm674, %v7959, 0.0
    %v8029 = vadd.f32 %v7957, %v8028
    %8030 = vadd.xlane.f32.xlu0 %v8029
    %v8031 = vpop.xlane.xlu0 %8030
    %v8032 = vsel %vm674, %v7963, 0.0
    %v8033 = vadd.f32 %v7961, %v8032
    %8034 = vadd.xlane.f32.xlu0 %v8033
    %v8035 = vpop.xlane.xlu0 %8034
    %v8036 = vrcp.pop %v7967
    %v8037 = vrcp.pop %v7971
    %v8038 = vrcp.pop %v7975
    %v8039 = vrcp.pop %v7979
    %v8040 = vrcp.pop %v7983
    %v8041 = vrcp.pop %v7987
    %v8042 = vrcp.pop %v7991
    %v8043 = vrcp.pop %v7995
    %v8044 = vrcp.pop %v7999
    %v8045 = vrcp.pop %v8003
    %v8046 = vrcp.pop %v8007
    %v8047 = vrcp.pop %v8011
    %v8048 = vrcp.pop %v8015
    %v8049 = vrcp.pop %v8019
    %v8050 = vrcp.pop %v8023
    %v8051 = vrcp.pop %v8027
    %v8052 = vrcp.pop %v8031
    %v8053 = vrcp.pop %v8035
    %v8054 = vmul.f32 %v7893, %v8036
    %v8055 = vmul.f32 %v7895, %v8036
    %v8056 = vmul.f32 %v7897, %v8037
    %v8057 = vmul.f32 %v7899, %v8037
    %v8058 = vmul.f32 %v7901, %v8038
    %v8059 = vmul.f32 %v7903, %v8038
    %v8060 = vmul.f32 %v7905, %v8039
    %v8061 = vmul.f32 %v7907, %v8039
    %v8062 = vmul.f32 %v7909, %v8040
    %v8063 = vmul.f32 %v7911, %v8040
    %v8064 = vmul.f32 %v7913, %v8041
    %v8065 = vmul.f32 %v7915, %v8041
    %v8066 = vmul.f32 %v7917, %v8042
    %v8067 = vmul.f32 %v7919, %v8042
    %v8068 = vmul.f32 %v7921, %v8043
    %v8069 = vmul.f32 %v7923, %v8043
    %v8070 = vmul.f32 %v7925, %v8044
    %v8071 = vmul.f32 %v7927, %v8044
    %v8072 = vmul.f32 %v7929, %v8045
    %v8073 = vmul.f32 %v7931, %v8045
    %v8074 = vmul.f32 %v7933, %v8046
    %v8075 = vmul.f32 %v7935, %v8046
    %v8076 = vmul.f32 %v7937, %v8047
    %v8077 = vmul.f32 %v7939, %v8047
    %v8078 = vmul.f32 %v7941, %v8048
    %v8079 = vmul.f32 %v7943, %v8048
    %v8080 = vmul.f32 %v7945, %v8049
    %v8081 = vmul.f32 %v7947, %v8049
    %v8082 = vmul.f32 %v7949, %v8050
    %v8083 = vmul.f32 %v7951, %v8050
    %v8084 = vmul.f32 %v7953, %v8051
    %v8085 = vmul.f32 %v7955, %v8051
    %v8086 = vmul.f32 %v7957, %v8052
    %v8087 = vmul.f32 %v7959, %v8052
    %v8088 = vmul.f32 %v7961, %v8053
    %v8089 = vmul.f32 %v7963, %v8053
    %8108 = vrot.lane.b32.xlu0 %v6423, 112
    %v8109 = vpop.permute.xlu0 %8108
    %8110 = vrot.lane.b32.xlu0 %v6427, 112
    %v8111 = vpop.permute.xlu0 %8110
    %8112 = vrot.lane.b32.xlu0 %v6433, 112
    %v8113 = vpop.permute.xlu0 %8112
    %8114 = vrot.lane.b32.xlu0 %v6437, 112
    %v8115 = vpop.permute.xlu0 %8114
    %8116 = vrot.lane.b32.xlu0 %v6443, 112
    %v8117 = vpop.permute.xlu0 %8116
    %8118 = vrot.lane.b32.xlu0 %v6447, 112
    %v8119 = vpop.permute.xlu0 %8118
    %8120 = vrot.lane.b32.xlu0 %v6453, 112
    %v8121 = vpop.permute.xlu0 %8120
    %8122 = vrot.lane.b32.xlu0 %v6457, 112
    %v8123 = vpop.permute.xlu0 %8122
    %8124 = vrot.lane.b32.xlu0 %v6463, 112
    %v8125 = vpop.permute.xlu0 %8124
    %8126 = vrot.lane.b32.xlu0 %v6467, 112
    %v8127 = vpop.permute.xlu0 %8126
    %8128 = vrot.lane.b32.xlu0 %v6473, 112
    %v8129 = vpop.permute.xlu0 %8128
    %8130 = vrot.lane.b32.xlu0 %v6477, 112
    %v8131 = vpop.permute.xlu0 %8130
    %8132 = vrot.lane.b32.xlu0 %v6483, 112
    %v8133 = vpop.permute.xlu0 %8132
    %8134 = vrot.lane.b32.xlu0 %v6487, 112
    %v8135 = vpop.permute.xlu0 %8134
    %8136 = vrot.lane.b32.xlu0 %v6493, 112
    %v8137 = vpop.permute.xlu0 %8136
    %8138 = vrot.lane.b32.xlu0 %v6497, 112
    %v8139 = vpop.permute.xlu0 %8138
    %8140 = vrot.lane.b32.xlu0 %v6503, 112
    %v8141 = vpop.permute.xlu0 %8140
    %8142 = vrot.lane.b32.xlu0 %v6507, 112
    %v8143 = vpop.permute.xlu0 %8142
    %v8163 = vsel %vm674, %v8055, 0
    %v8166 = vsel %vm674, %v8057, 0
    %v8169 = vsel %vm674, %v8059, 0
    %v8172 = vsel %vm674, %v8061, 0
    %v8175 = vsel %vm674, %v8063, 0
    %v8178 = vsel %vm674, %v8065, 0
    %v8181 = vsel %vm674, %v8067, 0
    %v8184 = vsel %vm674, %v8069, 0
    %v8187 = vsel %vm674, %v8071, 0
    %v8190 = vsel %vm674, %v8073, 0
    %v8193 = vsel %vm674, %v8075, 0
    %v8196 = vsel %vm674, %v8077, 0
    %v8199 = vsel %vm674, %v8079, 0
    %v8202 = vsel %vm674, %v8081, 0
    %v8205 = vsel %vm674, %v8083, 0
    %v8208 = vsel %vm674, %v8085, 0
    %v8211 = vsel %vm674, %v8087, 0
    %v8214 = vsel %vm674, %v8089, 0
    %8216 = vmatprep.subr.mxu0 0.0
    %8217 = vmatpush1.msra.mxu0 %v8109
    %8218 = vmatprep.subr.mxu0 0.0
    %8219 = vmatpush1.msra.mxu0 %v8111
    %8220 = vmatprep.subr.mxu0 0.0
    %8221 = vmatpush1.msra.mxu0 %v8113
    %8222 = vmatprep.subr.mxu0 0.0
    %8223 = vmatpush1.msra.mxu0 %v8115
    %8224 = vmatprep.subr.mxu0 0.0
    %8225 = vmatpush1.msra.mxu0 %v8117
    %8226 = vmatprep.subr.mxu0 0.0
    %8227 = vmatpush1.msra.mxu0 %v8119
    %8228 = vmatprep.subr.mxu0 0.0
    %8229 = vmatpush1.msra.mxu0 %v8121
    %8230 = vmatprep.subr.mxu0 0.0
    %8231 = vmatpush1.msra.mxu0 %v8123
    %8232 = vmatprep.subr.mxu0 0.0
    %8233 = vmatpush1.msra.mxu0 %v8125
    %8234 = vmatprep.subr.mxu0 0.0
    %8235 = vmatpush1.msra.mxu0 %v8127
    %8236 = vmatprep.subr.mxu0 0.0
    %8237 = vmatpush1.msra.mxu0 %v8129
    %8238 = vmatprep.subr.mxu0 0.0
    %8239 = vmatpush1.msra.mxu0 %v8131
    %8240 = vmatprep.subr.mxu0 0.0
    %8241 = vmatpush1.msra.mxu0 %v8133
    %8242 = vmatprep.subr.mxu0 0.0
    %8243 = vmatpush1.msra.mxu0 %v8135
    %8244 = vmatprep.subr.mxu0 0.0
    %8245 = vmatpush1.msra.mxu0 %v8137
    %8246 = vmatprep.subr.mxu0 0.0
    %8247 = vmatpush1.msra.mxu0 %v8139
    %8248 = vmatprep.subr.mxu0 0.0
    %8249 = vmatpush1.msra.mxu0 %v8141
    %8250 = vmatprep.subr.mxu0 0.0
    %8251 = vmatpush1.msra.mxu0 %v8143
    %8252 = vmatprep.subr.mxu0 0.0
    %8253 = vmatpush1.msra.mxu0 0.0
    %8254 = vmatprep.subr.mxu0 0.0
    %8255 = vmatpush1.msra.mxu0 0.0
    %8256 = vmatprep.subr.mxu0 0.0
    %8257 = vmatpush1.msra.mxu0 0.0
    %8258 = vmatprep.subr.mxu0 0.0
    %8259 = vmatpush1.msra.mxu0 0.0
    %8260 = vmatprep.subr.mxu0 0.0
    %8261 = vmatpush1.msra.mxu0 0.0
    %8262 = vmatprep.subr.mxu0 0.0
    %8263 = vmatpush1.msra.mxu0 0.0
    %8264 = vmatprep.subr.mxu0 0.0
    %8265 = vmatpush1.msra.mxu0 0.0
    %8266 = vmatprep.subr.mxu0 0.0
    %8267 = vmatpush1.msra.mxu0 0.0
    %8268 = vmatprep.subr.mxu0 0.0
    %8269 = vmatpush1.msra.mxu0 0.0
    %8270 = vmatprep.subr.mxu0 0.0
    %8271 = vmatpush1.msra.mxu0 0.0
    %8272 = vmatprep.subr.mxu0 0.0
    %8273 = vmatpush1.msra.mxu0 0.0
    %8274 = vmatprep.subr.mxu0 0.0
    %8275 = vmatpush1.msra.mxu0 0.0
    %8276 = vmatprep.subr.mxu0 0.0
    %8277 = vmatpush1.msra.mxu0 0.0
    %8278 = vmatprep.subr.mxu0 0.0
    %8279 = vmatpush1.msra.mxu0 0.0
    %8280 = vmatprep.mubr.f32.mxu0 %v8163
    %8281 = vmatmul.mubr.f32.gmra.mrb[0].mxu0 %v8054
    %v8282 = vpop.f32.mrb[0].mxu0
    %v8283 = vadd.f32 0.0, %v8282
    %v8284 = vpop.f32.mrb[0].mxu0
    %8285 = vmatprep.mubr.f32.mxu0 %v8166
    %8286 = vmatmul.mubr.f32.gmra.mrb[0].mxu0 %v8056
    %v8287 = vpop.f32.mrb[0].mxu0
    %v8288 = vadd.f32 0.0, %v8287
    %v8289 = vpop.f32.mrb[0].mxu0
    %8290 = vmatprep.mubr.f32.mxu0 %v8169
    %8291 = vmatmul.mubr.f32.gmra.mrb[0].mxu0 %v8058
    %v8292 = vpop.f32.mrb[0].mxu0
    %v8293 = vadd.f32 0.0, %v8292
    %v8294 = vpop.f32.mrb[0].mxu0
    %8295 = vmatprep.mubr.f32.mxu0 %v8172
    %8296 = vmatmul.mubr.f32.gmra.mrb[0].mxu0 %v8060
    %v8297 = vpop.f32.mrb[0].mxu0
    %v8298 = vadd.f32 0.0, %v8297
    %v8299 = vpop.f32.mrb[0].mxu0
    %8300 = vmatprep.mubr.f32.mxu0 %v8175
    %8301 = vmatmul.mubr.f32.gmra.mrb[0].mxu0 %v8062
    %v8302 = vpop.f32.mrb[0].mxu0
    %v8303 = vadd.f32 0.0, %v8302
    %v8304 = vpop.f32.mrb[0].mxu0
    %8305 = vmatprep.mubr.f32.mxu0 %v8178
    %8306 = vmatmul.mubr.f32.gmra.mrb[0].mxu0 %v8064
    %v8307 = vpop.f32.mrb[0].mxu0
    %v8308 = vadd.f32 0.0, %v8307
    %v8309 = vpop.f32.mrb[0].mxu0
    %8310 = vmatprep.mubr.f32.mxu0 %v8181
    %8311 = vmatmul.mubr.f32.gmra.mrb[0].mxu0 %v8066
    %v8312 = vpop.f32.mrb[0].mxu0
    %v8313 = vadd.f32 0.0, %v8312
    %v8314 = vpop.f32.mrb[0].mxu0
    %8315 = vmatprep.mubr.f32.mxu0 %v8184
    %8316 = vmatmul.mubr.f32.gmra.mrb[0].mxu0 %v8068
    %v8317 = vpop.f32.mrb[0].mxu0
    %v8318 = vadd.f32 0.0, %v8317
    %v8319 = vpop.f32.mrb[0].mxu0
    %8320 = vmatprep.mubr.f32.mxu0 %v8187
    %8321 = vmatmul.mubr.f32.gmra.mrb[0].mxu0 %v8070
    %v8322 = vpop.f32.mrb[0].mxu0
    %v8323 = vadd.f32 0.0, %v8322
    %v8324 = vpop.f32.mrb[0].mxu0
    %8325 = vmatprep.mubr.f32.mxu0 %v8190
    %8326 = vmatmul.mubr.f32.gmra.mrb[0].mxu0 %v8072
    %v8327 = vpop.f32.mrb[0].mxu0
    %v8328 = vadd.f32 0.0, %v8327
    %v8329 = vpop.f32.mrb[0].mxu0
    %8330 = vmatprep.mubr.f32.mxu0 %v8193
    %8331 = vmatmul.mubr.f32.gmra.mrb[0].mxu0 %v8074
    %v8332 = vpop.f32.mrb[0].mxu0
    %v8333 = vadd.f32 0.0, %v8332
    %v8334 = vpop.f32.mrb[0].mxu0
    %8335 = vmatprep.mubr.f32.mxu0 %v8196
    %8336 = vmatmul.mubr.f32.gmra.mrb[0].mxu0 %v8076
    %v8337 = vpop.f32.mrb[0].mxu0
    %v8338 = vadd.f32 0.0, %v8337
    %v8339 = vpop.f32.mrb[0].mxu0
    %8340 = vmatprep.mubr.f32.mxu0 %v8199
    %8341 = vmatmul.mubr.f32.gmra.mrb[0].mxu0 %v8078
    %v8342 = vpop.f32.mrb[0].mxu0
    %v8343 = vadd.f32 0.0, %v8342
    %v8344 = vpop.f32.mrb[0].mxu0
    %8345 = vmatprep.mubr.f32.mxu0 %v8202
    %8346 = vmatmul.mubr.f32.gmra.mrb[0].mxu0 %v8080
    %v8347 = vpop.f32.mrb[0].mxu0
    %v8348 = vadd.f32 0.0, %v8347
    %v8349 = vpop.f32.mrb[0].mxu0
    %8350 = vmatprep.mubr.f32.mxu0 %v8205
    %8351 = vmatmul.mubr.f32.gmra.mrb[0].mxu0 %v8082
    %v8352 = vpop.f32.mrb[0].mxu0
    %v8353 = vadd.f32 0.0, %v8352
    %v8354 = vpop.f32.mrb[0].mxu0
    %8355 = vmatprep.mubr.f32.mxu0 %v8208
    %8356 = vmatmul.mubr.f32.gmra.mrb[0].mxu0 %v8084
    %v8357 = vpop.f32.mrb[0].mxu0
    %v8358 = vadd.f32 0.0, %v8357
    %v8359 = vpop.f32.mrb[0].mxu0
    %8360 = vmatprep.mubr.f32.mxu0 %v8211
    %8361 = vmatmul.mubr.f32.gmra.mrb[0].mxu0 %v8086
    %v8362 = vpop.f32.mrb[0].mxu0
    %v8363 = vadd.f32 0.0, %v8362
    %v8364 = vpop.f32.mrb[0].mxu0
    %8365 = vmatprep.mubr.f32.mxu0 %v8214
    %8366 = vmatmul.mubr.f32.gmra.mrb[0].mxu0 %v8088
    %v8367 = vpop.f32.mrb[0].mxu0
    %v8368 = vadd.f32 0.0, %v8367
    %v8369 = vpop.f32.mrb[0].mxu0
    %8370 = vdwg.mxu0
    %8371 = vrot.lane.b32.xlu0 %v6421, 96
    %v8372 = vpop.permute.xlu0 %8371
    %8373 = vrot.lane.b32.xlu0 %v6425, 96
    %v8374 = vpop.permute.xlu0 %8373
    %8375 = vrot.lane.b32.xlu0 %v6431, 96
    %v8376 = vpop.permute.xlu0 %8375
    %8377 = vrot.lane.b32.xlu0 %v6435, 96
    %v8378 = vpop.permute.xlu0 %8377
    %8379 = vrot.lane.b32.xlu0 %v6441, 96
    %v8380 = vpop.permute.xlu0 %8379
    %8381 = vrot.lane.b32.xlu0 %v6445, 96
    %v8382 = vpop.permute.xlu0 %8381
    %8383 = vrot.lane.b32.xlu0 %v6451, 96
    %v8384 = vpop.permute.xlu0 %8383
    %8385 = vrot.lane.b32.xlu0 %v6455, 96
    %v8386 = vpop.permute.xlu0 %8385
    %8387 = vrot.lane.b32.xlu0 %v6461, 96
    %v8388 = vpop.permute.xlu0 %8387
    %8389 = vrot.lane.b32.xlu0 %v6465, 96
    %v8390 = vpop.permute.xlu0 %8389
    %8391 = vrot.lane.b32.xlu0 %v6471, 96
    %v8392 = vpop.permute.xlu0 %8391
    %8393 = vrot.lane.b32.xlu0 %v6475, 96
    %v8394 = vpop.permute.xlu0 %8393
    %8395 = vrot.lane.b32.xlu0 %v6481, 96
    %v8396 = vpop.permute.xlu0 %8395
    %8397 = vrot.lane.b32.xlu0 %v6485, 96
    %v8398 = vpop.permute.xlu0 %8397
    %8399 = vrot.lane.b32.xlu0 %v6491, 96
    %v8400 = vpop.permute.xlu0 %8399
    %8401 = vrot.lane.b32.xlu0 %v6495, 96
    %v8402 = vpop.permute.xlu0 %8401
    %8403 = vrot.lane.b32.xlu0 %v6501, 96
    %v8404 = vpop.permute.xlu0 %8403
    %8405 = vrot.lane.b32.xlu0 %v6505, 96
    %v8406 = vpop.permute.xlu0 %8405
    %8407 = vrot.lane.b32.xlu0 %v6421, 32
    %v8408 = vpop.permute.xlu0 %8407
    %8409 = vrot.lane.b32.xlu0 %v6425, 32
    %v8410 = vpop.permute.xlu0 %8409
    %8411 = vrot.lane.b32.xlu0 %v6431, 32
    %v8412 = vpop.permute.xlu0 %8411
    %8413 = vrot.lane.b32.xlu0 %v6435, 32
    %v8414 = vpop.permute.xlu0 %8413
    %8415 = vrot.lane.b32.xlu0 %v6441, 32
    %v8416 = vpop.permute.xlu0 %8415
    %8417 = vrot.lane.b32.xlu0 %v6445, 32
    %v8418 = vpop.permute.xlu0 %8417
    %8419 = vrot.lane.b32.xlu0 %v6451, 32
    %v8420 = vpop.permute.xlu0 %8419
    %8421 = vrot.lane.b32.xlu0 %v6455, 32
    %v8422 = vpop.permute.xlu0 %8421
    %8423 = vrot.lane.b32.xlu0 %v6461, 32
    %v8424 = vpop.permute.xlu0 %8423
    %8425 = vrot.lane.b32.xlu0 %v6465, 32
    %v8426 = vpop.permute.xlu0 %8425
    %8427 = vrot.lane.b32.xlu0 %v6471, 32
    %v8428 = vpop.permute.xlu0 %8427
    %8429 = vrot.lane.b32.xlu0 %v6475, 32
    %v8430 = vpop.permute.xlu0 %8429
    %8431 = vrot.lane.b32.xlu0 %v6481, 32
    %v8432 = vpop.permute.xlu0 %8431
    %8433 = vrot.lane.b32.xlu0 %v6485, 32
    %v8434 = vpop.permute.xlu0 %8433
    %8435 = vrot.lane.b32.xlu0 %v6491, 32
    %v8436 = vpop.permute.xlu0 %8435
    %8437 = vrot.lane.b32.xlu0 %v6495, 32
    %v8438 = vpop.permute.xlu0 %8437
    %8439 = vrot.lane.b32.xlu0 %v6501, 32
    %v8440 = vpop.permute.xlu0 %8439
    %8441 = vrot.lane.b32.xlu0 %v6505, 32
    %v8442 = vpop.permute.xlu0 %8441
    %v8443 = vsel %vm674, %v8372, 0
    %v8445 = vsel %vm674, %v8374, 0
    %v8447 = vsel %vm674, %v8376, 0
    %v8449 = vsel %vm674, %v8378, 0
    %v8451 = vsel %vm674, %v8380, 0
    %v8453 = vsel %vm674, %v8382, 0
    %v8455 = vsel %vm674, %v8384, 0
    %v8457 = vsel %vm674, %v8386, 0
    %v8459 = vsel %vm674, %v8388, 0
    %v8461 = vsel %vm674, %v8390, 0
    %v8463 = vsel %vm674, %v8392, 0
    %v8465 = vsel %vm674, %v8394, 0
    %v8467 = vsel %vm674, %v8396, 0
    %v8469 = vsel %vm674, %v8398, 0
    %v8471 = vsel %vm674, %v8400, 0
    %v8473 = vsel %vm674, %v8402, 0
    %v8475 = vsel %vm674, %v8404, 0
    %v8477 = vsel %vm674, %v8406, 0
    %v8479 = vsel %vm674, %v8408, 0
    %v8481 = vsel %vm674, %v8410, 0
    %v8483 = vsel %vm674, %v8412, 0
    %v8485 = vsel %vm674, %v8414, 0
    %v8487 = vsel %vm674, %v8416, 0
    %v8489 = vsel %vm674, %v8418, 0
    %v8491 = vsel %vm674, %v8420, 0
    %v8493 = vsel %vm674, %v8422, 0
    %v8495 = vsel %vm674, %v8424, 0
    %v8497 = vsel %vm674, %v8426, 0
    %v8499 = vsel %vm674, %v8428, 0
    %v8501 = vsel %vm674, %v8430, 0
    %v8503 = vsel %vm674, %v8432, 0
    %v8505 = vsel %vm674, %v8434, 0
    %v8507 = vsel %vm674, %v8436, 0
    %v8509 = vsel %vm674, %v8438, 0
    %v8511 = vsel %vm674, %v8440, 0
    %v8513 = vsel %vm674, %v8442, 0
    %8515 = vmatprep.subr.mxu0 0.0
    %8516 = vmatpush1.xpose.msra.mxu0 %v8479
    %8517 = vmatprep.subr.mxu0 0.0
    %8518 = vmatpush1.xpose.msra.mxu0 %v8481
    %8519 = vmatprep.subr.mxu0 0.0
    %8520 = vmatpush1.xpose.msra.mxu0 %v8483
    %8521 = vmatprep.subr.mxu0 0.0
    %8522 = vmatpush1.xpose.msra.mxu0 %v8485
    %8523 = vmatprep.subr.mxu0 0.0
    %8524 = vmatpush1.xpose.msra.mxu0 %v8487
    %8525 = vmatprep.subr.mxu0 0.0
    %8526 = vmatpush1.xpose.msra.mxu0 %v8489
    %8527 = vmatprep.subr.mxu0 0.0
    %8528 = vmatpush1.xpose.msra.mxu0 %v8491
    %8529 = vmatprep.subr.mxu0 0.0
    %8530 = vmatpush1.xpose.msra.mxu0 %v8493
    %8531 = vmatprep.subr.mxu0 0.0
    %8532 = vmatpush1.xpose.msra.mxu0 %v8495
    %8533 = vmatprep.subr.mxu0 0.0
    %8534 = vmatpush1.xpose.msra.mxu0 %v8497
    %8535 = vmatprep.subr.mxu0 0.0
    %8536 = vmatpush1.xpose.msra.mxu0 %v8499
    %8537 = vmatprep.subr.mxu0 0.0
    %8538 = vmatpush1.xpose.msra.mxu0 %v8501
    %8539 = vmatprep.subr.mxu0 0.0
    %8540 = vmatpush1.xpose.msra.mxu0 %v8503
    %8541 = vmatprep.subr.mxu0 0.0
    %8542 = vmatpush1.xpose.msra.mxu0 %v8505
    %8543 = vmatprep.subr.mxu0 0.0
    %8544 = vmatpush1.xpose.msra.mxu0 %v8507
    %8545 = vmatprep.subr.mxu0 0.0
    %8546 = vmatpush1.xpose.msra.mxu0 %v8509
    %8547 = vmatprep.subr.mxu0 0.0
    %8548 = vmatpush1.xpose.msra.mxu0 %v8511
    %8549 = vmatprep.subr.mxu0 0.0
    %8550 = vmatpush1.xpose.msra.mxu0 %v8513
    %8551 = vmatprep.subr.mxu0 0.0
    %8552 = vmatpush1.xpose.msra.mxu0 0.0
    %8553 = vmatprep.subr.mxu0 0.0
    %8554 = vmatpush1.xpose.msra.mxu0 0.0
    %8555 = vmatprep.subr.mxu0 0.0
    %8556 = vmatpush1.xpose.msra.mxu0 0.0
    %8557 = vmatprep.subr.mxu0 0.0
    %8558 = vmatpush1.xpose.msra.mxu0 0.0
    %8559 = vmatprep.subr.mxu0 0.0
    %8560 = vmatpush1.xpose.msra.mxu0 0.0
    %8561 = vmatprep.subr.mxu0 0.0
    %8562 = vmatpush1.xpose.msra.mxu0 0.0
    %8563 = vmatprep.subr.mxu0 0.0
    %8564 = vmatpush1.xpose.msra.mxu0 0.0
    %8565 = vmatprep.subr.mxu0 0.0
    %8566 = vmatpush1.xpose.msra.mxu0 0.0
    %8567 = vmatprep.subr.mxu0 0.0
    %8568 = vmatpush1.xpose.msra.mxu0 0.0
    %8569 = vmatprep.subr.mxu0 0.0
    %8570 = vmatpush1.xpose.msra.mxu0 0.0
    %8571 = vmatprep.subr.mxu0 0.0
    %8572 = vmatpush1.xpose.msra.mxu0 0.0
    %8573 = vmatprep.subr.mxu0 0.0
    %8574 = vmatpush1.xpose.msra.mxu0 0.0
    %8575 = vmatprep.subr.mxu0 0.0
    %8576 = vmatpush1.xpose.msra.mxu0 0.0
    %8577 = vmatprep.subr.mxu0 0.0
    %8578 = vmatpush1.xpose.msra.mxu0 0.0
    %8579 = vmatprep.mubr.f32.mxu0 0.0
    %8580 = vmatmul.mubr.f32.gmra.mrb[0].mxu0 %v8443
    %v8581 = vpop.f32.mrb[0].mxu0
    %v8582 = vadd.f32 0.0, %v8581
    %v8583 = vpop.f32.mrb[0].mxu0
    %v8584 = vadd.f32 0.0, %v8583
    %8585 = vmatprep.mubr.f32.mxu0 0.0
    %8586 = vmatmul.mubr.f32.gmra.mrb[0].mxu0 %v8445
    %v8587 = vpop.f32.mrb[0].mxu0
    %v8588 = vadd.f32 0.0, %v8587
    %v8589 = vpop.f32.mrb[0].mxu0
    %v8590 = vadd.f32 0.0, %v8589
    %8591 = vmatprep.mubr.f32.mxu0 0.0
    %8592 = vmatmul.mubr.f32.gmra.mrb[0].mxu0 %v8447
    %v8593 = vpop.f32.mrb[0].mxu0
    %v8594 = vadd.f32 0.0, %v8593
    %v8595 = vpop.f32.mrb[0].mxu0
    %v8596 = vadd.f32 0.0, %v8595
    %8597 = vmatprep.mubr.f32.mxu0 0.0
    %8598 = vmatmul.mubr.f32.gmra.mrb[0].mxu0 %v8449
    %v8599 = vpop.f32.mrb[0].mxu0
    %v8600 = vadd.f32 0.0, %v8599
    %v8601 = vpop.f32.mrb[0].mxu0
    %v8602 = vadd.f32 0.0, %v8601
    %8603 = vmatprep.mubr.f32.mxu0 0.0
    %8604 = vmatmul.mubr.f32.gmra.mrb[0].mxu0 %v8451
    %v8605 = vpop.f32.mrb[0].mxu0
    %v8606 = vadd.f32 0.0, %v8605
    %v8607 = vpop.f32.mrb[0].mxu0
    %v8608 = vadd.f32 0.0, %v8607
    %8609 = vmatprep.mubr.f32.mxu0 0.0
    %8610 = vmatmul.mubr.f32.gmra.mrb[0].mxu0 %v8453
    %v8611 = vpop.f32.mrb[0].mxu0
    %v8612 = vadd.f32 0.0, %v8611
    %v8613 = vpop.f32.mrb[0].mxu0
    %v8614 = vadd.f32 0.0, %v8613
    %8615 = vmatprep.mubr.f32.mxu0 0.0
    %8616 = vmatmul.mubr.f32.gmra.mrb[0].mxu0 %v8455
    %v8617 = vpop.f32.mrb[0].mxu0
    %v8618 = vadd.f32 0.0, %v8617
    %v8619 = vpop.f32.mrb[0].mxu0
    %v8620 = vadd.f32 0.0, %v8619
    %8621 = vmatprep.mubr.f32.mxu0 0.0
    %8622 = vmatmul.mubr.f32.gmra.mrb[0].mxu0 %v8457
    %v8623 = vpop.f32.mrb[0].mxu0
    %v8624 = vadd.f32 0.0, %v8623
    %v8625 = vpop.f32.mrb[0].mxu0
    %v8626 = vadd.f32 0.0, %v8625
    %8627 = vmatprep.mubr.f32.mxu0 0.0
    %8628 = vmatmul.mubr.f32.gmra.mrb[0].mxu0 %v8459
    %v8629 = vpop.f32.mrb[0].mxu0
    %v8630 = vadd.f32 0.0, %v8629
    %v8631 = vpop.f32.mrb[0].mxu0
    %v8632 = vadd.f32 0.0, %v8631
    %8633 = vmatprep.mubr.f32.mxu0 0.0
    %8634 = vmatmul.mubr.f32.gmra.mrb[0].mxu0 %v8461
    %v8635 = vpop.f32.mrb[0].mxu0
    %v8636 = vadd.f32 0.0, %v8635
    %v8637 = vpop.f32.mrb[0].mxu0
    %v8638 = vadd.f32 0.0, %v8637
    %8639 = vmatprep.mubr.f32.mxu0 0.0
    %8640 = vmatmul.mubr.f32.gmra.mrb[0].mxu0 %v8463
    %v8641 = vpop.f32.mrb[0].mxu0
    %v8642 = vadd.f32 0.0, %v8641
    %v8643 = vpop.f32.mrb[0].mxu0
    %v8644 = vadd.f32 0.0, %v8643
    %8645 = vmatprep.mubr.f32.mxu0 0.0
    %8646 = vmatmul.mubr.f32.gmra.mrb[0].mxu0 %v8465
    %v8647 = vpop.f32.mrb[0].mxu0
    %v8648 = vadd.f32 0.0, %v8647
    %v8649 = vpop.f32.mrb[0].mxu0
    %v8650 = vadd.f32 0.0, %v8649
    %8651 = vmatprep.mubr.f32.mxu0 0.0
    %8652 = vmatmul.mubr.f32.gmra.mrb[0].mxu0 %v8467
    %v8653 = vpop.f32.mrb[0].mxu0
    %v8654 = vadd.f32 0.0, %v8653
    %v8655 = vpop.f32.mrb[0].mxu0
    %v8656 = vadd.f32 0.0, %v8655
    %8657 = vmatprep.mubr.f32.mxu0 0.0
    %8658 = vmatmul.mubr.f32.gmra.mrb[0].mxu0 %v8469
    %v8659 = vpop.f32.mrb[0].mxu0
    %v8660 = vadd.f32 0.0, %v8659
    %v8661 = vpop.f32.mrb[0].mxu0
    %v8662 = vadd.f32 0.0, %v8661
    %8663 = vmatprep.mubr.f32.mxu0 0.0
    %8664 = vmatmul.mubr.f32.gmra.mrb[0].mxu0 %v8471
    %v8665 = vpop.f32.mrb[0].mxu0
    %v8666 = vadd.f32 0.0, %v8665
    %v8667 = vpop.f32.mrb[0].mxu0
    %v8668 = vadd.f32 0.0, %v8667
    %8669 = vmatprep.mubr.f32.mxu0 0.0
    %8670 = vmatmul.mubr.f32.gmra.mrb[0].mxu0 %v8473
    %v8671 = vpop.f32.mrb[0].mxu0
    %v8672 = vadd.f32 0.0, %v8671
    %v8673 = vpop.f32.mrb[0].mxu0
    %v8674 = vadd.f32 0.0, %v8673
    %8675 = vmatprep.mubr.f32.mxu0 0.0
    %8676 = vmatmul.mubr.f32.gmra.mrb[0].mxu0 %v8475
    %v8677 = vpop.f32.mrb[0].mxu0
    %v8678 = vadd.f32 0.0, %v8677
    %v8679 = vpop.f32.mrb[0].mxu0
    %v8680 = vadd.f32 0.0, %v8679
    %8681 = vmatprep.mubr.f32.mxu0 0.0
    %8682 = vmatmul.mubr.f32.gmra.mrb[0].mxu0 %v8477
    %v8683 = vpop.f32.mrb[0].mxu0
    %v8684 = vadd.f32 0.0, %v8683
    %v8685 = vpop.f32.mrb[0].mxu0
    %v8686 = vadd.f32 0.0, %v8685
    %8687 = vdwg.mxu0
    %v8688 = vmul.f32 %v8582, 0.25
    %v8689 = vmul.f32 %v8584, 0.25
    %v8690 = vmul.f32 %v8588, 0.25
    %v8691 = vmul.f32 %v8590, 0.25
    %v8692 = vmul.f32 %v8594, 0.25
    %v8693 = vmul.f32 %v8596, 0.25
    %v8694 = vmul.f32 %v8600, 0.25
    %v8695 = vmul.f32 %v8602, 0.25
    %v8696 = vmul.f32 %v8606, 0.25
    %v8697 = vmul.f32 %v8608, 0.25
    %v8698 = vmul.f32 %v8612, 0.25
    %v8699 = vmul.f32 %v8614, 0.25
    %v8700 = vmul.f32 %v8618, 0.25
    %v8701 = vmul.f32 %v8620, 0.25
    %v8702 = vmul.f32 %v8624, 0.25
    %v8703 = vmul.f32 %v8626, 0.25
    %v8704 = vmul.f32 %v8630, 0.25
    %v8705 = vmul.f32 %v8632, 0.25
    %v8706 = vmul.f32 %v8636, 0.25
    %v8707 = vmul.f32 %v8638, 0.25
    %v8708 = vmul.f32 %v8642, 0.25
    %v8709 = vmul.f32 %v8644, 0.25
    %v8710 = vmul.f32 %v8648, 0.25
    %v8711 = vmul.f32 %v8650, 0.25
    %v8712 = vmul.f32 %v8654, 0.25
    %v8713 = vmul.f32 %v8656, 0.25
    %v8714 = vmul.f32 %v8660, 0.25
    %v8715 = vmul.f32 %v8662, 0.25
    %v8716 = vmul.f32 %v8666, 0.25
    %v8717 = vmul.f32 %v8668, 0.25
    %v8718 = vmul.f32 %v8672, 0.25
    %v8719 = vmul.f32 %v8674, 0.25
    %v8720 = vmul.f32 %v8678, 0.25
    %v8721 = vmul.f32 %v8680, 0.25
    %v8722 = vmul.f32 %v8684, 0.25
    %v8723 = vmul.f32 %v8686, 0.25
    %v8724 = vadd.f32 %v8688, %v97
    %v8725 = vadd.f32 %v8689, %v98
    %v8726 = vadd.f32 %v8690, %v99
    %v8727 = vadd.f32 %v8691, %v100
    %v8728 = vadd.f32 %v8692, %v101
    %v8729 = vadd.f32 %v8693, %v102
    %v8730 = vadd.f32 %v8694, %v103
    %v8731 = vadd.f32 %v8695, %v104
    %v8732 = vadd.f32 %v8696, %v105
    %v8733 = vadd.f32 %v8697, %v106
    %v8734 = vadd.f32 %v8698, %v107
    %v8735 = vadd.f32 %v8699, %v108
    %v8736 = vadd.f32 %v8700, %v109
    %v8737 = vadd.f32 %v8701, %v110
    %v8738 = vadd.f32 %v8702, %v111
    %v8739 = vadd.f32 %v8703, %v112
    %v8740 = vadd.f32 %v8704, %v113
    %v8741 = vadd.f32 %v8705, %v114
    %v8742 = vadd.f32 %v8706, %v115
    %v8743 = vadd.f32 %v8707, %v116
    %v8744 = vadd.f32 %v8708, %v117
    %v8745 = vadd.f32 %v8709, %v118
    %v8746 = vadd.f32 %v8710, %v119
    %v8747 = vadd.f32 %v8711, %v120
    %v8748 = vadd.f32 %v8712, %v121
    %v8749 = vadd.f32 %v8713, %v122
    %v8750 = vadd.f32 %v8714, %v123
    %v8751 = vadd.f32 %v8715, %v124
    %v8752 = vadd.f32 %v8716, %v125
    %v8753 = vadd.f32 %v8717, %v126
    %v8754 = vadd.f32 %v8718, %v127
    %v8755 = vadd.f32 %v8719, %v128
    %v8756 = vadd.f32 %v8720, %v129
    %v8757 = vadd.f32 %v8721, %v130
    %v8758 = vadd.f32 %v8722, %v131
    %v8759 = vadd.f32 %v8723, %v132
    %v8760 = vsel %vm674, %v8725, -inf
    %v8761 = vmax.f32 %v8724, %v8760
    %8762 = vmax.xlane.f32.xlu0 %v8761
    %v8763 = vpop.xlane.xlu0 %8762
    %v8764 = vsel %vm674, %v8727, -inf
    %v8765 = vmax.f32 %v8726, %v8764
    %8766 = vmax.xlane.f32.xlu0 %v8765
    %v8767 = vpop.xlane.xlu0 %8766
    %v8768 = vsel %vm674, %v8729, -inf
    %v8769 = vmax.f32 %v8728, %v8768
    %8770 = vmax.xlane.f32.xlu0 %v8769
    %v8771 = vpop.xlane.xlu0 %8770
    %v8772 = vsel %vm674, %v8731, -inf
    %v8773 = vmax.f32 %v8730, %v8772
    %8774 = vmax.xlane.f32.xlu0 %v8773
    %v8775 = vpop.xlane.xlu0 %8774
    %v8776 = vsel %vm674, %v8733, -inf
    %v8777 = vmax.f32 %v8732, %v8776
    %8778 = vmax.xlane.f32.xlu0 %v8777
    %v8779 = vpop.xlane.xlu0 %8778
    %v8780 = vsel %vm674, %v8735, -inf
    %v8781 = vmax.f32 %v8734, %v8780
    %8782 = vmax.xlane.f32.xlu0 %v8781
    %v8783 = vpop.xlane.xlu0 %8782
    %v8784 = vsel %vm674, %v8737, -inf
    %v8785 = vmax.f32 %v8736, %v8784
    %8786 = vmax.xlane.f32.xlu0 %v8785
    %v8787 = vpop.xlane.xlu0 %8786
    %v8788 = vsel %vm674, %v8739, -inf
    %v8789 = vmax.f32 %v8738, %v8788
    %8790 = vmax.xlane.f32.xlu0 %v8789
    %v8791 = vpop.xlane.xlu0 %8790
    %v8792 = vsel %vm674, %v8741, -inf
    %v8793 = vmax.f32 %v8740, %v8792
    %8794 = vmax.xlane.f32.xlu0 %v8793
    %v8795 = vpop.xlane.xlu0 %8794
    %v8796 = vsel %vm674, %v8743, -inf
    %v8797 = vmax.f32 %v8742, %v8796
    %8798 = vmax.xlane.f32.xlu0 %v8797
    %v8799 = vpop.xlane.xlu0 %8798
    %v8800 = vsel %vm674, %v8745, -inf
    %v8801 = vmax.f32 %v8744, %v8800
    %8802 = vmax.xlane.f32.xlu0 %v8801
    %v8803 = vpop.xlane.xlu0 %8802
    %v8804 = vsel %vm674, %v8747, -inf
    %v8805 = vmax.f32 %v8746, %v8804
    %8806 = vmax.xlane.f32.xlu0 %v8805
    %v8807 = vpop.xlane.xlu0 %8806
    %v8808 = vsel %vm674, %v8749, -inf
    %v8809 = vmax.f32 %v8748, %v8808
    %8810 = vmax.xlane.f32.xlu0 %v8809
    %v8811 = vpop.xlane.xlu0 %8810
    %v8812 = vsel %vm674, %v8751, -inf
    %v8813 = vmax.f32 %v8750, %v8812
    %8814 = vmax.xlane.f32.xlu0 %v8813
    %v8815 = vpop.xlane.xlu0 %8814
    %v8816 = vsel %vm674, %v8753, -inf
    %v8817 = vmax.f32 %v8752, %v8816
    %8818 = vmax.xlane.f32.xlu0 %v8817
    %v8819 = vpop.xlane.xlu0 %8818
    %v8820 = vsel %vm674, %v8755, -inf
    %v8821 = vmax.f32 %v8754, %v8820
    %8822 = vmax.xlane.f32.xlu0 %v8821
    %v8823 = vpop.xlane.xlu0 %8822
    %v8824 = vsel %vm674, %v8757, -inf
    %v8825 = vmax.f32 %v8756, %v8824
    %8826 = vmax.xlane.f32.xlu0 %v8825
    %v8827 = vpop.xlane.xlu0 %8826
    %v8828 = vsel %vm674, %v8759, -inf
    %v8829 = vmax.f32 %v8758, %v8828
    %8830 = vmax.xlane.f32.xlu0 %v8829
    %v8831 = vpop.xlane.xlu0 %8830
    %v8832 = vsub.f32 %v8724, %v8763
    %v8833 = vsub.f32 %v8725, %v8763
    %v8834 = vsub.f32 %v8726, %v8767
    %v8835 = vsub.f32 %v8727, %v8767
    %v8836 = vsub.f32 %v8728, %v8771
    %v8837 = vsub.f32 %v8729, %v8771
    %v8838 = vsub.f32 %v8730, %v8775
    %v8839 = vsub.f32 %v8731, %v8775
    %v8840 = vsub.f32 %v8732, %v8779
    %v8841 = vsub.f32 %v8733, %v8779
    %v8842 = vsub.f32 %v8734, %v8783
    %v8843 = vsub.f32 %v8735, %v8783
    %v8844 = vsub.f32 %v8736, %v8787
    %v8845 = vsub.f32 %v8737, %v8787
    %v8846 = vsub.f32 %v8738, %v8791
    %v8847 = vsub.f32 %v8739, %v8791
    %v8848 = vsub.f32 %v8740, %v8795
    %v8849 = vsub.f32 %v8741, %v8795
    %v8850 = vsub.f32 %v8742, %v8799
    %v8851 = vsub.f32 %v8743, %v8799
    %v8852 = vsub.f32 %v8744, %v8803
    %v8853 = vsub.f32 %v8745, %v8803
    %v8854 = vsub.f32 %v8746, %v8807
    %v8855 = vsub.f32 %v8747, %v8807
    %v8856 = vsub.f32 %v8748, %v8811
    %v8857 = vsub.f32 %v8749, %v8811
    %v8858 = vsub.f32 %v8750, %v8815
    %v8859 = vsub.f32 %v8751, %v8815
    %v8860 = vsub.f32 %v8752, %v8819
    %v8861 = vsub.f32 %v8753, %v8819
    %v8862 = vsub.f32 %v8754, %v8823
    %v8863 = vsub.f32 %v8755, %v8823
    %v8864 = vsub.f32 %v8756, %v8827
    %v8865 = vsub.f32 %v8757, %v8827
    %v8866 = vsub.f32 %v8758, %v8831
    %v8867 = vsub.f32 %v8759, %v8831
    %v8868 = vmul.f32 %v8832, 1.442695
    %v8869 = vpow.pop %v8868
    %v8870 = vmul.f32 %v8833, 1.442695
    %v8871 = vpow.pop %v8870
    %v8872 = vmul.f32 %v8834, 1.442695
    %v8873 = vpow.pop %v8872
    %v8874 = vmul.f32 %v8835, 1.442695
    %v8875 = vpow.pop %v8874
    %v8876 = vmul.f32 %v8836, 1.442695
    %v8877 = vpow.pop %v8876
    %v8878 = vmul.f32 %v8837, 1.442695
    %v8879 = vpow.pop %v8878
    %v8880 = vmul.f32 %v8838, 1.442695
    %v8881 = vpow.pop %v8880
    %v8882 = vmul.f32 %v8839, 1.442695
    %v8883 = vpow.pop %v8882
    %v8884 = vmul.f32 %v8840, 1.442695
    %v8885 = vpow.pop %v8884
    %v8886 = vmul.f32 %v8841, 1.442695
    %v8887 = vpow.pop %v8886
    %v8888 = vmul.f32 %v8842, 1.442695
    %v8889 = vpow.pop %v8888
    %v8890 = vmul.f32 %v8843, 1.442695
    %v8891 = vpow.pop %v8890
    %v8892 = vmul.f32 %v8844, 1.442695
    %v8893 = vpow.pop %v8892
    %v8894 = vmul.f32 %v8845, 1.442695
    %v8895 = vpow.pop %v8894
    %v8896 = vmul.f32 %v8846, 1.442695
    %v8897 = vpow.pop %v8896
    %v8898 = vmul.f32 %v8847, 1.442695
    %v8899 = vpow.pop %v8898
    %v8900 = vmul.f32 %v8848, 1.442695
    %v8901 = vpow.pop %v8900
    %v8902 = vmul.f32 %v8849, 1.442695
    %v8903 = vpow.pop %v8902
    %v8904 = vmul.f32 %v8850, 1.442695
    %v8905 = vpow.pop %v8904
    %v8906 = vmul.f32 %v8851, 1.442695
    %v8907 = vpow.pop %v8906
    %v8908 = vmul.f32 %v8852, 1.442695
    %v8909 = vpow.pop %v8908
    %v8910 = vmul.f32 %v8853, 1.442695
    %v8911 = vpow.pop %v8910
    %v8912 = vmul.f32 %v8854, 1.442695
    %v8913 = vpow.pop %v8912
    %v8914 = vmul.f32 %v8855, 1.442695
    %v8915 = vpow.pop %v8914
    %v8916 = vmul.f32 %v8856, 1.442695
    %v8917 = vpow.pop %v8916
    %v8918 = vmul.f32 %v8857, 1.442695
    %v8919 = vpow.pop %v8918
    %v8920 = vmul.f32 %v8858, 1.442695
    %v8921 = vpow.pop %v8920
    %v8922 = vmul.f32 %v8859, 1.442695
    %v8923 = vpow.pop %v8922
    %v8924 = vmul.f32 %v8860, 1.442695
    %v8925 = vpow.pop %v8924
    %v8926 = vmul.f32 %v8861, 1.442695
    %v8927 = vpow.pop %v8926
    %v8928 = vmul.f32 %v8862, 1.442695
    %v8929 = vpow.pop %v8928
    %v8930 = vmul.f32 %v8863, 1.442695
    %v8931 = vpow.pop %v8930
    %v8932 = vmul.f32 %v8864, 1.442695
    %v8933 = vpow.pop %v8932
    %v8934 = vmul.f32 %v8865, 1.442695
    %v8935 = vpow.pop %v8934
    %v8936 = vmul.f32 %v8866, 1.442695
    %v8937 = vpow.pop %v8936
    %v8938 = vmul.f32 %v8867, 1.442695
    %v8939 = vpow.pop %v8938
    %v8940 = vsel %vm674, %v8871, 0.0
    %v8941 = vadd.f32 %v8869, %v8940
    %8942 = vadd.xlane.f32.xlu0 %v8941
    %v8943 = vpop.xlane.xlu0 %8942
    %v8944 = vsel %vm674, %v8875, 0.0
    %v8945 = vadd.f32 %v8873, %v8944
    %8946 = vadd.xlane.f32.xlu0 %v8945
    %v8947 = vpop.xlane.xlu0 %8946
    %v8948 = vsel %vm674, %v8879, 0.0
    %v8949 = vadd.f32 %v8877, %v8948
    %8950 = vadd.xlane.f32.xlu0 %v8949
    %v8951 = vpop.xlane.xlu0 %8950
    %v8952 = vsel %vm674, %v8883, 0.0
    %v8953 = vadd.f32 %v8881, %v8952
    %8954 = vadd.xlane.f32.xlu0 %v8953
    %v8955 = vpop.xlane.xlu0 %8954
    %v8956 = vsel %vm674, %v8887, 0.0
    %v8957 = vadd.f32 %v8885, %v8956
    %8958 = vadd.xlane.f32.xlu0 %v8957
    %v8959 = vpop.xlane.xlu0 %8958
    %v8960 = vsel %vm674, %v8891, 0.0
    %v8961 = vadd.f32 %v8889, %v8960
    %8962 = vadd.xlane.f32.xlu0 %v8961
    %v8963 = vpop.xlane.xlu0 %8962
    %v8964 = vsel %vm674, %v8895, 0.0
    %v8965 = vadd.f32 %v8893, %v8964
    %8966 = vadd.xlane.f32.xlu0 %v8965
    %v8967 = vpop.xlane.xlu0 %8966
    %v8968 = vsel %vm674, %v8899, 0.0
    %v8969 = vadd.f32 %v8897, %v8968
    %8970 = vadd.xlane.f32.xlu0 %v8969
    %v8971 = vpop.xlane.xlu0 %8970
    %v8972 = vsel %vm674, %v8903, 0.0
    %v8973 = vadd.f32 %v8901, %v8972
    %8974 = vadd.xlane.f32.xlu0 %v8973
    %v8975 = vpop.xlane.xlu0 %8974
    %v8976 = vsel %vm674, %v8907, 0.0
    %v8977 = vadd.f32 %v8905, %v8976
    %8978 = vadd.xlane.f32.xlu0 %v8977
    %v8979 = vpop.xlane.xlu0 %8978
    %v8980 = vsel %vm674, %v8911, 0.0
    %v8981 = vadd.f32 %v8909, %v8980
    %8982 = vadd.xlane.f32.xlu0 %v8981
    %v8983 = vpop.xlane.xlu0 %8982
    %v8984 = vsel %vm674, %v8915, 0.0
    %v8985 = vadd.f32 %v8913, %v8984
    %8986 = vadd.xlane.f32.xlu0 %v8985
    %v8987 = vpop.xlane.xlu0 %8986
    %v8988 = vsel %vm674, %v8919, 0.0
    %v8989 = vadd.f32 %v8917, %v8988
    %8990 = vadd.xlane.f32.xlu0 %v8989
    %v8991 = vpop.xlane.xlu0 %8990
    %v8992 = vsel %vm674, %v8923, 0.0
    %v8993 = vadd.f32 %v8921, %v8992
    %8994 = vadd.xlane.f32.xlu0 %v8993
    %v8995 = vpop.xlane.xlu0 %8994
    %v8996 = vsel %vm674, %v8927, 0.0
    %v8997 = vadd.f32 %v8925, %v8996
    %8998 = vadd.xlane.f32.xlu0 %v8997
    %v8999 = vpop.xlane.xlu0 %8998
    %v9000 = vsel %vm674, %v8931, 0.0
    %v9001 = vadd.f32 %v8929, %v9000
    %9002 = vadd.xlane.f32.xlu0 %v9001
    %v9003 = vpop.xlane.xlu0 %9002
    %v9004 = vsel %vm674, %v8935, 0.0
    %v9005 = vadd.f32 %v8933, %v9004
    %9006 = vadd.xlane.f32.xlu0 %v9005
    %v9007 = vpop.xlane.xlu0 %9006
    %v9008 = vsel %vm674, %v8939, 0.0
    %v9009 = vadd.f32 %v8937, %v9008
    %9010 = vadd.xlane.f32.xlu0 %v9009
    %v9011 = vpop.xlane.xlu0 %9010
    %v9012 = vrcp.pop %v8943
    %v9013 = vrcp.pop %v8947
    %v9014 = vrcp.pop %v8951
    %v9015 = vrcp.pop %v8955
    %v9016 = vrcp.pop %v8959
    %v9017 = vrcp.pop %v8963
    %v9018 = vrcp.pop %v8967
    %v9019 = vrcp.pop %v8971
    %v9020 = vrcp.pop %v8975
    %v9021 = vrcp.pop %v8979
    %v9022 = vrcp.pop %v8983
    %v9023 = vrcp.pop %v8987
    %v9024 = vrcp.pop %v8991
    %v9025 = vrcp.pop %v8995
    %v9026 = vrcp.pop %v8999
    %v9027 = vrcp.pop %v9003
    %v9028 = vrcp.pop %v9007
    %v9029 = vrcp.pop %v9011
    %v9030 = vmul.f32 %v8869, %v9012
    %v9031 = vmul.f32 %v8871, %v9012
    %v9032 = vmul.f32 %v8873, %v9013
    %v9033 = vmul.f32 %v8875, %v9013
    %v9034 = vmul.f32 %v8877, %v9014
    %v9035 = vmul.f32 %v8879, %v9014
    %v9036 = vmul.f32 %v8881, %v9015
    %v9037 = vmul.f32 %v8883, %v9015
    %v9038 = vmul.f32 %v8885, %v9016
    %v9039 = vmul.f32 %v8887, %v9016
    %v9040 = vmul.f32 %v8889, %v9017
    %v9041 = vmul.f32 %v8891, %v9017
    %v9042 = vmul.f32 %v8893, %v9018
    %v9043 = vmul.f32 %v8895, %v9018
    %v9044 = vmul.f32 %v8897, %v9019
    %v9045 = vmul.f32 %v8899, %v9019
    %v9046 = vmul.f32 %v8901, %v9020
    %v9047 = vmul.f32 %v8903, %v9020
    %v9048 = vmul.f32 %v8905, %v9021
    %v9049 = vmul.f32 %v8907, %v9021
    %v9050 = vmul.f32 %v8909, %v9022
    %v9051 = vmul.f32 %v8911, %v9022
    %v9052 = vmul.f32 %v8913, %v9023
    %v9053 = vmul.f32 %v8915, %v9023
    %v9054 = vmul.f32 %v8917, %v9024
    %v9055 = vmul.f32 %v8919, %v9024
    %v9056 = vmul.f32 %v8921, %v9025
    %v9057 = vmul.f32 %v8923, %v9025
    %v9058 = vmul.f32 %v8925, %v9026
    %v9059 = vmul.f32 %v8927, %v9026
    %v9060 = vmul.f32 %v8929, %v9027
    %v9061 = vmul.f32 %v8931, %v9027
    %v9062 = vmul.f32 %v8933, %v9028
    %v9063 = vmul.f32 %v8935, %v9028
    %v9064 = vmul.f32 %v8937, %v9029
    %v9065 = vmul.f32 %v8939, %v9029
    %9066 = vrot.lane.b32.xlu0 %v6423, 96
    %v9067 = vpop.permute.xlu0 %9066
    %9068 = vrot.lane.b32.xlu0 %v6427, 96
    %v9069 = vpop.permute.xlu0 %9068
    %9070 = vrot.lane.b32.xlu0 %v6433, 96
    %v9071 = vpop.permute.xlu0 %9070
    %9072 = vrot.lane.b32.xlu0 %v6437, 96
    %v9073 = vpop.permute.xlu0 %9072
    %9074 = vrot.lane.b32.xlu0 %v6443, 96
    %v9075 = vpop.permute.xlu0 %9074
    %9076 = vrot.lane.b32.xlu0 %v6447, 96
    %v9077 = vpop.permute.xlu0 %9076
    %9078 = vrot.lane.b32.xlu0 %v6453, 96
    %v9079 = vpop.permute.xlu0 %9078
    %9080 = vrot.lane.b32.xlu0 %v6457, 96
    %v9081 = vpop.permute.xlu0 %9080
    %9082 = vrot.lane.b32.xlu0 %v6463, 96
    %v9083 = vpop.permute.xlu0 %9082
    %9084 = vrot.lane.b32.xlu0 %v6467, 96
    %v9085 = vpop.permute.xlu0 %9084
    %9086 = vrot.lane.b32.xlu0 %v6473, 96
    %v9087 = vpop.permute.xlu0 %9086
    %9088 = vrot.lane.b32.xlu0 %v6477, 96
    %v9089 = vpop.permute.xlu0 %9088
    %9090 = vrot.lane.b32.xlu0 %v6483, 96
    %v9091 = vpop.permute.xlu0 %9090
    %9092 = vrot.lane.b32.xlu0 %v6487, 96
    %v9093 = vpop.permute.xlu0 %9092
    %9094 = vrot.lane.b32.xlu0 %v6493, 96
    %v9095 = vpop.permute.xlu0 %9094
    %9096 = vrot.lane.b32.xlu0 %v6497, 96
    %v9097 = vpop.permute.xlu0 %9096
    %9098 = vrot.lane.b32.xlu0 %v6503, 96
    %v9099 = vpop.permute.xlu0 %9098
    %9100 = vrot.lane.b32.xlu0 %v6507, 96
    %v9101 = vpop.permute.xlu0 %9100
    %v9121 = vsel %vm674, %v9031, 0
    %v9124 = vsel %vm674, %v9033, 0
    %v9127 = vsel %vm674, %v9035, 0
    %v9130 = vsel %vm674, %v9037, 0
    %v9133 = vsel %vm674, %v9039, 0
    %v9136 = vsel %vm674, %v9041, 0
    %v9139 = vsel %vm674, %v9043, 0
    %v9142 = vsel %vm674, %v9045, 0
    %v9145 = vsel %vm674, %v9047, 0
    %v9148 = vsel %vm674, %v9049, 0
    %v9151 = vsel %vm674, %v9051, 0
    %v9154 = vsel %vm674, %v9053, 0
    %v9157 = vsel %vm674, %v9055, 0
    %v9160 = vsel %vm674, %v9057, 0
    %v9163 = vsel %vm674, %v9059, 0
    %v9166 = vsel %vm674, %v9061, 0
    %v9169 = vsel %vm674, %v9063, 0
    %v9172 = vsel %vm674, %v9065, 0
    %9174 = vmatprep.subr.mxu0 0.0
    %9175 = vmatpush1.msra.mxu0 %v9067
    %9176 = vmatprep.subr.mxu0 0.0
    %9177 = vmatpush1.msra.mxu0 %v9069
    %9178 = vmatprep.subr.mxu0 0.0
    %9179 = vmatpush1.msra.mxu0 %v9071
    %9180 = vmatprep.subr.mxu0 0.0
    %9181 = vmatpush1.msra.mxu0 %v9073
    %9182 = vmatprep.subr.mxu0 0.0
    %9183 = vmatpush1.msra.mxu0 %v9075
    %9184 = vmatprep.subr.mxu0 0.0
    %9185 = vmatpush1.msra.mxu0 %v9077
    %9186 = vmatprep.subr.mxu0 0.0
    %9187 = vmatpush1.msra.mxu0 %v9079
    %9188 = vmatprep.subr.mxu0 0.0
    %9189 = vmatpush1.msra.mxu0 %v9081
    %9190 = vmatprep.subr.mxu0 0.0
    %9191 = vmatpush1.msra.mxu0 %v9083
    %9192 = vmatprep.subr.mxu0 0.0
    %9193 = vmatpush1.msra.mxu0 %v9085
    %9194 = vmatprep.subr.mxu0 0.0
    %9195 = vmatpush1.msra.mxu0 %v9087
    %9196 = vmatprep.subr.mxu0 0.0
    %9197 = vmatpush1.msra.mxu0 %v9089
    %9198 = vmatprep.subr.mxu0 0.0
    %9199 = vmatpush1.msra.mxu0 %v9091
    %9200 = vmatprep.subr.mxu0 0.0
    %9201 = vmatpush1.msra.mxu0 %v9093
    %9202 = vmatprep.subr.mxu0 0.0
    %9203 = vmatpush1.msra.mxu0 %v9095
    %9204 = vmatprep.subr.mxu0 0.0
    %9205 = vmatpush1.msra.mxu0 %v9097
    %9206 = vmatprep.subr.mxu0 0.0
    %9207 = vmatpush1.msra.mxu0 %v9099
    %9208 = vmatprep.subr.mxu0 0.0
    %9209 = vmatpush1.msra.mxu0 %v9101
    %9210 = vmatprep.subr.mxu0 0.0
    %9211 = vmatpush1.msra.mxu0 0.0
    %9212 = vmatprep.subr.mxu0 0.0
    %9213 = vmatpush1.msra.mxu0 0.0
    %9214 = vmatprep.subr.mxu0 0.0
    %9215 = vmatpush1.msra.mxu0 0.0
    %9216 = vmatprep.subr.mxu0 0.0
    %9217 = vmatpush1.msra.mxu0 0.0
    %9218 = vmatprep.subr.mxu0 0.0
    %9219 = vmatpush1.msra.mxu0 0.0
    %9220 = vmatprep.subr.mxu0 0.0
    %9221 = vmatpush1.msra.mxu0 0.0
    %9222 = vmatprep.subr.mxu0 0.0
    %9223 = vmatpush1.msra.mxu0 0.0
    %9224 = vmatprep.subr.mxu0 0.0
    %9225 = vmatpush1.msra.mxu0 0.0
    %9226 = vmatprep.subr.mxu0 0.0
    %9227 = vmatpush1.msra.mxu0 0.0
    %9228 = vmatprep.subr.mxu0 0.0
    %9229 = vmatpush1.msra.mxu0 0.0
    %9230 = vmatprep.subr.mxu0 0.0
    %9231 = vmatpush1.msra.mxu0 0.0
    %9232 = vmatprep.subr.mxu0 0.0
    %9233 = vmatpush1.msra.mxu0 0.0
    %9234 = vmatprep.subr.mxu0 0.0
    %9235 = vmatpush1.msra.mxu0 0.0
    %9236 = vmatprep.subr.mxu0 0.0
    %9237 = vmatpush1.msra.mxu0 0.0
    %9238 = vmatprep.mubr.f32.mxu0 %v9121
    %9239 = vmatmul.mubr.f32.gmra.mrb[0].mxu0 %v9030
    %v9240 = vpop.f32.mrb[0].mxu0
    %v9241 = vadd.f32 0.0, %v9240
    %v9242 = vpop.f32.mrb[0].mxu0
    %9243 = vmatprep.mubr.f32.mxu0 %v9124
    %9244 = vmatmul.mubr.f32.gmra.mrb[0].mxu0 %v9032
    %v9245 = vpop.f32.mrb[0].mxu0
    %v9246 = vadd.f32 0.0, %v9245
    %v9247 = vpop.f32.mrb[0].mxu0
    %9248 = vmatprep.mubr.f32.mxu0 %v9127
    %9249 = vmatmul.mubr.f32.gmra.mrb[0].mxu0 %v9034
    %v9250 = vpop.f32.mrb[0].mxu0
    %v9251 = vadd.f32 0.0, %v9250
    %v9252 = vpop.f32.mrb[0].mxu0
    %9253 = vmatprep.mubr.f32.mxu0 %v9130
    %9254 = vmatmul.mubr.f32.gmra.mrb[0].mxu0 %v9036
    %v9255 = vpop.f32.mrb[0].mxu0
    %v9256 = vadd.f32 0.0, %v9255
    %v9257 = vpop.f32.mrb[0].mxu0
    %9258 = vmatprep.mubr.f32.mxu0 %v9133
    %9259 = vmatmul.mubr.f32.gmra.mrb[0].mxu0 %v9038
    %v9260 = vpop.f32.mrb[0].mxu0
    %v9261 = vadd.f32 0.0, %v9260
    %v9262 = vpop.f32.mrb[0].mxu0
    %9263 = vmatprep.mubr.f32.mxu0 %v9136
    %9264 = vmatmul.mubr.f32.gmra.mrb[0].mxu0 %v9040
    %v9265 = vpop.f32.mrb[0].mxu0
    %v9266 = vadd.f32 0.0, %v9265
    %v9267 = vpop.f32.mrb[0].mxu0
    %9268 = vmatprep.mubr.f32.mxu0 %v9139
    %9269 = vmatmul.mubr.f32.gmra.mrb[0].mxu0 %v9042
    %v9270 = vpop.f32.mrb[0].mxu0
    %v9271 = vadd.f32 0.0, %v9270
    %v9272 = vpop.f32.mrb[0].mxu0
    %9273 = vmatprep.mubr.f32.mxu0 %v9142
    %9274 = vmatmul.mubr.f32.gmra.mrb[0].mxu0 %v9044
    %v9275 = vpop.f32.mrb[0].mxu0
    %v9276 = vadd.f32 0.0, %v9275
    %v9277 = vpop.f32.mrb[0].mxu0
    %9278 = vmatprep.mubr.f32.mxu0 %v9145
    %9279 = vmatmul.mubr.f32.gmra.mrb[0].mxu0 %v9046
    %v9280 = vpop.f32.mrb[0].mxu0
    %v9281 = vadd.f32 0.0, %v9280
    %v9282 = vpop.f32.mrb[0].mxu0
    %9283 = vmatprep.mubr.f32.mxu0 %v9148
    %9284 = vmatmul.mubr.f32.gmra.mrb[0].mxu0 %v9048
    %v9285 = vpop.f32.mrb[0].mxu0
    %v9286 = vadd.f32 0.0, %v9285
    %v9287 = vpop.f32.mrb[0].mxu0
    %9288 = vmatprep.mubr.f32.mxu0 %v9151
    %9289 = vmatmul.mubr.f32.gmra.mrb[0].mxu0 %v9050
    %v9290 = vpop.f32.mrb[0].mxu0
    %v9291 = vadd.f32 0.0, %v9290
    %v9292 = vpop.f32.mrb[0].mxu0
    %9293 = vmatprep.mubr.f32.mxu0 %v9154
    %9294 = vmatmul.mubr.f32.gmra.mrb[0].mxu0 %v9052
    %v9295 = vpop.f32.mrb[0].mxu0
    %v9296 = vadd.f32 0.0, %v9295
    %v9297 = vpop.f32.mrb[0].mxu0
    %9298 = vmatprep.mubr.f32.mxu0 %v9157
    %9299 = vmatmul.mubr.f32.gmra.mrb[0].mxu0 %v9054
    %v9300 = vpop.f32.mrb[0].mxu0
    %v9301 = vadd.f32 0.0, %v9300
    %v9302 = vpop.f32.mrb[0].mxu0
    %9303 = vmatprep.mubr.f32.mxu0 %v9160
    %9304 = vmatmul.mubr.f32.gmra.mrb[0].mxu0 %v9056
    %v9305 = vpop.f32.mrb[0].mxu0
    %v9306 = vadd.f32 0.0, %v9305
    %v9307 = vpop.f32.mrb[0].mxu0
    %9308 = vmatprep.mubr.f32.mxu0 %v9163
    %9309 = vmatmul.mubr.f32.gmra.mrb[0].mxu0 %v9058
    %v9310 = vpop.f32.mrb[0].mxu0
    %v9311 = vadd.f32 0.0, %v9310
    %v9312 = vpop.f32.mrb[0].mxu0
    %9313 = vmatprep.mubr.f32.mxu0 %v9166
    %9314 = vmatmul.mubr.f32.gmra.mrb[0].mxu0 %v9060
    %v9315 = vpop.f32.mrb[0].mxu0
    %v9316 = vadd.f32 0.0, %v9315
    %v9317 = vpop.f32.mrb[0].mxu0
    %9318 = vmatprep.mubr.f32.mxu0 %v9169
    %9319 = vmatmul.mubr.f32.gmra.mrb[0].mxu0 %v9062
    %v9320 = vpop.f32.mrb[0].mxu0
    %v9321 = vadd.f32 0.0, %v9320
    %v9322 = vpop.f32.mrb[0].mxu0
    %9323 = vmatprep.mubr.f32.mxu0 %v9172
    %9324 = vmatmul.mubr.f32.gmra.mrb[0].mxu0 %v9064
    %v9325 = vpop.f32.mrb[0].mxu0
    %v9326 = vadd.f32 0.0, %v9325
    %v9327 = vpop.f32.mrb[0].mxu0
    %9328 = vdwg.mxu0
    %9329 = vrot.lane.b32.xlu0 %v6421, 80
    %v9330 = vpop.permute.xlu0 %9329
    %9331 = vrot.lane.b32.xlu0 %v6425, 80
    %v9332 = vpop.permute.xlu0 %9331
    %9333 = vrot.lane.b32.xlu0 %v6431, 80
    %v9334 = vpop.permute.xlu0 %9333
    %9335 = vrot.lane.b32.xlu0 %v6435, 80
    %v9336 = vpop.permute.xlu0 %9335
    %9337 = vrot.lane.b32.xlu0 %v6441, 80
    %v9338 = vpop.permute.xlu0 %9337
    %9339 = vrot.lane.b32.xlu0 %v6445, 80
    %v9340 = vpop.permute.xlu0 %9339
    %9341 = vrot.lane.b32.xlu0 %v6451, 80
    %v9342 = vpop.permute.xlu0 %9341
    %9343 = vrot.lane.b32.xlu0 %v6455, 80
    %v9344 = vpop.permute.xlu0 %9343
    %9345 = vrot.lane.b32.xlu0 %v6461, 80
    %v9346 = vpop.permute.xlu0 %9345
    %9347 = vrot.lane.b32.xlu0 %v6465, 80
    %v9348 = vpop.permute.xlu0 %9347
    %9349 = vrot.lane.b32.xlu0 %v6471, 80
    %v9350 = vpop.permute.xlu0 %9349
    %9351 = vrot.lane.b32.xlu0 %v6475, 80
    %v9352 = vpop.permute.xlu0 %9351
    %9353 = vrot.lane.b32.xlu0 %v6481, 80
    %v9354 = vpop.permute.xlu0 %9353
    %9355 = vrot.lane.b32.xlu0 %v6485, 80
    %v9356 = vpop.permute.xlu0 %9355
    %9357 = vrot.lane.b32.xlu0 %v6491, 80
    %v9358 = vpop.permute.xlu0 %9357
    %9359 = vrot.lane.b32.xlu0 %v6495, 80
    %v9360 = vpop.permute.xlu0 %9359
    %9361 = vrot.lane.b32.xlu0 %v6501, 80
    %v9362 = vpop.permute.xlu0 %9361
    %9363 = vrot.lane.b32.xlu0 %v6505, 80
    %v9364 = vpop.permute.xlu0 %9363
    %9365 = vrot.lane.b32.xlu0 %v6421, 16
    %v9366 = vpop.permute.xlu0 %9365
    %9367 = vrot.lane.b32.xlu0 %v6425, 16
    %v9368 = vpop.permute.xlu0 %9367
    %9369 = vrot.lane.b32.xlu0 %v6431, 16
    %v9370 = vpop.permute.xlu0 %9369
    %9371 = vrot.lane.b32.xlu0 %v6435, 16
    %v9372 = vpop.permute.xlu0 %9371
    %9373 = vrot.lane.b32.xlu0 %v6441, 16
    %v9374 = vpop.permute.xlu0 %9373
    %9375 = vrot.lane.b32.xlu0 %v6445, 16
    %v9376 = vpop.permute.xlu0 %9375
    %9377 = vrot.lane.b32.xlu0 %v6451, 16
    %v9378 = vpop.permute.xlu0 %9377
    %9379 = vrot.lane.b32.xlu0 %v6455, 16
    %v9380 = vpop.permute.xlu0 %9379
    %9381 = vrot.lane.b32.xlu0 %v6461, 16
    %v9382 = vpop.permute.xlu0 %9381
    %9383 = vrot.lane.b32.xlu0 %v6465, 16
    %v9384 = vpop.permute.xlu0 %9383
    %9385 = vrot.lane.b32.xlu0 %v6471, 16
    %v9386 = vpop.permute.xlu0 %9385
    %9387 = vrot.lane.b32.xlu0 %v6475, 16
    %v9388 = vpop.permute.xlu0 %9387
    %9389 = vrot.lane.b32.xlu0 %v6481, 16
    %v9390 = vpop.permute.xlu0 %9389
    %9391 = vrot.lane.b32.xlu0 %v6485, 16
    %v9392 = vpop.permute.xlu0 %9391
    %9393 = vrot.lane.b32.xlu0 %v6491, 16
    %v9394 = vpop.permute.xlu0 %9393
    %9395 = vrot.lane.b32.xlu0 %v6495, 16
    %v9396 = vpop.permute.xlu0 %9395
    %9397 = vrot.lane.b32.xlu0 %v6501, 16
    %v9398 = vpop.permute.xlu0 %9397
    %9399 = vrot.lane.b32.xlu0 %v6505, 16
    %v9400 = vpop.permute.xlu0 %9399
    %v9401 = vsel %vm674, %v9330, 0
    %v9403 = vsel %vm674, %v9332, 0
    %v9405 = vsel %vm674, %v9334, 0
    %v9407 = vsel %vm674, %v9336, 0
    %v9409 = vsel %vm674, %v9338, 0
    %v9411 = vsel %vm674, %v9340, 0
    %v9413 = vsel %vm674, %v9342, 0
    %v9415 = vsel %vm674, %v9344, 0
    %v9417 = vsel %vm674, %v9346, 0
    %v9419 = vsel %vm674, %v9348, 0
    %v9421 = vsel %vm674, %v9350, 0
    %v9423 = vsel %vm674, %v9352, 0
    %v9425 = vsel %vm674, %v9354, 0
    %v9427 = vsel %vm674, %v9356, 0
    %v9429 = vsel %vm674, %v9358, 0
    %v9431 = vsel %vm674, %v9360, 0
    %v9433 = vsel %vm674, %v9362, 0
    %v9435 = vsel %vm674, %v9364, 0
    %v9437 = vsel %vm674, %v9366, 0
    %v9439 = vsel %vm674, %v9368, 0
    %v9441 = vsel %vm674, %v9370, 0
    %v9443 = vsel %vm674, %v9372, 0
    %v9445 = vsel %vm674, %v9374, 0
    %v9447 = vsel %vm674, %v9376, 0
    %v9449 = vsel %vm674, %v9378, 0
    %v9451 = vsel %vm674, %v9380, 0
    %v9453 = vsel %vm674, %v9382, 0
    %v9455 = vsel %vm674, %v9384, 0
    %v9457 = vsel %vm674, %v9386, 0
    %v9459 = vsel %vm674, %v9388, 0
    %v9461 = vsel %vm674, %v9390, 0
    %v9463 = vsel %vm674, %v9392, 0
    %v9465 = vsel %vm674, %v9394, 0
    %v9467 = vsel %vm674, %v9396, 0
    %v9469 = vsel %vm674, %v9398, 0
    %v9471 = vsel %vm674, %v9400, 0
    %9473 = vmatprep.subr.mxu0 0.0
    %9474 = vmatpush1.xpose.msra.mxu0 %v9437
    %9475 = vmatprep.subr.mxu0 0.0
    %9476 = vmatpush1.xpose.msra.mxu0 %v9439
    %9477 = vmatprep.subr.mxu0 0.0
    %9478 = vmatpush1.xpose.msra.mxu0 %v9441
    %9479 = vmatprep.subr.mxu0 0.0
    %9480 = vmatpush1.xpose.msra.mxu0 %v9443
    %9481 = vmatprep.subr.mxu0 0.0
    %9482 = vmatpush1.xpose.msra.mxu0 %v9445
    %9483 = vmatprep.subr.mxu0 0.0
    %9484 = vmatpush1.xpose.msra.mxu0 %v9447
    %9485 = vmatprep.subr.mxu0 0.0
    %9486 = vmatpush1.xpose.msra.mxu0 %v9449
    %9487 = vmatprep.subr.mxu0 0.0
    %9488 = vmatpush1.xpose.msra.mxu0 %v9451
    %9489 = vmatprep.subr.mxu0 0.0
    %9490 = vmatpush1.xpose.msra.mxu0 %v9453
    %9491 = vmatprep.subr.mxu0 0.0
    %9492 = vmatpush1.xpose.msra.mxu0 %v9455
    %9493 = vmatprep.subr.mxu0 0.0
    %9494 = vmatpush1.xpose.msra.mxu0 %v9457
    %9495 = vmatprep.subr.mxu0 0.0
    %9496 = vmatpush1.xpose.msra.mxu0 %v9459
    %9497 = vmatprep.subr.mxu0 0.0
    %9498 = vmatpush1.xpose.msra.mxu0 %v9461
    %9499 = vmatprep.subr.mxu0 0.0
    %9500 = vmatpush1.xpose.msra.mxu0 %v9463
    %9501 = vmatprep.subr.mxu0 0.0
    %9502 = vmatpush1.xpose.msra.mxu0 %v9465
    %9503 = vmatprep.subr.mxu0 0.0
    %9504 = vmatpush1.xpose.msra.mxu0 %v9467
    %9505 = vmatprep.subr.mxu0 0.0
    %9506 = vmatpush1.xpose.msra.mxu0 %v9469
    %9507 = vmatprep.subr.mxu0 0.0
    %9508 = vmatpush1.xpose.msra.mxu0 %v9471
    %9509 = vmatprep.subr.mxu0 0.0
    %9510 = vmatpush1.xpose.msra.mxu0 0.0
    %9511 = vmatprep.subr.mxu0 0.0
    %9512 = vmatpush1.xpose.msra.mxu0 0.0
    %9513 = vmatprep.subr.mxu0 0.0
    %9514 = vmatpush1.xpose.msra.mxu0 0.0
    %9515 = vmatprep.subr.mxu0 0.0
    %9516 = vmatpush1.xpose.msra.mxu0 0.0
    %9517 = vmatprep.subr.mxu0 0.0
    %9518 = vmatpush1.xpose.msra.mxu0 0.0
    %9519 = vmatprep.subr.mxu0 0.0
    %9520 = vmatpush1.xpose.msra.mxu0 0.0
    %9521 = vmatprep.subr.mxu0 0.0
    %9522 = vmatpush1.xpose.msra.mxu0 0.0
    %9523 = vmatprep.subr.mxu0 0.0
    %9524 = vmatpush1.xpose.msra.mxu0 0.0
    %9525 = vmatprep.subr.mxu0 0.0
    %9526 = vmatpush1.xpose.msra.mxu0 0.0
    %9527 = vmatprep.subr.mxu0 0.0
    %9528 = vmatpush1.xpose.msra.mxu0 0.0
    %9529 = vmatprep.subr.mxu0 0.0
    %9530 = vmatpush1.xpose.msra.mxu0 0.0
    %9531 = vmatprep.subr.mxu0 0.0
    %9532 = vmatpush1.xpose.msra.mxu0 0.0
    %9533 = vmatprep.subr.mxu0 0.0
    %9534 = vmatpush1.xpose.msra.mxu0 0.0
    %9535 = vmatprep.subr.mxu0 0.0
    %9536 = vmatpush1.xpose.msra.mxu0 0.0
    %9537 = vmatprep.mubr.f32.mxu0 0.0
    %9538 = vmatmul.mubr.f32.gmra.mrb[0].mxu0 %v9401
    %v9539 = vpop.f32.mrb[0].mxu0
    %v9540 = vadd.f32 0.0, %v9539
    %v9541 = vpop.f32.mrb[0].mxu0
    %v9542 = vadd.f32 0.0, %v9541
    %9543 = vmatprep.mubr.f32.mxu0 0.0
    %9544 = vmatmul.mubr.f32.gmra.mrb[0].mxu0 %v9403
    %v9545 = vpop.f32.mrb[0].mxu0
    %v9546 = vadd.f32 0.0, %v9545
    %v9547 = vpop.f32.mrb[0].mxu0
    %v9548 = vadd.f32 0.0, %v9547
    %9549 = vmatprep.mubr.f32.mxu0 0.0
    %9550 = vmatmul.mubr.f32.gmra.mrb[0].mxu0 %v9405
    %v9551 = vpop.f32.mrb[0].mxu0
    %v9552 = vadd.f32 0.0, %v9551
    %v9553 = vpop.f32.mrb[0].mxu0
    %v9554 = vadd.f32 0.0, %v9553
    %9555 = vmatprep.mubr.f32.mxu0 0.0
    %9556 = vmatmul.mubr.f32.gmra.mrb[0].mxu0 %v9407
    %v9557 = vpop.f32.mrb[0].mxu0
    %v9558 = vadd.f32 0.0, %v9557
    %v9559 = vpop.f32.mrb[0].mxu0
    %v9560 = vadd.f32 0.0, %v9559
    %9561 = vmatprep.mubr.f32.mxu0 0.0
    %9562 = vmatmul.mubr.f32.gmra.mrb[0].mxu0 %v9409
    %v9563 = vpop.f32.mrb[0].mxu0
    %v9564 = vadd.f32 0.0, %v9563
    %v9565 = vpop.f32.mrb[0].mxu0
    %v9566 = vadd.f32 0.0, %v9565
    %9567 = vmatprep.mubr.f32.mxu0 0.0
    %9568 = vmatmul.mubr.f32.gmra.mrb[0].mxu0 %v9411
    %v9569 = vpop.f32.mrb[0].mxu0
    %v9570 = vadd.f32 0.0, %v9569
    %v9571 = vpop.f32.mrb[0].mxu0
    %v9572 = vadd.f32 0.0, %v9571
    %9573 = vmatprep.mubr.f32.mxu0 0.0
    %9574 = vmatmul.mubr.f32.gmra.mrb[0].mxu0 %v9413
    %v9575 = vpop.f32.mrb[0].mxu0
    %v9576 = vadd.f32 0.0, %v9575
    %v9577 = vpop.f32.mrb[0].mxu0
    %v9578 = vadd.f32 0.0, %v9577
    %9579 = vmatprep.mubr.f32.mxu0 0.0
    %9580 = vmatmul.mubr.f32.gmra.mrb[0].mxu0 %v9415
    %v9581 = vpop.f32.mrb[0].mxu0
    %v9582 = vadd.f32 0.0, %v9581
    %v9583 = vpop.f32.mrb[0].mxu0
    %v9584 = vadd.f32 0.0, %v9583
    %9585 = vmatprep.mubr.f32.mxu0 0.0
    %9586 = vmatmul.mubr.f32.gmra.mrb[0].mxu0 %v9417
    %v9587 = vpop.f32.mrb[0].mxu0
    %v9588 = vadd.f32 0.0, %v9587
    %v9589 = vpop.f32.mrb[0].mxu0
    %v9590 = vadd.f32 0.0, %v9589
    %9591 = vmatprep.mubr.f32.mxu0 0.0
    %9592 = vmatmul.mubr.f32.gmra.mrb[0].mxu0 %v9419
    %v9593 = vpop.f32.mrb[0].mxu0
    %v9594 = vadd.f32 0.0, %v9593
    %v9595 = vpop.f32.mrb[0].mxu0
    %v9596 = vadd.f32 0.0, %v9595
    %9597 = vmatprep.mubr.f32.mxu0 0.0
    %9598 = vmatmul.mubr.f32.gmra.mrb[0].mxu0 %v9421
    %v9599 = vpop.f32.mrb[0].mxu0
    %v9600 = vadd.f32 0.0, %v9599
    %v9601 = vpop.f32.mrb[0].mxu0
    %v9602 = vadd.f32 0.0, %v9601
    %9603 = vmatprep.mubr.f32.mxu0 0.0
    %9604 = vmatmul.mubr.f32.gmra.mrb[0].mxu0 %v9423
    %v9605 = vpop.f32.mrb[0].mxu0
    %v9606 = vadd.f32 0.0, %v9605
    %v9607 = vpop.f32.mrb[0].mxu0
    %v9608 = vadd.f32 0.0, %v9607
    %9609 = vmatprep.mubr.f32.mxu0 0.0
    %9610 = vmatmul.mubr.f32.gmra.mrb[0].mxu0 %v9425
    %v9611 = vpop.f32.mrb[0].mxu0
    %v9612 = vadd.f32 0.0, %v9611
    %v9613 = vpop.f32.mrb[0].mxu0
    %v9614 = vadd.f32 0.0, %v9613
    %9615 = vmatprep.mubr.f32.mxu0 0.0
    %9616 = vmatmul.mubr.f32.gmra.mrb[0].mxu0 %v9427
    %v9617 = vpop.f32.mrb[0].mxu0
    %v9618 = vadd.f32 0.0, %v9617
    %v9619 = vpop.f32.mrb[0].mxu0
    %v9620 = vadd.f32 0.0, %v9619
    %9621 = vmatprep.mubr.f32.mxu0 0.0
    %9622 = vmatmul.mubr.f32.gmra.mrb[0].mxu0 %v9429
    %v9623 = vpop.f32.mrb[0].mxu0
    %v9624 = vadd.f32 0.0, %v9623
    %v9625 = vpop.f32.mrb[0].mxu0
    %v9626 = vadd.f32 0.0, %v9625
    %9627 = vmatprep.mubr.f32.mxu0 0.0
    %9628 = vmatmul.mubr.f32.gmra.mrb[0].mxu0 %v9431
    %v9629 = vpop.f32.mrb[0].mxu0
    %v9630 = vadd.f32 0.0, %v9629
    %v9631 = vpop.f32.mrb[0].mxu0
    %v9632 = vadd.f32 0.0, %v9631
    %9633 = vmatprep.mubr.f32.mxu0 0.0
    %9634 = vmatmul.mubr.f32.gmra.mrb[0].mxu0 %v9433
    %v9635 = vpop.f32.mrb[0].mxu0
    %v9636 = vadd.f32 0.0, %v9635
    %v9637 = vpop.f32.mrb[0].mxu0
    %v9638 = vadd.f32 0.0, %v9637
    %9639 = vmatprep.mubr.f32.mxu0 0.0
    %9640 = vmatmul.mubr.f32.gmra.mrb[0].mxu0 %v9435
    %v9641 = vpop.f32.mrb[0].mxu0
    %v9642 = vadd.f32 0.0, %v9641
    %v9643 = vpop.f32.mrb[0].mxu0
    %v9644 = vadd.f32 0.0, %v9643
    %9645 = vdwg.mxu0
    %v9646 = vmul.f32 %v9540, 0.25
    %v9647 = vmul.f32 %v9542, 0.25
    %v9648 = vmul.f32 %v9546, 0.25
    %v9649 = vmul.f32 %v9548, 0.25
    %v9650 = vmul.f32 %v9552, 0.25
    %v9651 = vmul.f32 %v9554, 0.25
    %v9652 = vmul.f32 %v9558, 0.25
    %v9653 = vmul.f32 %v9560, 0.25
    %v9654 = vmul.f32 %v9564, 0.25
    %v9655 = vmul.f32 %v9566, 0.25
    %v9656 = vmul.f32 %v9570, 0.25
    %v9657 = vmul.f32 %v9572, 0.25
    %v9658 = vmul.f32 %v9576, 0.25
    %v9659 = vmul.f32 %v9578, 0.25
    %v9660 = vmul.f32 %v9582, 0.25
    %v9661 = vmul.f32 %v9584, 0.25
    %v9662 = vmul.f32 %v9588, 0.25
    %v9663 = vmul.f32 %v9590, 0.25
    %v9664 = vmul.f32 %v9594, 0.25
    %v9665 = vmul.f32 %v9596, 0.25
    %v9666 = vmul.f32 %v9600, 0.25
    %v9667 = vmul.f32 %v9602, 0.25
    %v9668 = vmul.f32 %v9606, 0.25
    %v9669 = vmul.f32 %v9608, 0.25
    %v9670 = vmul.f32 %v9612, 0.25
    %v9671 = vmul.f32 %v9614, 0.25
    %v9672 = vmul.f32 %v9618, 0.25
    %v9673 = vmul.f32 %v9620, 0.25
    %v9674 = vmul.f32 %v9624, 0.25
    %v9675 = vmul.f32 %v9626, 0.25
    %v9676 = vmul.f32 %v9630, 0.25
    %v9677 = vmul.f32 %v9632, 0.25
    %v9678 = vmul.f32 %v9636, 0.25
    %v9679 = vmul.f32 %v9638, 0.25
    %v9680 = vmul.f32 %v9642, 0.25
    %v9681 = vmul.f32 %v9644, 0.25
    %v9682 = vadd.f32 %v9646, %v97
    %v9683 = vadd.f32 %v9647, %v98
    %v9684 = vadd.f32 %v9648, %v99
    %v9685 = vadd.f32 %v9649, %v100
    %v9686 = vadd.f32 %v9650, %v101
    %v9687 = vadd.f32 %v9651, %v102
    %v9688 = vadd.f32 %v9652, %v103
    %v9689 = vadd.f32 %v9653, %v104
    %v9690 = vadd.f32 %v9654, %v105
    %v9691 = vadd.f32 %v9655, %v106
    %v9692 = vadd.f32 %v9656, %v107
    %v9693 = vadd.f32 %v9657, %v108
    %v9694 = vadd.f32 %v9658, %v109
    %v9695 = vadd.f32 %v9659, %v110
    %v9696 = vadd.f32 %v9660, %v111
    %v9697 = vadd.f32 %v9661, %v112
    %v9698 = vadd.f32 %v9662, %v113
    %v9699 = vadd.f32 %v9663, %v114
    %v9700 = vadd.f32 %v9664, %v115
    %v9701 = vadd.f32 %v9665, %v116
    %v9702 = vadd.f32 %v9666, %v117
    %v9703 = vadd.f32 %v9667, %v118
    %v9704 = vadd.f32 %v9668, %v119
    %v9705 = vadd.f32 %v9669, %v120
    %v9706 = vadd.f32 %v9670, %v121
    %v9707 = vadd.f32 %v9671, %v122
    %v9708 = vadd.f32 %v9672, %v123
    %v9709 = vadd.f32 %v9673, %v124
    %v9710 = vadd.f32 %v9674, %v125
    %v9711 = vadd.f32 %v9675, %v126
    %v9712 = vadd.f32 %v9676, %v127
    %v9713 = vadd.f32 %v9677, %v128
    %v9714 = vadd.f32 %v9678, %v129
    %v9715 = vadd.f32 %v9679, %v130
    %v9716 = vadd.f32 %v9680, %v131
    %v9717 = vadd.f32 %v9681, %v132
    %v9718 = vsel %vm674, %v9683, -inf
    %v9719 = vmax.f32 %v9682, %v9718
    %9720 = vmax.xlane.f32.xlu0 %v9719
    %v9721 = vpop.xlane.xlu0 %9720
    %v9722 = vsel %vm674, %v9685, -inf
    %v9723 = vmax.f32 %v9684, %v9722
    %9724 = vmax.xlane.f32.xlu0 %v9723
    %v9725 = vpop.xlane.xlu0 %9724
    %v9726 = vsel %vm674, %v9687, -inf
    %v9727 = vmax.f32 %v9686, %v9726
    %9728 = vmax.xlane.f32.xlu0 %v9727
    %v9729 = vpop.xlane.xlu0 %9728
    %v9730 = vsel %vm674, %v9689, -inf
    %v9731 = vmax.f32 %v9688, %v9730
    %9732 = vmax.xlane.f32.xlu0 %v9731
    %v9733 = vpop.xlane.xlu0 %9732
    %v9734 = vsel %vm674, %v9691, -inf
    %v9735 = vmax.f32 %v9690, %v9734
    %9736 = vmax.xlane.f32.xlu0 %v9735
    %v9737 = vpop.xlane.xlu0 %9736
    %v9738 = vsel %vm674, %v9693, -inf
    %v9739 = vmax.f32 %v9692, %v9738
    %9740 = vmax.xlane.f32.xlu0 %v9739
    %v9741 = vpop.xlane.xlu0 %9740
    %v9742 = vsel %vm674, %v9695, -inf
    %v9743 = vmax.f32 %v9694, %v9742
    %9744 = vmax.xlane.f32.xlu0 %v9743
    %v9745 = vpop.xlane.xlu0 %9744
    %v9746 = vsel %vm674, %v9697, -inf
    %v9747 = vmax.f32 %v9696, %v9746
    %9748 = vmax.xlane.f32.xlu0 %v9747
    %v9749 = vpop.xlane.xlu0 %9748
    %v9750 = vsel %vm674, %v9699, -inf
    %v9751 = vmax.f32 %v9698, %v9750
    %9752 = vmax.xlane.f32.xlu0 %v9751
    %v9753 = vpop.xlane.xlu0 %9752
    %v9754 = vsel %vm674, %v9701, -inf
    %v9755 = vmax.f32 %v9700, %v9754
    %9756 = vmax.xlane.f32.xlu0 %v9755
    %v9757 = vpop.xlane.xlu0 %9756
    %v9758 = vsel %vm674, %v9703, -inf
    %v9759 = vmax.f32 %v9702, %v9758
    %9760 = vmax.xlane.f32.xlu0 %v9759
    %v9761 = vpop.xlane.xlu0 %9760
    %v9762 = vsel %vm674, %v9705, -inf
    %v9763 = vmax.f32 %v9704, %v9762
    %9764 = vmax.xlane.f32.xlu0 %v9763
    %v9765 = vpop.xlane.xlu0 %9764
    %v9766 = vsel %vm674, %v9707, -inf
    %v9767 = vmax.f32 %v9706, %v9766
    %9768 = vmax.xlane.f32.xlu0 %v9767
    %v9769 = vpop.xlane.xlu0 %9768
    %v9770 = vsel %vm674, %v9709, -inf
    %v9771 = vmax.f32 %v9708, %v9770
    %9772 = vmax.xlane.f32.xlu0 %v9771
    %v9773 = vpop.xlane.xlu0 %9772
    %v9774 = vsel %vm674, %v9711, -inf
    %v9775 = vmax.f32 %v9710, %v9774
    %9776 = vmax.xlane.f32.xlu0 %v9775
    %v9777 = vpop.xlane.xlu0 %9776
    %v9778 = vsel %vm674, %v9713, -inf
    %v9779 = vmax.f32 %v9712, %v9778
    %9780 = vmax.xlane.f32.xlu0 %v9779
    %v9781 = vpop.xlane.xlu0 %9780
    %v9782 = vsel %vm674, %v9715, -inf
    %v9783 = vmax.f32 %v9714, %v9782
    %9784 = vmax.xlane.f32.xlu0 %v9783
    %v9785 = vpop.xlane.xlu0 %9784
    %v9786 = vsel %vm674, %v9717, -inf
    %v9787 = vmax.f32 %v9716, %v9786
    %9788 = vmax.xlane.f32.xlu0 %v9787
    %v9789 = vpop.xlane.xlu0 %9788
    %v9790 = vsub.f32 %v9682, %v9721
    %v9791 = vsub.f32 %v9683, %v9721
    %v9792 = vsub.f32 %v9684, %v9725
    %v9793 = vsub.f32 %v9685, %v9725
    %v9794 = vsub.f32 %v9686, %v9729
    %v9795 = vsub.f32 %v9687, %v9729
    %v9796 = vsub.f32 %v9688, %v9733
    %v9797 = vsub.f32 %v9689, %v9733
    %v9798 = vsub.f32 %v9690, %v9737
    %v9799 = vsub.f32 %v9691, %v9737
    %v9800 = vsub.f32 %v9692, %v9741
    %v9801 = vsub.f32 %v9693, %v9741
    %v9802 = vsub.f32 %v9694, %v9745
    %v9803 = vsub.f32 %v9695, %v9745
    %v9804 = vsub.f32 %v9696, %v9749
    %v9805 = vsub.f32 %v9697, %v9749
    %v9806 = vsub.f32 %v9698, %v9753
    %v9807 = vsub.f32 %v9699, %v9753
    %v9808 = vsub.f32 %v9700, %v9757
    %v9809 = vsub.f32 %v9701, %v9757
    %v9810 = vsub.f32 %v9702, %v9761
    %v9811 = vsub.f32 %v9703, %v9761
    %v9812 = vsub.f32 %v9704, %v9765
    %v9813 = vsub.f32 %v9705, %v9765
    %v9814 = vsub.f32 %v9706, %v9769
    %v9815 = vsub.f32 %v9707, %v9769
    %v9816 = vsub.f32 %v9708, %v9773
    %v9817 = vsub.f32 %v9709, %v9773
    %v9818 = vsub.f32 %v9710, %v9777
    %v9819 = vsub.f32 %v9711, %v9777
    %v9820 = vsub.f32 %v9712, %v9781
    %v9821 = vsub.f32 %v9713, %v9781
    %v9822 = vsub.f32 %v9714, %v9785
    %v9823 = vsub.f32 %v9715, %v9785
    %v9824 = vsub.f32 %v9716, %v9789
    %v9825 = vsub.f32 %v9717, %v9789
    %v9826 = vmul.f32 %v9790, 1.442695
    %v9827 = vpow.pop %v9826
    %v9828 = vmul.f32 %v9791, 1.442695
    %v9829 = vpow.pop %v9828
    %v9830 = vmul.f32 %v9792, 1.442695
    %v9831 = vpow.pop %v9830
    %v9832 = vmul.f32 %v9793, 1.442695
    %v9833 = vpow.pop %v9832
    %v9834 = vmul.f32 %v9794, 1.442695
    %v9835 = vpow.pop %v9834
    %v9836 = vmul.f32 %v9795, 1.442695
    %v9837 = vpow.pop %v9836
    %v9838 = vmul.f32 %v9796, 1.442695
    %v9839 = vpow.pop %v9838
    %v9840 = vmul.f32 %v9797, 1.442695
    %v9841 = vpow.pop %v9840
    %v9842 = vmul.f32 %v9798, 1.442695
    %v9843 = vpow.pop %v9842
    %v9844 = vmul.f32 %v9799, 1.442695
    %v9845 = vpow.pop %v9844
    %v9846 = vmul.f32 %v9800, 1.442695
    %v9847 = vpow.pop %v9846
    %v9848 = vmul.f32 %v9801, 1.442695
    %v9849 = vpow.pop %v9848
    %v9850 = vmul.f32 %v9802, 1.442695
    %v9851 = vpow.pop %v9850
    %v9852 = vmul.f32 %v9803, 1.442695
    %v9853 = vpow.pop %v9852
    %v9854 = vmul.f32 %v9804, 1.442695
    %v9855 = vpow.pop %v9854
    %v9856 = vmul.f32 %v9805, 1.442695
    %v9857 = vpow.pop %v9856
    %v9858 = vmul.f32 %v9806, 1.442695
    %v9859 = vpow.pop %v9858
    %v9860 = vmul.f32 %v9807, 1.442695
    %v9861 = vpow.pop %v9860
    %v9862 = vmul.f32 %v9808, 1.442695
    %v9863 = vpow.pop %v9862
    %v9864 = vmul.f32 %v9809, 1.442695
    %v9865 = vpow.pop %v9864
    %v9866 = vmul.f32 %v9810, 1.442695
    %v9867 = vpow.pop %v9866
    %v9868 = vmul.f32 %v9811, 1.442695
    %v9869 = vpow.pop %v9868
    %v9870 = vmul.f32 %v9812, 1.442695
    %v9871 = vpow.pop %v9870
    %v9872 = vmul.f32 %v9813, 1.442695
    %v9873 = vpow.pop %v9872
    %v9874 = vmul.f32 %v9814, 1.442695
    %v9875 = vpow.pop %v9874
    %v9876 = vmul.f32 %v9815, 1.442695
    %v9877 = vpow.pop %v9876
    %v9878 = vmul.f32 %v9816, 1.442695
    %v9879 = vpow.pop %v9878
    %v9880 = vmul.f32 %v9817, 1.442695
    %v9881 = vpow.pop %v9880
    %v9882 = vmul.f32 %v9818, 1.442695
    %v9883 = vpow.pop %v9882
    %v9884 = vmul.f32 %v9819, 1.442695
    %v9885 = vpow.pop %v9884
    %v9886 = vmul.f32 %v9820, 1.442695
    %v9887 = vpow.pop %v9886
    %v9888 = vmul.f32 %v9821, 1.442695
    %v9889 = vpow.pop %v9888
    %v9890 = vmul.f32 %v9822, 1.442695
    %v9891 = vpow.pop %v9890
    %v9892 = vmul.f32 %v9823, 1.442695
    %v9893 = vpow.pop %v9892
    %v9894 = vmul.f32 %v9824, 1.442695
    %v9895 = vpow.pop %v9894
    %v9896 = vmul.f32 %v9825, 1.442695
    %v9897 = vpow.pop %v9896
    %v9898 = vsel %vm674, %v9829, 0.0
    %v9899 = vadd.f32 %v9827, %v9898
    %9900 = vadd.xlane.f32.xlu0 %v9899
    %v9901 = vpop.xlane.xlu0 %9900
    %v9902 = vsel %vm674, %v9833, 0.0
    %v9903 = vadd.f32 %v9831, %v9902
    %9904 = vadd.xlane.f32.xlu0 %v9903
    %v9905 = vpop.xlane.xlu0 %9904
    %v9906 = vsel %vm674, %v9837, 0.0
    %v9907 = vadd.f32 %v9835, %v9906
    %9908 = vadd.xlane.f32.xlu0 %v9907
    %v9909 = vpop.xlane.xlu0 %9908
    %v9910 = vsel %vm674, %v9841, 0.0
    %v9911 = vadd.f32 %v9839, %v9910
    %9912 = vadd.xlane.f32.xlu0 %v9911
    %v9913 = vpop.xlane.xlu0 %9912
    %v9914 = vsel %vm674, %v9845, 0.0
    %v9915 = vadd.f32 %v9843, %v9914
    %9916 = vadd.xlane.f32.xlu0 %v9915
    %v9917 = vpop.xlane.xlu0 %9916
    %v9918 = vsel %vm674, %v9849, 0.0
    %v9919 = vadd.f32 %v9847, %v9918
    %9920 = vadd.xlane.f32.xlu0 %v9919
    %v9921 = vpop.xlane.xlu0 %9920
    %v9922 = vsel %vm674, %v9853, 0.0
    %v9923 = vadd.f32 %v9851, %v9922
    %9924 = vadd.xlane.f32.xlu0 %v9923
    %v9925 = vpop.xlane.xlu0 %9924
    %v9926 = vsel %vm674, %v9857, 0.0
    %v9927 = vadd.f32 %v9855, %v9926
    %9928 = vadd.xlane.f32.xlu0 %v9927
    %v9929 = vpop.xlane.xlu0 %9928
    %v9930 = vsel %vm674, %v9861, 0.0
    %v9931 = vadd.f32 %v9859, %v9930
    %9932 = vadd.xlane.f32.xlu0 %v9931
    %v9933 = vpop.xlane.xlu0 %9932
    %v9934 = vsel %vm674, %v9865, 0.0
    %v9935 = vadd.f32 %v9863, %v9934
    %9936 = vadd.xlane.f32.xlu0 %v9935
    %v9937 = vpop.xlane.xlu0 %9936
    %v9938 = vsel %vm674, %v9869, 0.0
    %v9939 = vadd.f32 %v9867, %v9938
    %9940 = vadd.xlane.f32.xlu0 %v9939
    %v9941 = vpop.xlane.xlu0 %9940
    %v9942 = vsel %vm674, %v9873, 0.0
    %v9943 = vadd.f32 %v9871, %v9942
    %9944 = vadd.xlane.f32.xlu0 %v9943
    %v9945 = vpop.xlane.xlu0 %9944
    %v9946 = vsel %vm674, %v9877, 0.0
    %v9947 = vadd.f32 %v9875, %v9946
    %9948 = vadd.xlane.f32.xlu0 %v9947
    %v9949 = vpop.xlane.xlu0 %9948
    %v9950 = vsel %vm674, %v9881, 0.0
    %v9951 = vadd.f32 %v9879, %v9950
    %9952 = vadd.xlane.f32.xlu0 %v9951
    %v9953 = vpop.xlane.xlu0 %9952
    %v9954 = vsel %vm674, %v9885, 0.0
    %v9955 = vadd.f32 %v9883, %v9954
    %9956 = vadd.xlane.f32.xlu0 %v9955
    %v9957 = vpop.xlane.xlu0 %9956
    %v9958 = vsel %vm674, %v9889, 0.0
    %v9959 = vadd.f32 %v9887, %v9958
    %9960 = vadd.xlane.f32.xlu0 %v9959
    %v9961 = vpop.xlane.xlu0 %9960
    %v9962 = vsel %vm674, %v9893, 0.0
    %v9963 = vadd.f32 %v9891, %v9962
    %9964 = vadd.xlane.f32.xlu0 %v9963
    %v9965 = vpop.xlane.xlu0 %9964
    %v9966 = vsel %vm674, %v9897, 0.0
    %v9967 = vadd.f32 %v9895, %v9966
    %9968 = vadd.xlane.f32.xlu0 %v9967
    %v9969 = vpop.xlane.xlu0 %9968
    %v9970 = vrcp.pop %v9901
    %v9971 = vrcp.pop %v9905
    %v9972 = vrcp.pop %v9909
    %v9973 = vrcp.pop %v9913
    %v9974 = vrcp.pop %v9917
    %v9975 = vrcp.pop %v9921
    %v9976 = vrcp.pop %v9925
    %v9977 = vrcp.pop %v9929
    %v9978 = vrcp.pop %v9933
    %v9979 = vrcp.pop %v9937
    %v9980 = vrcp.pop %v9941
    %v9981 = vrcp.pop %v9945
    %v9982 = vrcp.pop %v9949
    %v9983 = vrcp.pop %v9953
    %v9984 = vrcp.pop %v9957
    %v9985 = vrcp.pop %v9961
    %v9986 = vrcp.pop %v9965
    %v9987 = vrcp.pop %v9969
    %v9988 = vmul.f32 %v9827, %v9970
    %v9989 = vmul.f32 %v9829, %v9970
    %v9990 = vmul.f32 %v9831, %v9971
    %v9991 = vmul.f32 %v9833, %v9971
    %v9992 = vmul.f32 %v9835, %v9972
    %v9993 = vmul.f32 %v9837, %v9972
    %v9994 = vmul.f32 %v9839, %v9973
    %v9995 = vmul.f32 %v9841, %v9973
    %v9996 = vmul.f32 %v9843, %v9974
    %v9997 = vmul.f32 %v9845, %v9974
    %v9998 = vmul.f32 %v9847, %v9975
    %v9999 = vmul.f32 %v9849, %v9975
    %v10000 = vmul.f32 %v9851, %v9976
    %v10001 = vmul.f32 %v9853, %v9976
    %v10002 = vmul.f32 %v9855, %v9977
    %v10003 = vmul.f32 %v9857, %v9977
    %v10004 = vmul.f32 %v9859, %v9978
    %v10005 = vmul.f32 %v9861, %v9978
    %v10006 = vmul.f32 %v9863, %v9979
    %v10007 = vmul.f32 %v9865, %v9979
    %v10008 = vmul.f32 %v9867, %v9980
    %v10009 = vmul.f32 %v9869, %v9980
    %v10010 = vmul.f32 %v9871, %v9981
    %v10011 = vmul.f32 %v9873, %v9981
    %v10012 = vmul.f32 %v9875, %v9982
    %v10013 = vmul.f32 %v9877, %v9982
    %v10014 = vmul.f32 %v9879, %v9983
    %v10015 = vmul.f32 %v9881, %v9983
    %v10016 = vmul.f32 %v9883, %v9984
    %v10017 = vmul.f32 %v9885, %v9984
    %v10018 = vmul.f32 %v9887, %v9985
    %v10019 = vmul.f32 %v9889, %v9985
    %v10020 = vmul.f32 %v9891, %v9986
    %v10021 = vmul.f32 %v9893, %v9986
    %v10022 = vmul.f32 %v9895, %v9987
    %v10023 = vmul.f32 %v9897, %v9987
    %10024 = vrot.lane.b32.xlu0 %v6423, 80
    %v10025 = vpop.permute.xlu0 %10024
    %10026 = vrot.lane.b32.xlu0 %v6427, 80
    %v10027 = vpop.permute.xlu0 %10026
    %10028 = vrot.lane.b32.xlu0 %v6433, 80
    %v10029 = vpop.permute.xlu0 %10028
    %10030 = vrot.lane.b32.xlu0 %v6437, 80
    %v10031 = vpop.permute.xlu0 %10030
    %10032 = vrot.lane.b32.xlu0 %v6443, 80
    %v10033 = vpop.permute.xlu0 %10032
    %10034 = vrot.lane.b32.xlu0 %v6447, 80
    %v10035 = vpop.permute.xlu0 %10034
    %10036 = vrot.lane.b32.xlu0 %v6453, 80
    %v10037 = vpop.permute.xlu0 %10036
    %10038 = vrot.lane.b32.xlu0 %v6457, 80
    %v10039 = vpop.permute.xlu0 %10038
    %10040 = vrot.lane.b32.xlu0 %v6463, 80
    %v10041 = vpop.permute.xlu0 %10040
    %10042 = vrot.lane.b32.xlu0 %v6467, 80
    %v10043 = vpop.permute.xlu0 %10042
    %10044 = vrot.lane.b32.xlu0 %v6473, 80
    %v10045 = vpop.permute.xlu0 %10044
    %10046 = vrot.lane.b32.xlu0 %v6477, 80
    %v10047 = vpop.permute.xlu0 %10046
    %10048 = vrot.lane.b32.xlu0 %v6483, 80
    %v10049 = vpop.permute.xlu0 %10048
    %10050 = vrot.lane.b32.xlu0 %v6487, 80
    %v10051 = vpop.permute.xlu0 %10050
    %10052 = vrot.lane.b32.xlu0 %v6493, 80
    %v10053 = vpop.permute.xlu0 %10052
    %10054 = vrot.lane.b32.xlu0 %v6497, 80
    %v10055 = vpop.permute.xlu0 %10054
    %10056 = vrot.lane.b32.xlu0 %v6503, 80
    %v10057 = vpop.permute.xlu0 %10056
    %10058 = vrot.lane.b32.xlu0 %v6507, 80
    %v10059 = vpop.permute.xlu0 %10058
    %v10079 = vsel %vm674, %v9989, 0
    %v10082 = vsel %vm674, %v9991, 0
    %v10085 = vsel %vm674, %v9993, 0
    %v10088 = vsel %vm674, %v9995, 0
    %v10091 = vsel %vm674, %v9997, 0
    %v10094 = vsel %vm674, %v9999, 0
    %v10097 = vsel %vm674, %v10001, 0
    %v10100 = vsel %vm674, %v10003, 0
    %v10103 = vsel %vm674, %v10005, 0
    %v10106 = vsel %vm674, %v10007, 0
    %v10109 = vsel %vm674, %v10009, 0
    %v10112 = vsel %vm674, %v10011, 0
    %v10115 = vsel %vm674, %v10013, 0
    %v10118 = vsel %vm674, %v10015, 0
    %v10121 = vsel %vm674, %v10017, 0
    %v10124 = vsel %vm674, %v10019, 0
    %v10127 = vsel %vm674, %v10021, 0
    %v10130 = vsel %vm674, %v10023, 0
    %10132 = vmatprep.subr.mxu0 0.0
    %10133 = vmatpush1.msra.mxu0 %v10025
    %10134 = vmatprep.subr.mxu0 0.0
    %10135 = vmatpush1.msra.mxu0 %v10027
    %10136 = vmatprep.subr.mxu0 0.0
    %10137 = vmatpush1.msra.mxu0 %v10029
    %10138 = vmatprep.subr.mxu0 0.0
    %10139 = vmatpush1.msra.mxu0 %v10031
    %10140 = vmatprep.subr.mxu0 0.0
    %10141 = vmatpush1.msra.mxu0 %v10033
    %10142 = vmatprep.subr.mxu0 0.0
    %10143 = vmatpush1.msra.mxu0 %v10035
    %10144 = vmatprep.subr.mxu0 0.0
    %10145 = vmatpush1.msra.mxu0 %v10037
    %10146 = vmatprep.subr.mxu0 0.0
    %10147 = vmatpush1.msra.mxu0 %v10039
    %10148 = vmatprep.subr.mxu0 0.0
    %10149 = vmatpush1.msra.mxu0 %v10041
    %10150 = vmatprep.subr.mxu0 0.0
    %10151 = vmatpush1.msra.mxu0 %v10043
    %10152 = vmatprep.subr.mxu0 0.0
    %10153 = vmatpush1.msra.mxu0 %v10045
    %10154 = vmatprep.subr.mxu0 0.0
    %10155 = vmatpush1.msra.mxu0 %v10047
    %10156 = vmatprep.subr.mxu0 0.0
    %10157 = vmatpush1.msra.mxu0 %v10049
    %10158 = vmatprep.subr.mxu0 0.0
    %10159 = vmatpush1.msra.mxu0 %v10051
    %10160 = vmatprep.subr.mxu0 0.0
    %10161 = vmatpush1.msra.mxu0 %v10053
    %10162 = vmatprep.subr.mxu0 0.0
    %10163 = vmatpush1.msra.mxu0 %v10055
    %10164 = vmatprep.subr.mxu0 0.0
    %10165 = vmatpush1.msra.mxu0 %v10057
    %10166 = vmatprep.subr.mxu0 0.0
    %10167 = vmatpush1.msra.mxu0 %v10059
    %10168 = vmatprep.subr.mxu0 0.0
    %10169 = vmatpush1.msra.mxu0 0.0
    %10170 = vmatprep.subr.mxu0 0.0
    %10171 = vmatpush1.msra.mxu0 0.0
    %10172 = vmatprep.subr.mxu0 0.0
    %10173 = vmatpush1.msra.mxu0 0.0
    %10174 = vmatprep.subr.mxu0 0.0
    %10175 = vmatpush1.msra.mxu0 0.0
    %10176 = vmatprep.subr.mxu0 0.0
    %10177 = vmatpush1.msra.mxu0 0.0
    %10178 = vmatprep.subr.mxu0 0.0
    %10179 = vmatpush1.msra.mxu0 0.0
    %10180 = vmatprep.subr.mxu0 0.0
    %10181 = vmatpush1.msra.mxu0 0.0
    %10182 = vmatprep.subr.mxu0 0.0
    %10183 = vmatpush1.msra.mxu0 0.0
    %10184 = vmatprep.subr.mxu0 0.0
    %10185 = vmatpush1.msra.mxu0 0.0
    %10186 = vmatprep.subr.mxu0 0.0
    %10187 = vmatpush1.msra.mxu0 0.0
    %10188 = vmatprep.subr.mxu0 0.0
    %10189 = vmatpush1.msra.mxu0 0.0
    %10190 = vmatprep.subr.mxu0 0.0
    %10191 = vmatpush1.msra.mxu0 0.0
    %10192 = vmatprep.subr.mxu0 0.0
    %10193 = vmatpush1.msra.mxu0 0.0
    %10194 = vmatprep.subr.mxu0 0.0
    %10195 = vmatpush1.msra.mxu0 0.0
    %10196 = vmatprep.mubr.f32.mxu0 %v10079
    %10197 = vmatmul.mubr.f32.gmra.mrb[0].mxu0 %v9988
    %v10198 = vpop.f32.mrb[0].mxu0
    %v10199 = vadd.f32 0.0, %v10198
    %v10200 = vpop.f32.mrb[0].mxu0
    %10201 = vmatprep.mubr.f32.mxu0 %v10082
    %10202 = vmatmul.mubr.f32.gmra.mrb[0].mxu0 %v9990
    %v10203 = vpop.f32.mrb[0].mxu0
    %v10204 = vadd.f32 0.0, %v10203
    %v10205 = vpop.f32.mrb[0].mxu0
    %10206 = vmatprep.mubr.f32.mxu0 %v10085
    %10207 = vmatmul.mubr.f32.gmra.mrb[0].mxu0 %v9992
    %v10208 = vpop.f32.mrb[0].mxu0
    %v10209 = vadd.f32 0.0, %v10208
    %v10210 = vpop.f32.mrb[0].mxu0
    %10211 = vmatprep.mubr.f32.mxu0 %v10088
    %10212 = vmatmul.mubr.f32.gmra.mrb[0].mxu0 %v9994
    %v10213 = vpop.f32.mrb[0].mxu0
    %v10214 = vadd.f32 0.0, %v10213
    %v10215 = vpop.f32.mrb[0].mxu0
    %10216 = vmatprep.mubr.f32.mxu0 %v10091
    %10217 = vmatmul.mubr.f32.gmra.mrb[0].mxu0 %v9996
    %v10218 = vpop.f32.mrb[0].mxu0
    %v10219 = vadd.f32 0.0, %v10218
    %v10220 = vpop.f32.mrb[0].mxu0
    %10221 = vmatprep.mubr.f32.mxu0 %v10094
    %10222 = vmatmul.mubr.f32.gmra.mrb[0].mxu0 %v9998
    %v10223 = vpop.f32.mrb[0].mxu0
    %v10224 = vadd.f32 0.0, %v10223
    %v10225 = vpop.f32.mrb[0].mxu0
    %10226 = vmatprep.mubr.f32.mxu0 %v10097
    %10227 = vmatmul.mubr.f32.gmra.mrb[0].mxu0 %v10000
    %v10228 = vpop.f32.mrb[0].mxu0
    %v10229 = vadd.f32 0.0, %v10228
    %v10230 = vpop.f32.mrb[0].mxu0
    %10231 = vmatprep.mubr.f32.mxu0 %v10100
    %10232 = vmatmul.mubr.f32.gmra.mrb[0].mxu0 %v10002
    %v10233 = vpop.f32.mrb[0].mxu0
    %v10234 = vadd.f32 0.0, %v10233
    %v10235 = vpop.f32.mrb[0].mxu0
    %10236 = vmatprep.mubr.f32.mxu0 %v10103
    %10237 = vmatmul.mubr.f32.gmra.mrb[0].mxu0 %v10004
    %v10238 = vpop.f32.mrb[0].mxu0
    %v10239 = vadd.f32 0.0, %v10238
    %v10240 = vpop.f32.mrb[0].mxu0
    %10241 = vmatprep.mubr.f32.mxu0 %v10106
    %10242 = vmatmul.mubr.f32.gmra.mrb[0].mxu0 %v10006
    %v10243 = vpop.f32.mrb[0].mxu0
    %v10244 = vadd.f32 0.0, %v10243
    %v10245 = vpop.f32.mrb[0].mxu0
    %10246 = vmatprep.mubr.f32.mxu0 %v10109
    %10247 = vmatmul.mubr.f32.gmra.mrb[0].mxu0 %v10008
    %v10248 = vpop.f32.mrb[0].mxu0
    %v10249 = vadd.f32 0.0, %v10248
    %v10250 = vpop.f32.mrb[0].mxu0
    %10251 = vmatprep.mubr.f32.mxu0 %v10112
    %10252 = vmatmul.mubr.f32.gmra.mrb[0].mxu0 %v10010
    %v10253 = vpop.f32.mrb[0].mxu0
    %v10254 = vadd.f32 0.0, %v10253
    %v10255 = vpop.f32.mrb[0].mxu0
    %10256 = vmatprep.mubr.f32.mxu0 %v10115
    %10257 = vmatmul.mubr.f32.gmra.mrb[0].mxu0 %v10012
    %v10258 = vpop.f32.mrb[0].mxu0
    %v10259 = vadd.f32 0.0, %v10258
    %v10260 = vpop.f32.mrb[0].mxu0
    %10261 = vmatprep.mubr.f32.mxu0 %v10118
    %10262 = vmatmul.mubr.f32.gmra.mrb[0].mxu0 %v10014
    %v10263 = vpop.f32.mrb[0].mxu0
    %v10264 = vadd.f32 0.0, %v10263
    %v10265 = vpop.f32.mrb[0].mxu0
    %10266 = vmatprep.mubr.f32.mxu0 %v10121
    %10267 = vmatmul.mubr.f32.gmra.mrb[0].mxu0 %v10016
    %v10268 = vpop.f32.mrb[0].mxu0
    %v10269 = vadd.f32 0.0, %v10268
    %v10270 = vpop.f32.mrb[0].mxu0
    %10271 = vmatprep.mubr.f32.mxu0 %v10124
    %10272 = vmatmul.mubr.f32.gmra.mrb[0].mxu0 %v10018
    %v10273 = vpop.f32.mrb[0].mxu0
    %v10274 = vadd.f32 0.0, %v10273
    %v10275 = vpop.f32.mrb[0].mxu0
    %10276 = vmatprep.mubr.f32.mxu0 %v10127
    %10277 = vmatmul.mubr.f32.gmra.mrb[0].mxu0 %v10020
    %v10278 = vpop.f32.mrb[0].mxu0
    %v10279 = vadd.f32 0.0, %v10278
    %v10280 = vpop.f32.mrb[0].mxu0
    %10281 = vmatprep.mubr.f32.mxu0 %v10130
    %10282 = vmatmul.mubr.f32.gmra.mrb[0].mxu0 %v10022
    %v10283 = vpop.f32.mrb[0].mxu0
    %v10284 = vadd.f32 0.0, %v10283
    %v10285 = vpop.f32.mrb[0].mxu0
    %10286 = vdwg.mxu0
    %10305 = vrot.lane.b32.xlu0 %v8283, 16
    %v10306 = vpop.permute.xlu0 %10305
    %10307 = vrot.lane.b32.xlu0 %v8288, 16
    %v10308 = vpop.permute.xlu0 %10307
    %10309 = vrot.lane.b32.xlu0 %v8293, 16
    %v10310 = vpop.permute.xlu0 %10309
    %10311 = vrot.lane.b32.xlu0 %v8298, 16
    %v10312 = vpop.permute.xlu0 %10311
    %10313 = vrot.lane.b32.xlu0 %v8303, 16
    %v10314 = vpop.permute.xlu0 %10313
    %10315 = vrot.lane.b32.xlu0 %v8308, 16
    %v10316 = vpop.permute.xlu0 %10315
    %10317 = vrot.lane.b32.xlu0 %v8313, 16
    %v10318 = vpop.permute.xlu0 %10317
    %10319 = vrot.lane.b32.xlu0 %v8318, 16
    %v10320 = vpop.permute.xlu0 %10319
    %10321 = vrot.lane.b32.xlu0 %v8323, 16
    %v10322 = vpop.permute.xlu0 %10321
    %10323 = vrot.lane.b32.xlu0 %v8328, 16
    %v10324 = vpop.permute.xlu0 %10323
    %10325 = vrot.lane.b32.xlu0 %v8333, 16
    %v10326 = vpop.permute.xlu0 %10325
    %10327 = vrot.lane.b32.xlu0 %v8338, 16
    %v10328 = vpop.permute.xlu0 %10327
    %10329 = vrot.lane.b32.xlu0 %v8343, 16
    %v10330 = vpop.permute.xlu0 %10329
    %10331 = vrot.lane.b32.xlu0 %v8348, 16
    %v10332 = vpop.permute.xlu0 %10331
    %10333 = vrot.lane.b32.xlu0 %v8353, 16
    %v10334 = vpop.permute.xlu0 %10333
    %10335 = vrot.lane.b32.xlu0 %v8358, 16
    %v10336 = vpop.permute.xlu0 %10335
    %10337 = vrot.lane.b32.xlu0 %v8363, 16
    %v10338 = vpop.permute.xlu0 %10337
    %10339 = vrot.lane.b32.xlu0 %v8368, 16
    %v10340 = vpop.permute.xlu0 %10339
    %10377 = vrot.lane.b32.xlu0 %v9241, 32
    %v10378 = vpop.permute.xlu0 %10377
    %10379 = vrot.lane.b32.xlu0 %v9246, 32
    %v10380 = vpop.permute.xlu0 %10379
    %10381 = vrot.lane.b32.xlu0 %v9251, 32
    %v10382 = vpop.permute.xlu0 %10381
    %10383 = vrot.lane.b32.xlu0 %v9256, 32
    %v10384 = vpop.permute.xlu0 %10383
    %10385 = vrot.lane.b32.xlu0 %v9261, 32
    %v10386 = vpop.permute.xlu0 %10385
    %10387 = vrot.lane.b32.xlu0 %v9266, 32
    %v10388 = vpop.permute.xlu0 %10387
    %10389 = vrot.lane.b32.xlu0 %v9271, 32
    %v10390 = vpop.permute.xlu0 %10389
    %10391 = vrot.lane.b32.xlu0 %v9276, 32
    %v10392 = vpop.permute.xlu0 %10391
    %10393 = vrot.lane.b32.xlu0 %v9281, 32
    %v10394 = vpop.permute.xlu0 %10393
    %10395 = vrot.lane.b32.xlu0 %v9286, 32
    %v10396 = vpop.permute.xlu0 %10395
    %10397 = vrot.lane.b32.xlu0 %v9291, 32
    %v10398 = vpop.permute.xlu0 %10397
    %10399 = vrot.lane.b32.xlu0 %v9296, 32
    %v10400 = vpop.permute.xlu0 %10399
    %10401 = vrot.lane.b32.xlu0 %v9301, 32
    %v10402 = vpop.permute.xlu0 %10401
    %10403 = vrot.lane.b32.xlu0 %v9306, 32
    %v10404 = vpop.permute.xlu0 %10403
    %10405 = vrot.lane.b32.xlu0 %v9311, 32
    %v10406 = vpop.permute.xlu0 %10405
    %10407 = vrot.lane.b32.xlu0 %v9316, 32
    %v10408 = vpop.permute.xlu0 %10407
    %10409 = vrot.lane.b32.xlu0 %v9321, 32
    %v10410 = vpop.permute.xlu0 %10409
    %10411 = vrot.lane.b32.xlu0 %v9326, 32
    %v10412 = vpop.permute.xlu0 %10411
    %10449 = vrot.lane.b32.xlu0 %v10199, 48
    %v10450 = vpop.permute.xlu0 %10449
    %10451 = vrot.lane.b32.xlu0 %v10204, 48
    %v10452 = vpop.permute.xlu0 %10451
    %10453 = vrot.lane.b32.xlu0 %v10209, 48
    %v10454 = vpop.permute.xlu0 %10453
    %10455 = vrot.lane.b32.xlu0 %v10214, 48
    %v10456 = vpop.permute.xlu0 %10455
    %10457 = vrot.lane.b32.xlu0 %v10219, 48
    %v10458 = vpop.permute.xlu0 %10457
    %10459 = vrot.lane.b32.xlu0 %v10224, 48
    %v10460 = vpop.permute.xlu0 %10459
    %10461 = vrot.lane.b32.xlu0 %v10229, 48
    %v10462 = vpop.permute.xlu0 %10461
    %10463 = vrot.lane.b32.xlu0 %v10234, 48
    %v10464 = vpop.permute.xlu0 %10463
    %10465 = vrot.lane.b32.xlu0 %v10239, 48
    %v10466 = vpop.permute.xlu0 %10465
    %10467 = vrot.lane.b32.xlu0 %v10244, 48
    %v10468 = vpop.permute.xlu0 %10467
    %10469 = vrot.lane.b32.xlu0 %v10249, 48
    %v10470 = vpop.permute.xlu0 %10469
    %10471 = vrot.lane.b32.xlu0 %v10254, 48
    %v10472 = vpop.permute.xlu0 %10471
    %10473 = vrot.lane.b32.xlu0 %v10259, 48
    %v10474 = vpop.permute.xlu0 %10473
    %10475 = vrot.lane.b32.xlu0 %v10264, 48
    %v10476 = vpop.permute.xlu0 %10475
    %10477 = vrot.lane.b32.xlu0 %v10269, 48
    %v10478 = vpop.permute.xlu0 %10477
    %10479 = vrot.lane.b32.xlu0 %v10274, 48
    %v10480 = vpop.permute.xlu0 %10479
    %10481 = vrot.lane.b32.xlu0 %v10279, 48
    %v10482 = vpop.permute.xlu0 %10481
    %10483 = vrot.lane.b32.xlu0 %v10284, 48
    %v10484 = vpop.permute.xlu0 %10483
    %v10503 = vsel %vm674, %v7307, %v10306
    %v10504 = vsel %vm674, %v7312, %v10308
    %v10505 = vsel %vm674, %v7317, %v10310
    %v10506 = vsel %vm674, %v7322, %v10312
    %v10507 = vsel %vm674, %v7327, %v10314
    %v10508 = vsel %vm674, %v7332, %v10316
    %v10509 = vsel %vm674, %v7337, %v10318
    %v10510 = vsel %vm674, %v7342, %v10320
    %v10511 = vsel %vm674, %v7347, %v10322
    %v10512 = vsel %vm674, %v7352, %v10324
    %v10513 = vsel %vm674, %v7357, %v10326
    %v10514 = vsel %vm674, %v7362, %v10328
    %v10515 = vsel %vm674, %v7367, %v10330
    %v10516 = vsel %vm674, %v7372, %v10332
    %v10517 = vsel %vm674, %v7377, %v10334
    %v10518 = vsel %vm674, %v7382, %v10336
    %v10519 = vsel %vm674, %v7387, %v10338
    %v10520 = vsel %vm674, %v7392, %v10340
    %v10521 = vsel %vm153, %v10503, %v10378
    %v10522 = vsel %vm153, %v10504, %v10380
    %v10523 = vsel %vm153, %v10505, %v10382
    %v10524 = vsel %vm153, %v10506, %v10384
    %v10525 = vsel %vm153, %v10507, %v10386
    %v10526 = vsel %vm153, %v10508, %v10388
    %v10527 = vsel %vm153, %v10509, %v10390
    %v10528 = vsel %vm153, %v10510, %v10392
    %v10529 = vsel %vm153, %v10511, %v10394
    %v10530 = vsel %vm153, %v10512, %v10396
    %v10531 = vsel %vm153, %v10513, %v10398
    %v10532 = vsel %vm153, %v10514, %v10400
    %v10533 = vsel %vm153, %v10515, %v10402
    %v10534 = vsel %vm153, %v10516, %v10404
    %v10535 = vsel %vm153, %v10517, %v10406
    %v10536 = vsel %vm153, %v10518, %v10408
    %v10537 = vsel %vm153, %v10519, %v10410
    %v10538 = vsel %vm153, %v10520, %v10412
    %v10539 = vsel %vm4651, %v10521, %v10450
    %v10540 = vsel %vm4651, %v10522, %v10452
    %v10541 = vsel %vm4651, %v10523, %v10454
    %v10542 = vsel %vm4651, %v10524, %v10456
    %v10543 = vsel %vm4651, %v10525, %v10458
    %v10544 = vsel %vm4651, %v10526, %v10460
    %v10545 = vsel %vm4651, %v10527, %v10462
    %v10546 = vsel %vm4651, %v10528, %v10464
    %v10547 = vsel %vm4651, %v10529, %v10466
    %v10548 = vsel %vm4651, %v10530, %v10468
    %v10549 = vsel %vm4651, %v10531, %v10470
    %v10550 = vsel %vm4651, %v10532, %v10472
    %v10551 = vsel %vm4651, %v10533, %v10474
    %v10552 = vsel %vm4651, %v10534, %v10476
    %v10553 = vsel %vm4651, %v10535, %v10478
    %v10554 = vsel %vm4651, %v10536, %v10480
    %v10555 = vsel %vm4651, %v10537, %v10482
    %v10556 = vsel %vm4651, %v10538, %v10484
    %v10557 = vpack.c.bf16 %v10540, %v10539
    %v10558 = vpack.c.bf16 %v10542, %v10541
    %v10559 = vpack.c.bf16 %v10544, %v10543
    %v10560 = vpack.c.bf16 %v10546, %v10545
    %v10561 = vpack.c.bf16 %v10548, %v10547
    %v10562 = vpack.c.bf16 %v10550, %v10549
    %v10563 = vpack.c.bf16 %v10552, %v10551
    %v10564 = vpack.c.bf16 %v10554, %v10553
    %v10565 = vpack.c.bf16 %v10556, %v10555
    %s10566 = scalar_lea.vmem %s8, 32
    %v10567 = vld [vmem:[%s10566] sm:$0xf]
    %v10568 = vld [vmem:[%s10566 + $0x4] sm:$0xf]
    %v10569 = vld [vmem:[%s10566 + $0x8] sm:$0xf]
    %v10570 = vld [vmem:[%s10566 + $0xc] sm:$0xf]
    %v10571 = vld [vmem:[%s10566 + $0x10] sm:$0xf]
    %v10572 = vld [vmem:[%s10566 + $0x14] sm:$0xf]
    %v10573 = vld [vmem:[%s10566 + $0x18] sm:$0xf]
    %v10574 = vld [vmem:[%s10566 + $0x1c] sm:$0xf]
    %s10575 = scalar_lea.vmem %s9, 1
    %v10576 = vld [vmem:[%s10575] sm:$0x1]
    %v10578 = vlaneseq
    %v10579 = vshrl.u32 %v10578, 7
    %v10580 = vsub.s32 0, %v10579
    %v10581 = vrot.slane %v10576, %v10580
    %v10591 = vunpack.c.l.b16 %v10567
    %v10592 = vunpack.c.l.b16 %v10568
    %v10593 = vunpack.c.l.b16 %v10569
    %v10594 = vunpack.c.l.b16 %v10570
    %v10595 = vunpack.c.l.b16 %v10571
    %v10596 = vunpack.c.l.b16 %v10572
    %v10597 = vunpack.c.l.b16 %v10573
    %v10598 = vunpack.c.l.b16 %v10574
    %v10599 = vpack.c.b16 %v10592, %v10591
    %v10600 = vpack.c.b16 %v10594, %v10593
    %v10601 = vpack.c.b16 %v10596, %v10595
    %v10602 = vpack.c.b16 %v10598, %v10597
    %v10608 = vsel %vm4718, %v10557, 0
    %v10611 = vsel %vm4718, %v10558, 0
    %v10614 = vsel %vm4718, %v10559, 0
    %v10617 = vsel %vm4718, %v10560, 0
    %v10620 = vsel %vm4718, %v10561, 0
    %v10623 = vsel %vm4718, %v10562, 0
    %v10626 = vsel %vm4718, %v10563, 0
    %v10629 = vsel %vm4718, %v10564, 0
    %v10632 = vsel %vm4718, %v10565, 0
    %10634 = vmatprep.subr.bf16.mxu0 0
    %10635 = vmatpush1.bf16.msra.mxu0 %v10599
    %10636 = vmatprep.subr.bf16.mxu0 0
    %10637 = vmatpush1.bf16.msra.mxu0 %v10600
    %10638 = vmatprep.subr.bf16.mxu0 0
    %10639 = vmatpush1.bf16.msra.mxu0 %v10601
    %10640 = vmatprep.subr.bf16.mxu0 0
    %10641 = vmatpush1.bf16.msra.mxu0 %v10602
    %10642 = vmatprep.subr.bf16.mxu0 0
    %10643 = vmatpush1.bf16.msra.mxu0 0
    %10644 = vmatprep.subr.bf16.mxu0 0
    %10645 = vmatpush1.bf16.msra.mxu0 0
    %10646 = vmatprep.subr.bf16.mxu0 0
    %10647 = vmatpush1.bf16.msra.mxu0 0
    %10648 = vmatprep.subr.bf16.mxu0 0
    %10649 = vmatpush1.bf16.msra.mxu0 0
    %10650 = vmatprep.subr.bf16.mxu0 0
    %10651 = vmatpush1.bf16.msra.mxu0 0
    %10652 = vmatprep.subr.bf16.mxu0 0
    %10653 = vmatpush1.bf16.msra.mxu0 0
    %10654 = vmatprep.subr.bf16.mxu0 0
    %10655 = vmatpush1.bf16.msra.mxu0 0
    %10656 = vmatprep.subr.bf16.mxu0 0
    %10657 = vmatpush1.bf16.msra.mxu0 0
    %10658 = vmatprep.subr.bf16.mxu0 0
    %10659 = vmatpush1.bf16.msra.mxu0 0
    %10660 = vmatprep.subr.bf16.mxu0 0
    %10661 = vmatpush1.bf16.msra.mxu0 0
    %10662 = vmatprep.subr.bf16.mxu0 0
    %10663 = vmatpush1.bf16.msra.mxu0 0
    %10664 = vmatprep.subr.bf16.mxu0 0
    %10665 = vmatpush1.bf16.msra.mxu0 0
    %10666 = vmatprep.mubr.bf16.mxu0 0
    %10667 = vmatmul.mubr.bf16.gmra.mrb[0].mxu0 %v10608
    %v10668 = vpop.f32.mrb[0].mxu0
    %v10669 = vadd.f32 %v10581, %v10668
    %v10670 = vpop.f32.mrb[0].mxu0
    %v10671 = vpop.f32.mrb[0].mxu0
    %v10672 = vadd.f32 %v10581, %v10671
    %v10673 = vpop.f32.mrb[0].mxu0
    %10674 = vmatprep.mubr.bf16.mxu0 0
    %10675 = vmatmul.mubr.bf16.gmra.mrb[0].mxu0 %v10611
    %v10676 = vpop.f32.mrb[0].mxu0
    %v10677 = vadd.f32 %v10581, %v10676
    %v10678 = vpop.f32.mrb[0].mxu0
    %v10679 = vpop.f32.mrb[0].mxu0
    %v10680 = vadd.f32 %v10581, %v10679
    %v10681 = vpop.f32.mrb[0].mxu0
    %10682 = vmatprep.mubr.bf16.mxu0 0
    %10683 = vmatmul.mubr.bf16.gmra.mrb[0].mxu0 %v10614
    %v10684 = vpop.f32.mrb[0].mxu0
    %v10685 = vadd.f32 %v10581, %v10684
    %v10686 = vpop.f32.mrb[0].mxu0
    %v10687 = vpop.f32.mrb[0].mxu0
    %v10688 = vadd.f32 %v10581, %v10687
    %v10689 = vpop.f32.mrb[0].mxu0
    %10690 = vmatprep.mubr.bf16.mxu0 0
    %10691 = vmatmul.mubr.bf16.gmra.mrb[0].mxu0 %v10617
    %v10692 = vpop.f32.mrb[0].mxu0
    %v10693 = vadd.f32 %v10581, %v10692
    %v10694 = vpop.f32.mrb[0].mxu0
    %v10695 = vpop.f32.mrb[0].mxu0
    %v10696 = vadd.f32 %v10581, %v10695
    %v10697 = vpop.f32.mrb[0].mxu0
    %10698 = vmatprep.mubr.bf16.mxu0 0
    %10699 = vmatmul.mubr.bf16.gmra.mrb[0].mxu0 %v10620
    %v10700 = vpop.f32.mrb[0].mxu0
    %v10701 = vadd.f32 %v10581, %v10700
    %v10702 = vpop.f32.mrb[0].mxu0
    %v10703 = vpop.f32.mrb[0].mxu0
    %v10704 = vadd.f32 %v10581, %v10703
    %v10705 = vpop.f32.mrb[0].mxu0
    %10706 = vmatprep.mubr.bf16.mxu0 0
    %10707 = vmatmul.mubr.bf16.gmra.mrb[0].mxu0 %v10623
    %v10708 = vpop.f32.mrb[0].mxu0
    %v10709 = vadd.f32 %v10581, %v10708
    %v10710 = vpop.f32.mrb[0].mxu0
    %v10711 = vpop.f32.mrb[0].mxu0
    %v10712 = vadd.f32 %v10581, %v10711
    %v10713 = vpop.f32.mrb[0].mxu0
    %10714 = vmatprep.mubr.bf16.mxu0 0
    %10715 = vmatmul.mubr.bf16.gmra.mrb[0].mxu0 %v10626
    %v10716 = vpop.f32.mrb[0].mxu0
    %v10717 = vadd.f32 %v10581, %v10716
    %v10718 = vpop.f32.mrb[0].mxu0
    %v10719 = vpop.f32.mrb[0].mxu0
    %v10720 = vadd.f32 %v10581, %v10719
    %v10721 = vpop.f32.mrb[0].mxu0
    %10722 = vmatprep.mubr.bf16.mxu0 0
    %10723 = vmatmul.mubr.bf16.gmra.mrb[0].mxu0 %v10629
    %v10724 = vpop.f32.mrb[0].mxu0
    %v10725 = vadd.f32 %v10581, %v10724
    %v10726 = vpop.f32.mrb[0].mxu0
    %v10727 = vpop.f32.mrb[0].mxu0
    %v10728 = vadd.f32 %v10581, %v10727
    %v10729 = vpop.f32.mrb[0].mxu0
    %10730 = vmatprep.mubr.bf16.mxu0 0
    %10731 = vmatmul.mubr.bf16.gmra.mrb[0].mxu0 %v10632
    %v10732 = vpop.f32.mrb[0].mxu0
    %v10733 = vadd.f32 %v10581, %v10732
    %v10734 = vpop.f32.mrb[0].mxu0
    %v10735 = vpop.f32.mrb[0].mxu0
    %v10736 = vadd.f32 %v10581, %v10735
    %v10737 = vpop.f32.mrb[0].mxu0
    %10738 = vdwg.mxu0
    %v10739 = vmul.f32 %v10669, %v4854
    %v10740 = vmul.f32 %v10672, %v4859
    %v10741 = vmul.f32 %v10677, %v4864
    %v10742 = vmul.f32 %v10680, %v4869
    %v10743 = vmul.f32 %v10685, %v4874
    %v10744 = vmul.f32 %v10688, %v4879
    %v10745 = vmul.f32 %v10693, %v4884
    %v10746 = vmul.f32 %v10696, %v4889
    %v10747 = vmul.f32 %v10701, %v4894
    %v10748 = vmul.f32 %v10704, %v4899
    %v10749 = vmul.f32 %v10709, %v4904
    %v10750 = vmul.f32 %v10712, %v4909
    %v10751 = vmul.f32 %v10717, %v4914
    %v10752 = vmul.f32 %v10720, %v4919
    %v10753 = vmul.f32 %v10725, %v4924
    %v10754 = vmul.f32 %v10728, %v4929
    %v10755 = vmul.f32 %v10733, %v4934
    %v10756 = vmul.f32 %v10736, %v4939
    %v10757 = vadd.f32 %v6021, %v10739
    %v10758 = vadd.f32 %v6022, %v10740
    %v10759 = vadd.f32 %v6023, %v10741
    %v10760 = vadd.f32 %v6024, %v10742
    %v10761 = vadd.f32 %v6025, %v10743
    %v10762 = vadd.f32 %v6026, %v10744
    %v10763 = vadd.f32 %v6027, %v10745
    %v10764 = vadd.f32 %v6028, %v10746
    %v10765 = vadd.f32 %v6029, %v10747
    %v10766 = vadd.f32 %v6030, %v10748
    %v10767 = vadd.f32 %v6031, %v10749
    %v10768 = vadd.f32 %v6032, %v10750
    %v10769 = vadd.f32 %v6033, %v10751
    %v10770 = vadd.f32 %v6034, %v10752
    %v10771 = vadd.f32 %v6035, %v10753
    %v10772 = vadd.f32 %v6036, %v10754
    %v10773 = vadd.f32 %v6037, %v10755
    %v10774 = vadd.f32 %v6038, %v10756
    %s10775 = scalar_lea.vmem %s3, 3
    %v10776 = vld [vmem:[%s10775] sm:$0x1]
    %v10777 = vld [vmem:[%s10775 + $0x1] sm:$0x1]
    %v10778 = vld [vmem:[%s10775 + $0x2] sm:$0x1]
    %v10779 = vrot.slane %v10757, 7
    %v10780 = vrot.slane %v10758, 7
    %v10781 = vrot.slane %v10759, 7
    %v10782 = vrot.slane %v10760, 7
    %v10783 = vrot.slane %v10761, 7
    %v10784 = vrot.slane %v10762, 7
    %v10785 = vrot.slane %v10763, 7
    %v10786 = vrot.slane %v10764, 7
    %v10787 = vrot.slane %v10765, 7
    %v10788 = vrot.slane %v10766, 7
    %v10789 = vrot.slane %v10767, 7
    %v10790 = vrot.slane %v10768, 7
    %v10791 = vrot.slane %v10769, 7
    %v10792 = vrot.slane %v10770, 7
    %v10793 = vrot.slane %v10771, 7
    %v10794 = vrot.slane %v10772, 7
    %v10795 = vrot.slane %v10773, 7
    %v10796 = vrot.slane %v10774, 7
    %v10797 = vsel %vm5000, %v10795, %v10796
    %v10798 = vsel %vm5000, %v10794, %v10795
    %v10799 = vsel %vm5000, %v10793, %v10794
    %v10800 = vsel %vm5000, %v10792, %v10793
    %v10801 = vsel %vm5000, %v10791, %v10792
    %v10802 = vsel %vm5000, %v10790, %v10791
    %v10803 = vsel %vm5000, %v10789, %v10790
    %v10804 = vsel %vm5000, %v10788, %v10789
    %v10805 = vsel %vm5000, %v10787, %v10788
    %v10806 = vsel %vm5000, %v10786, %v10787
    %v10807 = vsel %vm5000, %v10785, %v10786
    %v10808 = vsel %vm5000, %v10784, %v10785
    %v10809 = vsel %vm5000, %v10783, %v10784
    %v10810 = vsel %vm5000, %v10782, %v10783
    %v10811 = vsel %vm5000, %v10781, %v10782
    %v10812 = vsel %vm5000, %v10780, %v10781
    %v10813 = vsel %vm5000, %v10779, %v10780
    %v10814 = vsel %vm5000, %v10796, %v10779
    %v10815 = vrot.slane %v10757, 1
    %v10816 = vrot.slane %v10758, 1
    %v10817 = vrot.slane %v10759, 1
    %v10818 = vrot.slane %v10760, 1
    %v10819 = vrot.slane %v10761, 1
    %v10820 = vrot.slane %v10762, 1
    %v10821 = vrot.slane %v10763, 1
    %v10822 = vrot.slane %v10764, 1
    %v10823 = vrot.slane %v10765, 1
    %v10824 = vrot.slane %v10766, 1
    %v10825 = vrot.slane %v10767, 1
    %v10826 = vrot.slane %v10768, 1
    %v10827 = vrot.slane %v10769, 1
    %v10828 = vrot.slane %v10770, 1
    %v10829 = vrot.slane %v10771, 1
    %v10830 = vrot.slane %v10772, 1
    %v10831 = vrot.slane %v10773, 1
    %v10832 = vrot.slane %v10774, 1
    %v10833 = vsel %vm5037, %v10831, %v10832
    %v10834 = vsel %vm5037, %v10830, %v10831
    %v10835 = vsel %vm5037, %v10829, %v10830
    %v10836 = vsel %vm5037, %v10828, %v10829
    %v10837 = vsel %vm5037, %v10827, %v10828
    %v10838 = vsel %vm5037, %v10826, %v10827
    %v10839 = vsel %vm5037, %v10825, %v10826
    %v10840 = vsel %vm5037, %v10824, %v10825
    %v10841 = vsel %vm5037, %v10823, %v10824
    %v10842 = vsel %vm5037, %v10822, %v10823
    %v10843 = vsel %vm5037, %v10821, %v10822
    %v10844 = vsel %vm5037, %v10820, %v10821
    %v10845 = vsel %vm5037, %v10819, %v10820
    %v10846 = vsel %vm5037, %v10818, %v10819
    %v10847 = vsel %vm5037, %v10817, %v10818
    %v10848 = vsel %vm5037, %v10816, %v10817
    %v10849 = vsel %vm5037, %v10815, %v10816
    %v10850 = vsel %vm5037, %v10832, %v10815
    %v10852 = vlaneseq
    %v10853 = vshrl.u32 %v10852, 7
    %v10854 = vsub.s32 0, %v10853
    %v10855 = vrot.slane %v10776, %v10854
    %10856 = vset.pattern.permute.xlu0 0
    %10857 = vperm.xlu0 %10856, %v10855
    %v10858 = vpop.permute.xlu0 %10857
    %v10860 = vmul.f32 %v10858, %v10814
    %v10861 = vmul.f32 %v10858, %v10813
    %v10862 = vmul.f32 %v10858, %v10812
    %v10863 = vmul.f32 %v10858, %v10811
    %v10864 = vmul.f32 %v10858, %v10810
    %v10865 = vmul.f32 %v10858, %v10809
    %v10866 = vmul.f32 %v10858, %v10808
    %v10867 = vmul.f32 %v10858, %v10807
    %v10868 = vmul.f32 %v10858, %v10806
    %v10869 = vmul.f32 %v10858, %v10805
    %v10870 = vmul.f32 %v10858, %v10804
    %v10871 = vmul.f32 %v10858, %v10803
    %v10872 = vmul.f32 %v10858, %v10802
    %v10873 = vmul.f32 %v10858, %v10801
    %v10874 = vmul.f32 %v10858, %v10800
    %v10875 = vmul.f32 %v10858, %v10799
    %v10876 = vmul.f32 %v10858, %v10798
    %v10877 = vmul.f32 %v10858, %v10797
    %v10879 = vlaneseq
    %v10880 = vshrl.u32 %v10879, 7
    %v10881 = vsub.s32 0, %v10880
    %v10882 = vrot.slane %v10777, %v10881
    %10883 = vset.pattern.permute.xlu0 0
    %10884 = vperm.xlu0 %10883, %v10882
    %v10885 = vpop.permute.xlu0 %10884
    %v10887 = vmul.f32 %v10885, %v10757
    %v10888 = vmul.f32 %v10885, %v10758
    %v10889 = vmul.f32 %v10885, %v10759
    %v10890 = vmul.f32 %v10885, %v10760
    %v10891 = vmul.f32 %v10885, %v10761
    %v10892 = vmul.f32 %v10885, %v10762
    %v10893 = vmul.f32 %v10885, %v10763
    %v10894 = vmul.f32 %v10885, %v10764
    %v10895 = vmul.f32 %v10885, %v10765
    %v10896 = vmul.f32 %v10885, %v10766
    %v10897 = vmul.f32 %v10885, %v10767
    %v10898 = vmul.f32 %v10885, %v10768
    %v10899 = vmul.f32 %v10885, %v10769
    %v10900 = vmul.f32 %v10885, %v10770
    %v10901 = vmul.f32 %v10885, %v10771
    %v10902 = vmul.f32 %v10885, %v10772
    %v10903 = vmul.f32 %v10885, %v10773
    %v10904 = vmul.f32 %v10885, %v10774
    %v10905 = vadd.f32 %v10860, %v10887
    %v10906 = vadd.f32 %v10861, %v10888
    %v10907 = vadd.f32 %v10862, %v10889
    %v10908 = vadd.f32 %v10863, %v10890
    %v10909 = vadd.f32 %v10864, %v10891
    %v10910 = vadd.f32 %v10865, %v10892
    %v10911 = vadd.f32 %v10866, %v10893
    %v10912 = vadd.f32 %v10867, %v10894
    %v10913 = vadd.f32 %v10868, %v10895
    %v10914 = vadd.f32 %v10869, %v10896
    %v10915 = vadd.f32 %v10870, %v10897
    %v10916 = vadd.f32 %v10871, %v10898
    %v10917 = vadd.f32 %v10872, %v10899
    %v10918 = vadd.f32 %v10873, %v10900
    %v10919 = vadd.f32 %v10874, %v10901
    %v10920 = vadd.f32 %v10875, %v10902
    %v10921 = vadd.f32 %v10876, %v10903
    %v10922 = vadd.f32 %v10877, %v10904
    %v10924 = vlaneseq
    %v10925 = vshrl.u32 %v10924, 7
    %v10926 = vsub.s32 0, %v10925
    %v10927 = vrot.slane %v10778, %v10926
    %10928 = vset.pattern.permute.xlu0 0
    %10929 = vperm.xlu0 %10928, %v10927
    %v10930 = vpop.permute.xlu0 %10929
    %v10932 = vmul.f32 %v10930, %v10849
    %v10933 = vmul.f32 %v10930, %v10848
    %v10934 = vmul.f32 %v10930, %v10847
    %v10935 = vmul.f32 %v10930, %v10846
    %v10936 = vmul.f32 %v10930, %v10845
    %v10937 = vmul.f32 %v10930, %v10844
    %v10938 = vmul.f32 %v10930, %v10843
    %v10939 = vmul.f32 %v10930, %v10842
    %v10940 = vmul.f32 %v10930, %v10841
    %v10941 = vmul.f32 %v10930, %v10840
    %v10942 = vmul.f32 %v10930, %v10839
    %v10943 = vmul.f32 %v10930, %v10838
    %v10944 = vmul.f32 %v10930, %v10837
    %v10945 = vmul.f32 %v10930, %v10836
    %v10946 = vmul.f32 %v10930, %v10835
    %v10947 = vmul.f32 %v10930, %v10834
    %v10948 = vmul.f32 %v10930, %v10833
    %v10949 = vmul.f32 %v10930, %v10850
    %v10950 = vadd.f32 %v10905, %v10932
    %v10951 = vadd.f32 %v10906, %v10933
    %v10952 = vadd.f32 %v10907, %v10934
    %v10953 = vadd.f32 %v10908, %v10935
    %v10954 = vadd.f32 %v10909, %v10936
    %v10955 = vadd.f32 %v10910, %v10937
    %v10956 = vadd.f32 %v10911, %v10938
    %v10957 = vadd.f32 %v10912, %v10939
    %v10958 = vadd.f32 %v10913, %v10940
    %v10959 = vadd.f32 %v10914, %v10941
    %v10960 = vadd.f32 %v10915, %v10942
    %v10961 = vadd.f32 %v10916, %v10943
    %v10962 = vadd.f32 %v10917, %v10944
    %v10963 = vadd.f32 %v10918, %v10945
    %v10964 = vadd.f32 %v10919, %v10946
    %v10965 = vadd.f32 %v10920, %v10947
    %v10966 = vadd.f32 %v10921, %v10948
    %v10967 = vadd.f32 %v10922, %v10949
    %s10968 = scalar_lea.vmem %s4, 1
    %v10969 = vld [vmem:[%s10968] sm:$0x1]
    %v10971 = vlaneseq
    %v10972 = vshrl.u32 %v10971, 7
    %v10973 = vsub.s32 0, %v10972
    %v10974 = vrot.slane %v10969, %v10973
    %10975 = vset.pattern.permute.xlu0 0
    %10976 = vperm.xlu0 %10975, %v10974
    %v10977 = vpop.permute.xlu0 %10976
    %v10979 = vadd.f32 %v10950, %v10977
    %v10980 = vadd.f32 %v10951, %v10977
    %v10981 = vadd.f32 %v10952, %v10977
    %v10982 = vadd.f32 %v10953, %v10977
    %v10983 = vadd.f32 %v10954, %v10977
    %v10984 = vadd.f32 %v10955, %v10977
    %v10985 = vadd.f32 %v10956, %v10977
    %v10986 = vadd.f32 %v10957, %v10977
    %v10987 = vadd.f32 %v10958, %v10977
    %v10988 = vadd.f32 %v10959, %v10977
    %v10989 = vadd.f32 %v10960, %v10977
    %v10990 = vadd.f32 %v10961, %v10977
    %v10991 = vadd.f32 %v10962, %v10977
    %v10992 = vadd.f32 %v10963, %v10977
    %v10993 = vadd.f32 %v10964, %v10977
    %v10994 = vadd.f32 %v10965, %v10977
    %v10995 = vadd.f32 %v10966, %v10977
    %v10996 = vadd.f32 %v10967, %v10977
    %v10997 = vmul.f32 %v10979, %v4854
    %v10998 = vmul.f32 %v10980, %v4859
    %v10999 = vmul.f32 %v10981, %v4864
    %v11000 = vmul.f32 %v10982, %v4869
    %v11001 = vmul.f32 %v10983, %v4874
    %v11002 = vmul.f32 %v10984, %v4879
    %v11003 = vmul.f32 %v10985, %v4884
    %v11004 = vmul.f32 %v10986, %v4889
    %v11005 = vmul.f32 %v10987, %v4894
    %v11006 = vmul.f32 %v10988, %v4899
    %v11007 = vmul.f32 %v10989, %v4904
    %v11008 = vmul.f32 %v10990, %v4909
    %v11009 = vmul.f32 %v10991, %v4914
    %v11010 = vmul.f32 %v10992, %v4919
    %v11011 = vmul.f32 %v10993, %v4924
    %v11012 = vmul.f32 %v10994, %v4929
    %v11013 = vmul.f32 %v10995, %v4934
    %v11014 = vmul.f32 %v10996, %v4939
    %v11015 = vadd.f32 %v10757, %v10997
    %v11016 = vadd.f32 %v10758, %v10998
    %v11017 = vadd.f32 %v10759, %v10999
    %v11018 = vadd.f32 %v10760, %v11000
    %v11019 = vadd.f32 %v10761, %v11001
    %v11020 = vadd.f32 %v10762, %v11002
    %v11021 = vadd.f32 %v10763, %v11003
    %v11022 = vadd.f32 %v10764, %v11004
    %v11023 = vadd.f32 %v10765, %v11005
    %v11024 = vadd.f32 %v10766, %v11006
    %v11025 = vadd.f32 %v10767, %v11007
    %v11026 = vadd.f32 %v10768, %v11008
    %v11027 = vadd.f32 %v10769, %v11009
    %v11028 = vadd.f32 %v10770, %v11010
    %v11029 = vadd.f32 %v10771, %v11011
    %v11030 = vadd.f32 %v10772, %v11012
    %v11031 = vadd.f32 %v10773, %v11013
    %v11032 = vadd.f32 %v10774, %v11014
    %s11033 = scalar_lea.vmem %s10, 1
    %v11034 = vld [vmem:[%s11033] sm:$0x1]
    %s11035 = scalar_lea.vmem %s11, 1
    %v11036 = vld [vmem:[%s11035] sm:$0x1]
    %v11037 = vsel %vm153, %v11015, 0.0
    %11038 = vadd.xlane.f32.xlu0 %v11037
    %v11039 = vpop.xlane.xlu0 %11038
    %v11040 = vsel %vm153, %v11016, 0.0
    %11041 = vadd.xlane.f32.xlu0 %v11040
    %v11042 = vpop.xlane.xlu0 %11041
    %v11043 = vsel %vm153, %v11017, 0.0
    %11044 = vadd.xlane.f32.xlu0 %v11043
    %v11045 = vpop.xlane.xlu0 %11044
    %v11046 = vsel %vm153, %v11018, 0.0
    %11047 = vadd.xlane.f32.xlu0 %v11046
    %v11048 = vpop.xlane.xlu0 %11047
    %v11049 = vsel %vm153, %v11019, 0.0
    %11050 = vadd.xlane.f32.xlu0 %v11049
    %v11051 = vpop.xlane.xlu0 %11050
    %v11052 = vsel %vm153, %v11020, 0.0
    %11053 = vadd.xlane.f32.xlu0 %v11052
    %v11054 = vpop.xlane.xlu0 %11053
    %v11055 = vsel %vm153, %v11021, 0.0
    %11056 = vadd.xlane.f32.xlu0 %v11055
    %v11057 = vpop.xlane.xlu0 %11056
    %v11058 = vsel %vm153, %v11022, 0.0
    %11059 = vadd.xlane.f32.xlu0 %v11058
    %v11060 = vpop.xlane.xlu0 %11059
    %v11061 = vsel %vm153, %v11023, 0.0
    %11062 = vadd.xlane.f32.xlu0 %v11061
    %v11063 = vpop.xlane.xlu0 %11062
    %v11064 = vsel %vm153, %v11024, 0.0
    %11065 = vadd.xlane.f32.xlu0 %v11064
    %v11066 = vpop.xlane.xlu0 %11065
    %v11067 = vsel %vm153, %v11025, 0.0
    %11068 = vadd.xlane.f32.xlu0 %v11067
    %v11069 = vpop.xlane.xlu0 %11068
    %v11070 = vsel %vm153, %v11026, 0.0
    %11071 = vadd.xlane.f32.xlu0 %v11070
    %v11072 = vpop.xlane.xlu0 %11071
    %v11073 = vsel %vm153, %v11027, 0.0
    %11074 = vadd.xlane.f32.xlu0 %v11073
    %v11075 = vpop.xlane.xlu0 %11074
    %v11076 = vsel %vm153, %v11028, 0.0
    %11077 = vadd.xlane.f32.xlu0 %v11076
    %v11078 = vpop.xlane.xlu0 %11077
    %v11079 = vsel %vm153, %v11029, 0.0
    %11080 = vadd.xlane.f32.xlu0 %v11079
    %v11081 = vpop.xlane.xlu0 %11080
    %v11082 = vsel %vm153, %v11030, 0.0
    %11083 = vadd.xlane.f32.xlu0 %v11082
    %v11084 = vpop.xlane.xlu0 %11083
    %v11085 = vsel %vm153, %v11031, 0.0
    %11086 = vadd.xlane.f32.xlu0 %v11085
    %v11087 = vpop.xlane.xlu0 %11086
    %v11088 = vsel %vm153, %v11032, 0.0
    %11089 = vadd.xlane.f32.xlu0 %v11088
    %v11090 = vpop.xlane.xlu0 %11089
    %v11091 = vmul.f32 %v11039, %v208
    %v11092 = vmul.f32 %v11042, %v208
    %v11093 = vmul.f32 %v11045, %v208
    %v11094 = vmul.f32 %v11048, %v208
    %v11095 = vmul.f32 %v11051, %v208
    %v11096 = vmul.f32 %v11054, %v208
    %v11097 = vmul.f32 %v11057, %v208
    %v11098 = vmul.f32 %v11060, %v208
    %v11099 = vmul.f32 %v11063, %v208
    %v11100 = vmul.f32 %v11066, %v208
    %v11101 = vmul.f32 %v11069, %v208
    %v11102 = vmul.f32 %v11072, %v208
    %v11103 = vmul.f32 %v11075, %v208
    %v11104 = vmul.f32 %v11078, %v208
    %v11105 = vmul.f32 %v11081, %v208
    %v11106 = vmul.f32 %v11084, %v208
    %v11107 = vmul.f32 %v11087, %v208
    %v11108 = vmul.f32 %v11090, %v208
    %v11109 = vsub.f32 %v11015, %v11091
    %v11110 = vsub.f32 %v11016, %v11092
    %v11111 = vsub.f32 %v11017, %v11093
    %v11112 = vsub.f32 %v11018, %v11094
    %v11113 = vsub.f32 %v11019, %v11095
    %v11114 = vsub.f32 %v11020, %v11096
    %v11115 = vsub.f32 %v11021, %v11097
    %v11116 = vsub.f32 %v11022, %v11098
    %v11117 = vsub.f32 %v11023, %v11099
    %v11118 = vsub.f32 %v11024, %v11100
    %v11119 = vsub.f32 %v11025, %v11101
    %v11120 = vsub.f32 %v11026, %v11102
    %v11121 = vsub.f32 %v11027, %v11103
    %v11122 = vsub.f32 %v11028, %v11104
    %v11123 = vsub.f32 %v11029, %v11105
    %v11124 = vsub.f32 %v11030, %v11106
    %v11125 = vsub.f32 %v11031, %v11107
    %v11126 = vsub.f32 %v11032, %v11108
    %v11127 = vmul.f32 %v11109, %v11109
    %v11128 = vmul.f32 %v11110, %v11110
    %v11129 = vmul.f32 %v11111, %v11111
    %v11130 = vmul.f32 %v11112, %v11112
    %v11131 = vmul.f32 %v11113, %v11113
    %v11132 = vmul.f32 %v11114, %v11114
    %v11133 = vmul.f32 %v11115, %v11115
    %v11134 = vmul.f32 %v11116, %v11116
    %v11135 = vmul.f32 %v11117, %v11117
    %v11136 = vmul.f32 %v11118, %v11118
    %v11137 = vmul.f32 %v11119, %v11119
    %v11138 = vmul.f32 %v11120, %v11120
    %v11139 = vmul.f32 %v11121, %v11121
    %v11140 = vmul.f32 %v11122, %v11122
    %v11141 = vmul.f32 %v11123, %v11123
    %v11142 = vmul.f32 %v11124, %v11124
    %v11143 = vmul.f32 %v11125, %v11125
    %v11144 = vmul.f32 %v11126, %v11126
    %v11145 = vsel %vm153, %v11127, 0.0
    %11146 = vadd.xlane.f32.xlu0 %v11145
    %v11147 = vpop.xlane.xlu0 %11146
    %v11148 = vsel %vm153, %v11128, 0.0
    %11149 = vadd.xlane.f32.xlu0 %v11148
    %v11150 = vpop.xlane.xlu0 %11149
    %v11151 = vsel %vm153, %v11129, 0.0
    %11152 = vadd.xlane.f32.xlu0 %v11151
    %v11153 = vpop.xlane.xlu0 %11152
    %v11154 = vsel %vm153, %v11130, 0.0
    %11155 = vadd.xlane.f32.xlu0 %v11154
    %v11156 = vpop.xlane.xlu0 %11155
    %v11157 = vsel %vm153, %v11131, 0.0
    %11158 = vadd.xlane.f32.xlu0 %v11157
    %v11159 = vpop.xlane.xlu0 %11158
    %v11160 = vsel %vm153, %v11132, 0.0
    %11161 = vadd.xlane.f32.xlu0 %v11160
    %v11162 = vpop.xlane.xlu0 %11161
    %v11163 = vsel %vm153, %v11133, 0.0
    %11164 = vadd.xlane.f32.xlu0 %v11163
    %v11165 = vpop.xlane.xlu0 %11164
    %v11166 = vsel %vm153, %v11134, 0.0
    %11167 = vadd.xlane.f32.xlu0 %v11166
    %v11168 = vpop.xlane.xlu0 %11167
    %v11169 = vsel %vm153, %v11135, 0.0
    %11170 = vadd.xlane.f32.xlu0 %v11169
    %v11171 = vpop.xlane.xlu0 %11170
    %v11172 = vsel %vm153, %v11136, 0.0
    %11173 = vadd.xlane.f32.xlu0 %v11172
    %v11174 = vpop.xlane.xlu0 %11173
    %v11175 = vsel %vm153, %v11137, 0.0
    %11176 = vadd.xlane.f32.xlu0 %v11175
    %v11177 = vpop.xlane.xlu0 %11176
    %v11178 = vsel %vm153, %v11138, 0.0
    %11179 = vadd.xlane.f32.xlu0 %v11178
    %v11180 = vpop.xlane.xlu0 %11179
    %v11181 = vsel %vm153, %v11139, 0.0
    %11182 = vadd.xlane.f32.xlu0 %v11181
    %v11183 = vpop.xlane.xlu0 %11182
    %v11184 = vsel %vm153, %v11140, 0.0
    %11185 = vadd.xlane.f32.xlu0 %v11184
    %v11186 = vpop.xlane.xlu0 %11185
    %v11187 = vsel %vm153, %v11141, 0.0
    %11188 = vadd.xlane.f32.xlu0 %v11187
    %v11189 = vpop.xlane.xlu0 %11188
    %v11190 = vsel %vm153, %v11142, 0.0
    %11191 = vadd.xlane.f32.xlu0 %v11190
    %v11192 = vpop.xlane.xlu0 %11191
    %v11193 = vsel %vm153, %v11143, 0.0
    %11194 = vadd.xlane.f32.xlu0 %v11193
    %v11195 = vpop.xlane.xlu0 %11194
    %v11196 = vsel %vm153, %v11144, 0.0
    %11197 = vadd.xlane.f32.xlu0 %v11196
    %v11198 = vpop.xlane.xlu0 %11197
    %v11199 = vmul.f32 %v11147, %v208
    %v11200 = vmul.f32 %v11150, %v208
    %v11201 = vmul.f32 %v11153, %v208
    %v11202 = vmul.f32 %v11156, %v208
    %v11203 = vmul.f32 %v11159, %v208
    %v11204 = vmul.f32 %v11162, %v208
    %v11205 = vmul.f32 %v11165, %v208
    %v11206 = vmul.f32 %v11168, %v208
    %v11207 = vmul.f32 %v11171, %v208
    %v11208 = vmul.f32 %v11174, %v208
    %v11209 = vmul.f32 %v11177, %v208
    %v11210 = vmul.f32 %v11180, %v208
    %v11211 = vmul.f32 %v11183, %v208
    %v11212 = vmul.f32 %v11186, %v208
    %v11213 = vmul.f32 %v11189, %v208
    %v11214 = vmul.f32 %v11192, %v208
    %v11215 = vmul.f32 %v11195, %v208
    %v11216 = vmul.f32 %v11198, %v208
    %v11217 = vadd.f32 %v11199, 1e-05
    %v11218 = vadd.f32 %v11200, 1e-05
    %v11219 = vadd.f32 %v11201, 1e-05
    %v11220 = vadd.f32 %v11202, 1e-05
    %v11221 = vadd.f32 %v11203, 1e-05
    %v11222 = vadd.f32 %v11204, 1e-05
    %v11223 = vadd.f32 %v11205, 1e-05
    %v11224 = vadd.f32 %v11206, 1e-05
    %v11225 = vadd.f32 %v11207, 1e-05
    %v11226 = vadd.f32 %v11208, 1e-05
    %v11227 = vadd.f32 %v11209, 1e-05
    %v11228 = vadd.f32 %v11210, 1e-05
    %v11229 = vadd.f32 %v11211, 1e-05
    %v11230 = vadd.f32 %v11212, 1e-05
    %v11231 = vadd.f32 %v11213, 1e-05
    %v11232 = vadd.f32 %v11214, 1e-05
    %v11233 = vadd.f32 %v11215, 1e-05
    %v11234 = vadd.f32 %v11216, 1e-05
    %v11235 = vrsqrt.pop %v11217
    %v11236 = vrsqrt.pop %v11218
    %v11237 = vrsqrt.pop %v11219
    %v11238 = vrsqrt.pop %v11220
    %v11239 = vrsqrt.pop %v11221
    %v11240 = vrsqrt.pop %v11222
    %v11241 = vrsqrt.pop %v11223
    %v11242 = vrsqrt.pop %v11224
    %v11243 = vrsqrt.pop %v11225
    %v11244 = vrsqrt.pop %v11226
    %v11245 = vrsqrt.pop %v11227
    %v11246 = vrsqrt.pop %v11228
    %v11247 = vrsqrt.pop %v11229
    %v11248 = vrsqrt.pop %v11230
    %v11249 = vrsqrt.pop %v11231
    %v11250 = vrsqrt.pop %v11232
    %v11251 = vrsqrt.pop %v11233
    %v11252 = vrsqrt.pop %v11234
    %v11253 = vmul.f32 %v11109, %v11235
    %v11254 = vmul.f32 %v11110, %v11236
    %v11255 = vmul.f32 %v11111, %v11237
    %v11256 = vmul.f32 %v11112, %v11238
    %v11257 = vmul.f32 %v11113, %v11239
    %v11258 = vmul.f32 %v11114, %v11240
    %v11259 = vmul.f32 %v11115, %v11241
    %v11260 = vmul.f32 %v11116, %v11242
    %v11261 = vmul.f32 %v11117, %v11243
    %v11262 = vmul.f32 %v11118, %v11244
    %v11263 = vmul.f32 %v11119, %v11245
    %v11264 = vmul.f32 %v11120, %v11246
    %v11265 = vmul.f32 %v11121, %v11247
    %v11266 = vmul.f32 %v11122, %v11248
    %v11267 = vmul.f32 %v11123, %v11249
    %v11268 = vmul.f32 %v11124, %v11250
    %v11269 = vmul.f32 %v11125, %v11251
    %v11270 = vmul.f32 %v11126, %v11252
    %v11272 = vlaneseq
    %v11273 = vshrl.u32 %v11272, 7
    %v11274 = vsub.s32 0, %v11273
    %v11275 = vrot.slane %v11034, %v11274
    %v11277 = vmul.f32 %v11253, %v11275
    %v11278 = vmul.f32 %v11254, %v11275
    %v11279 = vmul.f32 %v11255, %v11275
    %v11280 = vmul.f32 %v11256, %v11275
    %v11281 = vmul.f32 %v11257, %v11275
    %v11282 = vmul.f32 %v11258, %v11275
    %v11283 = vmul.f32 %v11259, %v11275
    %v11284 = vmul.f32 %v11260, %v11275
    %v11285 = vmul.f32 %v11261, %v11275
    %v11286 = vmul.f32 %v11262, %v11275
    %v11287 = vmul.f32 %v11263, %v11275
    %v11288 = vmul.f32 %v11264, %v11275
    %v11289 = vmul.f32 %v11265, %v11275
    %v11290 = vmul.f32 %v11266, %v11275
    %v11291 = vmul.f32 %v11267, %v11275
    %v11292 = vmul.f32 %v11268, %v11275
    %v11293 = vmul.f32 %v11269, %v11275
    %v11294 = vmul.f32 %v11270, %v11275
    %v11296 = vlaneseq
    %v11297 = vshrl.u32 %v11296, 7
    %v11298 = vsub.s32 0, %v11297
    %v11299 = vrot.slane %v11036, %v11298
    %v11301 = vadd.f32 %v11277, %v11299
    %v11302 = vadd.f32 %v11278, %v11299
    %v11303 = vadd.f32 %v11279, %v11299
    %v11304 = vadd.f32 %v11280, %v11299
    %v11305 = vadd.f32 %v11281, %v11299
    %v11306 = vadd.f32 %v11282, %v11299
    %v11307 = vadd.f32 %v11283, %v11299
    %v11308 = vadd.f32 %v11284, %v11299
    %v11309 = vadd.f32 %v11285, %v11299
    %v11310 = vadd.f32 %v11286, %v11299
    %v11311 = vadd.f32 %v11287, %v11299
    %v11312 = vadd.f32 %v11288, %v11299
    %v11313 = vadd.f32 %v11289, %v11299
    %v11314 = vadd.f32 %v11290, %v11299
    %v11315 = vadd.f32 %v11291, %v11299
    %v11316 = vadd.f32 %v11292, %v11299
    %v11317 = vadd.f32 %v11293, %v11299
    %v11318 = vadd.f32 %v11294, %v11299
    %v11319 = vpack.c.bf16 %v11302, %v11301
    %v11320 = vpack.c.bf16 %v11304, %v11303
    %v11321 = vpack.c.bf16 %v11306, %v11305
    %v11322 = vpack.c.bf16 %v11308, %v11307
    %v11323 = vpack.c.bf16 %v11310, %v11309
    %v11324 = vpack.c.bf16 %v11312, %v11311
    %v11325 = vpack.c.bf16 %v11314, %v11313
    %v11326 = vpack.c.bf16 %v11316, %v11315
    %v11327 = vpack.c.bf16 %v11318, %v11317
    %s11328 = scalar_lea.vmem %s12, 16
    %v11329 = vld [vmem:[%s11328] sm:$0xf]
    %v11330 = vld [vmem:[%s11328 + $0x4] sm:$0xf]
    %v11331 = vld [vmem:[%s11328 + $0x8] sm:$0xf]
    %v11332 = vld [vmem:[%s11328 + $0xc] sm:$0xf]
    %s11333 = scalar_lea.vmem %s13, 1
    %v11334 = vld [vmem:[%s11333] sm:$0x1]
    %v11336 = vlaneseq
    %v11337 = vshrl.u32 %v11336, 7
    %v11338 = vsub.s32 0, %v11337
    %v11339 = vrot.slane %v11334, %v11338
    %v11345 = vunpack.c.l.b16 %v11329
    %v11346 = vunpack.c.l.b16 %v11330
    %v11347 = vunpack.c.l.b16 %v11331
    %v11348 = vunpack.c.l.b16 %v11332
    %v11349 = vpack.c.b16 %v11346, %v11345
    %v11350 = vpack.c.b16 %v11348, %v11347
    %v11354 = vsel %vm153, %v11319, 0
    %v11357 = vsel %vm153, %v11320, 0
    %v11360 = vsel %vm153, %v11321, 0
    %v11363 = vsel %vm153, %v11322, 0
    %v11366 = vsel %vm153, %v11323, 0
    %v11369 = vsel %vm153, %v11324, 0
    %v11372 = vsel %vm153, %v11325, 0
    %v11375 = vsel %vm153, %v11326, 0
    %v11378 = vsel %vm153, %v11327, 0
    %11380 = vmatprep.subr.bf16.mxu0 0
    %11381 = vmatpush1.bf16.msra.mxu0 %v11349
    %11382 = vmatprep.subr.bf16.mxu0 0
    %11383 = vmatpush1.bf16.msra.mxu0 %v11350
    %11384 = vmatprep.subr.bf16.mxu0 0
    %11385 = vmatpush1.bf16.msra.mxu0 0
    %11386 = vmatprep.subr.bf16.mxu0 0
    %11387 = vmatpush1.bf16.msra.mxu0 0
    %11388 = vmatprep.subr.bf16.mxu0 0
    %11389 = vmatpush1.bf16.msra.mxu0 0
    %11390 = vmatprep.subr.bf16.mxu0 0
    %11391 = vmatpush1.bf16.msra.mxu0 0
    %11392 = vmatprep.subr.bf16.mxu0 0
    %11393 = vmatpush1.bf16.msra.mxu0 0
    %11394 = vmatprep.subr.bf16.mxu0 0
    %11395 = vmatpush1.bf16.msra.mxu0 0
    %11396 = vmatprep.subr.bf16.mxu0 0
    %11397 = vmatpush1.bf16.msra.mxu0 0
    %11398 = vmatprep.subr.bf16.mxu0 0
    %11399 = vmatpush1.bf16.msra.mxu0 0
    %11400 = vmatprep.subr.bf16.mxu0 0
    %11401 = vmatpush1.bf16.msra.mxu0 0
    %11402 = vmatprep.subr.bf16.mxu0 0
    %11403 = vmatpush1.bf16.msra.mxu0 0
    %11404 = vmatprep.subr.bf16.mxu0 0
    %11405 = vmatpush1.bf16.msra.mxu0 0
    %11406 = vmatprep.subr.bf16.mxu0 0
    %11407 = vmatpush1.bf16.msra.mxu0 0
    %11408 = vmatprep.subr.bf16.mxu0 0
    %11409 = vmatpush1.bf16.msra.mxu0 0
    %11410 = vmatprep.subr.bf16.mxu0 0
    %11411 = vmatpush1.bf16.msra.mxu0 0
    %11412 = vmatprep.mubr.bf16.mxu0 0
    %11413 = vmatmul.mubr.bf16.gmra.mrb[0].mxu0 %v11354
    %v11414 = vpop.f32.mrb[0].mxu0
    %v11415 = vadd.f32 %v11339, %v11414
    %v11416 = vpop.f32.mrb[0].mxu0
    %v11417 = vpop.f32.mrb[0].mxu0
    %v11418 = vadd.f32 %v11339, %v11417
    %v11419 = vpop.f32.mrb[0].mxu0
    %11420 = vmatprep.mubr.bf16.mxu0 0
    %11421 = vmatmul.mubr.bf16.gmra.mrb[0].mxu0 %v11357
    %v11422 = vpop.f32.mrb[0].mxu0
    %v11423 = vadd.f32 %v11339, %v11422
    %v11424 = vpop.f32.mrb[0].mxu0
    %v11425 = vpop.f32.mrb[0].mxu0
    %v11426 = vadd.f32 %v11339, %v11425
    %v11427 = vpop.f32.mrb[0].mxu0
    %11428 = vmatprep.mubr.bf16.mxu0 0
    %11429 = vmatmul.mubr.bf16.gmra.mrb[0].mxu0 %v11360
    %v11430 = vpop.f32.mrb[0].mxu0
    %v11431 = vadd.f32 %v11339, %v11430
    %v11432 = vpop.f32.mrb[0].mxu0
    %v11433 = vpop.f32.mrb[0].mxu0
    %v11434 = vadd.f32 %v11339, %v11433
    %v11435 = vpop.f32.mrb[0].mxu0
    %11436 = vmatprep.mubr.bf16.mxu0 0
    %11437 = vmatmul.mubr.bf16.gmra.mrb[0].mxu0 %v11363
    %v11438 = vpop.f32.mrb[0].mxu0
    %v11439 = vadd.f32 %v11339, %v11438
    %v11440 = vpop.f32.mrb[0].mxu0
    %v11441 = vpop.f32.mrb[0].mxu0
    %v11442 = vadd.f32 %v11339, %v11441
    %v11443 = vpop.f32.mrb[0].mxu0
    %11444 = vmatprep.mubr.bf16.mxu0 0
    %11445 = vmatmul.mubr.bf16.gmra.mrb[0].mxu0 %v11366
    %v11446 = vpop.f32.mrb[0].mxu0
    %v11447 = vadd.f32 %v11339, %v11446
    %v11448 = vpop.f32.mrb[0].mxu0
    %v11449 = vpop.f32.mrb[0].mxu0
    %v11450 = vadd.f32 %v11339, %v11449
    %v11451 = vpop.f32.mrb[0].mxu0
    %11452 = vmatprep.mubr.bf16.mxu0 0
    %11453 = vmatmul.mubr.bf16.gmra.mrb[0].mxu0 %v11369
    %v11454 = vpop.f32.mrb[0].mxu0
    %v11455 = vadd.f32 %v11339, %v11454
    %v11456 = vpop.f32.mrb[0].mxu0
    %v11457 = vpop.f32.mrb[0].mxu0
    %v11458 = vadd.f32 %v11339, %v11457
    %v11459 = vpop.f32.mrb[0].mxu0
    %11460 = vmatprep.mubr.bf16.mxu0 0
    %11461 = vmatmul.mubr.bf16.gmra.mrb[0].mxu0 %v11372
    %v11462 = vpop.f32.mrb[0].mxu0
    %v11463 = vadd.f32 %v11339, %v11462
    %v11464 = vpop.f32.mrb[0].mxu0
    %v11465 = vpop.f32.mrb[0].mxu0
    %v11466 = vadd.f32 %v11339, %v11465
    %v11467 = vpop.f32.mrb[0].mxu0
    %11468 = vmatprep.mubr.bf16.mxu0 0
    %11469 = vmatmul.mubr.bf16.gmra.mrb[0].mxu0 %v11375
    %v11470 = vpop.f32.mrb[0].mxu0
    %v11471 = vadd.f32 %v11339, %v11470
    %v11472 = vpop.f32.mrb[0].mxu0
    %v11473 = vpop.f32.mrb[0].mxu0
    %v11474 = vadd.f32 %v11339, %v11473
    %v11475 = vpop.f32.mrb[0].mxu0
    %11476 = vmatprep.mubr.bf16.mxu0 0
    %11477 = vmatmul.mubr.bf16.gmra.mrb[0].mxu0 %v11378
    %v11478 = vpop.f32.mrb[0].mxu0
    %v11479 = vadd.f32 %v11339, %v11478
    %v11480 = vpop.f32.mrb[0].mxu0
    %v11481 = vpop.f32.mrb[0].mxu0
    %v11482 = vadd.f32 %v11339, %v11481
    %v11483 = vpop.f32.mrb[0].mxu0
    %11484 = vdwg.mxu0
    %v11485 = vmul.f32 %v11415, %v11415
    %v11486 = vmul.f32 %v11418, %v11418
    %v11487 = vmul.f32 %v11423, %v11423
    %v11488 = vmul.f32 %v11426, %v11426
    %v11489 = vmul.f32 %v11431, %v11431
    %v11490 = vmul.f32 %v11434, %v11434
    %v11491 = vmul.f32 %v11439, %v11439
    %v11492 = vmul.f32 %v11442, %v11442
    %v11493 = vmul.f32 %v11447, %v11447
    %v11494 = vmul.f32 %v11450, %v11450
    %v11495 = vmul.f32 %v11455, %v11455
    %v11496 = vmul.f32 %v11458, %v11458
    %v11497 = vmul.f32 %v11463, %v11463
    %v11498 = vmul.f32 %v11466, %v11466
    %v11499 = vmul.f32 %v11471, %v11471
    %v11500 = vmul.f32 %v11474, %v11474
    %v11501 = vmul.f32 %v11479, %v11479
    %v11502 = vmul.f32 %v11482, %v11482
    %v11503 = vmul.f32 %v11415, %v11485
    %v11504 = vmul.f32 %v11418, %v11486
    %v11505 = vmul.f32 %v11423, %v11487
    %v11506 = vmul.f32 %v11426, %v11488
    %v11507 = vmul.f32 %v11431, %v11489
    %v11508 = vmul.f32 %v11434, %v11490
    %v11509 = vmul.f32 %v11439, %v11491
    %v11510 = vmul.f32 %v11442, %v11492
    %v11511 = vmul.f32 %v11447, %v11493
    %v11512 = vmul.f32 %v11450, %v11494
    %v11513 = vmul.f32 %v11455, %v11495
    %v11514 = vmul.f32 %v11458, %v11496
    %v11515 = vmul.f32 %v11463, %v11497
    %v11516 = vmul.f32 %v11466, %v11498
    %v11517 = vmul.f32 %v11471, %v11499
    %v11518 = vmul.f32 %v11474, %v11500
    %v11519 = vmul.f32 %v11479, %v11501
    %v11520 = vmul.f32 %v11482, %v11502
    %v11521 = vmul.f32 %v11503, 0.044715
    %v11522 = vmul.f32 %v11504, 0.044715
    %v11523 = vmul.f32 %v11505, 0.044715
    %v11524 = vmul.f32 %v11506, 0.044715
    %v11525 = vmul.f32 %v11507, 0.044715
    %v11526 = vmul.f32 %v11508, 0.044715
    %v11527 = vmul.f32 %v11509, 0.044715
    %v11528 = vmul.f32 %v11510, 0.044715
    %v11529 = vmul.f32 %v11511, 0.044715
    %v11530 = vmul.f32 %v11512, 0.044715
    %v11531 = vmul.f32 %v11513, 0.044715
    %v11532 = vmul.f32 %v11514, 0.044715
    %v11533 = vmul.f32 %v11515, 0.044715
    %v11534 = vmul.f32 %v11516, 0.044715
    %v11535 = vmul.f32 %v11517, 0.044715
    %v11536 = vmul.f32 %v11518, 0.044715
    %v11537 = vmul.f32 %v11519, 0.044715
    %v11538 = vmul.f32 %v11520, 0.044715
    %v11539 = vadd.f32 %v11415, %v11521
    %v11540 = vadd.f32 %v11418, %v11522
    %v11541 = vadd.f32 %v11423, %v11523
    %v11542 = vadd.f32 %v11426, %v11524
    %v11543 = vadd.f32 %v11431, %v11525
    %v11544 = vadd.f32 %v11434, %v11526
    %v11545 = vadd.f32 %v11439, %v11527
    %v11546 = vadd.f32 %v11442, %v11528
    %v11547 = vadd.f32 %v11447, %v11529
    %v11548 = vadd.f32 %v11450, %v11530
    %v11549 = vadd.f32 %v11455, %v11531
    %v11550 = vadd.f32 %v11458, %v11532
    %v11551 = vadd.f32 %v11463, %v11533
    %v11552 = vadd.f32 %v11466, %v11534
    %v11553 = vadd.f32 %v11471, %v11535
    %v11554 = vadd.f32 %v11474, %v11536
    %v11555 = vadd.f32 %v11479, %v11537
    %v11556 = vadd.f32 %v11482, %v11538
    %v11557 = vmul.f32 %v11539, 0.7978846
    %v11558 = vmul.f32 %v11540, 0.7978846
    %v11559 = vmul.f32 %v11541, 0.7978846
    %v11560 = vmul.f32 %v11542, 0.7978846
    %v11561 = vmul.f32 %v11543, 0.7978846
    %v11562 = vmul.f32 %v11544, 0.7978846
    %v11563 = vmul.f32 %v11545, 0.7978846
    %v11564 = vmul.f32 %v11546, 0.7978846
    %v11565 = vmul.f32 %v11547, 0.7978846
    %v11566 = vmul.f32 %v11548, 0.7978846
    %v11567 = vmul.f32 %v11549, 0.7978846
    %v11568 = vmul.f32 %v11550, 0.7978846
    %v11569 = vmul.f32 %v11551, 0.7978846
    %v11570 = vmul.f32 %v11552, 0.7978846
    %v11571 = vmul.f32 %v11553, 0.7978846
    %v11572 = vmul.f32 %v11554, 0.7978846
    %v11573 = vmul.f32 %v11555, 0.7978846
    %v11574 = vmul.f32 %v11556, 0.7978846
    %v11575 = vtanh.pop %v11557
    %v11576 = vtanh.pop %v11558
    %v11577 = vtanh.pop %v11559
    %v11578 = vtanh.pop %v11560
    %v11579 = vtanh.pop %v11561
    %v11580 = vtanh.pop %v11562
    %v11581 = vtanh.pop %v11563
    %v11582 = vtanh.pop %v11564
    %v11583 = vtanh.pop %v11565
    %v11584 = vtanh.pop %v11566
    %v11585 = vtanh.pop %v11567
    %v11586 = vtanh.pop %v11568
    %v11587 = vtanh.pop %v11569
    %v11588 = vtanh.pop %v11570
    %v11589 = vtanh.pop %v11571
    %v11590 = vtanh.pop %v11572
    %v11591 = vtanh.pop %v11573
    %v11592 = vtanh.pop %v11574
    %v11593 = vadd.f32 %v11575, 1.0
    %v11594 = vadd.f32 %v11576, 1.0
    %v11595 = vadd.f32 %v11577, 1.0
    %v11596 = vadd.f32 %v11578, 1.0
    %v11597 = vadd.f32 %v11579, 1.0
    %v11598 = vadd.f32 %v11580, 1.0
    %v11599 = vadd.f32 %v11581, 1.0
    %v11600 = vadd.f32 %v11582, 1.0
    %v11601 = vadd.f32 %v11583, 1.0
    %v11602 = vadd.f32 %v11584, 1.0
    %v11603 = vadd.f32 %v11585, 1.0
    %v11604 = vadd.f32 %v11586, 1.0
    %v11605 = vadd.f32 %v11587, 1.0
    %v11606 = vadd.f32 %v11588, 1.0
    %v11607 = vadd.f32 %v11589, 1.0
    %v11608 = vadd.f32 %v11590, 1.0
    %v11609 = vadd.f32 %v11591, 1.0
    %v11610 = vadd.f32 %v11592, 1.0
    %v11611 = vmul.f32 %v11593, 0.5
    %v11612 = vmul.f32 %v11594, 0.5
    %v11613 = vmul.f32 %v11595, 0.5
    %v11614 = vmul.f32 %v11596, 0.5
    %v11615 = vmul.f32 %v11597, 0.5
    %v11616 = vmul.f32 %v11598, 0.5
    %v11617 = vmul.f32 %v11599, 0.5
    %v11618 = vmul.f32 %v11600, 0.5
    %v11619 = vmul.f32 %v11601, 0.5
    %v11620 = vmul.f32 %v11602, 0.5
    %v11621 = vmul.f32 %v11603, 0.5
    %v11622 = vmul.f32 %v11604, 0.5
    %v11623 = vmul.f32 %v11605, 0.5
    %v11624 = vmul.f32 %v11606, 0.5
    %v11625 = vmul.f32 %v11607, 0.5
    %v11626 = vmul.f32 %v11608, 0.5
    %v11627 = vmul.f32 %v11609, 0.5
    %v11628 = vmul.f32 %v11610, 0.5
    %v11629 = vmul.f32 %v11415, %v11611
    %v11630 = vmul.f32 %v11418, %v11612
    %v11631 = vmul.f32 %v11423, %v11613
    %v11632 = vmul.f32 %v11426, %v11614
    %v11633 = vmul.f32 %v11431, %v11615
    %v11634 = vmul.f32 %v11434, %v11616
    %v11635 = vmul.f32 %v11439, %v11617
    %v11636 = vmul.f32 %v11442, %v11618
    %v11637 = vmul.f32 %v11447, %v11619
    %v11638 = vmul.f32 %v11450, %v11620
    %v11639 = vmul.f32 %v11455, %v11621
    %v11640 = vmul.f32 %v11458, %v11622
    %v11641 = vmul.f32 %v11463, %v11623
    %v11642 = vmul.f32 %v11466, %v11624
    %v11643 = vmul.f32 %v11471, %v11625
    %v11644 = vmul.f32 %v11474, %v11626
    %v11645 = vmul.f32 %v11479, %v11627
    %v11646 = vmul.f32 %v11482, %v11628
    %v11647 = vpack.c.bf16 %v11630, %v11629
    %v11648 = vpack.c.bf16 %v11632, %v11631
    %v11649 = vpack.c.bf16 %v11634, %v11633
    %v11650 = vpack.c.bf16 %v11636, %v11635
    %v11651 = vpack.c.bf16 %v11638, %v11637
    %v11652 = vpack.c.bf16 %v11640, %v11639
    %v11653 = vpack.c.bf16 %v11642, %v11641
    %v11654 = vpack.c.bf16 %v11644, %v11643
    %v11655 = vpack.c.bf16 %v11646, %v11645
    %s11656 = scalar_lea.vmem %s14, 8
    %v11657 = vld [vmem:[%s11656] sm:$0xf]
    %v11658 = vld [vmem:[%s11656 + $0x4] sm:$0xf]
    %s11659 = scalar_lea.vmem %s15, 1
    %v11660 = vld [vmem:[%s11659] sm:$0x1]
    %v11662 = vlaneseq
    %v11663 = vshrl.u32 %v11662, 7
    %v11664 = vsub.s32 0, %v11663
    %v11665 = vrot.slane %v11660, %v11664
    %v11669 = vunpack.c.l.b16 %v11657
    %v11670 = vunpack.c.l.b16 %v11658
    %v11671 = vpack.c.b16 %v11670, %v11669
    %v11674 = vsel %vm674, %v11647, 0
    %v11677 = vsel %vm674, %v11648, 0
    %v11680 = vsel %vm674, %v11649, 0
    %v11683 = vsel %vm674, %v11650, 0
    %v11686 = vsel %vm674, %v11651, 0
    %v11689 = vsel %vm674, %v11652, 0
    %v11692 = vsel %vm674, %v11653, 0
    %v11695 = vsel %vm674, %v11654, 0
    %v11698 = vsel %vm674, %v11655, 0
    %11700 = vmatprep.subr.bf16.mxu0 0
    %11701 = vmatpush1.bf16.msra.mxu0 %v11671
    %11702 = vmatprep.subr.bf16.mxu0 0
    %11703 = vmatpush1.bf16.msra.mxu0 0
    %11704 = vmatprep.subr.bf16.mxu0 0
    %11705 = vmatpush1.bf16.msra.mxu0 0
    %11706 = vmatprep.subr.bf16.mxu0 0
    %11707 = vmatpush1.bf16.msra.mxu0 0
    %11708 = vmatprep.subr.bf16.mxu0 0
    %11709 = vmatpush1.bf16.msra.mxu0 0
    %11710 = vmatprep.subr.bf16.mxu0 0
    %11711 = vmatpush1.bf16.msra.mxu0 0
    %11712 = vmatprep.subr.bf16.mxu0 0
    %11713 = vmatpush1.bf16.msra.mxu0 0
    %11714 = vmatprep.subr.bf16.mxu0 0
    %11715 = vmatpush1.bf16.msra.mxu0 0
    %11716 = vmatprep.subr.bf16.mxu0 0
    %11717 = vmatpush1.bf16.msra.mxu0 0
    %11718 = vmatprep.subr.bf16.mxu0 0
    %11719 = vmatpush1.bf16.msra.mxu0 0
    %11720 = vmatprep.subr.bf16.mxu0 0
    %11721 = vmatpush1.bf16.msra.mxu0 0
    %11722 = vmatprep.subr.bf16.mxu0 0
    %11723 = vmatpush1.bf16.msra.mxu0 0
    %11724 = vmatprep.subr.bf16.mxu0 0
    %11725 = vmatpush1.bf16.msra.mxu0 0
    %11726 = vmatprep.subr.bf16.mxu0 0
    %11727 = vmatpush1.bf16.msra.mxu0 0
    %11728 = vmatprep.subr.bf16.mxu0 0
    %11729 = vmatpush1.bf16.msra.mxu0 0
    %11730 = vmatprep.subr.bf16.mxu0 0
    %11731 = vmatpush1.bf16.msra.mxu0 0
    %11732 = vmatprep.mubr.bf16.mxu0 0
    %11733 = vmatmul.mubr.bf16.gmra.mrb[0].mxu0 %v11674
    %v11734 = vpop.f32.mrb[0].mxu0
    %v11735 = vadd.f32 %v11665, %v11734
    %v11736 = vpop.f32.mrb[0].mxu0
    %v11737 = vpop.f32.mrb[0].mxu0
    %v11738 = vpop.f32.mrb[0].mxu0
    %11739 = vmatprep.mubr.bf16.mxu0 0
    %11740 = vmatmul.mubr.bf16.gmra.mrb[0].mxu0 %v11677
    %v11741 = vpop.f32.mrb[0].mxu0
    %v11742 = vpop.f32.mrb[0].mxu0
    %v11743 = vpop.f32.mrb[0].mxu0
    %v11744 = vpop.f32.mrb[0].mxu0
    %11745 = vmatprep.mubr.bf16.mxu0 0
    %11746 = vmatmul.mubr.bf16.gmra.mrb[0].mxu0 %v11680
    %v11747 = vpop.f32.mrb[0].mxu0
    %v11748 = vpop.f32.mrb[0].mxu0
    %v11749 = vpop.f32.mrb[0].mxu0
    %v11750 = vpop.f32.mrb[0].mxu0
    %11751 = vmatprep.mubr.bf16.mxu0 0
    %11752 = vmatmul.mubr.bf16.gmra.mrb[0].mxu0 %v11683
    %v11753 = vpop.f32.mrb[0].mxu0
    %v11754 = vpop.f32.mrb[0].mxu0
    %v11755 = vpop.f32.mrb[0].mxu0
    %v11756 = vpop.f32.mrb[0].mxu0
    %11757 = vmatprep.mubr.bf16.mxu0 0
    %11758 = vmatmul.mubr.bf16.gmra.mrb[0].mxu0 %v11686
    %v11759 = vpop.f32.mrb[0].mxu0
    %v11760 = vpop.f32.mrb[0].mxu0
    %v11761 = vpop.f32.mrb[0].mxu0
    %v11762 = vadd.f32 %v11665, %v11761
    %v11763 = vpop.f32.mrb[0].mxu0
    %11764 = vmatprep.mubr.bf16.mxu0 0
    %11765 = vmatmul.mubr.bf16.gmra.mrb[0].mxu0 %v11689
    %v11766 = vpop.f32.mrb[0].mxu0
    %v11767 = vpop.f32.mrb[0].mxu0
    %v11768 = vpop.f32.mrb[0].mxu0
    %v11769 = vpop.f32.mrb[0].mxu0
    %11770 = vmatprep.mubr.bf16.mxu0 0
    %11771 = vmatmul.mubr.bf16.gmra.mrb[0].mxu0 %v11692
    %v11772 = vpop.f32.mrb[0].mxu0
    %v11773 = vpop.f32.mrb[0].mxu0
    %v11774 = vpop.f32.mrb[0].mxu0
    %v11775 = vpop.f32.mrb[0].mxu0
    %11776 = vmatprep.mubr.bf16.mxu0 0
    %11777 = vmatmul.mubr.bf16.gmra.mrb[0].mxu0 %v11695
    %v11778 = vpop.f32.mrb[0].mxu0
    %v11779 = vpop.f32.mrb[0].mxu0
    %v11780 = vpop.f32.mrb[0].mxu0
    %v11781 = vpop.f32.mrb[0].mxu0
    %11782 = vmatprep.mubr.bf16.mxu0 0
    %11783 = vmatmul.mubr.bf16.gmra.mrb[0].mxu0 %v11698
    %v11784 = vpop.f32.mrb[0].mxu0
    %v11785 = vpop.f32.mrb[0].mxu0
    %v11786 = vpop.f32.mrb[0].mxu0
    %v11787 = vpop.f32.mrb[0].mxu0
    %11788 = vdwg.mxu0
    %v11789 = vmul.f32 %v11735, %v4854
    %v11790 = vmul.f32 %v11762, %v4899
    %v11791 = vadd.f32 %v11015, %v11789
    %v11792 = vadd.f32 %v11024, %v11790
    %v11794 = vrot.slane %v11792, 7
    %vm11796 = vcmask 1040384
    %v11797 = vsel %vm11796, %v11791, %v11794
    %v11798 = vld [vmem:[%s16] sm:$0x1]
    %v11799 = vld [vmem:[%s17] sm:$0x1]
    %vm11800 = vcmask 254976
    %v11801 = vsel %vm11800, %v11797, 0.0
    %11802 = vadd.xlane.f32.xlu0 %v11801
    %v11803 = vpop.xlane.xlu0 %11802
    %v11804 = vmul.f32 %v11803, %v208
    %v11805 = vsub.f32 %v11797, %v11804
    %v11806 = vmul.f32 %v11805, %v11805
    %v11807 = vsel %vm11800, %v11806, 0.0
    %11808 = vadd.xlane.f32.xlu0 %v11807
    %v11809 = vpop.xlane.xlu0 %11808
    %v11810 = vmul.f32 %v11809, %v208
    %v11811 = vadd.f32 %v11810, 1e-05
    %v11812 = vrsqrt.pop %v11811
    %v11813 = vmul.f32 %v11805, %v11812
    %v11815 = vlaneseq
    %v11816 = vshrl.u32 %v11815, 7
    %v11817 = vsub.s32 0, %v11816
    %v11818 = vrot.slane %v11798, %v11817
    %v11820 = vmul.f32 %v11813, %v11818
    %v11822 = vlaneseq
    %v11823 = vshrl.u32 %v11822, 7
    %v11824 = vsub.s32 0, %v11823
    %v11825 = vrot.slane %v11799, %v11824
    %v11827 = vadd.f32 %v11820, %v11825
    %v11828 = vld [vmem:[%s18] sm:$0xff]
    %v11829 = vld [vmem:[%s18 + $0x8] sm:$0xff]
    %v11830 = vld [vmem:[%s18 + $0x10] sm:$0xff]
    %v11831 = vld [vmem:[%s18 + $0x18] sm:$0xff]
    %v11832 = vld [vmem:[%s18 + $0x20] sm:$0xff]
    %v11833 = vld [vmem:[%s18 + $0x28] sm:$0xff]
    %v11834 = vld [vmem:[%s18 + $0x30] sm:$0xff]
    %v11835 = vld [vmem:[%s18 + $0x38] sm:$0xff]
    %v11836 = vld [vmem:[%s19] sm:$0x3]
    %v11838 = vlaneseq
    %v11839 = vshrl.u32 %v11838, 7
    %v11840 = vsub.s32 0, %v11839
    %v11841 = vrot.slane %v11836, %v11840
    %v11842 = vlaneseq
    %v11843 = vshrl.u32 %v11842, 7
    %v11844 = vsub.s32 1, %v11843
    %v11845 = vrot.slane %v11836, %v11844
    %v11849 = vsel %vm153, %v11827, 0
    %11851 = vmatprep.subr.mxu0 %v11829
    %11852 = vmatpush1.msra.mxu0 %v11828
    %11853 = vmatprep.subr.mxu0 %v11831
    %11854 = vmatpush1.msra.mxu0 %v11830
    %11855 = vmatprep.subr.mxu0 %v11833
    %11856 = vmatpush1.msra.mxu0 %v11832
    %11857 = vmatprep.subr.mxu0 %v11835
    %11858 = vmatpush1.msra.mxu0 %v11834
    %11859 = vmatprep.subr.mxu0 0.0
    %11860 = vmatpush1.msra.mxu0 0.0
    %11861 = vmatprep.subr.mxu0 0.0
    %11862 = vmatpush1.msra.mxu0 0.0
    %11863 = vmatprep.subr.mxu0 0.0
    %11864 = vmatpush1.msra.mxu0 0.0
    %11865 = vmatprep.subr.mxu0 0.0
    %11866 = vmatpush1.msra.mxu0 0.0
    %11867 = vmatprep.subr.mxu0 0.0
    %11868 = vmatpush1.msra.mxu0 0.0
    %11869 = vmatprep.subr.mxu0 0.0
    %11870 = vmatpush1.msra.mxu0 0.0
    %11871 = vmatprep.subr.mxu0 0.0
    %11872 = vmatpush1.msra.mxu0 0.0
    %11873 = vmatprep.subr.mxu0 0.0
    %11874 = vmatpush1.msra.mxu0 0.0
    %11875 = vmatprep.subr.mxu0 0.0
    %11876 = vmatpush1.msra.mxu0 0.0
    %11877 = vmatprep.subr.mxu0 0.0
    %11878 = vmatpush1.msra.mxu0 0.0
    %11879 = vmatprep.subr.mxu0 0.0
    %11880 = vmatpush1.msra.mxu0 0.0
    %11881 = vmatprep.subr.mxu0 0.0
    %11882 = vmatpush1.msra.mxu0 0.0
    %11883 = vmatprep.subr.mxu0 0.0
    %11884 = vmatpush1.msra.mxu0 0.0
    %11885 = vmatprep.subr.mxu0 0.0
    %11886 = vmatpush1.msra.mxu0 0.0
    %11887 = vmatprep.subr.mxu0 0.0
    %11888 = vmatpush1.msra.mxu0 0.0
    %11889 = vmatprep.subr.mxu0 0.0
    %11890 = vmatpush1.msra.mxu0 0.0
    %11891 = vmatprep.subr.mxu0 0.0
    %11892 = vmatpush1.msra.mxu0 0.0
    %11893 = vmatprep.subr.mxu0 0.0
    %11894 = vmatpush1.msra.mxu0 0.0
    %11895 = vmatprep.subr.mxu0 0.0
    %11896 = vmatpush1.msra.mxu0 0.0
    %11897 = vmatprep.subr.mxu0 0.0
    %11898 = vmatpush1.msra.mxu0 0.0
    %11899 = vmatprep.subr.mxu0 0.0
    %11900 = vmatpush1.msra.mxu0 0.0
    %11901 = vmatprep.subr.mxu0 0.0
    %11902 = vmatpush1.msra.mxu0 0.0
    %11903 = vmatprep.subr.mxu0 0.0
    %11904 = vmatpush1.msra.mxu0 0.0
    %11905 = vmatprep.subr.mxu0 0.0
    %11906 = vmatpush1.msra.mxu0 0.0
    %11907 = vmatprep.subr.mxu0 0.0
    %11908 = vmatpush1.msra.mxu0 0.0
    %11909 = vmatprep.subr.mxu0 0.0
    %11910 = vmatpush1.msra.mxu0 0.0
    %11911 = vmatprep.subr.mxu0 0.0
    %11912 = vmatpush1.msra.mxu0 0.0
    %11913 = vmatprep.subr.mxu0 0.0
    %11914 = vmatpush1.msra.mxu0 0.0
    %11915 = vmatprep.mubr.f32.mxu0 0.0
    %11916 = vmatmul.mubr.f32.gmra.mrb[0].mxu0 %v11849
    %v11917 = vpop.f32.mrb[0].mxu0
    %v11918 = vadd.f32 %v11841, %v11917
    %v11919 = vpop.f32.mrb[0].mxu0
    %v11920 = vadd.f32 %v11845, %v11919
    %11921 = vdwg.mxu0
    %v11922 = vmax.f32 %v11918, 0.0
    %v11923 = vmax.f32 %v11920, 0.0
    %v11924 = vld [vmem:[%s20] sm:$0xff]
    %v11925 = vld [vmem:[%s20 + $0x8] sm:$0xff]
    %v11926 = vld [vmem:[%s20 + $0x10] sm:$0xff]
    %v11927 = vld [vmem:[%s20 + $0x18] sm:$0xff]
    %v11928 = vld [vmem:[%s20 + $0x20] sm:$0xff]
    %v11929 = vld [vmem:[%s20 + $0x28] sm:$0xff]
    %v11930 = vld [vmem:[%s20 + $0x30] sm:$0xff]
    %v11931 = vld [vmem:[%s20 + $0x38] sm:$0xff]
    %v11932 = vld [vmem:[%s20 + $0x40] sm:$0xff]
    %v11933 = vld [vmem:[%s20 + $0x48] sm:$0xff]
    %v11934 = vld [vmem:[%s20 + $0x50] sm:$0xff]
    %v11935 = vld [vmem:[%s20 + $0x58] sm:$0xff]
    %v11936 = vld [vmem:[%s20 + $0x60] sm:$0xff]
    %v11937 = vld [vmem:[%s20 + $0x68] sm:$0xff]
    %v11938 = vld [vmem:[%s20 + $0x70] sm:$0xff]
    %v11939 = vld [vmem:[%s20 + $0x78] sm:$0xff]
    %v11940 = vld [vmem:[%s20 + $0x80] sm:$0xff]
    %v11941 = vld [vmem:[%s20 + $0x88] sm:$0xff]
    %v11942 = vld [vmem:[%s20 + $0x90] sm:$0xff]
    %v11943 = vld [vmem:[%s20 + $0x98] sm:$0xff]
    %v11944 = vld [vmem:[%s20 + $0xa0] sm:$0xff]
    %v11945 = vld [vmem:[%s20 + $0xa8] sm:$0xff]
    %v11946 = vld [vmem:[%s20 + $0xb0] sm:$0xff]
    %v11947 = vld [vmem:[%s20 + $0xb8] sm:$0xff]
    %v11948 = vld [vmem:[%s20 + $0xc0] sm:$0xff]
    %v11949 = vld [vmem:[%s20 + $0xc8] sm:$0xff]
    %v11950 = vld [vmem:[%s20 + $0xd0] sm:$0xff]
    %v11951 = vld [vmem:[%s20 + $0xd8] sm:$0xff]
    %v11952 = vld [vmem:[%s21] sm:$0x1]
    %v11954 = vlaneseq
    %v11955 = vshrl.u32 %v11954, 7
    %v11956 = vsub.s32 0, %v11955
    %v11957 = vrot.slane %v11952, %v11956
    %vm11959 = vcmask 785408
    %v11961 = vsel %vm11959, %v11923, 0
    %11963 = vmatprep.subr.mxu0 0.0
    %11964 = vmatpush1.msra.mxu0 %v11924
    %11965 = vmatprep.subr.mxu0 0.0
    %11966 = vmatpush1.msra.mxu0 %v11925
    %11967 = vmatprep.subr.mxu0 0.0
    %11968 = vmatpush1.msra.mxu0 %v11926
    %11969 = vmatprep.subr.mxu0 0.0
    %11970 = vmatpush1.msra.mxu0 %v11927
    %11971 = vmatprep.subr.mxu0 0.0
    %11972 = vmatpush1.msra.mxu0 %v11928
    %11973 = vmatprep.subr.mxu0 0.0
    %11974 = vmatpush1.msra.mxu0 %v11929
    %11975 = vmatprep.subr.mxu0 0.0
    %11976 = vmatpush1.msra.mxu0 %v11930
    %11977 = vmatprep.subr.mxu0 0.0
    %11978 = vmatpush1.msra.mxu0 %v11931
    %11979 = vmatprep.subr.mxu0 0.0
    %11980 = vmatpush1.msra.mxu0 %v11932
    %11981 = vmatprep.subr.mxu0 0.0
    %11982 = vmatpush1.msra.mxu0 %v11933
    %11983 = vmatprep.subr.mxu0 0.0
    %11984 = vmatpush1.msra.mxu0 %v11934
    %11985 = vmatprep.subr.mxu0 0.0
    %11986 = vmatpush1.msra.mxu0 %v11935
    %11987 = vmatprep.subr.mxu0 0.0
    %11988 = vmatpush1.msra.mxu0 %v11936
    %11989 = vmatprep.subr.mxu0 0.0
    %11990 = vmatpush1.msra.mxu0 %v11937
    %11991 = vmatprep.subr.mxu0 0.0
    %11992 = vmatpush1.msra.mxu0 %v11938
    %11993 = vmatprep.subr.mxu0 0.0
    %11994 = vmatpush1.msra.mxu0 %v11939
    %11995 = vmatprep.subr.mxu0 0.0
    %11996 = vmatpush1.msra.mxu0 %v11940
    %11997 = vmatprep.subr.mxu0 0.0
    %11998 = vmatpush1.msra.mxu0 %v11941
    %11999 = vmatprep.subr.mxu0 0.0
    %12000 = vmatpush1.msra.mxu0 %v11942
    %12001 = vmatprep.subr.mxu0 0.0
    %12002 = vmatpush1.msra.mxu0 %v11943
    %12003 = vmatprep.subr.mxu0 0.0
    %12004 = vmatpush1.msra.mxu0 %v11944
    %12005 = vmatprep.subr.mxu0 0.0
    %12006 = vmatpush1.msra.mxu0 %v11945
    %12007 = vmatprep.subr.mxu0 0.0
    %12008 = vmatpush1.msra.mxu0 %v11946
    %12009 = vmatprep.subr.mxu0 0.0
    %12010 = vmatpush1.msra.mxu0 %v11947
    %12011 = vmatprep.subr.mxu0 0.0
    %12012 = vmatpush1.msra.mxu0 %v11948
    %12013 = vmatprep.subr.mxu0 0.0
    %12014 = vmatpush1.msra.mxu0 %v11949
    %12015 = vmatprep.subr.mxu0 0.0
    %12016 = vmatpush1.msra.mxu0 %v11950
    %12017 = vmatprep.subr.mxu0 0.0
    %12018 = vmatpush1.msra.mxu0 %v11951
    %12019 = vmatprep.subr.mxu0 0.0
    %12020 = vmatpush1.msra.mxu0 0.0
    %12021 = vmatprep.subr.mxu0 0.0
    %12022 = vmatpush1.msra.mxu0 0.0
    %12023 = vmatprep.subr.mxu0 0.0
    %12024 = vmatpush1.msra.mxu0 0.0
    %12025 = vmatprep.subr.mxu0 0.0
    %12026 = vmatpush1.msra.mxu0 0.0
    %12027 = vmatprep.mubr.f32.mxu0 %v11961
    %12028 = vmatmul.mubr.f32.gmra.mrb[0].mxu0 %v11922
    %v12029 = vpop.f32.mrb[0].mxu0
    %v12030 = vadd.f32 %v11957, %v12029
    %v12031 = vpop.f32.mrb[0].mxu0
    %12032 = vdwg.mxu0
    %v12033 = vmax.f32 %v12030, 0.0
    %v12034 = vld [vmem:[%s22] sm:$0xff]
    %v12035 = vld [vmem:[%s22 + $0x8] sm:$0xff]
    %v12036 = vld [vmem:[%s22 + $0x10] sm:$0xff]
    %v12037 = vld [vmem:[%s22 + $0x18] sm:$0xff]
    %v12038 = vld [vmem:[%s23] sm:$0x1]
    %v12040 = vlaneseq
    %v12041 = vshrl.u32 %v12040, 7
    %v12042 = vsub.s32 0, %v12041
    %v12043 = vrot.slane %v12038, %v12042
    %v12046 = vsel %vm153, %v12033, 0
    %12048 = vmatprep.subr.mxu0 0.0
    %12049 = vmatpush1.msra.mxu0 %v12034
    %12050 = vmatprep.subr.mxu0 0.0
    %12051 = vmatpush1.msra.mxu0 %v12035
    %12052 = vmatprep.subr.mxu0 0.0
    %12053 = vmatpush1.msra.mxu0 %v12036
    %12054 = vmatprep.subr.mxu0 0.0
    %12055 = vmatpush1.msra.mxu0 %v12037
    %12056 = vmatprep.subr.mxu0 0.0
    %12057 = vmatpush1.msra.mxu0 0.0
    %12058 = vmatprep.subr.mxu0 0.0
    %12059 = vmatpush1.msra.mxu0 0.0
    %12060 = vmatprep.subr.mxu0 0.0
    %12061 = vmatpush1.msra.mxu0 0.0
    %12062 = vmatprep.subr.mxu0 0.0
    %12063 = vmatpush1.msra.mxu0 0.0
    %12064 = vmatprep.subr.mxu0 0.0
    %12065 = vmatpush1.msra.mxu0 0.0
    %12066 = vmatprep.subr.mxu0 0.0
    %12067 = vmatpush1.msra.mxu0 0.0
    %12068 = vmatprep.subr.mxu0 0.0
    %12069 = vmatpush1.msra.mxu0 0.0
    %12070 = vmatprep.subr.mxu0 0.0
    %12071 = vmatpush1.msra.mxu0 0.0
    %12072 = vmatprep.subr.mxu0 0.0
    %12073 = vmatpush1.msra.mxu0 0.0
    %12074 = vmatprep.subr.mxu0 0.0
    %12075 = vmatpush1.msra.mxu0 0.0
    %12076 = vmatprep.subr.mxu0 0.0
    %12077 = vmatpush1.msra.mxu0 0.0
    %12078 = vmatprep.subr.mxu0 0.0
    %12079 = vmatpush1.msra.mxu0 0.0
    %12080 = vmatprep.subr.mxu0 0.0
    %12081 = vmatpush1.msra.mxu0 0.0
    %12082 = vmatprep.subr.mxu0 0.0
    %12083 = vmatpush1.msra.mxu0 0.0
    %12084 = vmatprep.subr.mxu0 0.0
    %12085 = vmatpush1.msra.mxu0 0.0
    %12086 = vmatprep.subr.mxu0 0.0
    %12087 = vmatpush1.msra.mxu0 0.0
    %12088 = vmatprep.subr.mxu0 0.0
    %12089 = vmatpush1.msra.mxu0 0.0
    %12090 = vmatprep.subr.mxu0 0.0
    %12091 = vmatpush1.msra.mxu0 0.0
    %12092 = vmatprep.subr.mxu0 0.0
    %12093 = vmatpush1.msra.mxu0 0.0
    %12094 = vmatprep.subr.mxu0 0.0
    %12095 = vmatpush1.msra.mxu0 0.0
    %12096 = vmatprep.subr.mxu0 0.0
    %12097 = vmatpush1.msra.mxu0 0.0
    %12098 = vmatprep.subr.mxu0 0.0
    %12099 = vmatpush1.msra.mxu0 0.0
    %12100 = vmatprep.subr.mxu0 0.0
    %12101 = vmatpush1.msra.mxu0 0.0
    %12102 = vmatprep.subr.mxu0 0.0
    %12103 = vmatpush1.msra.mxu0 0.0
    %12104 = vmatprep.subr.mxu0 0.0
    %12105 = vmatpush1.msra.mxu0 0.0
    %12106 = vmatprep.subr.mxu0 0.0
    %12107 = vmatpush1.msra.mxu0 0.0
    %12108 = vmatprep.subr.mxu0 0.0
    %12109 = vmatpush1.msra.mxu0 0.0
    %12110 = vmatprep.subr.mxu0 0.0
    %12111 = vmatpush1.msra.mxu0 0.0
    %12112 = vmatprep.mubr.f32.mxu0 0.0
    %12113 = vmatmul.mubr.f32.gmra.mrb[0].mxu0 %v12046
    %v12114 = vpop.f32.mrb[0].mxu0
    %v12115 = vadd.f32 %v12043, %v12114
    %v12116 = vpop.f32.mrb[0].mxu0
    %12117 = vdwg.mxu0
    %12118 = vst [vmem:[#allocation2] sm:$0x3] %v12115
    // Predicated region
    $region98: #{tpu_custom_call.1} parent=1 // pred_check
      _
    $region99: #{tpu_custom_call.1} parent=1 // pred_check_branch
      %12120 = sbr.rel (0) target = $region101
    $region100: #{tpu_custom_call.1} parent=1 // pred_region
      %s12122 = ssub.s32 32, 32
      %12123 = vsyncadd [#allocation3], %s12122
      %s12125 = sshll.u32 [#allocation2], 4
      %s12126 = int_to_ptr.vmem [resolvable:$true] %s12125
      %12128 = dma.vmem_to_hbm [thread:$0]  %s12126, 32, %s24, [#allocation3]
    $region101: #{tpu_custom_call.1} parent=1 // pred_fallthru
      _
    // Predicated region
    $region102: #{tpu_custom_call.1} parent=1 // pred_check
      _
    $region103: #{tpu_custom_call.1} parent=1 // pred_check_branch
      %12130 = sbr.rel (0) target = $region105
    $region104: #{tpu_custom_call.1} parent=1 // pred_region
      %12131 = dma.done [#allocation3], 32
    $region105: #{tpu_custom_call.1} parent=1 // pred_fallthru
      _
    %12132 = vsyncpa [#allocation3], 1

</llo_original>
